<compile_context>
chip_gen: v5e
topology: v5e:2x2
jax: 0.10.0
libtpu: 0.0.40
codegen_flags: <defaults>
</compile_context>

<pallas_src>
import jax
import jax.numpy as jnp
import numpy as np
from jax.experimental import pallas as pl
from jax.experimental.pallas import tpu as pltpu

_LANE = 128
_BN_EPS = 1e-5


def _round_up(x, m):
    return (x + m - 1) // m * m


_VMEM_LIMIT = None


def _vmem_limit_bytes():
    """Per-generation VMEM budget (v5e/v6e: 128 MiB physical, v7x: 64 MiB)."""
    global _VMEM_LIMIT
    if _VMEM_LIMIT is None:
        cap = 64 * 1024 * 1024
        try:
            cap = int(getattr(pltpu.get_tpu_info(), "vmem_capacity_bytes", cap))
        except Exception:
            pass
        _VMEM_LIMIT = min(max(32 * 1024 * 1024, (3 * cap) // 4),
                          100 * 1024 * 1024)
    return _VMEM_LIMIT


# ------------------------------ kernel helpers ------------------------------
def _fill_padded(pad_ref, interior):
    """Write the conv interior and zero ONLY the 1-pixel border."""
    _, hp, wp, c = pad_ref.shape
    h, w = hp - 2, wp - 2
    pad_ref[:, 1:h + 1, 1:w + 1, :] = interior
    zrow = jnp.zeros((1, 1, wp, c), pad_ref.dtype)
    pad_ref[:, 0:1, :, :] = zrow
    pad_ref[:, h + 1:h + 2, :, :] = zrow
    zcol = jnp.zeros((1, h, 1, c), pad_ref.dtype)
    pad_ref[:, 1:h + 1, 0:1, :] = zcol
    pad_ref[:, 1:h + 1, w + 1:w + 2, :] = zcol


def _conv3x3(xpad_ref, w_ref):
    """3x3 conv (spatial pad already in VMEM) via accumulating MXU matmuls.

    xpad_ref: (1, H+2, W+2, Ci) bf16
    w_ref:    (9*Ci, Co)        bf16, rows ordered (ky*3 + kx)*Ci + ci
    returns:  (H*W, Co)         f32

    Never materialises the (M, 9*Ci) im2col patch:
      * tiny Ci (9*Ci <= 128, first UNet block): one matmul per tap (K = Ci),
        input channels left unpadded in HBM.
      * wide Ci: one matmul per kernel row over a transient (M, 3*Ci) slab
        (K = 3*Ci >= 384 keeps the 256-deep v6e/v7x MXU full).
    """
    _, hp, wp, ci = xpad_ref.shape
    h, w = hp - 2, wp - 2
    m = h * w

    def tap(ky, kx):
        return xpad_ref[:, ky:ky + h, kx:kx + w, :].reshape(m, ci)

    acc = jnp.zeros((m, w_ref.shape[-1]), jnp.float32)
    if 9 * ci <= _LANE:
        for ky in range(3):
            for kx in range(3):
                t = ky * 3 + kx
                acc = acc + jnp.dot(tap(ky, kx),
                                    w_ref[t * ci:(t + 1) * ci, :],
                                    preferred_element_type=jnp.float32)
        return acc
    for ky in range(3):
        # Lane-aligned concat of 3 taps (ci is a multiple of 128 here).
        slab = jnp.concatenate([tap(ky, 0), tap(ky, 1), tap(ky, 2)], axis=-1)
        acc = acc + jnp.dot(slab, w_ref[ky * 3 * ci:(ky + 1) * 3 * ci, :],
                            preferred_element_type=jnp.float32)
    return acc


def _write_stats(stats_ref, acc):
    """Per-sample channel mean + centered sum of squares (two-pass, f32)."""
    m, co = acc.shape
    mean = jnp.sum(acc, axis=0, keepdims=True) * (1.0 / m)       # (1, Co)
    d = acc - mean
    css = jnp.sum(d * d, axis=0, keepdims=True)                  # (1, Co)
    stats_ref[:, 0:1, :] = mean.reshape(1, 1, co)
    stats_ref[:, 1:2, :] = css.reshape(1, 1, co)


# --------------------------------- kernels -----------------------------------
def _stage1_kernel(x_ref, w_ref, y_ref, stats_ref, xpad_ref):
    """Per-sample: conv1 (bias-free) + BN1 batch statistics."""
    _fill_padded(xpad_ref, x_ref[...].astype(xpad_ref.dtype))
    acc = _conv3x3(xpad_ref, w_ref)                  # (H*W, Cp) f32
    y_ref[...] = acc.reshape(y_ref.shape)
    _write_stats(stats_ref, acc)


def _stage2_kernel(y1_ref, scale_ref, shift_ref, w_ref, y_ref, stats_ref,
                   ypad_ref):
    """Per-sample: BN1 affine + ReLU (f32) -> conv2 + BN2 batch statistics."""
    _, h, w, c = y1_ref.shape
    a = jnp.maximum(y1_ref[...].reshape(h * w, c) * scale_ref[...]
                    + shift_ref[...], 0.0)           # stage-1 activation, f32
    _fill_padded(ypad_ref, a.reshape(1, h, w, c).astype(ypad_ref.dtype))
    acc = _conv3x3(ypad_ref, w_ref)
    y_ref[...] = acc.reshape(y_ref.shape)
    _write_stats(stats_ref, acc)


def _affine_relu_kernel(y_ref, scale_ref, shift_ref, o_ref):
    """Per-sample: BN2 affine + ReLU -> final output."""
    _, h, w, c = y_ref.shape
    o = jnp.maximum(y_ref[...].reshape(h * w, c) * scale_ref[...]
                    + shift_ref[...], 0.0)
    o_ref[...] = o.reshape(o_ref.shape).astype(o_ref.dtype)


# --------------------------------- wrapper ------------------------------------
def _bn_scale_shift(stats, count_per_sample, gamma, beta):
    """Combine per-sample (mean, centered-SS) -> global BN scale/shift.

    Chan's parallel-variance combine; biased variance (PyTorch training mode).
    """
    means = stats[:, 0, :]                           # (N, Cp)
    css = stats[:, 1, :]                             # (N, Cp)
    mean = jnp.mean(means, axis=0)                   # equal counts per sample
    m2 = jnp.sum(css, axis=0) + count_per_sample * jnp.sum(
        (means - mean) ** 2, axis=0)
    var = m2 / (count_per_sample * stats.shape[0])
    inv_std = jax.lax.rsqrt(var + _BN_EPS)
    scale = gamma * inv_std
    shift = beta - mean * scale
    return scale.reshape(1, -1), shift.reshape(1, -1)


def double_conv(x_nchw, params):
    """DoubleConv forward.  Input/output NCHW f32 (PyTorch convention)."""
    n, cin, h, w = x_nchw.shape
    cout = params["w1"].shape[-1]
    cp = _round_up(cout, _LANE)
    hw = h * w

    # NCHW -> NHWC (channels on the lane axis).  Tiny Cin (9*Cin <= 128) stays
    # unpadded; wide Cin is lane-padded so per-ky concat / matmul stay aligned.
    x = jnp.transpose(x_nchw, (0, 2, 3, 1)).astype(jnp.float32)
    if 9 * cin <= _LANE:
        cin_k = cin
    else:
        cin_k = _round_up(cin, _LANE)
        x = jnp.pad(x, ((0, 0), (0, 0), (0, 0), (0, cin_k - cin)))

    # Conv weights -> im2col row order (ky*3+kx)*Ci + ci, out-channels padded
    # to the 128-lane width, bf16 MXU operands.  The Conv2d bias is dropped:
    # a per-channel constant before training-mode BatchNorm cancels in y-mean.
    w1 = jnp.pad(params["w1"],
                 ((0, 0), (0, 0), (0, cin_k - cin), (0, cp - cout)))
    w1 = w1.reshape(9 * cin_k, cp).astype(jnp.bfloat16)
    w2 = jnp.pad(params["w2"],
                 ((0, 0), (0, 0), (0, cp - cout), (0, cp - cout)))
    w2 = w2.reshape(9 * cp, cp).astype(jnp.bfloat16)

    def _pad_vec(v):
        return jnp.pad(v.astype(jnp.float32), (0, cp - cout))

    g1, be1 = _pad_vec(params["g1"]), _pad_vec(params["beta1"])
    g2, be2 = _pad_vec(params["g2"]), _pad_vec(params["beta2"])

    cparams = pltpu.CompilerParams(
        dimension_semantics=("parallel",),   # shards N across v7x's 2 TCs
        vmem_limit_bytes=_vmem_limit_bytes())

    def per_sample(c):
        return pl.BlockSpec((1, h, w, c), lambda b: (b, 0, 0, 0))

    def shared(shape):
        return pl.BlockSpec(shape, lambda b: (0,) * len(shape))

    stats_spec = pl.BlockSpec((1, 2, cp), lambda b: (b, 0, 0))
    act_shape = jax.ShapeDtypeStruct((n, h, w, cp), jnp.float32)
    stats_shape = jax.ShapeDtypeStruct((n, 2, cp), jnp.float32)

    # ---- pass 1: conv1 + per-sample BN1 statistics ---------------------------
    y1, st1 = pl.pallas_call(
        _stage1_kernel,
        grid_spec=pltpu.PrefetchScalarGridSpec(
            num_scalar_prefetch=0, grid=(n,),
            in_specs=[per_sample(cin_k), shared((9 * cin_k, cp))],
            out_specs=(per_sample(cp), stats_spec),
            scratch_shapes=[pltpu.VMEM((1, h + 2, w + 2, cin_k), jnp.bfloat16)]),
        out_shape=(act_shape, stats_shape),
        compiler_params=cparams,
    )(x, w1)

    scale1, shift1 = _bn_scale_shift(st1, hw, g1, be1)

    # ---- pass 2: BN1 affine + ReLU + conv2 + per-sample BN2 statistics -------
    y2, st2 = pl.pallas_call(
        _stage2_kernel,
        grid_spec=pltpu.PrefetchScalarGridSpec(
            num_scalar_prefetch=0, grid=(n,),
            in_specs=[per_sample(cp), shared((1, cp)), shared((1, cp)),
                      shared((9 * cp, cp))],
            out_specs=(per_sample(cp), stats_spec),
            scratch_shapes=[pltpu.VMEM((1, h + 2, w + 2, cp), jnp.bfloat16)]),
        out_shape=(act_shape, stats_shape),
        compiler_params=cparams,
    )(y1, scale1, shift1, w2)

    scale2, shift2 = _bn_scale_shift(st2, hw, g2, be2)

    # ---- pass 3: BN2 affine + ReLU -------------------------------------------
    out = pl.pallas_call(
        _affine_relu_kernel,
        grid_spec=pltpu.PrefetchScalarGridSpec(
            num_scalar_prefetch=0, grid=(n,),
            in_specs=[per_sample(cp), shared((1, cp)), shared((1, cp))],
            out_specs=per_sample(cp)),
        out_shape=act_shape,
        compiler_params=cparams,
    )(y2, scale2, shift2)

    # Drop channel lane-padding, back to NCHW.
    return jnp.transpose(out[:, :, :, :cout], (0, 3, 1, 2))


# ------------------------ pure-JAX reference (sanity) ------------------------
def _ref_stage(x_nhwc, w_hwio, b, gamma, beta, quantize):
    if quantize:  # mimic the kernel's bf16 MXU operands (f32 accumulation)
        x_nhwc = x_nhwc.astype(jnp.bfloat16).astype(jnp.float32)
        w_hwio = w_hwio.astype(jnp.bfloat16).astype(jnp.float32)
    y = jax.lax.conv_general_dilated(
        x_nhwc, w_hwio, window_strides=(1, 1), padding=((1, 1), (1, 1)),
        dimension_numbers=("NHWC", "HWIO", "NHWC"),
        precision=jax.lax.Precision.HIGHEST)
    y = y + b.reshape(1, 1, 1, -1)  # bias cancels in BN; kept to verify that
    mean = jnp.mean(y, axis=(0, 1, 2), keepdims=True)
    var = jnp.mean((y - mean) ** 2, axis=(0, 1, 2), keepdims=True)
    y = (y - mean) * jax.lax.rsqrt(var + _BN_EPS)
    y = y * gamma.reshape(1, 1, 1, -1) + beta.reshape(1, 1, 1, -1)
    return jnp.maximum(y, 0.0)


def double_conv_ref(x_nchw, params, quantize=False):
    x = jnp.transpose(x_nchw, (0, 2, 3, 1))
    x = _ref_stage(x, params["w1"], params["b1"], params["g1"],
                   params["beta1"], quantize)
    x = _ref_stage(x, params["w2"], params["b2"], params["g2"],
                   params["beta2"], quantize)
    return jnp.transpose(x, (0, 3, 1, 2))


def init_params(key, in_channels, out_channels):
    k1, k2, k3, k4 = jax.random.split(key, 4)
    fan1 = in_channels * 9
    fan2 = out_channels * 9
    return {
        "w1": jax.random.normal(k1, (3, 3, in_channels, out_channels),
                                jnp.float32) / np.sqrt(fan1),
        "b1": jax.random.normal(k2, (out_channels,), jnp.float32) * 0.01,
        "g1": jnp.ones((out_channels,), jnp.float32),      # BN weight
        "beta1": jnp.zeros((out_channels,), jnp.float32),  # BN bias
        "w2": jax.random.normal(k3, (3, 3, out_channels, out_channels),
                                jnp.float32) / np.sqrt(fan2),
        "b2": jax.random.normal(k4, (out_channels,), jnp.float32) * 0.01,
        "g2": jnp.ones((out_channels,), jnp.float32),
        "beta2": jnp.zeros((out_channels,), jnp.float32),
    }


if __name__ == "__main__":
    key = jax.random.PRNGKey(0)
    kx, kp = jax.random.split(key)

    batch, in_channels, out_channels, spatial = 2, 4, 8, 16
    x = jax.random.normal(kx, (batch, in_channels, spatial, spatial),
                          jnp.float32)
    params = init_params(kp, in_channels, out_channels)

    out = jax.block_until_ready(jax.jit(double_conv)(x, params))
    assert out.shape == (batch, out_channels, spatial, spatial)

    # Tight check vs a reference with the same bf16 operand quantisation.
    ref_q = jax.block_until_ready(double_conv_ref(x, params, quantize=True))
    np.testing.assert_allclose(np.asarray(out), np.asarray(ref_q),
                               rtol=1e-2, atol=1e-2)

    # Loose check vs the full-f32 reference (bf16 MXU-operand rounding only).
    ref = jax.block_until_ready(double_conv_ref(x, params, quantize=False))
    np.testing.assert_allclose(np.asarray(out), np.asarray(ref),
                               rtol=3e-2, atol=4e-2)

    print("KERNEL_OK")
</pallas_src>

<mosaic_0001>
module attributes {stable_mosaic.version = 11 : i64} {
  func.func @_stage1_kernel(%arg0: i32, %arg1: memref<1x16x16x4xf32, #tpu.memory_space<vmem>>, %arg2: memref<36x128xbf16, #tpu.memory_space<vmem>>, %arg3: memref<1x16x16x128xf32, #tpu.memory_space<vmem>>, %arg4: memref<1x2x128xf32, #tpu.memory_space<vmem>>, %arg5: memref<1x18x18x4xbf16, #tpu.memory_space<vmem>>) attributes {dimension_semantics = [#tpu.dimension_semantics<parallel>], iteration_bounds = array<i64: 2>, scalar_prefetch = 0 : i64, scratch_operands = 1 : i64, tpu.core_type = #tpu.core_type<tc>, window_params = [{transform_indices = @transform_0, window_bounds = array<i64: 1, 16, 16, 4>}, {pipeline_mode = #tpu.pipeline_mode<synchronous>, transform_indices = @transform_1, window_bounds = array<i64: 36, 128>}, {transform_indices = @transform_2, window_bounds = array<i64: 1, 16, 16, 128>}, {transform_indices = @transform_3, window_bounds = array<i64: 1, 2, 128>}]} {
    %c0 = arith.constant 0 : index
    %c0_0 = arith.constant 0 : index
    %c0_1 = arith.constant 0 : index
    %c0_2 = arith.constant 0 : index
    %0 = vector.load %arg1[%c0, %c0_0, %c0_1, %c0_2] : memref<1x16x16x4xf32, #tpu.memory_space<vmem>>, vector<1x16x16x4xf32>
    %1 = arith.truncf %0 : vector<1x16x16x4xf32> to vector<1x16x16x4xbf16>
    %c0_3 = arith.constant 0 : index
    %c1 = arith.constant 1 : index
    %c1_4 = arith.constant 1 : index
    %c0_5 = arith.constant 0 : index
    %2 = vector.load %arg5[%c0_3, %c1, %c1_4, %c0_5] : memref<1x18x18x4xbf16, #tpu.memory_space<vmem>>, vector<1x16x16x4xbf16>
    tpu.vector_store %arg5[%c0_3, %c1, %c1_4, %c0_5], %1 {strides = array<i32>} : memref<1x18x18x4xbf16, #tpu.memory_space<vmem>>, vector<1x16x16x4xbf16>,
    %cst = arith.constant 0.000000e+00 : bf16
    %3 = vector.broadcast %cst : bf16 to vector<1x1x18x4xbf16>
    %c0_6 = arith.constant 0 : index
    %c0_7 = arith.constant 0 : index
    %c0_8 = arith.constant 0 : index
    %c0_9 = arith.constant 0 : index
    %4 = vector.load %arg5[%c0_6, %c0_7, %c0_8, %c0_9] : memref<1x18x18x4xbf16, #tpu.memory_space<vmem>>, vector<1x1x18x4xbf16>
    tpu.vector_store %arg5[%c0_6, %c0_7, %c0_8, %c0_9], %3 {strides = array<i32>} : memref<1x18x18x4xbf16, #tpu.memory_space<vmem>>, vector<1x1x18x4xbf16>,
    %c0_10 = arith.constant 0 : index
    %c17 = arith.constant 17 : index
    %c0_11 = arith.constant 0 : index
    %c0_12 = arith.constant 0 : index
    %5 = vector.load %arg5[%c0_10, %c17, %c0_11, %c0_12] : memref<1x18x18x4xbf16, #tpu.memory_space<vmem>>, vector<1x1x18x4xbf16>
    tpu.vector_store %arg5[%c0_10, %c17, %c0_11, %c0_12], %3 {strides = array<i32>} : memref<1x18x18x4xbf16, #tpu.memory_space<vmem>>, vector<1x1x18x4xbf16>,
    %cst_13 = arith.constant 0.000000e+00 : bf16
    %6 = vector.broadcast %cst_13 : bf16 to vector<1x16x1x4xbf16>
    %c0_14 = arith.constant 0 : index
    %c1_15 = arith.constant 1 : index
    %c0_16 = arith.constant 0 : index
    %c0_17 = arith.constant 0 : index
    %7 = vector.load %arg5[%c0_14, %c1_15, %c0_16, %c0_17] : memref<1x18x18x4xbf16, #tpu.memory_space<vmem>>, vector<1x16x1x4xbf16>
    tpu.vector_store %arg5[%c0_14, %c1_15, %c0_16, %c0_17], %6 {strides = array<i32>} : memref<1x18x18x4xbf16, #tpu.memory_space<vmem>>, vector<1x16x1x4xbf16>,
    %c0_18 = arith.constant 0 : index
    %c1_19 = arith.constant 1 : index
    %c17_20 = arith.constant 17 : index
    %c0_21 = arith.constant 0 : index
    %8 = vector.load %arg5[%c0_18, %c1_19, %c17_20, %c0_21] : memref<1x18x18x4xbf16, #tpu.memory_space<vmem>>, vector<1x16x1x4xbf16>
    tpu.vector_store %arg5[%c0_18, %c1_19, %c17_20, %c0_21], %6 {strides = array<i32>} : memref<1x18x18x4xbf16, #tpu.memory_space<vmem>>, vector<1x16x1x4xbf16>,
    %cst_22 = arith.constant 0.000000e+00 : f32
    %9 = vector.broadcast %cst_22 : f32 to vector<256x128xf32>
    %c0_23 = arith.constant 0 : index
    %c0_24 = arith.constant 0 : index
    %c0_25 = arith.constant 0 : index
    %c0_26 = arith.constant 0 : index
    %10 = vector.load %arg5[%c0_23, %c0_24, %c0_25, %c0_26] : memref<1x18x18x4xbf16, #tpu.memory_space<vmem>>, vector<1x16x16x4xbf16>
    %11 = vector.shape_cast %10 : vector<1x16x16x4xbf16> to vector<256x4xbf16>
    %c0_27 = arith.constant 0 : index
    %c0_28 = arith.constant 0 : index
    %12 = vector.load %arg2[%c0_27, %c0_28] : memref<36x128xbf16, #tpu.memory_space<vmem>>, vector<4x128xbf16>
    %cst_29 = arith.constant dense<0.000000e+00> : vector<256x128xf32>
    %13 = tpu.matmul %11, %12, %cst_29 {dimension_numbers = #tpu.dot_dimension_numbers<[1], [0], [0], [1], [0, 0, 1, 1], [], []>} : vector<256x4xbf16>, vector<4x128xbf16>, vector<256x128xf32> -> vector<256x128xf32>
    %14 = arith.addf %9, %13 : vector<256x128xf32>
    %c0_30 = arith.constant 0 : index
    %c0_31 = arith.constant 0 : index
    %c1_32 = arith.constant 1 : index
    %c0_33 = arith.constant 0 : index
    %15 = vector.load %arg5[%c0_30, %c0_31, %c1_32, %c0_33] : memref<1x18x18x4xbf16, #tpu.memory_space<vmem>>, vector<1x16x16x4xbf16>
    %16 = vector.shape_cast %15 : vector<1x16x16x4xbf16> to vector<256x4xbf16>
    %c4 = arith.constant 4 : index
    %c0_34 = arith.constant 0 : index
    %17 = vector.load %arg2[%c4, %c0_34] : memref<36x128xbf16, #tpu.memory_space<vmem>>, vector<4x128xbf16>
    %cst_35 = arith.constant dense<0.000000e+00> : vector<256x128xf32>
    %18 = tpu.matmul %16, %17, %cst_35 {dimension_numbers = #tpu.dot_dimension_numbers<[1], [0], [0], [1], [0, 0, 1, 1], [], []>} : vector<256x4xbf16>, vector<4x128xbf16>, vector<256x128xf32> -> vector<256x128xf32>
    %19 = arith.addf %14, %18 : vector<256x128xf32>
    %c0_36 = arith.constant 0 : index
    %c0_37 = arith.constant 0 : index
    %c2 = arith.constant 2 : index
    %c0_38 = arith.constant 0 : index
    %20 = vector.load %arg5[%c0_36, %c0_37, %c2, %c0_38] : memref<1x18x18x4xbf16, #tpu.memory_space<vmem>>, vector<1x16x16x4xbf16>
    %21 = vector.shape_cast %20 : vector<1x16x16x4xbf16> to vector<256x4xbf16>
    %c8 = arith.constant 8 : index
    %c0_39 = arith.constant 0 : index
    %22 = vector.load %arg2[%c8, %c0_39] : memref<36x128xbf16, #tpu.memory_space<vmem>>, vector<4x128xbf16>
    %cst_40 = arith.constant dense<0.000000e+00> : vector<256x128xf32>
    %23 = tpu.matmul %21, %22, %cst_40 {dimension_numbers = #tpu.dot_dimension_numbers<[1], [0], [0], [1], [0, 0, 1, 1], [], []>} : vector<256x4xbf16>, vector<4x128xbf16>, vector<256x128xf32> -> vector<256x128xf32>
    %24 = arith.addf %19, %23 : vector<256x128xf32>
    %c0_41 = arith.constant 0 : index
    %c1_42 = arith.constant 1 : index
    %c0_43 = arith.constant 0 : index
    %c0_44 = arith.constant 0 : index
    %25 = vector.load %arg5[%c0_41, %c1_42, %c0_43, %c0_44] : memref<1x18x18x4xbf16, #tpu.memory_space<vmem>>, vector<1x16x16x4xbf16>
    %26 = vector.shape_cast %25 : vector<1x16x16x4xbf16> to vector<256x4xbf16>
    %c12 = arith.constant 12 : index
    %c0_45 = arith.constant 0 : index
    %27 = vector.load %arg2[%c12, %c0_45] : memref<36x128xbf16, #tpu.memory_space<vmem>>, vector<4x128xbf16>
    %cst_46 = arith.constant dense<0.000000e+00> : vector<256x128xf32>
    %28 = tpu.matmul %26, %27, %cst_46 {dimension_numbers = #tpu.dot_dimension_numbers<[1], [0], [0], [1], [0, 0, 1, 1], [], []>} : vector<256x4xbf16>, vector<4x128xbf16>, vector<256x128xf32> -> vector<256x128xf32>
    %29 = arith.addf %24, %28 : vector<256x128xf32>
    %c0_47 = arith.constant 0 : index
    %c1_48 = arith.constant 1 : index
    %c1_49 = arith.constant 1 : index
    %c0_50 = arith.constant 0 : index
    %30 = vector.load %arg5[%c0_47, %c1_48, %c1_49, %c0_50] : memref<1x18x18x4xbf16, #tpu.memory_space<vmem>>, vector<1x16x16x4xbf16>
    %31 = vector.shape_cast %30 : vector<1x16x16x4xbf16> to vector<256x4xbf16>
    %c16 = arith.constant 16 : index
    %c0_51 = arith.constant 0 : index
    %32 = vector.load %arg2[%c16, %c0_51] : memref<36x128xbf16, #tpu.memory_space<vmem>>, vector<4x128xbf16>
    %cst_52 = arith.constant dense<0.000000e+00> : vector<256x128xf32>
    %33 = tpu.matmul %31, %32, %cst_52 {dimension_numbers = #tpu.dot_dimension_numbers<[1], [0], [0], [1], [0, 0, 1, 1], [], []>} : vector<256x4xbf16>, vector<4x128xbf16>, vector<256x128xf32> -> vector<256x128xf32>
    %34 = arith.addf %29, %33 : vector<256x128xf32>
    %c0_53 = arith.constant 0 : index
    %c1_54 = arith.constant 1 : index
    %c2_55 = arith.constant 2 : index
    %c0_56 = arith.constant 0 : index
    %35 = vector.load %arg5[%c0_53, %c1_54, %c2_55, %c0_56] : memref<1x18x18x4xbf16, #tpu.memory_space<vmem>>, vector<1x16x16x4xbf16>
    %36 = vector.shape_cast %35 : vector<1x16x16x4xbf16> to vector<256x4xbf16>
    %c20 = arith.constant 20 : index
    %c0_57 = arith.constant 0 : index
    %37 = vector.load %arg2[%c20, %c0_57] : memref<36x128xbf16, #tpu.memory_space<vmem>>, vector<4x128xbf16>
    %cst_58 = arith.constant dense<0.000000e+00> : vector<256x128xf32>
    %38 = tpu.matmul %36, %37, %cst_58 {dimension_numbers = #tpu.dot_dimension_numbers<[1], [0], [0], [1], [0, 0, 1, 1], [], []>} : vector<256x4xbf16>, vector<4x128xbf16>, vector<256x128xf32> -> vector<256x128xf32>
    %39 = arith.addf %34, %38 : vector<256x128xf32>
    %c0_59 = arith.constant 0 : index
    %c2_60 = arith.constant 2 : index
    %c0_61 = arith.constant 0 : index
    %c0_62 = arith.constant 0 : index
    %40 = vector.load %arg5[%c0_59, %c2_60, %c0_61, %c0_62] : memref<1x18x18x4xbf16, #tpu.memory_space<vmem>>, vector<1x16x16x4xbf16>
    %41 = vector.shape_cast %40 : vector<1x16x16x4xbf16> to vector<256x4xbf16>
    %c24 = arith.constant 24 : index
    %c0_63 = arith.constant 0 : index
    %42 = vector.load %arg2[%c24, %c0_63] : memref<36x128xbf16, #tpu.memory_space<vmem>>, vector<4x128xbf16>
    %cst_64 = arith.constant dense<0.000000e+00> : vector<256x128xf32>
    %43 = tpu.matmul %41, %42, %cst_64 {dimension_numbers = #tpu.dot_dimension_numbers<[1], [0], [0], [1], [0, 0, 1, 1], [], []>} : vector<256x4xbf16>, vector<4x128xbf16>, vector<256x128xf32> -> vector<256x128xf32>
    %44 = arith.addf %39, %43 : vector<256x128xf32>
    %c0_65 = arith.constant 0 : index
    %c2_66 = arith.constant 2 : index
    %c1_67 = arith.constant 1 : index
    %c0_68 = arith.constant 0 : index
    %45 = vector.load %arg5[%c0_65, %c2_66, %c1_67, %c0_68] : memref<1x18x18x4xbf16, #tpu.memory_space<vmem>>, vector<1x16x16x4xbf16>
    %46 = vector.shape_cast %45 : vector<1x16x16x4xbf16> to vector<256x4xbf16>
    %c28 = arith.constant 28 : index
    %c0_69 = arith.constant 0 : index
    %47 = vector.load %arg2[%c28, %c0_69] : memref<36x128xbf16, #tpu.memory_space<vmem>>, vector<4x128xbf16>
    %cst_70 = arith.constant dense<0.000000e+00> : vector<256x128xf32>
    %48 = tpu.matmul %46, %47, %cst_70 {dimension_numbers = #tpu.dot_dimension_numbers<[1], [0], [0], [1], [0, 0, 1, 1], [], []>} : vector<256x4xbf16>, vector<4x128xbf16>, vector<256x128xf32> -> vector<256x128xf32>
    %49 = arith.addf %44, %48 : vector<256x128xf32>
    %c0_71 = arith.constant 0 : index
    %c2_72 = arith.constant 2 : index
    %c2_73 = arith.constant 2 : index
    %c0_74 = arith.constant 0 : index
    %50 = vector.load %arg5[%c0_71, %c2_72, %c2_73, %c0_74] : memref<1x18x18x4xbf16, #tpu.memory_space<vmem>>, vector<1x16x16x4xbf16>
    %51 = vector.shape_cast %50 : vector<1x16x16x4xbf16> to vector<256x4xbf16>
    %c32 = arith.constant 32 : index
    %c0_75 = arith.constant 0 : index
    %52 = vector.load %arg2[%c32, %c0_75] : memref<36x128xbf16, #tpu.memory_space<vmem>>, vector<4x128xbf16>
    %cst_76 = arith.constant dense<0.000000e+00> : vector<256x128xf32>
    %53 = tpu.matmul %51, %52, %cst_76 {dimension_numbers = #tpu.dot_dimension_numbers<[1], [0], [0], [1], [0, 0, 1, 1], [], []>} : vector<256x4xbf16>, vector<4x128xbf16>, vector<256x128xf32> -> vector<256x128xf32>
    %54 = arith.addf %49, %53 : vector<256x128xf32>
    %55 = vector.shape_cast %54 : vector<256x128xf32> to vector<1x16x16x128xf32>
    %c0_77 = arith.constant 0 : index
    %c0_78 = arith.constant 0 : index
    %c0_79 = arith.constant 0 : index
    %c0_80 = arith.constant 0 : index
    %56 = vector.load %arg3[%c0_77, %c0_78, %c0_79, %c0_80] : memref<1x16x16x128xf32, #tpu.memory_space<vmem>>, vector<1x16x16x128xf32>
    tpu.vector_store %arg3[%c0_77, %c0_78, %c0_79, %c0_80], %55 {strides = array<i32>} : memref<1x16x16x128xf32, #tpu.memory_space<vmem>>, vector<1x16x16x128xf32>,
    %cst_81 = arith.constant dense<0.000000e+00> : vector<128xf32>
    %57 = vector.multi_reduction <add>, %54, %cst_81 [0] : vector<256x128xf32> to vector<128xf32>
    %58 = vector.shape_cast %57 : vector<128xf32> to vector<1x128xf32>
    %cst_82 = arith.constant 3.906250e-03 : f32
    %59 = vector.broadcast %cst_82 : f32 to vector<1x128xf32>
    %60 = arith.mulf %58, %59 : vector<1x128xf32>
    %61 = vector.broadcast %60 : vector<1x128xf32> to vector<256x128xf32>
    %62 = arith.subf %54, %61 : vector<256x128xf32>
    %63 = arith.mulf %62, %62 : vector<256x128xf32>
    %cst_83 = arith.constant dense<0.000000e+00> : vector<128xf32>
    %64 = vector.multi_reduction <add>, %63, %cst_83 [0] : vector<256x128xf32> to vector<128xf32>
    %65 = vector.shape_cast %64 : vector<128xf32> to vector<1x128xf32>
    %66 = vector.shape_cast %60 : vector<1x128xf32> to vector<1x1x128xf32>
    %c0_84 = arith.constant 0 : index
    %c0_85 = arith.constant 0 : index
    %c0_86 = arith.constant 0 : index
    %67 = vector.load %arg4[%c0_84, %c0_85, %c0_86] : memref<1x2x128xf32, #tpu.memory_space<vmem>>, vector<1x1x128xf32>
    tpu.vector_store %arg4[%c0_84, %c0_85, %c0_86], %66 {strides = array<i32>} : memref<1x2x128xf32, #tpu.memory_space<vmem>>, vector<1x1x128xf32>,
    %68 = vector.shape_cast %65 : vector<1x128xf32> to vector<1x1x128xf32>
    %c0_87 = arith.constant 0 : index
    %c1_88 = arith.constant 1 : index
    %c0_89 = arith.constant 0 : index
    %69 = vector.load %arg4[%c0_87, %c1_88, %c0_89] : memref<1x2x128xf32, #tpu.memory_space<vmem>>, vector<1x1x128xf32>
    tpu.vector_store %arg4[%c0_87, %c1_88, %c0_89], %68 {strides = array<i32>} : memref<1x2x128xf32, #tpu.memory_space<vmem>>, vector<1x1x128xf32>,
    return
  }
  func.func @transform_0(%arg0: i32) -> (i32, i32, i32, i32) {
    %c0_i32 = arith.constant 0 : i32
    %c0_i32_0 = arith.constant 0 : i32
    %c0_i32_1 = arith.constant 0 : i32
    %c0_i32_2 = arith.constant 0 : i32
    return %arg0, %c0_i32, %c0_i32_0, %c0_i32_1 : i32, i32, i32, i32
  }
  func.func @transform_1(%arg0: i32) -> (i32, i32) {
    %c0_i32 = arith.constant 0 : i32
    %c0_i32_0 = arith.constant 0 : i32
    %c0_i32_1 = arith.constant 0 : i32
    return %c0_i32, %c0_i32_0 : i32, i32
  }
  func.func @transform_2(%arg0: i32) -> (i32, i32, i32, i32) {
    %c0_i32 = arith.constant 0 : i32
    %c0_i32_0 = arith.constant 0 : i32
    %c0_i32_1 = arith.constant 0 : i32
    %c0_i32_2 = arith.constant 0 : i32
    return %arg0, %c0_i32, %c0_i32_0, %c0_i32_1 : i32, i32, i32, i32
  }
  func.func @transform_3(%arg0: i32) -> (i32, i32, i32) {
    %c0_i32 = arith.constant 0 : i32
    %c0_i32_0 = arith.constant 0 : i32
    %c0_i32_1 = arith.constant 0 : i32
    return %arg0, %c0_i32, %c0_i32_0 : i32, i32, i32
  }
}

module attributes {stable_mosaic.version = 11 : i64} {
  func.func @_affine_relu_kernel(%arg0: i32, %arg1: memref<1x16x16x128xf32, #tpu.memory_space<vmem>>, %arg2: memref<1x128xf32, #tpu.memory_space<vmem>>, %arg3: memref<1x128xf32, #tpu.memory_space<vmem>>, %arg4: memref<1x16x16x128xf32, #tpu.memory_space<vmem>>) attributes {dimension_semantics = [#tpu.dimension_semantics<parallel>], iteration_bounds = array<i64: 2>, scalar_prefetch = 0 : i64, scratch_operands = 0 : i64, tpu.core_type = #tpu.core_type<tc>, window_params = [{transform_indices = @transform_0, window_bounds = array<i64: 1, 16, 16, 128>}, {pipeline_mode = #tpu.pipeline_mode<synchronous>, transform_indices = @transform_1, window_bounds = array<i64: 1, 128>}, {pipeline_mode = #tpu.pipeline_mode<synchronous>, transform_indices = @transform_2, window_bounds = array<i64: 1, 128>}, {transform_indices = @transform_3, window_bounds = array<i64: 1, 16, 16, 128>}]} {
    %c0 = arith.constant 0 : index
    %c0_0 = arith.constant 0 : index
    %c0_1 = arith.constant 0 : index
    %c0_2 = arith.constant 0 : index
    %0 = vector.load %arg1[%c0, %c0_0, %c0_1, %c0_2] : memref<1x16x16x128xf32, #tpu.memory_space<vmem>>, vector<1x16x16x128xf32>
    %1 = vector.shape_cast %0 : vector<1x16x16x128xf32> to vector<256x128xf32>
    %c0_3 = arith.constant 0 : index
    %c0_4 = arith.constant 0 : index
    %2 = vector.load %arg2[%c0_3, %c0_4] : memref<1x128xf32, #tpu.memory_space<vmem>>, vector<1x128xf32>
    %3 = vector.broadcast %2 : vector<1x128xf32> to vector<256x128xf32>
    %4 = arith.mulf %1, %3 : vector<256x128xf32>
    %c0_5 = arith.constant 0 : index
    %c0_6 = arith.constant 0 : index
    %5 = vector.load %arg3[%c0_5, %c0_6] : memref<1x128xf32, #tpu.memory_space<vmem>>, vector<1x128xf32>
    %6 = vector.broadcast %5 : vector<1x128xf32> to vector<256x128xf32>
    %7 = arith.addf %4, %6 : vector<256x128xf32>
    %cst = arith.constant 0.000000e+00 : f32
    %8 = vector.broadcast %cst : f32 to vector<256x128xf32>
    %9 = arith.maximumf %7, %8 : vector<256x128xf32>
    %10 = vector.shape_cast %9 : vector<256x128xf32> to vector<1x16x16x128xf32>
    %c0_7 = arith.constant 0 : index
    %c0_8 = arith.constant 0 : index
    %c0_9 = arith.constant 0 : index
    %c0_10 = arith.constant 0 : index
    %11 = vector.load %arg4[%c0_7, %c0_8, %c0_9, %c0_10] : memref<1x16x16x128xf32, #tpu.memory_space<vmem>>, vector<1x16x16x128xf32>
    tpu.vector_store %arg4[%c0_7, %c0_8, %c0_9, %c0_10], %10 {strides = array<i32>} : memref<1x16x16x128xf32, #tpu.memory_space<vmem>>, vector<1x16x16x128xf32>,
    return
  }
  func.func @transform_0(%arg0: i32) -> (i32, i32, i32, i32) {
    %c0_i32 = arith.constant 0 : i32
    %c0_i32_0 = arith.constant 0 : i32
    %c0_i32_1 = arith.constant 0 : i32
    %c0_i32_2 = arith.constant 0 : i32
    return %arg0, %c0_i32, %c0_i32_0, %c0_i32_1 : i32, i32, i32, i32
  }
  func.func @transform_1(%arg0: i32) -> (i32, i32) {
    %c0_i32 = arith.constant 0 : i32
    %c0_i32_0 = arith.constant 0 : i32
    %c0_i32_1 = arith.constant 0 : i32
    return %c0_i32, %c0_i32_0 : i32, i32
  }
  func.func @transform_2(%arg0: i32) -> (i32, i32) {
    %c0_i32 = arith.constant 0 : i32
    %c0_i32_0 = arith.constant 0 : i32
    %c0_i32_1 = arith.constant 0 : i32
    return %c0_i32, %c0_i32_0 : i32, i32
  }
  func.func @transform_3(%arg0: i32) -> (i32, i32, i32, i32) {
    %c0_i32 = arith.constant 0 : i32
    %c0_i32_0 = arith.constant 0 : i32
    %c0_i32_1 = arith.constant 0 : i32
    %c0_i32_2 = arith.constant 0 : i32
    return %arg0, %c0_i32, %c0_i32_0, %c0_i32_1 : i32, i32, i32, i32
  }
}

module attributes {stable_mosaic.version = 11 : i64} {
  func.func @_stage2_kernel(%arg0: i32, %arg1: memref<1x16x16x128xf32, #tpu.memory_space<vmem>>, %arg2: memref<1x128xf32, #tpu.memory_space<vmem>>, %arg3: memref<1x128xf32, #tpu.memory_space<vmem>>, %arg4: memref<1152x128xbf16, #tpu.memory_space<vmem>>, %arg5: memref<1x16x16x128xf32, #tpu.memory_space<vmem>>, %arg6: memref<1x2x128xf32, #tpu.memory_space<vmem>>, %arg7: memref<1x18x18x128xbf16, #tpu.memory_space<vmem>>) attributes {dimension_semantics = [#tpu.dimension_semantics<parallel>], iteration_bounds = array<i64: 2>, scalar_prefetch = 0 : i64, scratch_operands = 1 : i64, tpu.core_type = #tpu.core_type<tc>, window_params = [{transform_indices = @transform_0, window_bounds = array<i64: 1, 16, 16, 128>}, {pipeline_mode = #tpu.pipeline_mode<synchronous>, transform_indices = @transform_1, window_bounds = array<i64: 1, 128>}, {pipeline_mode = #tpu.pipeline_mode<synchronous>, transform_indices = @transform_2, window_bounds = array<i64: 1, 128>}, {pipeline_mode = #tpu.pipeline_mode<synchronous>, transform_indices = @transform_3, window_bounds = array<i64: 1152, 128>}, {transform_indices = @transform_4, window_bounds = array<i64: 1, 16, 16, 128>}, {transform_indices = @transform_5, window_bounds = array<i64: 1, 2, 128>}]} {
    %c0 = arith.constant 0 : index
    %c0_0 = arith.constant 0 : index
    %c0_1 = arith.constant 0 : index
    %c0_2 = arith.constant 0 : index
    %0 = vector.load %arg1[%c0, %c0_0, %c0_1, %c0_2] : memref<1x16x16x128xf32, #tpu.memory_space<vmem>>, vector<1x16x16x128xf32>
    %1 = vector.shape_cast %0 : vector<1x16x16x128xf32> to vector<256x128xf32>
    %c0_3 = arith.constant 0 : index
    %c0_4 = arith.constant 0 : index
    %2 = vector.load %arg2[%c0_3, %c0_4] : memref<1x128xf32, #tpu.memory_space<vmem>>, vector<1x128xf32>
    %3 = vector.broadcast %2 : vector<1x128xf32> to vector<256x128xf32>
    %4 = arith.mulf %1, %3 : vector<256x128xf32>
    %c0_5 = arith.constant 0 : index
    %c0_6 = arith.constant 0 : index
    %5 = vector.load %arg3[%c0_5, %c0_6] : memref<1x128xf32, #tpu.memory_space<vmem>>, vector<1x128xf32>
    %6 = vector.broadcast %5 : vector<1x128xf32> to vector<256x128xf32>
    %7 = arith.addf %4, %6 : vector<256x128xf32>
    %cst = arith.constant 0.000000e+00 : f32
    %8 = vector.broadcast %cst : f32 to vector<256x128xf32>
    %9 = arith.maximumf %7, %8 : vector<256x128xf32>
    %10 = vector.shape_cast %9 : vector<256x128xf32> to vector<1x16x16x128xf32>
    %11 = arith.truncf %10 : vector<1x16x16x128xf32> to vector<1x16x16x128xbf16>
    %c0_7 = arith.constant 0 : index
    %c1 = arith.constant 1 : index
    %c1_8 = arith.constant 1 : index
    %c0_9 = arith.constant 0 : index
    %12 = vector.load %arg7[%c0_7, %c1, %c1_8, %c0_9] : memref<1x18x18x128xbf16, #tpu.memory_space<vmem>>, vector<1x16x16x128xbf16>
    tpu.vector_store %arg7[%c0_7, %c1, %c1_8, %c0_9], %11 {strides = array<i32>} : memref<1x18x18x128xbf16, #tpu.memory_space<vmem>>, vector<1x16x16x128xbf16>,
    %cst_10 = arith.constant 0.000000e+00 : bf16
    %13 = vector.broadcast %cst_10 : bf16 to vector<1x1x18x128xbf16>
    %c0_11 = arith.constant 0 : index
    %c0_12 = arith.constant 0 : index
    %c0_13 = arith.constant 0 : index
    %c0_14 = arith.constant 0 : index
    %14 = vector.load %arg7[%c0_11, %c0_12, %c0_13, %c0_14] : memref<1x18x18x128xbf16, #tpu.memory_space<vmem>>, vector<1x1x18x128xbf16>
    tpu.vector_store %arg7[%c0_11, %c0_12, %c0_13, %c0_14], %13 {strides = array<i32>} : memref<1x18x18x128xbf16, #tpu.memory_space<vmem>>, vector<1x1x18x128xbf16>,
    %c0_15 = arith.constant 0 : index
    %c17 = arith.constant 17 : index
    %c0_16 = arith.constant 0 : index
    %c0_17 = arith.constant 0 : index
    %15 = vector.load %arg7[%c0_15, %c17, %c0_16, %c0_17] : memref<1x18x18x128xbf16, #tpu.memory_space<vmem>>, vector<1x1x18x128xbf16>
    tpu.vector_store %arg7[%c0_15, %c17, %c0_16, %c0_17], %13 {strides = array<i32>} : memref<1x18x18x128xbf16, #tpu.memory_space<vmem>>, vector<1x1x18x128xbf16>,
    %cst_18 = arith.constant 0.000000e+00 : bf16
    %16 = vector.broadcast %cst_18 : bf16 to vector<1x16x1x128xbf16>
    %c0_19 = arith.constant 0 : index
    %c1_20 = arith.constant 1 : index
    %c0_21 = arith.constant 0 : index
    %c0_22 = arith.constant 0 : index
    %17 = vector.load %arg7[%c0_19, %c1_20, %c0_21, %c0_22] : memref<1x18x18x128xbf16, #tpu.memory_space<vmem>>, vector<1x16x1x128xbf16>
    tpu.vector_store %arg7[%c0_19, %c1_20, %c0_21, %c0_22], %16 {strides = array<i32>} : memref<1x18x18x128xbf16, #tpu.memory_space<vmem>>, vector<1x16x1x128xbf16>,
    %c0_23 = arith.constant 0 : index
    %c1_24 = arith.constant 1 : index
    %c17_25 = arith.constant 17 : index
    %c0_26 = arith.constant 0 : index
    %18 = vector.load %arg7[%c0_23, %c1_24, %c17_25, %c0_26] : memref<1x18x18x128xbf16, #tpu.memory_space<vmem>>, vector<1x16x1x128xbf16>
    tpu.vector_store %arg7[%c0_23, %c1_24, %c17_25, %c0_26], %16 {strides = array<i32>} : memref<1x18x18x128xbf16, #tpu.memory_space<vmem>>, vector<1x16x1x128xbf16>,
    %cst_27 = arith.constant 0.000000e+00 : f32
    %19 = vector.broadcast %cst_27 : f32 to vector<256x128xf32>
    %c0_28 = arith.constant 0 : index
    %c0_29 = arith.constant 0 : index
    %c0_30 = arith.constant 0 : index
    %c0_31 = arith.constant 0 : index
    %20 = vector.load %arg7[%c0_28, %c0_29, %c0_30, %c0_31] : memref<1x18x18x128xbf16, #tpu.memory_space<vmem>>, vector<1x16x16x128xbf16>
    %21 = vector.shape_cast %20 : vector<1x16x16x128xbf16> to vector<256x128xbf16>
    %c0_32 = arith.constant 0 : index
    %c0_33 = arith.constant 0 : index
    %c1_34 = arith.constant 1 : index
    %c0_35 = arith.constant 0 : index
    %22 = vector.load %arg7[%c0_32, %c0_33, %c1_34, %c0_35] : memref<1x18x18x128xbf16, #tpu.memory_space<vmem>>, vector<1x16x16x128xbf16>
    %23 = vector.shape_cast %22 : vector<1x16x16x128xbf16> to vector<256x128xbf16>
    %c0_36 = arith.constant 0 : index
    %c0_37 = arith.constant 0 : index
    %c2 = arith.constant 2 : index
    %c0_38 = arith.constant 0 : index
    %24 = vector.load %arg7[%c0_36, %c0_37, %c2, %c0_38] : memref<1x18x18x128xbf16, #tpu.memory_space<vmem>>, vector<1x16x16x128xbf16>
    %25 = vector.shape_cast %24 : vector<1x16x16x128xbf16> to vector<256x128xbf16>
    %26 = tpu.concatenate %21, %23, %25 in 1 : vector<256x128xbf16>, vector<256x128xbf16>, vector<256x128xbf16> -> vector<256x384xbf16>
    %c0_39 = arith.constant 0 : index
    %c0_40 = arith.constant 0 : index
    %27 = vector.load %arg4[%c0_39, %c0_40] : memref<1152x128xbf16, #tpu.memory_space<vmem>>, vector<384x128xbf16>
    %cst_41 = arith.constant dense<0.000000e+00> : vector<256x128xf32>
    %28 = tpu.matmul %26, %27, %cst_41 {dimension_numbers = #tpu.dot_dimension_numbers<[1], [0], [0], [1], [0, 0, 1, 1], [], []>} : vector<256x384xbf16>, vector<384x128xbf16>, vector<256x128xf32> -> vector<256x128xf32>
    %29 = arith.addf %19, %28 : vector<256x128xf32>
    %c0_42 = arith.constant 0 : index
    %c1_43 = arith.constant 1 : index
    %c0_44 = arith.constant 0 : index
    %c0_45 = arith.constant 0 : index
    %30 = vector.load %arg7[%c0_42, %c1_43, %c0_44, %c0_45] : memref<1x18x18x128xbf16, #tpu.memory_space<vmem>>, vector<1x16x16x128xbf16>
    %31 = vector.shape_cast %30 : vector<1x16x16x128xbf16> to vector<256x128xbf16>
    %c0_46 = arith.constant 0 : index
    %c1_47 = arith.constant 1 : index
    %c1_48 = arith.constant 1 : index
    %c0_49 = arith.constant 0 : index
    %32 = vector.load %arg7[%c0_46, %c1_47, %c1_48, %c0_49] : memref<1x18x18x128xbf16, #tpu.memory_space<vmem>>, vector<1x16x16x128xbf16>
    %33 = vector.shape_cast %32 : vector<1x16x16x128xbf16> to vector<256x128xbf16>
    %c0_50 = arith.constant 0 : index
    %c1_51 = arith.constant 1 : index
    %c2_52 = arith.constant 2 : index
    %c0_53 = arith.constant 0 : index
    %34 = vector.load %arg7[%c0_50, %c1_51, %c2_52, %c0_53] : memref<1x18x18x128xbf16, #tpu.memory_space<vmem>>, vector<1x16x16x128xbf16>
    %35 = vector.shape_cast %34 : vector<1x16x16x128xbf16> to vector<256x128xbf16>
    %36 = tpu.concatenate %31, %33, %35 in 1 : vector<256x128xbf16>, vector<256x128xbf16>, vector<256x128xbf16> -> vector<256x384xbf16>
    %c384 = arith.constant 384 : index
    %c0_54 = arith.constant 0 : index
    %37 = vector.load %arg4[%c384, %c0_54] : memref<1152x128xbf16, #tpu.memory_space<vmem>>, vector<384x128xbf16>
    %cst_55 = arith.constant dense<0.000000e+00> : vector<256x128xf32>
    %38 = tpu.matmul %36, %37, %cst_55 {dimension_numbers = #tpu.dot_dimension_numbers<[1], [0], [0], [1], [0, 0, 1, 1], [], []>} : vector<256x384xbf16>, vector<384x128xbf16>, vector<256x128xf32> -> vector<256x128xf32>
    %39 = arith.addf %29, %38 : vector<256x128xf32>
    %c0_56 = arith.constant 0 : index
    %c2_57 = arith.constant 2 : index
    %c0_58 = arith.constant 0 : index
    %c0_59 = arith.constant 0 : index
    %40 = vector.load %arg7[%c0_56, %c2_57, %c0_58, %c0_59] : memref<1x18x18x128xbf16, #tpu.memory_space<vmem>>, vector<1x16x16x128xbf16>
    %41 = vector.shape_cast %40 : vector<1x16x16x128xbf16> to vector<256x128xbf16>
    %c0_60 = arith.constant 0 : index
    %c2_61 = arith.constant 2 : index
    %c1_62 = arith.constant 1 : index
    %c0_63 = arith.constant 0 : index
    %42 = vector.load %arg7[%c0_60, %c2_61, %c1_62, %c0_63] : memref<1x18x18x128xbf16, #tpu.memory_space<vmem>>, vector<1x16x16x128xbf16>
    %43 = vector.shape_cast %42 : vector<1x16x16x128xbf16> to vector<256x128xbf16>
    %c0_64 = arith.constant 0 : index
    %c2_65 = arith.constant 2 : index
    %c2_66 = arith.constant 2 : index
    %c0_67 = arith.constant 0 : index
    %44 = vector.load %arg7[%c0_64, %c2_65, %c2_66, %c0_67] : memref<1x18x18x128xbf16, #tpu.memory_space<vmem>>, vector<1x16x16x128xbf16>
    %45 = vector.shape_cast %44 : vector<1x16x16x128xbf16> to vector<256x128xbf16>
    %46 = tpu.concatenate %41, %43, %45 in 1 : vector<256x128xbf16>, vector<256x128xbf16>, vector<256x128xbf16> -> vector<256x384xbf16>
    %c768 = arith.constant 768 : index
    %c0_68 = arith.constant 0 : index
    %47 = vector.load %arg4[%c768, %c0_68] : memref<1152x128xbf16, #tpu.memory_space<vmem>>, vector<384x128xbf16>
    %cst_69 = arith.constant dense<0.000000e+00> : vector<256x128xf32>
    %48 = tpu.matmul %46, %47, %cst_69 {dimension_numbers = #tpu.dot_dimension_numbers<[1], [0], [0], [1], [0, 0, 1, 1], [], []>} : vector<256x384xbf16>, vector<384x128xbf16>, vector<256x128xf32> -> vector<256x128xf32>
    %49 = arith.addf %39, %48 : vector<256x128xf32>
    %50 = vector.shape_cast %49 : vector<256x128xf32> to vector<1x16x16x128xf32>
    %c0_70 = arith.constant 0 : index
    %c0_71 = arith.constant 0 : index
    %c0_72 = arith.constant 0 : index
    %c0_73 = arith.constant 0 : index
    %51 = vector.load %arg5[%c0_70, %c0_71, %c0_72, %c0_73] : memref<1x16x16x128xf32, #tpu.memory_space<vmem>>, vector<1x16x16x128xf32>
    tpu.vector_store %arg5[%c0_70, %c0_71, %c0_72, %c0_73], %50 {strides = array<i32>} : memref<1x16x16x128xf32, #tpu.memory_space<vmem>>, vector<1x16x16x128xf32>,
    %cst_74 = arith.constant dense<0.000000e+00> : vector<128xf32>
    %52 = vector.multi_reduction <add>, %49, %cst_74 [0] : vector<256x128xf32> to vector<128xf32>
    %53 = vector.shape_cast %52 : vector<128xf32> to vector<1x128xf32>
    %cst_75 = arith.constant 3.906250e-03 : f32
    %54 = vector.broadcast %cst_75 : f32 to vector<1x128xf32>
    %55 = arith.mulf %53, %54 : vector<1x128xf32>
    %56 = vector.broadcast %55 : vector<1x128xf32> to vector<256x128xf32>
    %57 = arith.subf %49, %56 : vector<256x128xf32>
    %58 = arith.mulf %57, %57 : vector<256x128xf32>
    %cst_76 = arith.constant dense<0.000000e+00> : vector<128xf32>
    %59 = vector.multi_reduction <add>, %58, %cst_76 [0] : vector<256x128xf32> to vector<128xf32>
    %60 = vector.shape_cast %59 : vector<128xf32> to vector<1x128xf32>
    %61 = vector.shape_cast %55 : vector<1x128xf32> to vector<1x1x128xf32>
    %c0_77 = arith.constant 0 : index
    %c0_78 = arith.constant 0 : index
    %c0_79 = arith.constant 0 : index
    %62 = vector.load %arg6[%c0_77, %c0_78, %c0_79] : memref<1x2x128xf32, #tpu.memory_space<vmem>>, vector<1x1x128xf32>
    tpu.vector_store %arg6[%c0_77, %c0_78, %c0_79], %61 {strides = array<i32>} : memref<1x2x128xf32, #tpu.memory_space<vmem>>, vector<1x1x128xf32>,
    %63 = vector.shape_cast %60 : vector<1x128xf32> to vector<1x1x128xf32>
    %c0_80 = arith.constant 0 : index
    %c1_81 = arith.constant 1 : index
    %c0_82 = arith.constant 0 : index
    %64 = vector.load %arg6[%c0_80, %c1_81, %c0_82] : memref<1x2x128xf32, #tpu.memory_space<vmem>>, vector<1x1x128xf32>
    tpu.vector_store %arg6[%c0_80, %c1_81, %c0_82], %63 {strides = array<i32>} : memref<1x2x128xf32, #tpu.memory_space<vmem>>, vector<1x1x128xf32>,
    return
  }
  func.func @transform_0(%arg0: i32) -> (i32, i32, i32, i32) {
    %c0_i32 = arith.constant 0 : i32
    %c0_i32_0 = arith.constant 0 : i32
    %c0_i32_1 = arith.constant 0 : i32
    %c0_i32_2 = arith.constant 0 : i32
    return %arg0, %c0_i32, %c0_i32_0, %c0_i32_1 : i32, i32, i32, i32
  }
  func.func @transform_1(%arg0: i32) -> (i32, i32) {
    %c0_i32 = arith.constant 0 : i32
    %c0_i32_0 = arith.constant 0 : i32
    %c0_i32_1 = arith.constant 0 : i32
    return %c0_i32, %c0_i32_0 : i32, i32
  }
  func.func @transform_2(%arg0: i32) -> (i32, i32) {
    %c0_i32 = arith.constant 0 : i32
    %c0_i32_0 = arith.constant 0 : i32
    %c0_i32_1 = arith.constant 0 : i32
    return %c0_i32, %c0_i32_0 : i32, i32
  }
  func.func @transform_3(%arg0: i32) -> (i32, i32) {
    %c0_i32 = arith.constant 0 : i32
    %c0_i32_0 = arith.constant 0 : i32
    %c0_i32_1 = arith.constant 0 : i32
    return %c0_i32, %c0_i32_0 : i32, i32
  }
  func.func @transform_4(%arg0: i32) -> (i32, i32, i32, i32) {
    %c0_i32 = arith.constant 0 : i32
    %c0_i32_0 = arith.constant 0 : i32
    %c0_i32_1 = arith.constant 0 : i32
    %c0_i32_2 = arith.constant 0 : i32
    return %arg0, %c0_i32, %c0_i32_0, %c0_i32_1 : i32, i32, i32, i32
  }
  func.func @transform_5(%arg0: i32) -> (i32, i32, i32) {
    %c0_i32 = arith.constant 0 : i32
    %c0_i32_0 = arith.constant 0 : i32
    %c0_i32_1 = arith.constant 0 : i32
    return %arg0, %c0_i32, %c0_i32_0 : i32, i32, i32
  }
}

</mosaic_0001>

<llo_original>
// kernel: double_conv.5
$region0: #{double_conv.5}
  #allocation0 [shape = 'u32[]', space=smem, size = 0x4, offset = 0x4, fixed_abs, tag = 'smem constant byte address 0x4 - core index']
  #allocation1 [shape = 'u32[72,128]{1,0:T(1,128)}', space=vmem, size = 0x9000, scoped, tag = 'internal scratch']
  %s0 = inlined_call_operand.vmem [shape: f32[2,16,16,128], index: 0, kind: input, shape index: {}]
  %s1 = inlined_call_operand.vmem [shape: f32[1,128], index: 1, kind: input, shape index: {}]
  %s2 = inlined_call_operand.vmem [shape: f32[1,128], index: 2, kind: input, shape index: {}]
  %s3 = inlined_call_operand.vmem [shape: f32[2,16,16,128], index: 3, kind: output, shape index: {}]
  %s4 = sld [smem:[#allocation0]]
  $region45: #{double_conv.5} parent=0
    _
  %s6 = ssub.s32 1, %s4
  %s7 = scalar_select 0, %s6, %s4
  loop: start=0, step=1, limit=4
  $region2: #{double_conv.5} parent=0 // loop_pre_header
    _
  $region3: #{double_conv.5} parent=0 // loop_header
    %s9 = sphi 0, %s13
    %p10 = scmp.ge.s32.totalorder %s9, 4
    %s19 = sphi 0, %s21
    %s22 = sphi 0, %s19
    %s23 = sphi 0, %s22
    %s39 = sphi 0, %s23
    %s43 = sphi 0, %s43
    %s45 = sphi 0, %s43
    %s46 = sphi 0, %s45
    %s60 = sphi 0, %s46
    %s64 = sphi 0, %s64
    %s66 = sphi 0, %s64
    %s67 = sphi 0, %s66
    %s81 = sphi 0, %s67
    %s87 = sphi 0, %s89
    %s90 = sphi 0, %s87
    %s91 = sphi 0, %s90
    %s107 = sphi 0, %s91
  $region4: #{double_conv.5} parent=0 // loop_header_branch
    %12 = sbr.rel (%p10) target = $region8
  $region5: #{double_conv.5} parent=0 // loop_body
    %s14 = ssub.s32 %s9, 1
    %s15 = ssub.s32 %s9, 2
    %s16 = sadd.s32 %s9, 1
    %s17 = ssub.s32 %s9, %s16
    %p18 = scmp.eq.s32.totalorder %s17, 0
    %s20 = sadd.s32 %s19, 1
    %s21 = scalar_select %p18, %s19, %s20
    %p24 = pneg %p18
    %p25 = scmp.eq.s32.totalorder %s9, 1
    %p26 = por %p24, %p25
    %p27 = scmp.ne.s32.totalorder %s19, %s22
    %p28 = scmp.eq.s32.totalorder %s9, 0
    %p29 = por %p27, %p28
    %p30 = scmp.ne.s32.totalorder %s19, %s22
    %p31 = scmp.eq.s32.totalorder %s14, 1
    %p32 = por %p30, %p31
    %p33 = scmp.ne.s32.totalorder %s22, %s23
    %p34 = scmp.eq.s32.totalorder %s14, 0
    %p35 = por %p33, %p34
    %p36 = scmp.ne.s32.totalorder %s22, %s23
    %p37 = scmp.eq.s32.totalorder %s15, 1
    %p38 = por %p36, %p37
    %p40 = scmp.ne.s32.totalorder %s23, %s39
    %p41 = scmp.eq.s32.totalorder %s15, 0
    %p42 = por %p40, %p41
    %s44 = sadd.s32 %s43, 1
    %p47 = scmp.eq.s32.totalorder %s9, 1
    %p48 = scmp.ne.s32.totalorder %s43, %s45
    %p49 = scmp.eq.s32.totalorder %s9, 0
    %p50 = por %p48, %p49
    %p51 = scmp.ne.s32.totalorder %s43, %s45
    %p52 = scmp.eq.s32.totalorder %s14, 1
    %p53 = por %p51, %p52
    %p54 = scmp.ne.s32.totalorder %s45, %s46
    %p55 = scmp.eq.s32.totalorder %s14, 0
    %p56 = por %p54, %p55
    %p57 = scmp.ne.s32.totalorder %s45, %s46
    %p58 = scmp.eq.s32.totalorder %s15, 1
    %p59 = por %p57, %p58
    %p61 = scmp.ne.s32.totalorder %s46, %s60
    %p62 = scmp.eq.s32.totalorder %s15, 0
    %p63 = por %p61, %p62
    %s65 = sadd.s32 %s64, 1
    %p68 = scmp.eq.s32.totalorder %s9, 1
    %p69 = scmp.ne.s32.totalorder %s64, %s66
    %p70 = scmp.eq.s32.totalorder %s9, 0
    %p71 = por %p69, %p70
    %p72 = scmp.ne.s32.totalorder %s64, %s66
    %p73 = scmp.eq.s32.totalorder %s14, 1
    %p74 = por %p72, %p73
    %p75 = scmp.ne.s32.totalorder %s66, %s67
    %p76 = scmp.eq.s32.totalorder %s14, 0
    %p77 = por %p75, %p76
    %p78 = scmp.ne.s32.totalorder %s66, %s67
    %p79 = scmp.eq.s32.totalorder %s15, 1
    %p80 = por %p78, %p79
    %p82 = scmp.ne.s32.totalorder %s67, %s81
    %p83 = scmp.eq.s32.totalorder %s15, 0
    %p84 = por %p82, %p83
    %s85 = ssub.s32 %s9, %s16
    %p86 = scmp.eq.s32.totalorder %s85, 0
    %s88 = sadd.s32 %s87, 1
    %s89 = scalar_select %p86, %s87, %s88
    %p92 = pneg %p86
    %p93 = scmp.eq.s32.totalorder %s9, 1
    %p94 = por %p92, %p93
    %p95 = scmp.ne.s32.totalorder %s87, %s90
    %p96 = scmp.eq.s32.totalorder %s9, 0
    %p97 = por %p95, %p96
    %p98 = scmp.ne.s32.totalorder %s87, %s90
    %p99 = scmp.eq.s32.totalorder %s14, 1
    %p100 = por %p98, %p99
    %p101 = scmp.ne.s32.totalorder %s90, %s91
    %p102 = scmp.eq.s32.totalorder %s14, 0
    %p103 = por %p101, %p102
    %p104 = scmp.ne.s32.totalorder %s90, %s91
    %p105 = scmp.eq.s32.totalorder %s15, 1
    %p106 = por %p104, %p105
    %p108 = scmp.ne.s32.totalorder %s91, %s107
    %p109 = scmp.eq.s32.totalorder %s15, 0
    %p110 = por %p108, %p109
    %p111 = scmp.le.s32.totalorder 1, %s9
    %p112 = scmp.lt.s32.totalorder %s9, 3
    %p113 = pnand %p111, %p112
    %p114 = pneg %p113
    // Predicated region
    $region9: #{double_conv.5} parent=5 // pred_check
      _
    $region10: #{double_conv.5} parent=5 // pred_check_branch
      %116 = sbr.rel (%p113) target = $region12
    $region11: #{double_conv.5} parent=5 // pred_region
      %s117 = ssub.s32 %s9, 1
      // Predicated region
      $region13: #{double_conv.5} parent=11 // pred_check
        %p118 = pneg %p56
      $region14: #{double_conv.5} parent=11 // pred_check_branch
        %120 = sbr.rel (%p118) target = $region16
      $region15: #{double_conv.5} parent=11 // pred_region
        _
      $region16: #{double_conv.5} parent=11 // pred_fallthru
        _
      // Predicated region
      $region17: #{double_conv.5} parent=11 // pred_check
        %p121 = pneg %p77
      $region18: #{double_conv.5} parent=11 // pred_check_branch
        %123 = sbr.rel (%p121) target = $region20
      $region19: #{double_conv.5} parent=11 // pred_region
        _
      $region20: #{double_conv.5} parent=11 // pred_fallthru
        _
    $region12: #{double_conv.5} parent=5 // pred_fallthru
      _
    %p124 = scmp.lt.s32.totalorder %s9, 2
    // Predicated region
    $region21: #{double_conv.5} parent=5 // pred_check
      %p125 = pneg %p124
    $region22: #{double_conv.5} parent=5 // pred_check_branch
      %127 = sbr.rel (%p125) target = $region24
    $region23: #{double_conv.5} parent=5 // pred_region
      // Predicated region
      $region25: #{double_conv.5} parent=23 // pred_check
        %p128 = pneg %p29
      $region26: #{double_conv.5} parent=23 // pred_check_branch
        %130 = sbr.rel (%p128) target = $region28
      $region27: #{double_conv.5} parent=23 // pred_region
        %p131 = scmp.lt.s32.totalorder %s9, 1
        %s132 = scalar_select %p131, %s9, 1
        %s133 = smul.addr %s132, 32
        %s134 = smul.addr %s133, 8
        %s135 = scalar_lea.vmem %s0, %s134
      $region28: #{double_conv.5} parent=23 // pred_fallthru
        _
    $region24: #{double_conv.5} parent=5 // pred_fallthru
      _
    %p136 = scmp.le.s32.totalorder 1, %s9
    %p137 = scmp.lt.s32.totalorder %s9, 3
    %p138 = pnand %p136, %p137
    %p139 = pneg %p138
    // Predicated region
    $region29: #{double_conv.5} parent=5 // pred_check
      _
    $region30: #{double_conv.5} parent=5 // pred_check_branch
      %141 = sbr.rel (%p138) target = $region32
    $region31: #{double_conv.5} parent=5 // pred_region
      %s142 = ssub.s32 %s9, 1
      %p143 = scmp.lt.s32.totalorder %s14, 1
      %s144 = scalar_select %p143, %s14, 1
      %s145 = smul.addr %s144, 32
      %s146 = smul.addr %s145, 8
      %s147 = scalar_lea.vmem %s0, %s146
      %p148 = pneg %p35
      %p149 = pneg %p32
      %p150 = pneg %p56
      %p151 = pneg %p53
      %p152 = pneg %p77
      %p153 = pneg %p74
      %p154 = pneg %p103
      %p155 = pneg %p100
      %p156 = scmp.lt.s32.totalorder %s14, 1
      %s157 = scalar_select %p156, %s14, 1
      %s158 = smul.addr %s157, 32
      %s159 = smul.addr %s158, 8
      %s160 = scalar_lea.vmem %s3, %s159
      %p161 = scmp.lt.s32.totalorder %s14, 1
      %s162 = scalar_select %p161, %s14, 1
      %s163 = smul.addr %s162, 32
      %s164 = smul.addr %s163, 8
      %s165 = scalar_lea.vmem %s0, %s164
      %p166 = scmp.lt.s32.totalorder %s14, 1
      %s167 = scalar_select %p166, %s14, 1
      %s168 = smul.addr %s167, 32
      %s169 = smul.addr %s168, 8
      %s170 = scalar_lea.vmem %s3, %s169
      %v171 = vld [vmem:[%s165] sm:$0xff]
      %v172 = vld [vmem:[%s165 + $0x8] sm:$0xff]
      %v173 = vld [vmem:[%s165 + $0x10] sm:$0xff]
      %v174 = vld [vmem:[%s165 + $0x18] sm:$0xff]
      %v175 = vld [vmem:[%s165 + $0x20] sm:$0xff]
      %v176 = vld [vmem:[%s165 + $0x28] sm:$0xff]
      %v177 = vld [vmem:[%s165 + $0x30] sm:$0xff]
      %v178 = vld [vmem:[%s165 + $0x38] sm:$0xff]
      %v179 = vld [vmem:[%s165 + $0x40] sm:$0xff]
      %v180 = vld [vmem:[%s165 + $0x48] sm:$0xff]
      %v181 = vld [vmem:[%s165 + $0x50] sm:$0xff]
      %v182 = vld [vmem:[%s165 + $0x58] sm:$0xff]
      %v183 = vld [vmem:[%s165 + $0x60] sm:$0xff]
      %v184 = vld [vmem:[%s165 + $0x68] sm:$0xff]
      %v185 = vld [vmem:[%s165 + $0x70] sm:$0xff]
      %v186 = vld [vmem:[%s165 + $0x78] sm:$0xff]
      %v187 = vld [vmem:[%s165 + $0x80] sm:$0xff]
      %v188 = vld [vmem:[%s165 + $0x88] sm:$0xff]
      %v189 = vld [vmem:[%s165 + $0x90] sm:$0xff]
      %v190 = vld [vmem:[%s165 + $0x98] sm:$0xff]
      %v191 = vld [vmem:[%s165 + $0xa0] sm:$0xff]
      %v192 = vld [vmem:[%s165 + $0xa8] sm:$0xff]
      %v193 = vld [vmem:[%s165 + $0xb0] sm:$0xff]
      %v194 = vld [vmem:[%s165 + $0xb8] sm:$0xff]
      %v195 = vld [vmem:[%s165 + $0xc0] sm:$0xff]
      %v196 = vld [vmem:[%s165 + $0xc8] sm:$0xff]
      %v197 = vld [vmem:[%s165 + $0xd0] sm:$0xff]
      %v198 = vld [vmem:[%s165 + $0xd8] sm:$0xff]
      %v199 = vld [vmem:[%s165 + $0xe0] sm:$0xff]
      %v200 = vld [vmem:[%s165 + $0xe8] sm:$0xff]
      %v201 = vld [vmem:[%s165 + $0xf0] sm:$0xff]
      %v202 = vld [vmem:[%s165 + $0xf8] sm:$0xff]
      %v203 = vld [vmem:[%s1] sm:$0x1]
      %v205 = vperm.slane %v203, 0
      %v207 = vmul.f32 %v171, %v205
      %v208 = vmul.f32 %v172, %v205
      %v209 = vmul.f32 %v173, %v205
      %v210 = vmul.f32 %v174, %v205
      %v211 = vmul.f32 %v175, %v205
      %v212 = vmul.f32 %v176, %v205
      %v213 = vmul.f32 %v177, %v205
      %v214 = vmul.f32 %v178, %v205
      %v215 = vmul.f32 %v179, %v205
      %v216 = vmul.f32 %v180, %v205
      %v217 = vmul.f32 %v181, %v205
      %v218 = vmul.f32 %v182, %v205
      %v219 = vmul.f32 %v183, %v205
      %v220 = vmul.f32 %v184, %v205
      %v221 = vmul.f32 %v185, %v205
      %v222 = vmul.f32 %v186, %v205
      %v223 = vmul.f32 %v187, %v205
      %v224 = vmul.f32 %v188, %v205
      %v225 = vmul.f32 %v189, %v205
      %v226 = vmul.f32 %v190, %v205
      %v227 = vmul.f32 %v191, %v205
      %v228 = vmul.f32 %v192, %v205
      %v229 = vmul.f32 %v193, %v205
      %v230 = vmul.f32 %v194, %v205
      %v231 = vmul.f32 %v195, %v205
      %v232 = vmul.f32 %v196, %v205
      %v233 = vmul.f32 %v197, %v205
      %v234 = vmul.f32 %v198, %v205
      %v235 = vmul.f32 %v199, %v205
      %v236 = vmul.f32 %v200, %v205
      %v237 = vmul.f32 %v201, %v205
      %v238 = vmul.f32 %v202, %v205
      %v239 = vld [vmem:[%s2] sm:$0x1]
      %v241 = vperm.slane %v239, 0
      %v243 = vadd.f32 %v207, %v241
      %v244 = vadd.f32 %v208, %v241
      %v245 = vadd.f32 %v209, %v241
      %v246 = vadd.f32 %v210, %v241
      %v247 = vadd.f32 %v211, %v241
      %v248 = vadd.f32 %v212, %v241
      %v249 = vadd.f32 %v213, %v241
      %v250 = vadd.f32 %v214, %v241
      %v251 = vadd.f32 %v215, %v241
      %v252 = vadd.f32 %v216, %v241
      %v253 = vadd.f32 %v217, %v241
      %v254 = vadd.f32 %v218, %v241
      %v255 = vadd.f32 %v219, %v241
      %v256 = vadd.f32 %v220, %v241
      %v257 = vadd.f32 %v221, %v241
      %v258 = vadd.f32 %v222, %v241
      %v259 = vadd.f32 %v223, %v241
      %v260 = vadd.f32 %v224, %v241
      %v261 = vadd.f32 %v225, %v241
      %v262 = vadd.f32 %v226, %v241
      %v263 = vadd.f32 %v227, %v241
      %v264 = vadd.f32 %v228, %v241
      %v265 = vadd.f32 %v229, %v241
      %v266 = vadd.f32 %v230, %v241
      %v267 = vadd.f32 %v231, %v241
      %v268 = vadd.f32 %v232, %v241
      %v269 = vadd.f32 %v233, %v241
      %v270 = vadd.f32 %v234, %v241
      %v271 = vadd.f32 %v235, %v241
      %v272 = vadd.f32 %v236, %v241
      %v273 = vadd.f32 %v237, %v241
      %v274 = vadd.f32 %v238, %v241
      %v275 = vmax.f32 %v243, 0.0
      %v276 = vmax.f32 %v244, 0.0
      %v277 = vmax.f32 %v245, 0.0
      %v278 = vmax.f32 %v246, 0.0
      %v279 = vmax.f32 %v247, 0.0
      %v280 = vmax.f32 %v248, 0.0
      %v281 = vmax.f32 %v249, 0.0
      %v282 = vmax.f32 %v250, 0.0
      %v283 = vmax.f32 %v251, 0.0
      %v284 = vmax.f32 %v252, 0.0
      %v285 = vmax.f32 %v253, 0.0
      %v286 = vmax.f32 %v254, 0.0
      %v287 = vmax.f32 %v255, 0.0
      %v288 = vmax.f32 %v256, 0.0
      %v289 = vmax.f32 %v257, 0.0
      %v290 = vmax.f32 %v258, 0.0
      %v291 = vmax.f32 %v259, 0.0
      %v292 = vmax.f32 %v260, 0.0
      %v293 = vmax.f32 %v261, 0.0
      %v294 = vmax.f32 %v262, 0.0
      %v295 = vmax.f32 %v263, 0.0
      %v296 = vmax.f32 %v264, 0.0
      %v297 = vmax.f32 %v265, 0.0
      %v298 = vmax.f32 %v266, 0.0
      %v299 = vmax.f32 %v267, 0.0
      %v300 = vmax.f32 %v268, 0.0
      %v301 = vmax.f32 %v269, 0.0
      %v302 = vmax.f32 %v270, 0.0
      %v303 = vmax.f32 %v271, 0.0
      %v304 = vmax.f32 %v272, 0.0
      %v305 = vmax.f32 %v273, 0.0
      %v306 = vmax.f32 %v274, 0.0
      %307 = vst [vmem:[%s170] sm:$0xff] %v275
      %308 = vst [vmem:[%s170 + $0x8] sm:$0xff] %v276
      %309 = vst [vmem:[%s170 + $0x10] sm:$0xff] %v277
      %310 = vst [vmem:[%s170 + $0x18] sm:$0xff] %v278
      %311 = vst [vmem:[%s170 + $0x20] sm:$0xff] %v279
      %312 = vst [vmem:[%s170 + $0x28] sm:$0xff] %v280
      %313 = vst [vmem:[%s170 + $0x30] sm:$0xff] %v281
      %314 = vst [vmem:[%s170 + $0x38] sm:$0xff] %v282
      %315 = vst [vmem:[%s170 + $0x40] sm:$0xff] %v283
      %316 = vst [vmem:[%s170 + $0x48] sm:$0xff] %v284
      %317 = vst [vmem:[%s170 + $0x50] sm:$0xff] %v285
      %318 = vst [vmem:[%s170 + $0x58] sm:$0xff] %v286
      %319 = vst [vmem:[%s170 + $0x60] sm:$0xff] %v287
      %320 = vst [vmem:[%s170 + $0x68] sm:$0xff] %v288
      %321 = vst [vmem:[%s170 + $0x70] sm:$0xff] %v289
      %322 = vst [vmem:[%s170 + $0x78] sm:$0xff] %v290
      %323 = vst [vmem:[%s170 + $0x80] sm:$0xff] %v291
      %324 = vst [vmem:[%s170 + $0x88] sm:$0xff] %v292
      %325 = vst [vmem:[%s170 + $0x90] sm:$0xff] %v293
      %326 = vst [vmem:[%s170 + $0x98] sm:$0xff] %v294
      %327 = vst [vmem:[%s170 + $0xa0] sm:$0xff] %v295
      %328 = vst [vmem:[%s170 + $0xa8] sm:$0xff] %v296
      %329 = vst [vmem:[%s170 + $0xb0] sm:$0xff] %v297
      %330 = vst [vmem:[%s170 + $0xb8] sm:$0xff] %v298
      %331 = vst [vmem:[%s170 + $0xc0] sm:$0xff] %v299
      %332 = vst [vmem:[%s170 + $0xc8] sm:$0xff] %v300
      %333 = vst [vmem:[%s170 + $0xd0] sm:$0xff] %v301
      %334 = vst [vmem:[%s170 + $0xd8] sm:$0xff] %v302
      %335 = vst [vmem:[%s170 + $0xe0] sm:$0xff] %v303
      %336 = vst [vmem:[%s170 + $0xe8] sm:$0xff] %v304
      %337 = vst [vmem:[%s170 + $0xf0] sm:$0xff] %v305
      %338 = vst [vmem:[%s170 + $0xf8] sm:$0xff] %v306
      %p339 = scmp.lt.s32.totalorder %s14, 1
      %s340 = scalar_select %p339, %s14, 1
      %s341 = smul.addr %s340, 32
      %s342 = smul.addr %s341, 8
      %s343 = scalar_lea.vmem %s3, %s342
      // Predicated region
      $region33: #{double_conv.5} parent=31 // pred_check
        %p344 = pneg %p100
      $region34: #{double_conv.5} parent=31 // pred_check_branch
        %346 = sbr.rel (%p344) target = $region36
      $region35: #{double_conv.5} parent=31 // pred_region
        _
      $region36: #{double_conv.5} parent=31 // pred_fallthru
        _
    $region32: #{double_conv.5} parent=5 // pred_fallthru
      _
    %p347 = scmp.le.s32.totalorder 2, %s9
    // Predicated region
    $region37: #{double_conv.5} parent=5 // pred_check
      %p348 = pneg %p347
    $region38: #{double_conv.5} parent=5 // pred_check_branch
      %350 = sbr.rel (%p348) target = $region40
    $region39: #{double_conv.5} parent=5 // pred_region
      %s351 = ssub.s32 %s9, 2
      // Predicated region
      $region41: #{double_conv.5} parent=39 // pred_check
        %p352 = pneg %p106
      $region42: #{double_conv.5} parent=39 // pred_check_branch
        %354 = sbr.rel (%p352) target = $region44
      $region43: #{double_conv.5} parent=39 // pred_region
        %p355 = scmp.lt.s32.totalorder %s15, 1
        %s356 = scalar_select %p355, %s15, 1
        %s357 = smul.addr %s356, 32
        %s358 = smul.addr %s357, 8
        %s359 = scalar_lea.vmem %s3, %s358
      $region44: #{double_conv.5} parent=39 // pred_fallthru
        _
    $region40: #{double_conv.5} parent=5 // pred_fallthru
      _
  $region6: #{double_conv.5} parent=0 // loop_footer
    %s13 = sadd.s32 1, %s9
  $region7: #{double_conv.5} parent=0 // loop_footer_branch
    %8 = sbr.rel target = $region3
  $region8: #{double_conv.5} parent=0 // loop_exit
    _

// kernel: double_conv.3
$region0: #{double_conv.3}
  #allocation0 [shape = 'u32[]', space=smem, size = 0x4, offset = 0x4, fixed_abs, tag = 'smem constant byte address 0x4 - core index']
  #allocation1 [shape = 'u32[72,128]{1,0:T(1,128)}', space=vmem, size = 0x9000, scoped, tag = 'internal scratch']
  #allocation2 [shape = 'bf16[1,18,18,4]{3,2,1,0:T(8,128)(2,1)}', space=vmem, size = 0x1b000, scoped, tag = 'scratch operand']
  %s0 = inlined_call_operand.vmem [shape: f32[2,16,16,4], index: 0, kind: input, shape index: {}]
  %s1 = inlined_call_operand.vmem [shape: bf16[36,128], index: 1, kind: input, shape index: {}]
  %s2 = inlined_call_operand.vmem [shape: f32[2,16,16,128], index: 2, kind: output, shape index: {0}]
  %s3 = inlined_call_operand.vmem [shape: f32[2,2,128], index: 3, kind: output, shape index: {1}]
  %4 = xla_tuple %s2, %s3
  %s5 = sld [smem:[#allocation0]]
  $region49: #{double_conv.3} parent=0
    _
  %s7 = ssub.s32 1, %s5
  %s8 = scalar_select 0, %s7, %s5
  loop: start=0, step=1, limit=4
  $region2: #{double_conv.3} parent=0 // loop_pre_header
    _
  $region3: #{double_conv.3} parent=0 // loop_header
    %s10 = sphi 0, %s14
    %p11 = scmp.ge.s32.totalorder %s10, 4
    %s20 = sphi 0, %s22
    %s23 = sphi 0, %s20
    %s24 = sphi 0, %s23
    %s40 = sphi 0, %s24
    %s44 = sphi 0, %s44
    %s46 = sphi 0, %s44
    %s47 = sphi 0, %s46
    %s61 = sphi 0, %s47
    %s67 = sphi 0, %s69
    %s70 = sphi 0, %s67
    %s71 = sphi 0, %s70
    %s87 = sphi 0, %s71
    %s93 = sphi 0, %s95
    %s96 = sphi 0, %s93
    %s97 = sphi 0, %s96
    %s113 = sphi 0, %s97
  $region4: #{double_conv.3} parent=0 // loop_header_branch
    %13 = sbr.rel (%p11) target = $region8
  $region5: #{double_conv.3} parent=0 // loop_body
    %s15 = ssub.s32 %s10, 1
    %s16 = ssub.s32 %s10, 2
    %s17 = sadd.s32 %s10, 1
    %s18 = ssub.s32 %s10, %s17
    %p19 = scmp.eq.s32.totalorder %s18, 0
    %s21 = sadd.s32 %s20, 1
    %s22 = scalar_select %p19, %s20, %s21
    %p25 = pneg %p19
    %p26 = scmp.eq.s32.totalorder %s10, 1
    %p27 = por %p25, %p26
    %p28 = scmp.ne.s32.totalorder %s20, %s23
    %p29 = scmp.eq.s32.totalorder %s10, 0
    %p30 = por %p28, %p29
    %p31 = scmp.ne.s32.totalorder %s20, %s23
    %p32 = scmp.eq.s32.totalorder %s15, 1
    %p33 = por %p31, %p32
    %p34 = scmp.ne.s32.totalorder %s23, %s24
    %p35 = scmp.eq.s32.totalorder %s15, 0
    %p36 = por %p34, %p35
    %p37 = scmp.ne.s32.totalorder %s23, %s24
    %p38 = scmp.eq.s32.totalorder %s16, 1
    %p39 = por %p37, %p38
    %p41 = scmp.ne.s32.totalorder %s24, %s40
    %p42 = scmp.eq.s32.totalorder %s16, 0
    %p43 = por %p41, %p42
    %s45 = sadd.s32 %s44, 1
    %p48 = scmp.eq.s32.totalorder %s10, 1
    %p49 = scmp.ne.s32.totalorder %s44, %s46
    %p50 = scmp.eq.s32.totalorder %s10, 0
    %p51 = por %p49, %p50
    %p52 = scmp.ne.s32.totalorder %s44, %s46
    %p53 = scmp.eq.s32.totalorder %s15, 1
    %p54 = por %p52, %p53
    %p55 = scmp.ne.s32.totalorder %s46, %s47
    %p56 = scmp.eq.s32.totalorder %s15, 0
    %p57 = por %p55, %p56
    %p58 = scmp.ne.s32.totalorder %s46, %s47
    %p59 = scmp.eq.s32.totalorder %s16, 1
    %p60 = por %p58, %p59
    %p62 = scmp.ne.s32.totalorder %s47, %s61
    %p63 = scmp.eq.s32.totalorder %s16, 0
    %p64 = por %p62, %p63
    %s65 = ssub.s32 %s10, %s17
    %p66 = scmp.eq.s32.totalorder %s65, 0
    %s68 = sadd.s32 %s67, 1
    %s69 = scalar_select %p66, %s67, %s68
    %p72 = pneg %p66
    %p73 = scmp.eq.s32.totalorder %s10, 1
    %p74 = por %p72, %p73
    %p75 = scmp.ne.s32.totalorder %s67, %s70
    %p76 = scmp.eq.s32.totalorder %s10, 0
    %p77 = por %p75, %p76
    %p78 = scmp.ne.s32.totalorder %s67, %s70
    %p79 = scmp.eq.s32.totalorder %s15, 1
    %p80 = por %p78, %p79
    %p81 = scmp.ne.s32.totalorder %s70, %s71
    %p82 = scmp.eq.s32.totalorder %s15, 0
    %p83 = por %p81, %p82
    %p84 = scmp.ne.s32.totalorder %s70, %s71
    %p85 = scmp.eq.s32.totalorder %s16, 1
    %p86 = por %p84, %p85
    %p88 = scmp.ne.s32.totalorder %s71, %s87
    %p89 = scmp.eq.s32.totalorder %s16, 0
    %p90 = por %p88, %p89
    %s91 = ssub.s32 %s10, %s17
    %p92 = scmp.eq.s32.totalorder %s91, 0
    %s94 = sadd.s32 %s93, 1
    %s95 = scalar_select %p92, %s93, %s94
    %p98 = pneg %p92
    %p99 = scmp.eq.s32.totalorder %s10, 1
    %p100 = por %p98, %p99
    %p101 = scmp.ne.s32.totalorder %s93, %s96
    %p102 = scmp.eq.s32.totalorder %s10, 0
    %p103 = por %p101, %p102
    %p104 = scmp.ne.s32.totalorder %s93, %s96
    %p105 = scmp.eq.s32.totalorder %s15, 1
    %p106 = por %p104, %p105
    %p107 = scmp.ne.s32.totalorder %s96, %s97
    %p108 = scmp.eq.s32.totalorder %s15, 0
    %p109 = por %p107, %p108
    %p110 = scmp.ne.s32.totalorder %s96, %s97
    %p111 = scmp.eq.s32.totalorder %s16, 1
    %p112 = por %p110, %p111
    %p114 = scmp.ne.s32.totalorder %s97, %s113
    %p115 = scmp.eq.s32.totalorder %s16, 0
    %p116 = por %p114, %p115
    %p117 = scmp.le.s32.totalorder 1, %s10
    %p118 = scmp.lt.s32.totalorder %s10, 3
    %p119 = pnand %p117, %p118
    %p120 = pneg %p119
    // Predicated region
    $region9: #{double_conv.3} parent=5 // pred_check
      _
    $region10: #{double_conv.3} parent=5 // pred_check_branch
      %122 = sbr.rel (%p119) target = $region12
    $region11: #{double_conv.3} parent=5 // pred_region
      %s123 = ssub.s32 %s10, 1
      // Predicated region
      $region13: #{double_conv.3} parent=11 // pred_check
        %p124 = pneg %p57
      $region14: #{double_conv.3} parent=11 // pred_check_branch
        %126 = sbr.rel (%p124) target = $region16
      $region15: #{double_conv.3} parent=11 // pred_region
        _
      $region16: #{double_conv.3} parent=11 // pred_fallthru
        _
    $region12: #{double_conv.3} parent=5 // pred_fallthru
      _
    %p127 = scmp.lt.s32.totalorder %s10, 2
    // Predicated region
    $region17: #{double_conv.3} parent=5 // pred_check
      %p128 = pneg %p127
    $region18: #{double_conv.3} parent=5 // pred_check_branch
      %130 = sbr.rel (%p128) target = $region20
    $region19: #{double_conv.3} parent=5 // pred_region
      // Predicated region
      $region21: #{double_conv.3} parent=19 // pred_check
        %p131 = pneg %p30
      $region22: #{double_conv.3} parent=19 // pred_check_branch
        %133 = sbr.rel (%p131) target = $region24
      $region23: #{double_conv.3} parent=19 // pred_region
        %p134 = scmp.lt.s32.totalorder %s10, 1
        %s135 = scalar_select %p134, %s10, 1
        %s136 = smul.addr %s135, 32
        %s137 = smul.addr %s136, 8
        %s138 = scalar_lea.vmem %s0, %s137
      $region24: #{double_conv.3} parent=19 // pred_fallthru
        _
    $region20: #{double_conv.3} parent=5 // pred_fallthru
      _
    %p139 = scmp.le.s32.totalorder 1, %s10
    %p140 = scmp.lt.s32.totalorder %s10, 3
    %p141 = pnand %p139, %p140
    %p142 = pneg %p141
    // Predicated region
    $region25: #{double_conv.3} parent=5 // pred_check
      _
    $region26: #{double_conv.3} parent=5 // pred_check_branch
      %144 = sbr.rel (%p141) target = $region28
    $region27: #{double_conv.3} parent=5 // pred_region
      %s145 = ssub.s32 %s10, 1
      %p146 = scmp.lt.s32.totalorder %s15, 1
      %s147 = scalar_select %p146, %s15, 1
      %s148 = smul.addr %s147, 32
      %s149 = smul.addr %s148, 8
      %s150 = scalar_lea.vmem %s0, %s149
      %p151 = pneg %p36
      %p152 = pneg %p33
      %p153 = pneg %p57
      %p154 = pneg %p54
      %p155 = pneg %p83
      %p156 = pneg %p80
      %p157 = scmp.lt.s32.totalorder %s15, 1
      %s158 = scalar_select %p157, %s15, 1
      %s159 = smul.addr %s158, 32
      %s160 = smul.addr %s159, 8
      %s161 = scalar_lea.vmem %s2, %s160
      %p162 = pneg %p109
      %p163 = pneg %p106
      %p164 = scmp.lt.s32.totalorder %s15, 1
      %s165 = scalar_select %p164, %s15, 1
      %s166 = smul.addr %s165, 2
      %s167 = scalar_lea.vmem %s3, %s166
      %p168 = scmp.lt.s32.totalorder %s15, 1
      %s169 = scalar_select %p168, %s15, 1
      %s170 = smul.addr %s169, 32
      %s171 = smul.addr %s170, 8
      %s172 = scalar_lea.vmem %s0, %s171
      %p173 = scmp.lt.s32.totalorder %s15, 1
      %s174 = scalar_select %p173, %s15, 1
      %s175 = smul.addr %s174, 32
      %s176 = smul.addr %s175, 8
      %s177 = scalar_lea.vmem %s2, %s176
      %p178 = scmp.lt.s32.totalorder %s15, 1
      %s179 = scalar_select %p178, %s15, 1
      %s180 = smul.addr %s179, 2
      %s181 = scalar_lea.vmem %s3, %s180
      %v183 = vld [vmem:[%s172] sm:$0xff]
      %v184 = vld [vmem:[%s172 + $0x8] sm:$0xff]
      %v185 = vld [vmem:[%s172 + $0x10] sm:$0xff]
      %v186 = vld [vmem:[%s172 + $0x18] sm:$0xff]
      %v187 = vld [vmem:[%s172 + $0x20] sm:$0xff]
      %v188 = vld [vmem:[%s172 + $0x28] sm:$0xff]
      %v189 = vld [vmem:[%s172 + $0x30] sm:$0xff]
      %v190 = vld [vmem:[%s172 + $0x38] sm:$0xff]
      %v191 = vld [vmem:[%s172 + $0x40] sm:$0xff]
      %v192 = vld [vmem:[%s172 + $0x48] sm:$0xff]
      %v193 = vld [vmem:[%s172 + $0x50] sm:$0xff]
      %v194 = vld [vmem:[%s172 + $0x58] sm:$0xff]
      %v195 = vld [vmem:[%s172 + $0x60] sm:$0xff]
      %v196 = vld [vmem:[%s172 + $0x68] sm:$0xff]
      %v197 = vld [vmem:[%s172 + $0x70] sm:$0xff]
      %v198 = vld [vmem:[%s172 + $0x78] sm:$0xff]
      %v199 = vld [vmem:[%s172 + $0x80] sm:$0xff]
      %v200 = vld [vmem:[%s172 + $0x88] sm:$0xff]
      %v201 = vld [vmem:[%s172 + $0x90] sm:$0xff]
      %v202 = vld [vmem:[%s172 + $0x98] sm:$0xff]
      %v203 = vld [vmem:[%s172 + $0xa0] sm:$0xff]
      %v204 = vld [vmem:[%s172 + $0xa8] sm:$0xff]
      %v205 = vld [vmem:[%s172 + $0xb0] sm:$0xff]
      %v206 = vld [vmem:[%s172 + $0xb8] sm:$0xff]
      %v207 = vld [vmem:[%s172 + $0xc0] sm:$0xff]
      %v208 = vld [vmem:[%s172 + $0xc8] sm:$0xff]
      %v209 = vld [vmem:[%s172 + $0xd0] sm:$0xff]
      %v210 = vld [vmem:[%s172 + $0xd8] sm:$0xff]
      %v211 = vld [vmem:[%s172 + $0xe0] sm:$0xff]
      %v212 = vld [vmem:[%s172 + $0xe8] sm:$0xff]
      %v213 = vld [vmem:[%s172 + $0xf0] sm:$0xff]
      %v214 = vld [vmem:[%s172 + $0xf8] sm:$0xff]
      %v215 = vpack.c.bf16 %v183, %v183
      %v216 = vpack.c.bf16 %v184, %v184
      %v217 = vpack.c.bf16 %v185, %v185
      %v218 = vpack.c.bf16 %v186, %v186
      %v219 = vpack.c.bf16 %v187, %v187
      %v220 = vpack.c.bf16 %v188, %v188
      %v221 = vpack.c.bf16 %v189, %v189
      %v222 = vpack.c.bf16 %v190, %v190
      %v223 = vpack.c.bf16 %v191, %v191
      %v224 = vpack.c.bf16 %v192, %v192
      %v225 = vpack.c.bf16 %v193, %v193
      %v226 = vpack.c.bf16 %v194, %v194
      %v227 = vpack.c.bf16 %v195, %v195
      %v228 = vpack.c.bf16 %v196, %v196
      %v229 = vpack.c.bf16 %v197, %v197
      %v230 = vpack.c.bf16 %v198, %v198
      %v231 = vpack.c.bf16 %v199, %v199
      %v232 = vpack.c.bf16 %v200, %v200
      %v233 = vpack.c.bf16 %v201, %v201
      %v234 = vpack.c.bf16 %v202, %v202
      %v235 = vpack.c.bf16 %v203, %v203
      %v236 = vpack.c.bf16 %v204, %v204
      %v237 = vpack.c.bf16 %v205, %v205
      %v238 = vpack.c.bf16 %v206, %v206
      %v239 = vpack.c.bf16 %v207, %v207
      %v240 = vpack.c.bf16 %v208, %v208
      %v241 = vpack.c.bf16 %v209, %v209
      %v242 = vpack.c.bf16 %v210, %v210
      %v243 = vpack.c.bf16 %v211, %v211
      %v244 = vpack.c.bf16 %v212, %v212
      %v245 = vpack.c.bf16 %v213, %v213
      %v246 = vpack.c.bf16 %v214, %v214
      %vm247 = vsmask.f32 256
      %vm248 = vsmask.f32 4368
      %vm249 = vmor %vm247, %vm248
      %v251 = vshrl.u32 %v215, 16
      %v253 = vrot.slane %v251, 7
      %v254 = vshll.u32 %v215, 16
      %v256 = vor.u32 %v253, %v254
      %v257 = vrot.slane %v253, 4
      %v259 = vshrl.u32 %v216, 16
      %v261 = vrot.slane %v259, 7
      %v262 = vshll.u32 %v216, 16
      %v264 = vor.u32 %v261, %v262
      %v265 = vsel %vm249, %v257, %v264
      %v266 = vrot.slane %v261, 4
      %v268 = vshrl.u32 %v217, 16
      %v270 = vrot.slane %v268, 7
      %v271 = vshll.u32 %v217, 16
      %v273 = vor.u32 %v270, %v271
      %v274 = vrot.slane %v270, 4
      %v276 = vshrl.u32 %v218, 16
      %v278 = vrot.slane %v276, 7
      %v279 = vshll.u32 %v218, 16
      %v281 = vor.u32 %v278, %v279
      %v282 = vsel %vm249, %v274, %v281
      %v283 = vrot.slane %v278, 4
      %v285 = vshrl.u32 %v219, 16
      %v287 = vrot.slane %v285, 7
      %v288 = vshll.u32 %v219, 16
      %v290 = vor.u32 %v287, %v288
      %v291 = vrot.slane %v287, 4
      %v293 = vshrl.u32 %v220, 16
      %v295 = vrot.slane %v293, 7
      %v296 = vshll.u32 %v220, 16
      %v298 = vor.u32 %v295, %v296
      %v299 = vsel %vm249, %v291, %v298
      %v300 = vrot.slane %v295, 4
      %v302 = vshrl.u32 %v221, 16
      %v304 = vrot.slane %v302, 7
      %v305 = vshll.u32 %v221, 16
      %v307 = vor.u32 %v304, %v305
      %v308 = vrot.slane %v304, 4
      %v310 = vshrl.u32 %v222, 16
      %v312 = vrot.slane %v310, 7
      %v313 = vshll.u32 %v222, 16
      %v315 = vor.u32 %v312, %v313
      %v316 = vsel %vm249, %v308, %v315
      %v317 = vrot.slane %v312, 4
      %v319 = vshrl.u32 %v223, 16
      %v321 = vrot.slane %v319, 7
      %v322 = vshll.u32 %v223, 16
      %v324 = vor.u32 %v321, %v322
      %v325 = vrot.slane %v321, 4
      %v327 = vshrl.u32 %v224, 16
      %v329 = vrot.slane %v327, 7
      %v330 = vshll.u32 %v224, 16
      %v332 = vor.u32 %v329, %v330
      %v333 = vsel %vm249, %v325, %v332
      %v334 = vrot.slane %v329, 4
      %v336 = vshrl.u32 %v225, 16
      %v338 = vrot.slane %v336, 7
      %v339 = vshll.u32 %v225, 16
      %v341 = vor.u32 %v338, %v339
      %v342 = vrot.slane %v338, 4
      %v344 = vshrl.u32 %v226, 16
      %v346 = vrot.slane %v344, 7
      %v347 = vshll.u32 %v226, 16
      %v349 = vor.u32 %v346, %v347
      %v350 = vsel %vm249, %v342, %v349
      %v351 = vrot.slane %v346, 4
      %v353 = vshrl.u32 %v227, 16
      %v355 = vrot.slane %v353, 7
      %v356 = vshll.u32 %v227, 16
      %v358 = vor.u32 %v355, %v356
      %v359 = vrot.slane %v355, 4
      %v361 = vshrl.u32 %v228, 16
      %v363 = vrot.slane %v361, 7
      %v364 = vshll.u32 %v228, 16
      %v366 = vor.u32 %v363, %v364
      %v367 = vsel %vm249, %v359, %v366
      %v368 = vrot.slane %v363, 4
      %v370 = vshrl.u32 %v229, 16
      %v372 = vrot.slane %v370, 7
      %v373 = vshll.u32 %v229, 16
      %v375 = vor.u32 %v372, %v373
      %v376 = vrot.slane %v372, 4
      %v378 = vshrl.u32 %v230, 16
      %v380 = vrot.slane %v378, 7
      %v381 = vshll.u32 %v230, 16
      %v383 = vor.u32 %v380, %v381
      %v384 = vsel %vm249, %v376, %v383
      %v385 = vrot.slane %v380, 4
      %v387 = vshrl.u32 %v231, 16
      %v389 = vrot.slane %v387, 7
      %v390 = vshll.u32 %v231, 16
      %v392 = vor.u32 %v389, %v390
      %v393 = vrot.slane %v389, 4
      %v395 = vshrl.u32 %v232, 16
      %v397 = vrot.slane %v395, 7
      %v398 = vshll.u32 %v232, 16
      %v400 = vor.u32 %v397, %v398
      %v401 = vsel %vm249, %v393, %v400
      %v402 = vrot.slane %v397, 4
      %v404 = vshrl.u32 %v233, 16
      %v406 = vrot.slane %v404, 7
      %v407 = vshll.u32 %v233, 16
      %v409 = vor.u32 %v406, %v407
      %v410 = vrot.slane %v406, 4
      %v412 = vshrl.u32 %v234, 16
      %v414 = vrot.slane %v412, 7
      %v415 = vshll.u32 %v234, 16
      %v417 = vor.u32 %v414, %v415
      %v418 = vsel %vm249, %v410, %v417
      %v419 = vrot.slane %v414, 4
      %v421 = vshrl.u32 %v235, 16
      %v423 = vrot.slane %v421, 7
      %v424 = vshll.u32 %v235, 16
      %v426 = vor.u32 %v423, %v424
      %v427 = vrot.slane %v423, 4
      %v429 = vshrl.u32 %v236, 16
      %v431 = vrot.slane %v429, 7
      %v432 = vshll.u32 %v236, 16
      %v434 = vor.u32 %v431, %v432
      %v435 = vsel %vm249, %v427, %v434
      %v436 = vrot.slane %v431, 4
      %v438 = vshrl.u32 %v237, 16
      %v440 = vrot.slane %v438, 7
      %v441 = vshll.u32 %v237, 16
      %v443 = vor.u32 %v440, %v441
      %v444 = vrot.slane %v440, 4
      %v446 = vshrl.u32 %v238, 16
      %v448 = vrot.slane %v446, 7
      %v449 = vshll.u32 %v238, 16
      %v451 = vor.u32 %v448, %v449
      %v452 = vsel %vm249, %v444, %v451
      %v453 = vrot.slane %v448, 4
      %v455 = vshrl.u32 %v239, 16
      %v457 = vrot.slane %v455, 7
      %v458 = vshll.u32 %v239, 16
      %v460 = vor.u32 %v457, %v458
      %v461 = vrot.slane %v457, 4
      %v463 = vshrl.u32 %v240, 16
      %v465 = vrot.slane %v463, 7
      %v466 = vshll.u32 %v240, 16
      %v468 = vor.u32 %v465, %v466
      %v469 = vsel %vm249, %v461, %v468
      %v470 = vrot.slane %v465, 4
      %v472 = vshrl.u32 %v241, 16
      %v474 = vrot.slane %v472, 7
      %v475 = vshll.u32 %v241, 16
      %v477 = vor.u32 %v474, %v475
      %v478 = vrot.slane %v474, 4
      %v480 = vshrl.u32 %v242, 16
      %v482 = vrot.slane %v480, 7
      %v483 = vshll.u32 %v242, 16
      %v485 = vor.u32 %v482, %v483
      %v486 = vsel %vm249, %v478, %v485
      %v487 = vrot.slane %v482, 4
      %v489 = vshrl.u32 %v243, 16
      %v491 = vrot.slane %v489, 7
      %v492 = vshll.u32 %v243, 16
      %v494 = vor.u32 %v491, %v492
      %v495 = vrot.slane %v491, 4
      %v497 = vshrl.u32 %v244, 16
      %v499 = vrot.slane %v497, 7
      %v500 = vshll.u32 %v244, 16
      %v502 = vor.u32 %v499, %v500
      %v503 = vsel %vm249, %v495, %v502
      %v504 = vrot.slane %v499, 4
      %v506 = vshrl.u32 %v245, 16
      %v508 = vrot.slane %v506, 7
      %v509 = vshll.u32 %v245, 16
      %v511 = vor.u32 %v508, %v509
      %v512 = vrot.slane %v508, 4
      %v514 = vshrl.u32 %v246, 16
      %v516 = vrot.slane %v514, 7
      %v517 = vshll.u32 %v246, 16
      %v519 = vor.u32 %v516, %v517
      %v520 = vsel %vm249, %v512, %v519
      %v521 = vrot.slane %v516, 4
      %s570 = scalar_lea.vmem [#allocation2], 12
      %vm571 = vcmask 27648
      %vm572 = vsmask.f32 7938
      %vm573 = vmand %vm571, %vm572
      %v574 = vld [vmem:[%s570] sm:$0xf]
      %v575 = vsel %vm573, %v256, %v574
      %576 = vst [vmem:[%s570] sm:$0xf] %v575
      %vm577 = vcmask 27648
      %578 = vst.msk [vmem:[%s570 + $0x4] sm:$0xf] %vm577, %v265
      %vm579 = vcmask 24576
      %vm580 = vmand %vm579, %vm247
      %v581 = vld [vmem:[%s570 + $0x8] sm:$0x1]
      %v582 = vsel %vm580, %v266, %v581
      %583 = vst [vmem:[%s570 + $0x8] sm:$0x1] %v582
      %v584 = vld [vmem:[%s570 + $0xc] sm:$0xf]
      %v585 = vsel %vm573, %v273, %v584
      %586 = vst [vmem:[%s570 + $0xc] sm:$0xf] %v585
      %587 = vst.msk [vmem:[%s570 + $0x10] sm:$0xf] %vm577, %v282
      %v588 = vld [vmem:[%s570 + $0x14] sm:$0x1]
      %v589 = vsel %vm580, %v283, %v588
      %590 = vst [vmem:[%s570 + $0x14] sm:$0x1] %v589
      %v591 = vld [vmem:[%s570 + $0x18] sm:$0xf]
      %v592 = vsel %vm573, %v290, %v591
      %593 = vst [vmem:[%s570 + $0x18] sm:$0xf] %v592
      %594 = vst.msk [vmem:[%s570 + $0x1c] sm:$0xf] %vm577, %v299
      %v595 = vld [vmem:[%s570 + $0x20] sm:$0x1]
      %v596 = vsel %vm580, %v300, %v595
      %597 = vst [vmem:[%s570 + $0x20] sm:$0x1] %v596
      %v598 = vld [vmem:[%s570 + $0x24] sm:$0xf]
      %v599 = vsel %vm573, %v307, %v598
      %600 = vst [vmem:[%s570 + $0x24] sm:$0xf] %v599
      %601 = vst.msk [vmem:[%s570 + $0x28] sm:$0xf] %vm577, %v316
      %v602 = vld [vmem:[%s570 + $0x2c] sm:$0x1]
      %v603 = vsel %vm580, %v317, %v602
      %604 = vst [vmem:[%s570 + $0x2c] sm:$0x1] %v603
      %v605 = vld [vmem:[%s570 + $0x30] sm:$0xf]
      %v606 = vsel %vm573, %v324, %v605
      %607 = vst [vmem:[%s570 + $0x30] sm:$0xf] %v606
      %608 = vst.msk [vmem:[%s570 + $0x34] sm:$0xf] %vm577, %v333
      %v609 = vld [vmem:[%s570 + $0x38] sm:$0x1]
      %v610 = vsel %vm580, %v334, %v609
      %611 = vst [vmem:[%s570 + $0x38] sm:$0x1] %v610
      %v612 = vld [vmem:[%s570 + $0x3c] sm:$0xf]
      %v613 = vsel %vm573, %v341, %v612
      %614 = vst [vmem:[%s570 + $0x3c] sm:$0xf] %v613
      %615 = vst.msk [vmem:[%s570 + $0x40] sm:$0xf] %vm577, %v350
      %v616 = vld [vmem:[%s570 + $0x44] sm:$0x1]
      %v617 = vsel %vm580, %v351, %v616
      %618 = vst [vmem:[%s570 + $0x44] sm:$0x1] %v617
      %v619 = vld [vmem:[%s570 + $0x48] sm:$0xf]
      %v620 = vsel %vm573, %v358, %v619
      %621 = vst [vmem:[%s570 + $0x48] sm:$0xf] %v620
      %622 = vst.msk [vmem:[%s570 + $0x4c] sm:$0xf] %vm577, %v367
      %v623 = vld [vmem:[%s570 + $0x50] sm:$0x1]
      %v624 = vsel %vm580, %v368, %v623
      %625 = vst [vmem:[%s570 + $0x50] sm:$0x1] %v624
      %v626 = vld [vmem:[%s570 + $0x54] sm:$0xf]
      %v627 = vsel %vm573, %v375, %v626
      %628 = vst [vmem:[%s570 + $0x54] sm:$0xf] %v627
      %629 = vst.msk [vmem:[%s570 + $0x58] sm:$0xf] %vm577, %v384
      %v630 = vld [vmem:[%s570 + $0x5c] sm:$0x1]
      %v631 = vsel %vm580, %v385, %v630
      %632 = vst [vmem:[%s570 + $0x5c] sm:$0x1] %v631
      %v633 = vld [vmem:[%s570 + $0x60] sm:$0xf]
      %v634 = vsel %vm573, %v392, %v633
      %635 = vst [vmem:[%s570 + $0x60] sm:$0xf] %v634
      %636 = vst.msk [vmem:[%s570 + $0x64] sm:$0xf] %vm577, %v401
      %v637 = vld [vmem:[%s570 + $0x68] sm:$0x1]
      %v638 = vsel %vm580, %v402, %v637
      %639 = vst [vmem:[%s570 + $0x68] sm:$0x1] %v638
      %v640 = vld [vmem:[%s570 + $0x6c] sm:$0xf]
      %v641 = vsel %vm573, %v409, %v640
      %642 = vst [vmem:[%s570 + $0x6c] sm:$0xf] %v641
      %643 = vst.msk [vmem:[%s570 + $0x70] sm:$0xf] %vm577, %v418
      %v644 = vld [vmem:[%s570 + $0x74] sm:$0x1]
      %v645 = vsel %vm580, %v419, %v644
      %646 = vst [vmem:[%s570 + $0x74] sm:$0x1] %v645
      %v647 = vld [vmem:[%s570 + $0x78] sm:$0xf]
      %v648 = vsel %vm573, %v426, %v647
      %649 = vst [vmem:[%s570 + $0x78] sm:$0xf] %v648
      %650 = vst.msk [vmem:[%s570 + $0x7c] sm:$0xf] %vm577, %v435
      %v651 = vld [vmem:[%s570 + $0x80] sm:$0x1]
      %v652 = vsel %vm580, %v436, %v651
      %653 = vst [vmem:[%s570 + $0x80] sm:$0x1] %v652
      %v654 = vld [vmem:[%s570 + $0x84] sm:$0xf]
      %v655 = vsel %vm573, %v443, %v654
      %656 = vst [vmem:[%s570 + $0x84] sm:$0xf] %v655
      %657 = vst.msk [vmem:[%s570 + $0x88] sm:$0xf] %vm577, %v452
      %v658 = vld [vmem:[%s570 + $0x8c] sm:$0x1]
      %v659 = vsel %vm580, %v453, %v658
      %660 = vst [vmem:[%s570 + $0x8c] sm:$0x1] %v659
      %v661 = vld [vmem:[%s570 + $0x90] sm:$0xf]
      %v662 = vsel %vm573, %v460, %v661
      %663 = vst [vmem:[%s570 + $0x90] sm:$0xf] %v662
      %664 = vst.msk [vmem:[%s570 + $0x94] sm:$0xf] %vm577, %v469
      %v665 = vld [vmem:[%s570 + $0x98] sm:$0x1]
      %v666 = vsel %vm580, %v470, %v665
      %667 = vst [vmem:[%s570 + $0x98] sm:$0x1] %v666
      %v668 = vld [vmem:[%s570 + $0x9c] sm:$0xf]
      %v669 = vsel %vm573, %v477, %v668
      %670 = vst [vmem:[%s570 + $0x9c] sm:$0xf] %v669
      %671 = vst.msk [vmem:[%s570 + $0xa0] sm:$0xf] %vm577, %v486
      %v672 = vld [vmem:[%s570 + $0xa4] sm:$0x1]
      %v673 = vsel %vm580, %v487, %v672
      %674 = vst [vmem:[%s570 + $0xa4] sm:$0x1] %v673
      %v675 = vld [vmem:[%s570 + $0xa8] sm:$0xf]
      %v676 = vsel %vm573, %v494, %v675
      %677 = vst [vmem:[%s570 + $0xa8] sm:$0xf] %v676
      %678 = vst.msk [vmem:[%s570 + $0xac] sm:$0xf] %vm577, %v503
      %v679 = vld [vmem:[%s570 + $0xb0] sm:$0x1]
      %v680 = vsel %vm580, %v504, %v679
      %681 = vst [vmem:[%s570 + $0xb0] sm:$0x1] %v680
      %v682 = vld [vmem:[%s570 + $0xb4] sm:$0xf]
      %v683 = vsel %vm573, %v511, %v682
      %684 = vst [vmem:[%s570 + $0xb4] sm:$0xf] %v683
      %685 = vst.msk [vmem:[%s570 + $0xb8] sm:$0xf] %vm577, %v520
      %v686 = vld [vmem:[%s570 + $0xbc] sm:$0x1]
      %v687 = vsel %vm580, %v521, %v686
      %688 = vst [vmem:[%s570 + $0xbc] sm:$0x1] %v687
      %689 = vst.msk [vmem:[#allocation2] sm:$0xf] %vm577, 0
      %690 = vst.msk [vmem:[#allocation2 + $0x4] sm:$0xf] %vm577, 0
      %vm691 = vcmask 24576
      %692 = vst.msk [vmem:[#allocation2 + $0x8] sm:$0x1] %vm691, 0
      %s693 = scalar_lea.vmem [#allocation2], 204
      %694 = vst.msk [vmem:[%s693] sm:$0xf] %vm577, 0
      %695 = vst.msk [vmem:[%s693 + $0x4] sm:$0xf] %vm577, 0
      %696 = vst.msk [vmem:[%s693 + $0x8] sm:$0x1] %vm691, 0
      %v697 = vld [vmem:[%s570] sm:$0x1]
      %v698 = vsel %vm580, 0, %v697
      %699 = vst [vmem:[%s570] sm:$0x1] %v698
      %v700 = vld [vmem:[%s570 + $0xc] sm:$0x1]
      %v701 = vsel %vm580, 0, %v700
      %702 = vst [vmem:[%s570 + $0xc] sm:$0x1] %v701
      %v703 = vld [vmem:[%s570 + $0x18] sm:$0x1]
      %v704 = vsel %vm580, 0, %v703
      %705 = vst [vmem:[%s570 + $0x18] sm:$0x1] %v704
      %v706 = vld [vmem:[%s570 + $0x24] sm:$0x1]
      %v707 = vsel %vm580, 0, %v706
      %708 = vst [vmem:[%s570 + $0x24] sm:$0x1] %v707
      %v709 = vld [vmem:[%s570 + $0x30] sm:$0x1]
      %v710 = vsel %vm580, 0, %v709
      %711 = vst [vmem:[%s570 + $0x30] sm:$0x1] %v710
      %v712 = vld [vmem:[%s570 + $0x3c] sm:$0x1]
      %v713 = vsel %vm580, 0, %v712
      %714 = vst [vmem:[%s570 + $0x3c] sm:$0x1] %v713
      %v715 = vld [vmem:[%s570 + $0x48] sm:$0x1]
      %v716 = vsel %vm580, 0, %v715
      %717 = vst [vmem:[%s570 + $0x48] sm:$0x1] %v716
      %v718 = vld [vmem:[%s570 + $0x54] sm:$0x1]
      %v719 = vsel %vm580, 0, %v718
      %720 = vst [vmem:[%s570 + $0x54] sm:$0x1] %v719
      %v721 = vld [vmem:[%s570 + $0x60] sm:$0x1]
      %v722 = vsel %vm580, 0, %v721
      %723 = vst [vmem:[%s570 + $0x60] sm:$0x1] %v722
      %v724 = vld [vmem:[%s570 + $0x6c] sm:$0x1]
      %v725 = vsel %vm580, 0, %v724
      %726 = vst [vmem:[%s570 + $0x6c] sm:$0x1] %v725
      %v727 = vld [vmem:[%s570 + $0x78] sm:$0x1]
      %v728 = vsel %vm580, 0, %v727
      %729 = vst [vmem:[%s570 + $0x78] sm:$0x1] %v728
      %v730 = vld [vmem:[%s570 + $0x84] sm:$0x1]
      %v731 = vsel %vm580, 0, %v730
      %732 = vst [vmem:[%s570 + $0x84] sm:$0x1] %v731
      %v733 = vld [vmem:[%s570 + $0x90] sm:$0x1]
      %v734 = vsel %vm580, 0, %v733
      %735 = vst [vmem:[%s570 + $0x90] sm:$0x1] %v734
      %v736 = vld [vmem:[%s570 + $0x9c] sm:$0x1]
      %v737 = vsel %vm580, 0, %v736
      %738 = vst [vmem:[%s570 + $0x9c] sm:$0x1] %v737
      %v739 = vld [vmem:[%s570 + $0xa8] sm:$0x1]
      %v740 = vsel %vm580, 0, %v739
      %741 = vst [vmem:[%s570 + $0xa8] sm:$0x1] %v740
      %v742 = vld [vmem:[%s570 + $0xb4] sm:$0x1]
      %v743 = vsel %vm580, 0, %v742
      %744 = vst [vmem:[%s570 + $0xb4] sm:$0x1] %v743
      %vm745 = vmand %vm579, %vm572
      %v746 = vld [vmem:[%s570 + $0x8] sm:$0x1]
      %v747 = vsel %vm745, 0, %v746
      %748 = vst [vmem:[%s570 + $0x8] sm:$0x1] %v747
      %v749 = vld [vmem:[%s570 + $0x14] sm:$0x1]
      %v750 = vsel %vm745, 0, %v749
      %751 = vst [vmem:[%s570 + $0x14] sm:$0x1] %v750
      %v752 = vld [vmem:[%s570 + $0x20] sm:$0x1]
      %v753 = vsel %vm745, 0, %v752
      %754 = vst [vmem:[%s570 + $0x20] sm:$0x1] %v753
      %v755 = vld [vmem:[%s570 + $0x2c] sm:$0x1]
      %v756 = vsel %vm745, 0, %v755
      %757 = vst [vmem:[%s570 + $0x2c] sm:$0x1] %v756
      %v758 = vld [vmem:[%s570 + $0x38] sm:$0x1]
      %v759 = vsel %vm745, 0, %v758
      %760 = vst [vmem:[%s570 + $0x38] sm:$0x1] %v759
      %v761 = vld [vmem:[%s570 + $0x44] sm:$0x1]
      %v762 = vsel %vm745, 0, %v761
      %763 = vst [vmem:[%s570 + $0x44] sm:$0x1] %v762
      %v764 = vld [vmem:[%s570 + $0x50] sm:$0x1]
      %v765 = vsel %vm745, 0, %v764
      %766 = vst [vmem:[%s570 + $0x50] sm:$0x1] %v765
      %v767 = vld [vmem:[%s570 + $0x5c] sm:$0x1]
      %v768 = vsel %vm745, 0, %v767
      %769 = vst [vmem:[%s570 + $0x5c] sm:$0x1] %v768
      %v770 = vld [vmem:[%s570 + $0x68] sm:$0x1]
      %v771 = vsel %vm745, 0, %v770
      %772 = vst [vmem:[%s570 + $0x68] sm:$0x1] %v771
      %v773 = vld [vmem:[%s570 + $0x74] sm:$0x1]
      %v774 = vsel %vm745, 0, %v773
      %775 = vst [vmem:[%s570 + $0x74] sm:$0x1] %v774
      %v776 = vld [vmem:[%s570 + $0x80] sm:$0x1]
      %v777 = vsel %vm745, 0, %v776
      %778 = vst [vmem:[%s570 + $0x80] sm:$0x1] %v777
      %v779 = vld [vmem:[%s570 + $0x8c] sm:$0x1]
      %v780 = vsel %vm745, 0, %v779
      %781 = vst [vmem:[%s570 + $0x8c] sm:$0x1] %v780
      %v782 = vld [vmem:[%s570 + $0x98] sm:$0x1]
      %v783 = vsel %vm745, 0, %v782
      %784 = vst [vmem:[%s570 + $0x98] sm:$0x1] %v783
      %v785 = vld [vmem:[%s570 + $0xa4] sm:$0x1]
      %v786 = vsel %vm745, 0, %v785
      %787 = vst [vmem:[%s570 + $0xa4] sm:$0x1] %v786
      %v788 = vld [vmem:[%s570 + $0xb0] sm:$0x1]
      %v789 = vsel %vm745, 0, %v788
      %790 = vst [vmem:[%s570 + $0xb0] sm:$0x1] %v789
      %v791 = vld [vmem:[%s570 + $0xbc] sm:$0x1]
      %v792 = vsel %vm745, 0, %v791
      %793 = vst [vmem:[%s570 + $0xbc] sm:$0x1] %v792
      %v794 = vld [vmem:[#allocation2] sm:$0xf]
      %v795 = vld [vmem:[#allocation2 + $0x4] sm:$0xf]
      %v796 = vld [vmem:[#allocation2 + $0xc] sm:$0xf]
      %v797 = vld [vmem:[#allocation2 + $0x10] sm:$0xf]
      %v798 = vld [vmem:[#allocation2 + $0x18] sm:$0xf]
      %v799 = vld [vmem:[#allocation2 + $0x1c] sm:$0xf]
      %v800 = vld [vmem:[#allocation2 + $0x24] sm:$0xf]
      %v801 = vld [vmem:[#allocation2 + $0x28] sm:$0xf]
      %v802 = vld [vmem:[#allocation2 + $0x30] sm:$0xf]
      %v803 = vld [vmem:[#allocation2 + $0x34] sm:$0xf]
      %v804 = vld [vmem:[#allocation2 + $0x3c] sm:$0xf]
      %v805 = vld [vmem:[#allocation2 + $0x40] sm:$0xf]
      %v806 = vld [vmem:[#allocation2 + $0x48] sm:$0xf]
      %v807 = vld [vmem:[#allocation2 + $0x4c] sm:$0xf]
      %v808 = vld [vmem:[#allocation2 + $0x54] sm:$0xf]
      %v809 = vld [vmem:[#allocation2 + $0x58] sm:$0xf]
      %v810 = vld [vmem:[#allocation2 + $0x60] sm:$0xf]
      %v811 = vld [vmem:[#allocation2 + $0x64] sm:$0xf]
      %v812 = vld [vmem:[#allocation2 + $0x6c] sm:$0xf]
      %v813 = vld [vmem:[#allocation2 + $0x70] sm:$0xf]
      %v814 = vld [vmem:[#allocation2 + $0x78] sm:$0xf]
      %v815 = vld [vmem:[#allocation2 + $0x7c] sm:$0xf]
      %v816 = vld [vmem:[#allocation2 + $0x84] sm:$0xf]
      %v817 = vld [vmem:[#allocation2 + $0x88] sm:$0xf]
      %v818 = vld [vmem:[#allocation2 + $0x90] sm:$0xf]
      %v819 = vld [vmem:[#allocation2 + $0x94] sm:$0xf]
      %v820 = vld [vmem:[#allocation2 + $0x9c] sm:$0xf]
      %v821 = vld [vmem:[#allocation2 + $0xa0] sm:$0xf]
      %v822 = vld [vmem:[#allocation2 + $0xa8] sm:$0xf]
      %v823 = vld [vmem:[#allocation2 + $0xac] sm:$0xf]
      %v824 = vld [vmem:[#allocation2 + $0xb4] sm:$0xf]
      %v825 = vld [vmem:[#allocation2 + $0xb8] sm:$0xf]
      %v826 = vld [vmem:[%s1] sm:$0x3]
      %v827 = vld [vmem:[#allocation2 + $0x8] sm:$0x1]
      %v828 = vld [vmem:[#allocation2 + $0x14] sm:$0x1]
      %v829 = vld [vmem:[#allocation2 + $0x20] sm:$0x1]
      %v830 = vld [vmem:[#allocation2 + $0x2c] sm:$0x1]
      %v831 = vld [vmem:[#allocation2 + $0x38] sm:$0x1]
      %v832 = vld [vmem:[#allocation2 + $0x44] sm:$0x1]
      %v833 = vld [vmem:[#allocation2 + $0x50] sm:$0x1]
      %v834 = vld [vmem:[#allocation2 + $0x5c] sm:$0x1]
      %v835 = vld [vmem:[#allocation2 + $0x68] sm:$0x1]
      %v836 = vld [vmem:[#allocation2 + $0x74] sm:$0x1]
      %v837 = vld [vmem:[#allocation2 + $0x80] sm:$0x1]
      %v838 = vld [vmem:[#allocation2 + $0x8c] sm:$0x1]
      %v839 = vld [vmem:[#allocation2 + $0x98] sm:$0x1]
      %v840 = vld [vmem:[#allocation2 + $0xa4] sm:$0x1]
      %v841 = vld [vmem:[#allocation2 + $0xb0] sm:$0x1]
      %v842 = vld [vmem:[#allocation2 + $0xbc] sm:$0x1]
      %vm843 = vsmask.f32 3328
      %vm844 = vsmask.f32 7440
      %vm845 = vmor %vm843, %vm844
      %v847 = vshrl.u32 %v794, 16
      %v849 = vrot.slane %v847, 4
      %v850 = vshll.u32 %v794, 16
      %v852 = vrot.slane %v850, 5
      %v853 = vor.u32 %v849, %v852
      %v854 = vrot.slane %v853, 4
      %v856 = vshll.u32 %v795, 16
      %v858 = vrot.slane %v856, 5
      %v859 = vsel %vm845, %v854, %v858
      %v860 = vshrl.u32 %v795, 16
      %v862 = vrot.slane %v860, 4
      %v863 = vor.u32 %v862, %v858
      %v864 = vrot.slane %v863, 4
      %v866 = vshll.u32 %v827, 16
      %v868 = vrot.slane %v866, 5
      %v869 = vsel %vm845, %v864, %v868
      %v871 = vshrl.u32 %v796, 16
      %v873 = vrot.slane %v871, 4
      %v874 = vshll.u32 %v796, 16
      %v876 = vrot.slane %v874, 5
      %v877 = vor.u32 %v873, %v876
      %v878 = vrot.slane %v877, 4
      %v880 = vshll.u32 %v797, 16
      %v882 = vrot.slane %v880, 5
      %v883 = vsel %vm845, %v878, %v882
      %v884 = vshrl.u32 %v797, 16
      %v886 = vrot.slane %v884, 4
      %v887 = vor.u32 %v886, %v882
      %v888 = vrot.slane %v887, 4
      %v890 = vshll.u32 %v828, 16
      %v892 = vrot.slane %v890, 5
      %v893 = vsel %vm845, %v888, %v892
      %v895 = vshrl.u32 %v798, 16
      %v897 = vrot.slane %v895, 4
      %v898 = vshll.u32 %v798, 16
      %v900 = vrot.slane %v898, 5
      %v901 = vor.u32 %v897, %v900
      %v902 = vrot.slane %v901, 4
      %v904 = vshll.u32 %v799, 16
      %v906 = vrot.slane %v904, 5
      %v907 = vsel %vm845, %v902, %v906
      %v908 = vshrl.u32 %v799, 16
      %v910 = vrot.slane %v908, 4
      %v911 = vor.u32 %v910, %v906
      %v912 = vrot.slane %v911, 4
      %v914 = vshll.u32 %v829, 16
      %v916 = vrot.slane %v914, 5
      %v917 = vsel %vm845, %v912, %v916
      %v919 = vshrl.u32 %v800, 16
      %v921 = vrot.slane %v919, 4
      %v922 = vshll.u32 %v800, 16
      %v924 = vrot.slane %v922, 5
      %v925 = vor.u32 %v921, %v924
      %v926 = vrot.slane %v925, 4
      %v928 = vshll.u32 %v801, 16
      %v930 = vrot.slane %v928, 5
      %v931 = vsel %vm845, %v926, %v930
      %v932 = vshrl.u32 %v801, 16
      %v934 = vrot.slane %v932, 4
      %v935 = vor.u32 %v934, %v930
      %v936 = vrot.slane %v935, 4
      %v938 = vshll.u32 %v830, 16
      %v940 = vrot.slane %v938, 5
      %v941 = vsel %vm845, %v936, %v940
      %v943 = vshrl.u32 %v802, 16
      %v945 = vrot.slane %v943, 4
      %v946 = vshll.u32 %v802, 16
      %v948 = vrot.slane %v946, 5
      %v949 = vor.u32 %v945, %v948
      %v950 = vrot.slane %v949, 4
      %v952 = vshll.u32 %v803, 16
      %v954 = vrot.slane %v952, 5
      %v955 = vsel %vm845, %v950, %v954
      %v956 = vshrl.u32 %v803, 16
      %v958 = vrot.slane %v956, 4
      %v959 = vor.u32 %v958, %v954
      %v960 = vrot.slane %v959, 4
      %v962 = vshll.u32 %v831, 16
      %v964 = vrot.slane %v962, 5
      %v965 = vsel %vm845, %v960, %v964
      %v967 = vshrl.u32 %v804, 16
      %v969 = vrot.slane %v967, 4
      %v970 = vshll.u32 %v804, 16
      %v972 = vrot.slane %v970, 5
      %v973 = vor.u32 %v969, %v972
      %v974 = vrot.slane %v973, 4
      %v976 = vshll.u32 %v805, 16
      %v978 = vrot.slane %v976, 5
      %v979 = vsel %vm845, %v974, %v978
      %v980 = vshrl.u32 %v805, 16
      %v982 = vrot.slane %v980, 4
      %v983 = vor.u32 %v982, %v978
      %v984 = vrot.slane %v983, 4
      %v986 = vshll.u32 %v832, 16
      %v988 = vrot.slane %v986, 5
      %v989 = vsel %vm845, %v984, %v988
      %v991 = vshrl.u32 %v806, 16
      %v993 = vrot.slane %v991, 4
      %v994 = vshll.u32 %v806, 16
      %v996 = vrot.slane %v994, 5
      %v997 = vor.u32 %v993, %v996
      %v998 = vrot.slane %v997, 4
      %v1000 = vshll.u32 %v807, 16
      %v1002 = vrot.slane %v1000, 5
      %v1003 = vsel %vm845, %v998, %v1002
      %v1004 = vshrl.u32 %v807, 16
      %v1006 = vrot.slane %v1004, 4
      %v1007 = vor.u32 %v1006, %v1002
      %v1008 = vrot.slane %v1007, 4
      %v1010 = vshll.u32 %v833, 16
      %v1012 = vrot.slane %v1010, 5
      %v1013 = vsel %vm845, %v1008, %v1012
      %v1015 = vshrl.u32 %v808, 16
      %v1017 = vrot.slane %v1015, 4
      %v1018 = vshll.u32 %v808, 16
      %v1020 = vrot.slane %v1018, 5
      %v1021 = vor.u32 %v1017, %v1020
      %v1022 = vrot.slane %v1021, 4
      %v1024 = vshll.u32 %v809, 16
      %v1026 = vrot.slane %v1024, 5
      %v1027 = vsel %vm845, %v1022, %v1026
      %v1028 = vshrl.u32 %v809, 16
      %v1030 = vrot.slane %v1028, 4
      %v1031 = vor.u32 %v1030, %v1026
      %v1032 = vrot.slane %v1031, 4
      %v1034 = vshll.u32 %v834, 16
      %v1036 = vrot.slane %v1034, 5
      %v1037 = vsel %vm845, %v1032, %v1036
      %v1039 = vshrl.u32 %v810, 16
      %v1041 = vrot.slane %v1039, 4
      %v1042 = vshll.u32 %v810, 16
      %v1044 = vrot.slane %v1042, 5
      %v1045 = vor.u32 %v1041, %v1044
      %v1046 = vrot.slane %v1045, 4
      %v1048 = vshll.u32 %v811, 16
      %v1050 = vrot.slane %v1048, 5
      %v1051 = vsel %vm845, %v1046, %v1050
      %v1052 = vshrl.u32 %v811, 16
      %v1054 = vrot.slane %v1052, 4
      %v1055 = vor.u32 %v1054, %v1050
      %v1056 = vrot.slane %v1055, 4
      %v1058 = vshll.u32 %v835, 16
      %v1060 = vrot.slane %v1058, 5
      %v1061 = vsel %vm845, %v1056, %v1060
      %v1063 = vshrl.u32 %v812, 16
      %v1065 = vrot.slane %v1063, 4
      %v1066 = vshll.u32 %v812, 16
      %v1068 = vrot.slane %v1066, 5
      %v1069 = vor.u32 %v1065, %v1068
      %v1070 = vrot.slane %v1069, 4
      %v1072 = vshll.u32 %v813, 16
      %v1074 = vrot.slane %v1072, 5
      %v1075 = vsel %vm845, %v1070, %v1074
      %v1076 = vshrl.u32 %v813, 16
      %v1078 = vrot.slane %v1076, 4
      %v1079 = vor.u32 %v1078, %v1074
      %v1080 = vrot.slane %v1079, 4
      %v1082 = vshll.u32 %v836, 16
      %v1084 = vrot.slane %v1082, 5
      %v1085 = vsel %vm845, %v1080, %v1084
      %v1087 = vshrl.u32 %v814, 16
      %v1089 = vrot.slane %v1087, 4
      %v1090 = vshll.u32 %v814, 16
      %v1092 = vrot.slane %v1090, 5
      %v1093 = vor.u32 %v1089, %v1092
      %v1094 = vrot.slane %v1093, 4
      %v1096 = vshll.u32 %v815, 16
      %v1098 = vrot.slane %v1096, 5
      %v1099 = vsel %vm845, %v1094, %v1098
      %v1100 = vshrl.u32 %v815, 16
      %v1102 = vrot.slane %v1100, 4
      %v1103 = vor.u32 %v1102, %v1098
      %v1104 = vrot.slane %v1103, 4
      %v1106 = vshll.u32 %v837, 16
      %v1108 = vrot.slane %v1106, 5
      %v1109 = vsel %vm845, %v1104, %v1108
      %v1111 = vshrl.u32 %v816, 16
      %v1113 = vrot.slane %v1111, 4
      %v1114 = vshll.u32 %v816, 16
      %v1116 = vrot.slane %v1114, 5
      %v1117 = vor.u32 %v1113, %v1116
      %v1118 = vrot.slane %v1117, 4
      %v1120 = vshll.u32 %v817, 16
      %v1122 = vrot.slane %v1120, 5
      %v1123 = vsel %vm845, %v1118, %v1122
      %v1124 = vshrl.u32 %v817, 16
      %v1126 = vrot.slane %v1124, 4
      %v1127 = vor.u32 %v1126, %v1122
      %v1128 = vrot.slane %v1127, 4
      %v1130 = vshll.u32 %v838, 16
      %v1132 = vrot.slane %v1130, 5
      %v1133 = vsel %vm845, %v1128, %v1132
      %v1135 = vshrl.u32 %v818, 16
      %v1137 = vrot.slane %v1135, 4
      %v1138 = vshll.u32 %v818, 16
      %v1140 = vrot.slane %v1138, 5
      %v1141 = vor.u32 %v1137, %v1140
      %v1142 = vrot.slane %v1141, 4
      %v1144 = vshll.u32 %v819, 16
      %v1146 = vrot.slane %v1144, 5
      %v1147 = vsel %vm845, %v1142, %v1146
      %v1148 = vshrl.u32 %v819, 16
      %v1150 = vrot.slane %v1148, 4
      %v1151 = vor.u32 %v1150, %v1146
      %v1152 = vrot.slane %v1151, 4
      %v1154 = vshll.u32 %v839, 16
      %v1156 = vrot.slane %v1154, 5
      %v1157 = vsel %vm845, %v1152, %v1156
      %v1159 = vshrl.u32 %v820, 16
      %v1161 = vrot.slane %v1159, 4
      %v1162 = vshll.u32 %v820, 16
      %v1164 = vrot.slane %v1162, 5
      %v1165 = vor.u32 %v1161, %v1164
      %v1166 = vrot.slane %v1165, 4
      %v1168 = vshll.u32 %v821, 16
      %v1170 = vrot.slane %v1168, 5
      %v1171 = vsel %vm845, %v1166, %v1170
      %v1172 = vshrl.u32 %v821, 16
      %v1174 = vrot.slane %v1172, 4
      %v1175 = vor.u32 %v1174, %v1170
      %v1176 = vrot.slane %v1175, 4
      %v1178 = vshll.u32 %v840, 16
      %v1180 = vrot.slane %v1178, 5
      %v1181 = vsel %vm845, %v1176, %v1180
      %v1183 = vshrl.u32 %v822, 16
      %v1185 = vrot.slane %v1183, 4
      %v1186 = vshll.u32 %v822, 16
      %v1188 = vrot.slane %v1186, 5
      %v1189 = vor.u32 %v1185, %v1188
      %v1190 = vrot.slane %v1189, 4
      %v1192 = vshll.u32 %v823, 16
      %v1194 = vrot.slane %v1192, 5
      %v1195 = vsel %vm845, %v1190, %v1194
      %v1196 = vshrl.u32 %v823, 16
      %v1198 = vrot.slane %v1196, 4
      %v1199 = vor.u32 %v1198, %v1194
      %v1200 = vrot.slane %v1199, 4
      %v1202 = vshll.u32 %v841, 16
      %v1204 = vrot.slane %v1202, 5
      %v1205 = vsel %vm845, %v1200, %v1204
      %v1207 = vshrl.u32 %v824, 16
      %v1209 = vrot.slane %v1207, 4
      %v1210 = vshll.u32 %v824, 16
      %v1212 = vrot.slane %v1210, 5
      %v1213 = vor.u32 %v1209, %v1212
      %v1214 = vrot.slane %v1213, 4
      %v1216 = vshll.u32 %v825, 16
      %v1218 = vrot.slane %v1216, 5
      %v1219 = vsel %vm845, %v1214, %v1218
      %v1220 = vshrl.u32 %v825, 16
      %v1222 = vrot.slane %v1220, 4
      %v1223 = vor.u32 %v1222, %v1218
      %v1224 = vrot.slane %v1223, 4
      %v1226 = vshll.u32 %v842, 16
      %v1228 = vrot.slane %v1226, 5
      %v1229 = vsel %vm845, %v1224, %v1228
      %v1230 = vld [vmem:[%s1] sm:$0xc]
      %v1231 = vunpack.c.l.b16 %v859
      %v1232 = vunpack.c.l.b16 %v869
      %v1233 = vunpack.c.l.b16 %v883
      %v1234 = vunpack.c.l.b16 %v893
      %v1235 = vunpack.c.l.b16 %v907
      %v1236 = vunpack.c.l.b16 %v917
      %v1237 = vunpack.c.l.b16 %v931
      %v1238 = vunpack.c.l.b16 %v941
      %v1239 = vunpack.c.l.b16 %v955
      %v1240 = vunpack.c.l.b16 %v965
      %v1241 = vunpack.c.l.b16 %v979
      %v1242 = vunpack.c.l.b16 %v989
      %v1243 = vunpack.c.l.b16 %v1003
      %v1244 = vunpack.c.l.b16 %v1013
      %v1245 = vunpack.c.l.b16 %v1027
      %v1246 = vunpack.c.l.b16 %v1037
      %v1247 = vunpack.c.l.b16 %v1051
      %v1248 = vunpack.c.l.b16 %v1061
      %v1249 = vunpack.c.l.b16 %v1075
      %v1250 = vunpack.c.l.b16 %v1085
      %v1251 = vunpack.c.l.b16 %v1099
      %v1252 = vunpack.c.l.b16 %v1109
      %v1253 = vunpack.c.l.b16 %v1123
      %v1254 = vunpack.c.l.b16 %v1133
      %v1255 = vunpack.c.l.b16 %v1147
      %v1256 = vunpack.c.l.b16 %v1157
      %v1257 = vunpack.c.l.b16 %v1171
      %v1258 = vunpack.c.l.b16 %v1181
      %v1259 = vunpack.c.l.b16 %v1195
      %v1260 = vunpack.c.l.b16 %v1205
      %v1261 = vunpack.c.l.b16 %v1219
      %v1262 = vunpack.c.l.b16 %v1229
      %v1263 = vpack.c.b16 %v1232, %v1231
      %v1264 = vpack.c.b16 %v1234, %v1233
      %v1265 = vpack.c.b16 %v1236, %v1235
      %v1266 = vpack.c.b16 %v1238, %v1237
      %v1267 = vpack.c.b16 %v1240, %v1239
      %v1268 = vpack.c.b16 %v1242, %v1241
      %v1269 = vpack.c.b16 %v1244, %v1243
      %v1270 = vpack.c.b16 %v1246, %v1245
      %v1271 = vpack.c.b16 %v1248, %v1247
      %v1272 = vpack.c.b16 %v1250, %v1249
      %v1273 = vpack.c.b16 %v1252, %v1251
      %v1274 = vpack.c.b16 %v1254, %v1253
      %v1275 = vpack.c.b16 %v1256, %v1255
      %v1276 = vpack.c.b16 %v1258, %v1257
      %v1277 = vpack.c.b16 %v1260, %v1259
      %v1278 = vpack.c.b16 %v1262, %v1261
      %v1280 = vunpack.c.l.b16 %v1230
      %v1281 = vpack.c.b16 %v1280, %v1280
      %v1282 = vrot.slane %v1281, 2
      %vm1283 = vcmask 31744
      %v1285 = vsel %vm1283, %v1263, 0
      %v1288 = vsel %vm1283, %v1264, 0
      %v1291 = vsel %vm1283, %v1265, 0
      %v1294 = vsel %vm1283, %v1266, 0
      %v1297 = vsel %vm1283, %v1267, 0
      %v1300 = vsel %vm1283, %v1268, 0
      %v1303 = vsel %vm1283, %v1269, 0
      %v1306 = vsel %vm1283, %v1270, 0
      %v1309 = vsel %vm1283, %v1271, 0
      %v1312 = vsel %vm1283, %v1272, 0
      %v1315 = vsel %vm1283, %v1273, 0
      %v1318 = vsel %vm1283, %v1274, 0
      %v1321 = vsel %vm1283, %v1275, 0
      %v1324 = vsel %vm1283, %v1276, 0
      %v1327 = vsel %vm1283, %v1277, 0
      %v1330 = vsel %vm1283, %v1278, 0
      %vm1332 = vcmask 1041408
      %v1334 = vsel %vm1332, %v1282, 0
      %1336 = vmatpush.bf16.msra.mxu0 0
      %1337 = vmatpush.bf16.msra.mxu0 0
      %1338 = vmatpush.bf16.msra.mxu0 0
      %1339 = vmatpush.bf16.msra.mxu0 0
      %1340 = vmatpush.bf16.msra.mxu0 0
      %1341 = vmatpush.bf16.msra.mxu0 0
      %1342 = vmatpush.bf16.msra.mxu0 0
      %1343 = vmatpush.bf16.msra.mxu0 %v1334
      %1344 = vmatmul.bf16.gmra.mxu0 %v1285
      %v1345 = vpop.f32.mrf.mxu0
      %v1346 = vadd.f32 0.0, %v1345
      %v1347 = vpop.f32.mrf.mxu0
      %v1348 = vadd.f32 0.0, %v1347
      %1349 = vmatmul.bf16.gmra.mxu0 %v1288
      %v1350 = vpop.f32.mrf.mxu0
      %v1351 = vadd.f32 0.0, %v1350
      %v1352 = vpop.f32.mrf.mxu0
      %v1353 = vadd.f32 0.0, %v1352
      %1354 = vmatmul.bf16.gmra.mxu0 %v1291
      %v1355 = vpop.f32.mrf.mxu0
      %v1356 = vadd.f32 0.0, %v1355
      %v1357 = vpop.f32.mrf.mxu0
      %v1358 = vadd.f32 0.0, %v1357
      %1359 = vmatmul.bf16.gmra.mxu0 %v1294
      %v1360 = vpop.f32.mrf.mxu0
      %v1361 = vadd.f32 0.0, %v1360
      %v1362 = vpop.f32.mrf.mxu0
      %v1363 = vadd.f32 0.0, %v1362
      %1364 = vmatmul.bf16.gmra.mxu0 %v1297
      %v1365 = vpop.f32.mrf.mxu0
      %v1366 = vadd.f32 0.0, %v1365
      %v1367 = vpop.f32.mrf.mxu0
      %v1368 = vadd.f32 0.0, %v1367
      %1369 = vmatmul.bf16.gmra.mxu0 %v1300
      %v1370 = vpop.f32.mrf.mxu0
      %v1371 = vadd.f32 0.0, %v1370
      %v1372 = vpop.f32.mrf.mxu0
      %v1373 = vadd.f32 0.0, %v1372
      %1374 = vmatmul.bf16.gmra.mxu0 %v1303
      %v1375 = vpop.f32.mrf.mxu0
      %v1376 = vadd.f32 0.0, %v1375
      %v1377 = vpop.f32.mrf.mxu0
      %v1378 = vadd.f32 0.0, %v1377
      %1379 = vmatmul.bf16.gmra.mxu0 %v1306
      %v1380 = vpop.f32.mrf.mxu0
      %v1381 = vadd.f32 0.0, %v1380
      %v1382 = vpop.f32.mrf.mxu0
      %v1383 = vadd.f32 0.0, %v1382
      %1384 = vmatmul.bf16.gmra.mxu0 %v1309
      %v1385 = vpop.f32.mrf.mxu0
      %v1386 = vadd.f32 0.0, %v1385
      %v1387 = vpop.f32.mrf.mxu0
      %v1388 = vadd.f32 0.0, %v1387
      %1389 = vmatmul.bf16.gmra.mxu0 %v1312
      %v1390 = vpop.f32.mrf.mxu0
      %v1391 = vadd.f32 0.0, %v1390
      %v1392 = vpop.f32.mrf.mxu0
      %v1393 = vadd.f32 0.0, %v1392
      %1394 = vmatmul.bf16.gmra.mxu0 %v1315
      %v1395 = vpop.f32.mrf.mxu0
      %v1396 = vadd.f32 0.0, %v1395
      %v1397 = vpop.f32.mrf.mxu0
      %v1398 = vadd.f32 0.0, %v1397
      %1399 = vmatmul.bf16.gmra.mxu0 %v1318
      %v1400 = vpop.f32.mrf.mxu0
      %v1401 = vadd.f32 0.0, %v1400
      %v1402 = vpop.f32.mrf.mxu0
      %v1403 = vadd.f32 0.0, %v1402
      %1404 = vmatmul.bf16.gmra.mxu0 %v1321
      %v1405 = vpop.f32.mrf.mxu0
      %v1406 = vadd.f32 0.0, %v1405
      %v1407 = vpop.f32.mrf.mxu0
      %v1408 = vadd.f32 0.0, %v1407
      %1409 = vmatmul.bf16.gmra.mxu0 %v1324
      %v1410 = vpop.f32.mrf.mxu0
      %v1411 = vadd.f32 0.0, %v1410
      %v1412 = vpop.f32.mrf.mxu0
      %v1413 = vadd.f32 0.0, %v1412
      %1414 = vmatmul.bf16.gmra.mxu0 %v1327
      %v1415 = vpop.f32.mrf.mxu0
      %v1416 = vadd.f32 0.0, %v1415
      %v1417 = vpop.f32.mrf.mxu0
      %v1418 = vadd.f32 0.0, %v1417
      %1419 = vmatmul.bf16.gmra.mxu0 %v1330
      %v1420 = vpop.f32.mrf.mxu0
      %v1421 = vadd.f32 0.0, %v1420
      %v1422 = vpop.f32.mrf.mxu0
      %v1423 = vadd.f32 0.0, %v1422
      %1424 = vdwg.mxu0
      %v1457 = vunpack.c.l.b16 %v794
      %v1458 = vunpack.c.l.b16 %v795
      %v1459 = vunpack.c.l.b16 %v796
      %v1460 = vunpack.c.l.b16 %v797
      %v1461 = vunpack.c.l.b16 %v798
      %v1462 = vunpack.c.l.b16 %v799
      %v1463 = vunpack.c.l.b16 %v800
      %v1464 = vunpack.c.l.b16 %v801
      %v1465 = vunpack.c.l.b16 %v802
      %v1466 = vunpack.c.l.b16 %v803
      %v1467 = vunpack.c.l.b16 %v804
      %v1468 = vunpack.c.l.b16 %v805
      %v1469 = vunpack.c.l.b16 %v806
      %v1470 = vunpack.c.l.b16 %v807
      %v1471 = vunpack.c.l.b16 %v808
      %v1472 = vunpack.c.l.b16 %v809
      %v1473 = vunpack.c.l.b16 %v810
      %v1474 = vunpack.c.l.b16 %v811
      %v1475 = vunpack.c.l.b16 %v812
      %v1476 = vunpack.c.l.b16 %v813
      %v1477 = vunpack.c.l.b16 %v814
      %v1478 = vunpack.c.l.b16 %v815
      %v1479 = vunpack.c.l.b16 %v816
      %v1480 = vunpack.c.l.b16 %v817
      %v1481 = vunpack.c.l.b16 %v818
      %v1482 = vunpack.c.l.b16 %v819
      %v1483 = vunpack.c.l.b16 %v820
      %v1484 = vunpack.c.l.b16 %v821
      %v1485 = vunpack.c.l.b16 %v822
      %v1486 = vunpack.c.l.b16 %v823
      %v1487 = vunpack.c.l.b16 %v824
      %v1488 = vunpack.c.l.b16 %v825
      %v1489 = vpack.c.b16 %v1458, %v1457
      %v1490 = vpack.c.b16 %v1460, %v1459
      %v1491 = vpack.c.b16 %v1462, %v1461
      %v1492 = vpack.c.b16 %v1464, %v1463
      %v1493 = vpack.c.b16 %v1466, %v1465
      %v1494 = vpack.c.b16 %v1468, %v1467
      %v1495 = vpack.c.b16 %v1470, %v1469
      %v1496 = vpack.c.b16 %v1472, %v1471
      %v1497 = vpack.c.b16 %v1474, %v1473
      %v1498 = vpack.c.b16 %v1476, %v1475
      %v1499 = vpack.c.b16 %v1478, %v1477
      %v1500 = vpack.c.b16 %v1480, %v1479
      %v1501 = vpack.c.b16 %v1482, %v1481
      %v1502 = vpack.c.b16 %v1484, %v1483
      %v1503 = vpack.c.b16 %v1486, %v1485
      %v1504 = vpack.c.b16 %v1488, %v1487
      %v1506 = vsel %vm1283, %v1489, 0
      %v1509 = vsel %vm1283, %v1490, 0
      %v1512 = vsel %vm1283, %v1491, 0
      %v1515 = vsel %vm1283, %v1492, 0
      %v1518 = vsel %vm1283, %v1493, 0
      %v1521 = vsel %vm1283, %v1494, 0
      %v1524 = vsel %vm1283, %v1495, 0
      %v1527 = vsel %vm1283, %v1496, 0
      %v1530 = vsel %vm1283, %v1497, 0
      %v1533 = vsel %vm1283, %v1498, 0
      %v1536 = vsel %vm1283, %v1499, 0
      %v1539 = vsel %vm1283, %v1500, 0
      %v1542 = vsel %vm1283, %v1501, 0
      %v1545 = vsel %vm1283, %v1502, 0
      %v1548 = vsel %vm1283, %v1503, 0
      %v1551 = vsel %vm1283, %v1504, 0
      %v1554 = vsel %vm1332, %v826, 0
      %1556 = vmatpush.bf16.msra.mxu0 0
      %1557 = vmatpush.bf16.msra.mxu0 0
      %1558 = vmatpush.bf16.msra.mxu0 0
      %1559 = vmatpush.bf16.msra.mxu0 0
      %1560 = vmatpush.bf16.msra.mxu0 0
      %1561 = vmatpush.bf16.msra.mxu0 0
      %1562 = vmatpush.bf16.msra.mxu0 0
      %1563 = vmatpush.bf16.msra.mxu0 %v1554
      %1564 = vmatmul.bf16.gmra.mxu0 %v1506
      %v1565 = vpop.f32.mrf.mxu0
      %v1566 = vadd.f32 %v1346, %v1565
      %v1567 = vpop.f32.mrf.mxu0
      %v1568 = vadd.f32 %v1348, %v1567
      %1569 = vmatmul.bf16.gmra.mxu0 %v1509
      %v1570 = vpop.f32.mrf.mxu0
      %v1571 = vadd.f32 %v1351, %v1570
      %v1572 = vpop.f32.mrf.mxu0
      %v1573 = vadd.f32 %v1353, %v1572
      %1574 = vmatmul.bf16.gmra.mxu0 %v1512
      %v1575 = vpop.f32.mrf.mxu0
      %v1576 = vadd.f32 %v1356, %v1575
      %v1577 = vpop.f32.mrf.mxu0
      %v1578 = vadd.f32 %v1358, %v1577
      %1579 = vmatmul.bf16.gmra.mxu0 %v1515
      %v1580 = vpop.f32.mrf.mxu0
      %v1581 = vadd.f32 %v1361, %v1580
      %v1582 = vpop.f32.mrf.mxu0
      %v1583 = vadd.f32 %v1363, %v1582
      %1584 = vmatmul.bf16.gmra.mxu0 %v1518
      %v1585 = vpop.f32.mrf.mxu0
      %v1586 = vadd.f32 %v1366, %v1585
      %v1587 = vpop.f32.mrf.mxu0
      %v1588 = vadd.f32 %v1368, %v1587
      %1589 = vmatmul.bf16.gmra.mxu0 %v1521
      %v1590 = vpop.f32.mrf.mxu0
      %v1591 = vadd.f32 %v1371, %v1590
      %v1592 = vpop.f32.mrf.mxu0
      %v1593 = vadd.f32 %v1373, %v1592
      %1594 = vmatmul.bf16.gmra.mxu0 %v1524
      %v1595 = vpop.f32.mrf.mxu0
      %v1596 = vadd.f32 %v1376, %v1595
      %v1597 = vpop.f32.mrf.mxu0
      %v1598 = vadd.f32 %v1378, %v1597
      %1599 = vmatmul.bf16.gmra.mxu0 %v1527
      %v1600 = vpop.f32.mrf.mxu0
      %v1601 = vadd.f32 %v1381, %v1600
      %v1602 = vpop.f32.mrf.mxu0
      %v1603 = vadd.f32 %v1383, %v1602
      %1604 = vmatmul.bf16.gmra.mxu0 %v1530
      %v1605 = vpop.f32.mrf.mxu0
      %v1606 = vadd.f32 %v1386, %v1605
      %v1607 = vpop.f32.mrf.mxu0
      %v1608 = vadd.f32 %v1388, %v1607
      %1609 = vmatmul.bf16.gmra.mxu0 %v1533
      %v1610 = vpop.f32.mrf.mxu0
      %v1611 = vadd.f32 %v1391, %v1610
      %v1612 = vpop.f32.mrf.mxu0
      %v1613 = vadd.f32 %v1393, %v1612
      %1614 = vmatmul.bf16.gmra.mxu0 %v1536
      %v1615 = vpop.f32.mrf.mxu0
      %v1616 = vadd.f32 %v1396, %v1615
      %v1617 = vpop.f32.mrf.mxu0
      %v1618 = vadd.f32 %v1398, %v1617
      %1619 = vmatmul.bf16.gmra.mxu0 %v1539
      %v1620 = vpop.f32.mrf.mxu0
      %v1621 = vadd.f32 %v1401, %v1620
      %v1622 = vpop.f32.mrf.mxu0
      %v1623 = vadd.f32 %v1403, %v1622
      %1624 = vmatmul.bf16.gmra.mxu0 %v1542
      %v1625 = vpop.f32.mrf.mxu0
      %v1626 = vadd.f32 %v1406, %v1625
      %v1627 = vpop.f32.mrf.mxu0
      %v1628 = vadd.f32 %v1408, %v1627
      %1629 = vmatmul.bf16.gmra.mxu0 %v1545
      %v1630 = vpop.f32.mrf.mxu0
      %v1631 = vadd.f32 %v1411, %v1630
      %v1632 = vpop.f32.mrf.mxu0
      %v1633 = vadd.f32 %v1413, %v1632
      %1634 = vmatmul.bf16.gmra.mxu0 %v1548
      %v1635 = vpop.f32.mrf.mxu0
      %v1636 = vadd.f32 %v1416, %v1635
      %v1637 = vpop.f32.mrf.mxu0
      %v1638 = vadd.f32 %v1418, %v1637
      %1639 = vmatmul.bf16.gmra.mxu0 %v1551
      %v1640 = vpop.f32.mrf.mxu0
      %v1641 = vadd.f32 %v1421, %v1640
      %v1642 = vpop.f32.mrf.mxu0
      %v1643 = vadd.f32 %v1423, %v1642
      %1644 = vdwg.mxu0
      %v1645 = vld [vmem:[#allocation2] sm:$0xe]
      %v1646 = vld [vmem:[#allocation2 + $0xc] sm:$0xe]
      %v1647 = vld [vmem:[#allocation2 + $0x18] sm:$0xe]
      %v1648 = vld [vmem:[#allocation2 + $0x24] sm:$0xe]
      %v1649 = vld [vmem:[#allocation2 + $0x30] sm:$0xe]
      %v1650 = vld [vmem:[#allocation2 + $0x3c] sm:$0xe]
      %v1651 = vld [vmem:[#allocation2 + $0x48] sm:$0xe]
      %v1652 = vld [vmem:[#allocation2 + $0x54] sm:$0xe]
      %v1653 = vld [vmem:[#allocation2 + $0x60] sm:$0xe]
      %v1654 = vld [vmem:[#allocation2 + $0x6c] sm:$0xe]
      %v1655 = vld [vmem:[#allocation2 + $0x78] sm:$0xe]
      %v1656 = vld [vmem:[#allocation2 + $0x84] sm:$0xe]
      %v1657 = vld [vmem:[#allocation2 + $0x90] sm:$0xe]
      %v1658 = vld [vmem:[#allocation2 + $0x9c] sm:$0xe]
      %v1659 = vld [vmem:[#allocation2 + $0xa8] sm:$0xe]
      %v1660 = vld [vmem:[#allocation2 + $0xb4] sm:$0xe]
      %vm1693 = vcmask 1042432
      %vm1694 = vcmask 1046532
      %vm1695 = vmor %vm1693, %vm1694
      %v1696 = vrot.slane %v1645, 5
      %v1697 = vrot.slane %v1696, 4
      %v1698 = vrot.slane %v795, 5
      %v1699 = vsel %vm1695, %v1697, %v1698
      %v1700 = vrot.slane %v1698, 4
      %v1701 = vrot.slane %v827, 5
      %v1702 = vsel %vm1695, %v1700, %v1701
      %v1703 = vrot.slane %v1646, 5
      %v1704 = vrot.slane %v1703, 4
      %v1705 = vrot.slane %v797, 5
      %v1706 = vsel %vm1695, %v1704, %v1705
      %v1707 = vrot.slane %v1705, 4
      %v1708 = vrot.slane %v828, 5
      %v1709 = vsel %vm1695, %v1707, %v1708
      %v1710 = vrot.slane %v1647, 5
      %v1711 = vrot.slane %v1710, 4
      %v1712 = vrot.slane %v799, 5
      %v1713 = vsel %vm1695, %v1711, %v1712
      %v1714 = vrot.slane %v1712, 4
      %v1715 = vrot.slane %v829, 5
      %v1716 = vsel %vm1695, %v1714, %v1715
      %v1717 = vrot.slane %v1648, 5
      %v1718 = vrot.slane %v1717, 4
      %v1719 = vrot.slane %v801, 5
      %v1720 = vsel %vm1695, %v1718, %v1719
      %v1721 = vrot.slane %v1719, 4
      %v1722 = vrot.slane %v830, 5
      %v1723 = vsel %vm1695, %v1721, %v1722
      %v1724 = vrot.slane %v1649, 5
      %v1725 = vrot.slane %v1724, 4
      %v1726 = vrot.slane %v803, 5
      %v1727 = vsel %vm1695, %v1725, %v1726
      %v1728 = vrot.slane %v1726, 4
      %v1729 = vrot.slane %v831, 5
      %v1730 = vsel %vm1695, %v1728, %v1729
      %v1731 = vrot.slane %v1650, 5
      %v1732 = vrot.slane %v1731, 4
      %v1733 = vrot.slane %v805, 5
      %v1734 = vsel %vm1695, %v1732, %v1733
      %v1735 = vrot.slane %v1733, 4
      %v1736 = vrot.slane %v832, 5
      %v1737 = vsel %vm1695, %v1735, %v1736
      %v1738 = vrot.slane %v1651, 5
      %v1739 = vrot.slane %v1738, 4
      %v1740 = vrot.slane %v807, 5
      %v1741 = vsel %vm1695, %v1739, %v1740
      %v1742 = vrot.slane %v1740, 4
      %v1743 = vrot.slane %v833, 5
      %v1744 = vsel %vm1695, %v1742, %v1743
      %v1745 = vrot.slane %v1652, 5
      %v1746 = vrot.slane %v1745, 4
      %v1747 = vrot.slane %v809, 5
      %v1748 = vsel %vm1695, %v1746, %v1747
      %v1749 = vrot.slane %v1747, 4
      %v1750 = vrot.slane %v834, 5
      %v1751 = vsel %vm1695, %v1749, %v1750
      %v1752 = vrot.slane %v1653, 5
      %v1753 = vrot.slane %v1752, 4
      %v1754 = vrot.slane %v811, 5
      %v1755 = vsel %vm1695, %v1753, %v1754
      %v1756 = vrot.slane %v1754, 4
      %v1757 = vrot.slane %v835, 5
      %v1758 = vsel %vm1695, %v1756, %v1757
      %v1759 = vrot.slane %v1654, 5
      %v1760 = vrot.slane %v1759, 4
      %v1761 = vrot.slane %v813, 5
      %v1762 = vsel %vm1695, %v1760, %v1761
      %v1763 = vrot.slane %v1761, 4
      %v1764 = vrot.slane %v836, 5
      %v1765 = vsel %vm1695, %v1763, %v1764
      %v1766 = vrot.slane %v1655, 5
      %v1767 = vrot.slane %v1766, 4
      %v1768 = vrot.slane %v815, 5
      %v1769 = vsel %vm1695, %v1767, %v1768
      %v1770 = vrot.slane %v1768, 4
      %v1771 = vrot.slane %v837, 5
      %v1772 = vsel %vm1695, %v1770, %v1771
      %v1773 = vrot.slane %v1656, 5
      %v1774 = vrot.slane %v1773, 4
      %v1775 = vrot.slane %v817, 5
      %v1776 = vsel %vm1695, %v1774, %v1775
      %v1777 = vrot.slane %v1775, 4
      %v1778 = vrot.slane %v838, 5
      %v1779 = vsel %vm1695, %v1777, %v1778
      %v1780 = vrot.slane %v1657, 5
      %v1781 = vrot.slane %v1780, 4
      %v1782 = vrot.slane %v819, 5
      %v1783 = vsel %vm1695, %v1781, %v1782
      %v1784 = vrot.slane %v1782, 4
      %v1785 = vrot.slane %v839, 5
      %v1786 = vsel %vm1695, %v1784, %v1785
      %v1787 = vrot.slane %v1658, 5
      %v1788 = vrot.slane %v1787, 4
      %v1789 = vrot.slane %v821, 5
      %v1790 = vsel %vm1695, %v1788, %v1789
      %v1791 = vrot.slane %v1789, 4
      %v1792 = vrot.slane %v840, 5
      %v1793 = vsel %vm1695, %v1791, %v1792
      %v1794 = vrot.slane %v1659, 5
      %v1795 = vrot.slane %v1794, 4
      %v1796 = vrot.slane %v823, 5
      %v1797 = vsel %vm1695, %v1795, %v1796
      %v1798 = vrot.slane %v1796, 4
      %v1799 = vrot.slane %v841, 5
      %v1800 = vsel %vm1695, %v1798, %v1799
      %v1801 = vrot.slane %v1660, 5
      %v1802 = vrot.slane %v1801, 4
      %v1803 = vrot.slane %v825, 5
      %v1804 = vsel %vm1695, %v1802, %v1803
      %v1805 = vrot.slane %v1803, 4
      %v1806 = vrot.slane %v842, 5
      %v1807 = vsel %vm1695, %v1805, %v1806
      %v1808 = vld [vmem:[%s1 + $0x4] sm:$0x3]
      %v1809 = vunpack.c.l.b16 %v1699
      %v1810 = vunpack.c.l.b16 %v1702
      %v1811 = vunpack.c.l.b16 %v1706
      %v1812 = vunpack.c.l.b16 %v1709
      %v1813 = vunpack.c.l.b16 %v1713
      %v1814 = vunpack.c.l.b16 %v1716
      %v1815 = vunpack.c.l.b16 %v1720
      %v1816 = vunpack.c.l.b16 %v1723
      %v1817 = vunpack.c.l.b16 %v1727
      %v1818 = vunpack.c.l.b16 %v1730
      %v1819 = vunpack.c.l.b16 %v1734
      %v1820 = vunpack.c.l.b16 %v1737
      %v1821 = vunpack.c.l.b16 %v1741
      %v1822 = vunpack.c.l.b16 %v1744
      %v1823 = vunpack.c.l.b16 %v1748
      %v1824 = vunpack.c.l.b16 %v1751
      %v1825 = vunpack.c.l.b16 %v1755
      %v1826 = vunpack.c.l.b16 %v1758
      %v1827 = vunpack.c.l.b16 %v1762
      %v1828 = vunpack.c.l.b16 %v1765
      %v1829 = vunpack.c.l.b16 %v1769
      %v1830 = vunpack.c.l.b16 %v1772
      %v1831 = vunpack.c.l.b16 %v1776
      %v1832 = vunpack.c.l.b16 %v1779
      %v1833 = vunpack.c.l.b16 %v1783
      %v1834 = vunpack.c.l.b16 %v1786
      %v1835 = vunpack.c.l.b16 %v1790
      %v1836 = vunpack.c.l.b16 %v1793
      %v1837 = vunpack.c.l.b16 %v1797
      %v1838 = vunpack.c.l.b16 %v1800
      %v1839 = vunpack.c.l.b16 %v1804
      %v1840 = vunpack.c.l.b16 %v1807
      %v1841 = vpack.c.b16 %v1810, %v1809
      %v1842 = vpack.c.b16 %v1812, %v1811
      %v1843 = vpack.c.b16 %v1814, %v1813
      %v1844 = vpack.c.b16 %v1816, %v1815
      %v1845 = vpack.c.b16 %v1818, %v1817
      %v1846 = vpack.c.b16 %v1820, %v1819
      %v1847 = vpack.c.b16 %v1822, %v1821
      %v1848 = vpack.c.b16 %v1824, %v1823
      %v1849 = vpack.c.b16 %v1826, %v1825
      %v1850 = vpack.c.b16 %v1828, %v1827
      %v1851 = vpack.c.b16 %v1830, %v1829
      %v1852 = vpack.c.b16 %v1832, %v1831
      %v1853 = vpack.c.b16 %v1834, %v1833
      %v1854 = vpack.c.b16 %v1836, %v1835
      %v1855 = vpack.c.b16 %v1838, %v1837
      %v1856 = vpack.c.b16 %v1840, %v1839
      %v1858 = vsel %vm1283, %v1841, 0
      %v1861 = vsel %vm1283, %v1842, 0
      %v1864 = vsel %vm1283, %v1843, 0
      %v1867 = vsel %vm1283, %v1844, 0
      %v1870 = vsel %vm1283, %v1845, 0
      %v1873 = vsel %vm1283, %v1846, 0
      %v1876 = vsel %vm1283, %v1847, 0
      %v1879 = vsel %vm1283, %v1848, 0
      %v1882 = vsel %vm1283, %v1849, 0
      %v1885 = vsel %vm1283, %v1850, 0
      %v1888 = vsel %vm1283, %v1851, 0
      %v1891 = vsel %vm1283, %v1852, 0
      %v1894 = vsel %vm1283, %v1853, 0
      %v1897 = vsel %vm1283, %v1854, 0
      %v1900 = vsel %vm1283, %v1855, 0
      %v1903 = vsel %vm1283, %v1856, 0
      %v1906 = vsel %vm1332, %v1808, 0
      %1908 = vmatpush.bf16.msra.mxu0 0
      %1909 = vmatpush.bf16.msra.mxu0 0
      %1910 = vmatpush.bf16.msra.mxu0 0
      %1911 = vmatpush.bf16.msra.mxu0 0
      %1912 = vmatpush.bf16.msra.mxu0 0
      %1913 = vmatpush.bf16.msra.mxu0 0
      %1914 = vmatpush.bf16.msra.mxu0 0
      %1915 = vmatpush.bf16.msra.mxu0 %v1906
      %1916 = vmatmul.bf16.gmra.mxu0 %v1858
      %v1917 = vpop.f32.mrf.mxu0
      %v1918 = vadd.f32 0.0, %v1917
      %v1919 = vpop.f32.mrf.mxu0
      %v1920 = vadd.f32 0.0, %v1919
      %1921 = vmatmul.bf16.gmra.mxu0 %v1861
      %v1922 = vpop.f32.mrf.mxu0
      %v1923 = vadd.f32 0.0, %v1922
      %v1924 = vpop.f32.mrf.mxu0
      %v1925 = vadd.f32 0.0, %v1924
      %1926 = vmatmul.bf16.gmra.mxu0 %v1864
      %v1927 = vpop.f32.mrf.mxu0
      %v1928 = vadd.f32 0.0, %v1927
      %v1929 = vpop.f32.mrf.mxu0
      %v1930 = vadd.f32 0.0, %v1929
      %1931 = vmatmul.bf16.gmra.mxu0 %v1867
      %v1932 = vpop.f32.mrf.mxu0
      %v1933 = vadd.f32 0.0, %v1932
      %v1934 = vpop.f32.mrf.mxu0
      %v1935 = vadd.f32 0.0, %v1934
      %1936 = vmatmul.bf16.gmra.mxu0 %v1870
      %v1937 = vpop.f32.mrf.mxu0
      %v1938 = vadd.f32 0.0, %v1937
      %v1939 = vpop.f32.mrf.mxu0
      %v1940 = vadd.f32 0.0, %v1939
      %1941 = vmatmul.bf16.gmra.mxu0 %v1873
      %v1942 = vpop.f32.mrf.mxu0
      %v1943 = vadd.f32 0.0, %v1942
      %v1944 = vpop.f32.mrf.mxu0
      %v1945 = vadd.f32 0.0, %v1944
      %1946 = vmatmul.bf16.gmra.mxu0 %v1876
      %v1947 = vpop.f32.mrf.mxu0
      %v1948 = vadd.f32 0.0, %v1947
      %v1949 = vpop.f32.mrf.mxu0
      %v1950 = vadd.f32 0.0, %v1949
      %1951 = vmatmul.bf16.gmra.mxu0 %v1879
      %v1952 = vpop.f32.mrf.mxu0
      %v1953 = vadd.f32 0.0, %v1952
      %v1954 = vpop.f32.mrf.mxu0
      %v1955 = vadd.f32 0.0, %v1954
      %1956 = vmatmul.bf16.gmra.mxu0 %v1882
      %v1957 = vpop.f32.mrf.mxu0
      %v1958 = vadd.f32 0.0, %v1957
      %v1959 = vpop.f32.mrf.mxu0
      %v1960 = vadd.f32 0.0, %v1959
      %1961 = vmatmul.bf16.gmra.mxu0 %v1885
      %v1962 = vpop.f32.mrf.mxu0
      %v1963 = vadd.f32 0.0, %v1962
      %v1964 = vpop.f32.mrf.mxu0
      %v1965 = vadd.f32 0.0, %v1964
      %1966 = vmatmul.bf16.gmra.mxu0 %v1888
      %v1967 = vpop.f32.mrf.mxu0
      %v1968 = vadd.f32 0.0, %v1967
      %v1969 = vpop.f32.mrf.mxu0
      %v1970 = vadd.f32 0.0, %v1969
      %1971 = vmatmul.bf16.gmra.mxu0 %v1891
      %v1972 = vpop.f32.mrf.mxu0
      %v1973 = vadd.f32 0.0, %v1972
      %v1974 = vpop.f32.mrf.mxu0
      %v1975 = vadd.f32 0.0, %v1974
      %1976 = vmatmul.bf16.gmra.mxu0 %v1894
      %v1977 = vpop.f32.mrf.mxu0
      %v1978 = vadd.f32 0.0, %v1977
      %v1979 = vpop.f32.mrf.mxu0
      %v1980 = vadd.f32 0.0, %v1979
      %1981 = vmatmul.bf16.gmra.mxu0 %v1897
      %v1982 = vpop.f32.mrf.mxu0
      %v1983 = vadd.f32 0.0, %v1982
      %v1984 = vpop.f32.mrf.mxu0
      %v1985 = vadd.f32 0.0, %v1984
      %1986 = vmatmul.bf16.gmra.mxu0 %v1900
      %v1987 = vpop.f32.mrf.mxu0
      %v1988 = vadd.f32 0.0, %v1987
      %v1989 = vpop.f32.mrf.mxu0
      %v1990 = vadd.f32 0.0, %v1989
      %1991 = vmatmul.bf16.gmra.mxu0 %v1903
      %v1992 = vpop.f32.mrf.mxu0
      %v1993 = vadd.f32 0.0, %v1992
      %v1994 = vpop.f32.mrf.mxu0
      %v1995 = vadd.f32 0.0, %v1994
      %1996 = vdwg.mxu0
      %v1997 = vadd.f32 %v1566, %v1918
      %v1998 = vadd.f32 %v1568, %v1920
      %v1999 = vadd.f32 %v1571, %v1923
      %v2000 = vadd.f32 %v1573, %v1925
      %v2001 = vadd.f32 %v1576, %v1928
      %v2002 = vadd.f32 %v1578, %v1930
      %v2003 = vadd.f32 %v1581, %v1933
      %v2004 = vadd.f32 %v1583, %v1935
      %v2005 = vadd.f32 %v1586, %v1938
      %v2006 = vadd.f32 %v1588, %v1940
      %v2007 = vadd.f32 %v1591, %v1943
      %v2008 = vadd.f32 %v1593, %v1945
      %v2009 = vadd.f32 %v1596, %v1948
      %v2010 = vadd.f32 %v1598, %v1950
      %v2011 = vadd.f32 %v1601, %v1953
      %v2012 = vadd.f32 %v1603, %v1955
      %v2013 = vadd.f32 %v1606, %v1958
      %v2014 = vadd.f32 %v1608, %v1960
      %v2015 = vadd.f32 %v1611, %v1963
      %v2016 = vadd.f32 %v1613, %v1965
      %v2017 = vadd.f32 %v1616, %v1968
      %v2018 = vadd.f32 %v1618, %v1970
      %v2019 = vadd.f32 %v1621, %v1973
      %v2020 = vadd.f32 %v1623, %v1975
      %v2021 = vadd.f32 %v1626, %v1978
      %v2022 = vadd.f32 %v1628, %v1980
      %v2023 = vadd.f32 %v1631, %v1983
      %v2024 = vadd.f32 %v1633, %v1985
      %v2025 = vadd.f32 %v1636, %v1988
      %v2026 = vadd.f32 %v1638, %v1990
      %v2027 = vadd.f32 %v1641, %v1993
      %v2028 = vadd.f32 %v1643, %v1995
      %v2029 = vld [vmem:[%s570] sm:$0xf]
      %v2030 = vld [vmem:[%s570 + $0x4] sm:$0xf]
      %v2031 = vld [vmem:[%s570 + $0xc] sm:$0xf]
      %v2032 = vld [vmem:[%s570 + $0x10] sm:$0xf]
      %v2033 = vld [vmem:[%s570 + $0x18] sm:$0xf]
      %v2034 = vld [vmem:[%s570 + $0x1c] sm:$0xf]
      %v2035 = vld [vmem:[%s570 + $0x24] sm:$0xf]
      %v2036 = vld [vmem:[%s570 + $0x28] sm:$0xf]
      %v2037 = vld [vmem:[%s570 + $0x30] sm:$0xf]
      %v2038 = vld [vmem:[%s570 + $0x34] sm:$0xf]
      %v2039 = vld [vmem:[%s570 + $0x3c] sm:$0xf]
      %v2040 = vld [vmem:[%s570 + $0x40] sm:$0xf]
      %v2041 = vld [vmem:[%s570 + $0x48] sm:$0xf]
      %v2042 = vld [vmem:[%s570 + $0x4c] sm:$0xf]
      %v2043 = vld [vmem:[%s570 + $0x54] sm:$0xf]
      %v2044 = vld [vmem:[%s570 + $0x58] sm:$0xf]
      %v2045 = vld [vmem:[%s570 + $0x60] sm:$0xf]
      %v2046 = vld [vmem:[%s570 + $0x64] sm:$0xf]
      %v2047 = vld [vmem:[%s570 + $0x6c] sm:$0xf]
      %v2048 = vld [vmem:[%s570 + $0x70] sm:$0xf]
      %v2049 = vld [vmem:[%s570 + $0x78] sm:$0xf]
      %v2050 = vld [vmem:[%s570 + $0x7c] sm:$0xf]
      %v2051 = vld [vmem:[%s570 + $0x84] sm:$0xf]
      %v2052 = vld [vmem:[%s570 + $0x88] sm:$0xf]
      %v2053 = vld [vmem:[%s570 + $0x90] sm:$0xf]
      %v2054 = vld [vmem:[%s570 + $0x94] sm:$0xf]
      %v2055 = vld [vmem:[%s570 + $0x9c] sm:$0xf]
      %v2056 = vld [vmem:[%s570 + $0xa0] sm:$0xf]
      %v2057 = vld [vmem:[%s570 + $0xa8] sm:$0xf]
      %v2058 = vld [vmem:[%s570 + $0xac] sm:$0xf]
      %v2059 = vld [vmem:[%s570 + $0xb4] sm:$0xf]
      %v2060 = vld [vmem:[%s570 + $0xb8] sm:$0xf]
      %v2061 = vld [vmem:[%s1 + $0x4] sm:$0xc]
      %v2094 = vunpack.c.l.b16 %v2029
      %v2095 = vunpack.c.l.b16 %v2030
      %v2096 = vunpack.c.l.b16 %v2031
      %v2097 = vunpack.c.l.b16 %v2032
      %v2098 = vunpack.c.l.b16 %v2033
      %v2099 = vunpack.c.l.b16 %v2034
      %v2100 = vunpack.c.l.b16 %v2035
      %v2101 = vunpack.c.l.b16 %v2036
      %v2102 = vunpack.c.l.b16 %v2037
      %v2103 = vunpack.c.l.b16 %v2038
      %v2104 = vunpack.c.l.b16 %v2039
      %v2105 = vunpack.c.l.b16 %v2040
      %v2106 = vunpack.c.l.b16 %v2041
      %v2107 = vunpack.c.l.b16 %v2042
      %v2108 = vunpack.c.l.b16 %v2043
      %v2109 = vunpack.c.l.b16 %v2044
      %v2110 = vunpack.c.l.b16 %v2045
      %v2111 = vunpack.c.l.b16 %v2046
      %v2112 = vunpack.c.l.b16 %v2047
      %v2113 = vunpack.c.l.b16 %v2048
      %v2114 = vunpack.c.l.b16 %v2049
      %v2115 = vunpack.c.l.b16 %v2050
      %v2116 = vunpack.c.l.b16 %v2051
      %v2117 = vunpack.c.l.b16 %v2052
      %v2118 = vunpack.c.l.b16 %v2053
      %v2119 = vunpack.c.l.b16 %v2054
      %v2120 = vunpack.c.l.b16 %v2055
      %v2121 = vunpack.c.l.b16 %v2056
      %v2122 = vunpack.c.l.b16 %v2057
      %v2123 = vunpack.c.l.b16 %v2058
      %v2124 = vunpack.c.l.b16 %v2059
      %v2125 = vunpack.c.l.b16 %v2060
      %v2126 = vpack.c.b16 %v2095, %v2094
      %v2127 = vpack.c.b16 %v2097, %v2096
      %v2128 = vpack.c.b16 %v2099, %v2098
      %v2129 = vpack.c.b16 %v2101, %v2100
      %v2130 = vpack.c.b16 %v2103, %v2102
      %v2131 = vpack.c.b16 %v2105, %v2104
      %v2132 = vpack.c.b16 %v2107, %v2106
      %v2133 = vpack.c.b16 %v2109, %v2108
      %v2134 = vpack.c.b16 %v2111, %v2110
      %v2135 = vpack.c.b16 %v2113, %v2112
      %v2136 = vpack.c.b16 %v2115, %v2114
      %v2137 = vpack.c.b16 %v2117, %v2116
      %v2138 = vpack.c.b16 %v2119, %v2118
      %v2139 = vpack.c.b16 %v2121, %v2120
      %v2140 = vpack.c.b16 %v2123, %v2122
      %v2141 = vpack.c.b16 %v2125, %v2124
      %v2143 = vunpack.c.l.b16 %v2061
      %v2144 = vpack.c.b16 %v2143, %v2143
      %v2145 = vrot.slane %v2144, 2
      %v2147 = vsel %vm1283, %v2126, 0
      %v2150 = vsel %vm1283, %v2127, 0
      %v2153 = vsel %vm1283, %v2128, 0
      %v2156 = vsel %vm1283, %v2129, 0
      %v2159 = vsel %vm1283, %v2130, 0
      %v2162 = vsel %vm1283, %v2131, 0
      %v2165 = vsel %vm1283, %v2132, 0
      %v2168 = vsel %vm1283, %v2133, 0
      %v2171 = vsel %vm1283, %v2134, 0
      %v2174 = vsel %vm1283, %v2135, 0
      %v2177 = vsel %vm1283, %v2136, 0
      %v2180 = vsel %vm1283, %v2137, 0
      %v2183 = vsel %vm1283, %v2138, 0
      %v2186 = vsel %vm1283, %v2139, 0
      %v2189 = vsel %vm1283, %v2140, 0
      %v2192 = vsel %vm1283, %v2141, 0
      %v2195 = vsel %vm1332, %v2145, 0
      %2197 = vmatpush.bf16.msra.mxu0 0
      %2198 = vmatpush.bf16.msra.mxu0 0
      %2199 = vmatpush.bf16.msra.mxu0 0
      %2200 = vmatpush.bf16.msra.mxu0 0
      %2201 = vmatpush.bf16.msra.mxu0 0
      %2202 = vmatpush.bf16.msra.mxu0 0
      %2203 = vmatpush.bf16.msra.mxu0 0
      %2204 = vmatpush.bf16.msra.mxu0 %v2195
      %2205 = vmatmul.bf16.gmra.mxu0 %v2147
      %v2206 = vpop.f32.mrf.mxu0
      %v2207 = vadd.f32 0.0, %v2206
      %v2208 = vpop.f32.mrf.mxu0
      %v2209 = vadd.f32 0.0, %v2208
      %2210 = vmatmul.bf16.gmra.mxu0 %v2150
      %v2211 = vpop.f32.mrf.mxu0
      %v2212 = vadd.f32 0.0, %v2211
      %v2213 = vpop.f32.mrf.mxu0
      %v2214 = vadd.f32 0.0, %v2213
      %2215 = vmatmul.bf16.gmra.mxu0 %v2153
      %v2216 = vpop.f32.mrf.mxu0
      %v2217 = vadd.f32 0.0, %v2216
      %v2218 = vpop.f32.mrf.mxu0
      %v2219 = vadd.f32 0.0, %v2218
      %2220 = vmatmul.bf16.gmra.mxu0 %v2156
      %v2221 = vpop.f32.mrf.mxu0
      %v2222 = vadd.f32 0.0, %v2221
      %v2223 = vpop.f32.mrf.mxu0
      %v2224 = vadd.f32 0.0, %v2223
      %2225 = vmatmul.bf16.gmra.mxu0 %v2159
      %v2226 = vpop.f32.mrf.mxu0
      %v2227 = vadd.f32 0.0, %v2226
      %v2228 = vpop.f32.mrf.mxu0
      %v2229 = vadd.f32 0.0, %v2228
      %2230 = vmatmul.bf16.gmra.mxu0 %v2162
      %v2231 = vpop.f32.mrf.mxu0
      %v2232 = vadd.f32 0.0, %v2231
      %v2233 = vpop.f32.mrf.mxu0
      %v2234 = vadd.f32 0.0, %v2233
      %2235 = vmatmul.bf16.gmra.mxu0 %v2165
      %v2236 = vpop.f32.mrf.mxu0
      %v2237 = vadd.f32 0.0, %v2236
      %v2238 = vpop.f32.mrf.mxu0
      %v2239 = vadd.f32 0.0, %v2238
      %2240 = vmatmul.bf16.gmra.mxu0 %v2168
      %v2241 = vpop.f32.mrf.mxu0
      %v2242 = vadd.f32 0.0, %v2241
      %v2243 = vpop.f32.mrf.mxu0
      %v2244 = vadd.f32 0.0, %v2243
      %2245 = vmatmul.bf16.gmra.mxu0 %v2171
      %v2246 = vpop.f32.mrf.mxu0
      %v2247 = vadd.f32 0.0, %v2246
      %v2248 = vpop.f32.mrf.mxu0
      %v2249 = vadd.f32 0.0, %v2248
      %2250 = vmatmul.bf16.gmra.mxu0 %v2174
      %v2251 = vpop.f32.mrf.mxu0
      %v2252 = vadd.f32 0.0, %v2251
      %v2253 = vpop.f32.mrf.mxu0
      %v2254 = vadd.f32 0.0, %v2253
      %2255 = vmatmul.bf16.gmra.mxu0 %v2177
      %v2256 = vpop.f32.mrf.mxu0
      %v2257 = vadd.f32 0.0, %v2256
      %v2258 = vpop.f32.mrf.mxu0
      %v2259 = vadd.f32 0.0, %v2258
      %2260 = vmatmul.bf16.gmra.mxu0 %v2180
      %v2261 = vpop.f32.mrf.mxu0
      %v2262 = vadd.f32 0.0, %v2261
      %v2263 = vpop.f32.mrf.mxu0
      %v2264 = vadd.f32 0.0, %v2263
      %2265 = vmatmul.bf16.gmra.mxu0 %v2183
      %v2266 = vpop.f32.mrf.mxu0
      %v2267 = vadd.f32 0.0, %v2266
      %v2268 = vpop.f32.mrf.mxu0
      %v2269 = vadd.f32 0.0, %v2268
      %2270 = vmatmul.bf16.gmra.mxu0 %v2186
      %v2271 = vpop.f32.mrf.mxu0
      %v2272 = vadd.f32 0.0, %v2271
      %v2273 = vpop.f32.mrf.mxu0
      %v2274 = vadd.f32 0.0, %v2273
      %2275 = vmatmul.bf16.gmra.mxu0 %v2189
      %v2276 = vpop.f32.mrf.mxu0
      %v2277 = vadd.f32 0.0, %v2276
      %v2278 = vpop.f32.mrf.mxu0
      %v2279 = vadd.f32 0.0, %v2278
      %2280 = vmatmul.bf16.gmra.mxu0 %v2192
      %v2281 = vpop.f32.mrf.mxu0
      %v2282 = vadd.f32 0.0, %v2281
      %v2283 = vpop.f32.mrf.mxu0
      %v2284 = vadd.f32 0.0, %v2283
      %2285 = vdwg.mxu0
      %v2286 = vadd.f32 %v1997, %v2207
      %v2287 = vadd.f32 %v1998, %v2209
      %v2288 = vadd.f32 %v1999, %v2212
      %v2289 = vadd.f32 %v2000, %v2214
      %v2290 = vadd.f32 %v2001, %v2217
      %v2291 = vadd.f32 %v2002, %v2219
      %v2292 = vadd.f32 %v2003, %v2222
      %v2293 = vadd.f32 %v2004, %v2224
      %v2294 = vadd.f32 %v2005, %v2227
      %v2295 = vadd.f32 %v2006, %v2229
      %v2296 = vadd.f32 %v2007, %v2232
      %v2297 = vadd.f32 %v2008, %v2234
      %v2298 = vadd.f32 %v2009, %v2237
      %v2299 = vadd.f32 %v2010, %v2239
      %v2300 = vadd.f32 %v2011, %v2242
      %v2301 = vadd.f32 %v2012, %v2244
      %v2302 = vadd.f32 %v2013, %v2247
      %v2303 = vadd.f32 %v2014, %v2249
      %v2304 = vadd.f32 %v2015, %v2252
      %v2305 = vadd.f32 %v2016, %v2254
      %v2306 = vadd.f32 %v2017, %v2257
      %v2307 = vadd.f32 %v2018, %v2259
      %v2308 = vadd.f32 %v2019, %v2262
      %v2309 = vadd.f32 %v2020, %v2264
      %v2310 = vadd.f32 %v2021, %v2267
      %v2311 = vadd.f32 %v2022, %v2269
      %v2312 = vadd.f32 %v2023, %v2272
      %v2313 = vadd.f32 %v2024, %v2274
      %v2314 = vadd.f32 %v2025, %v2277
      %v2315 = vadd.f32 %v2026, %v2279
      %v2316 = vadd.f32 %v2027, %v2282
      %v2317 = vadd.f32 %v2028, %v2284
      %v2318 = vld [vmem:[%s570] sm:$0xf]
      %v2319 = vld [vmem:[%s570 + $0x4] sm:$0xf]
      %v2320 = vld [vmem:[%s570 + $0x8] sm:$0x1]
      %v2321 = vld [vmem:[%s570 + $0xc] sm:$0xf]
      %v2322 = vld [vmem:[%s570 + $0x10] sm:$0xf]
      %v2323 = vld [vmem:[%s570 + $0x14] sm:$0x1]
      %v2324 = vld [vmem:[%s570 + $0x18] sm:$0xf]
      %v2325 = vld [vmem:[%s570 + $0x1c] sm:$0xf]
      %v2326 = vld [vmem:[%s570 + $0x20] sm:$0x1]
      %v2327 = vld [vmem:[%s570 + $0x24] sm:$0xf]
      %v2328 = vld [vmem:[%s570 + $0x28] sm:$0xf]
      %v2329 = vld [vmem:[%s570 + $0x2c] sm:$0x1]
      %v2330 = vld [vmem:[%s570 + $0x30] sm:$0xf]
      %v2331 = vld [vmem:[%s570 + $0x34] sm:$0xf]
      %v2332 = vld [vmem:[%s570 + $0x38] sm:$0x1]
      %v2333 = vld [vmem:[%s570 + $0x3c] sm:$0xf]
      %v2334 = vld [vmem:[%s570 + $0x40] sm:$0xf]
      %v2335 = vld [vmem:[%s570 + $0x44] sm:$0x1]
      %v2336 = vld [vmem:[%s570 + $0x48] sm:$0xf]
      %v2337 = vld [vmem:[%s570 + $0x4c] sm:$0xf]
      %v2338 = vld [vmem:[%s570 + $0x50] sm:$0x1]
      %v2339 = vld [vmem:[%s570 + $0x54] sm:$0xf]
      %v2340 = vld [vmem:[%s570 + $0x58] sm:$0xf]
      %v2341 = vld [vmem:[%s570 + $0x5c] sm:$0x1]
      %v2342 = vld [vmem:[%s570 + $0x60] sm:$0xf]
      %v2343 = vld [vmem:[%s570 + $0x64] sm:$0xf]
      %v2344 = vld [vmem:[%s570 + $0x68] sm:$0x1]
      %v2345 = vld [vmem:[%s570 + $0x6c] sm:$0xf]
      %v2346 = vld [vmem:[%s570 + $0x70] sm:$0xf]
      %v2347 = vld [vmem:[%s570 + $0x74] sm:$0x1]
      %v2348 = vld [vmem:[%s570 + $0x78] sm:$0xf]
      %v2349 = vld [vmem:[%s570 + $0x7c] sm:$0xf]
      %v2350 = vld [vmem:[%s570 + $0x80] sm:$0x1]
      %v2351 = vld [vmem:[%s570 + $0x84] sm:$0xf]
      %v2352 = vld [vmem:[%s570 + $0x88] sm:$0xf]
      %v2353 = vld [vmem:[%s570 + $0x8c] sm:$0x1]
      %v2354 = vld [vmem:[%s570 + $0x90] sm:$0xf]
      %v2355 = vld [vmem:[%s570 + $0x94] sm:$0xf]
      %v2356 = vld [vmem:[%s570 + $0x98] sm:$0x1]
      %v2357 = vld [vmem:[%s570 + $0x9c] sm:$0xf]
      %v2358 = vld [vmem:[%s570 + $0xa0] sm:$0xf]
      %v2359 = vld [vmem:[%s570 + $0xa4] sm:$0x1]
      %v2360 = vld [vmem:[%s570 + $0xa8] sm:$0xf]
      %v2361 = vld [vmem:[%s570 + $0xac] sm:$0xf]
      %v2362 = vld [vmem:[%s570 + $0xb0] sm:$0x1]
      %v2363 = vld [vmem:[%s570 + $0xb4] sm:$0xf]
      %v2364 = vld [vmem:[%s570 + $0xb8] sm:$0xf]
      %v2365 = vld [vmem:[%s570 + $0xbc] sm:$0x1]
      %v2367 = vshrl.u32 %v2318, 16
      %v2369 = vrot.slane %v2367, 4
      %v2370 = vshll.u32 %v2318, 16
      %v2372 = vrot.slane %v2370, 5
      %v2373 = vor.u32 %v2369, %v2372
      %v2374 = vrot.slane %v2373, 4
      %v2376 = vshll.u32 %v2319, 16
      %v2378 = vrot.slane %v2376, 5
      %v2379 = vsel %vm845, %v2374, %v2378
      %v2380 = vshrl.u32 %v2319, 16
      %v2382 = vrot.slane %v2380, 4
      %v2383 = vor.u32 %v2382, %v2378
      %v2384 = vrot.slane %v2383, 4
      %v2386 = vshll.u32 %v2320, 16
      %v2388 = vrot.slane %v2386, 5
      %v2389 = vsel %vm845, %v2384, %v2388
      %v2391 = vshrl.u32 %v2321, 16
      %v2393 = vrot.slane %v2391, 4
      %v2394 = vshll.u32 %v2321, 16
      %v2396 = vrot.slane %v2394, 5
      %v2397 = vor.u32 %v2393, %v2396
      %v2398 = vrot.slane %v2397, 4
      %v2400 = vshll.u32 %v2322, 16
      %v2402 = vrot.slane %v2400, 5
      %v2403 = vsel %vm845, %v2398, %v2402
      %v2404 = vshrl.u32 %v2322, 16
      %v2406 = vrot.slane %v2404, 4
      %v2407 = vor.u32 %v2406, %v2402
      %v2408 = vrot.slane %v2407, 4
      %v2410 = vshll.u32 %v2323, 16
      %v2412 = vrot.slane %v2410, 5
      %v2413 = vsel %vm845, %v2408, %v2412
      %v2415 = vshrl.u32 %v2324, 16
      %v2417 = vrot.slane %v2415, 4
      %v2418 = vshll.u32 %v2324, 16
      %v2420 = vrot.slane %v2418, 5
      %v2421 = vor.u32 %v2417, %v2420
      %v2422 = vrot.slane %v2421, 4
      %v2424 = vshll.u32 %v2325, 16
      %v2426 = vrot.slane %v2424, 5
      %v2427 = vsel %vm845, %v2422, %v2426
      %v2428 = vshrl.u32 %v2325, 16
      %v2430 = vrot.slane %v2428, 4
      %v2431 = vor.u32 %v2430, %v2426
      %v2432 = vrot.slane %v2431, 4
      %v2434 = vshll.u32 %v2326, 16
      %v2436 = vrot.slane %v2434, 5
      %v2437 = vsel %vm845, %v2432, %v2436
      %v2439 = vshrl.u32 %v2327, 16
      %v2441 = vrot.slane %v2439, 4
      %v2442 = vshll.u32 %v2327, 16
      %v2444 = vrot.slane %v2442, 5
      %v2445 = vor.u32 %v2441, %v2444
      %v2446 = vrot.slane %v2445, 4
      %v2448 = vshll.u32 %v2328, 16
      %v2450 = vrot.slane %v2448, 5
      %v2451 = vsel %vm845, %v2446, %v2450
      %v2452 = vshrl.u32 %v2328, 16
      %v2454 = vrot.slane %v2452, 4
      %v2455 = vor.u32 %v2454, %v2450
      %v2456 = vrot.slane %v2455, 4
      %v2458 = vshll.u32 %v2329, 16
      %v2460 = vrot.slane %v2458, 5
      %v2461 = vsel %vm845, %v2456, %v2460
      %v2463 = vshrl.u32 %v2330, 16
      %v2465 = vrot.slane %v2463, 4
      %v2466 = vshll.u32 %v2330, 16
      %v2468 = vrot.slane %v2466, 5
      %v2469 = vor.u32 %v2465, %v2468
      %v2470 = vrot.slane %v2469, 4
      %v2472 = vshll.u32 %v2331, 16
      %v2474 = vrot.slane %v2472, 5
      %v2475 = vsel %vm845, %v2470, %v2474
      %v2476 = vshrl.u32 %v2331, 16
      %v2478 = vrot.slane %v2476, 4
      %v2479 = vor.u32 %v2478, %v2474
      %v2480 = vrot.slane %v2479, 4
      %v2482 = vshll.u32 %v2332, 16
      %v2484 = vrot.slane %v2482, 5
      %v2485 = vsel %vm845, %v2480, %v2484
      %v2487 = vshrl.u32 %v2333, 16
      %v2489 = vrot.slane %v2487, 4
      %v2490 = vshll.u32 %v2333, 16
      %v2492 = vrot.slane %v2490, 5
      %v2493 = vor.u32 %v2489, %v2492
      %v2494 = vrot.slane %v2493, 4
      %v2496 = vshll.u32 %v2334, 16
      %v2498 = vrot.slane %v2496, 5
      %v2499 = vsel %vm845, %v2494, %v2498
      %v2500 = vshrl.u32 %v2334, 16
      %v2502 = vrot.slane %v2500, 4
      %v2503 = vor.u32 %v2502, %v2498
      %v2504 = vrot.slane %v2503, 4
      %v2506 = vshll.u32 %v2335, 16
      %v2508 = vrot.slane %v2506, 5
      %v2509 = vsel %vm845, %v2504, %v2508
      %v2511 = vshrl.u32 %v2336, 16
      %v2513 = vrot.slane %v2511, 4
      %v2514 = vshll.u32 %v2336, 16
      %v2516 = vrot.slane %v2514, 5
      %v2517 = vor.u32 %v2513, %v2516
      %v2518 = vrot.slane %v2517, 4
      %v2520 = vshll.u32 %v2337, 16
      %v2522 = vrot.slane %v2520, 5
      %v2523 = vsel %vm845, %v2518, %v2522
      %v2524 = vshrl.u32 %v2337, 16
      %v2526 = vrot.slane %v2524, 4
      %v2527 = vor.u32 %v2526, %v2522
      %v2528 = vrot.slane %v2527, 4
      %v2530 = vshll.u32 %v2338, 16
      %v2532 = vrot.slane %v2530, 5
      %v2533 = vsel %vm845, %v2528, %v2532
      %v2535 = vshrl.u32 %v2339, 16
      %v2537 = vrot.slane %v2535, 4
      %v2538 = vshll.u32 %v2339, 16
      %v2540 = vrot.slane %v2538, 5
      %v2541 = vor.u32 %v2537, %v2540
      %v2542 = vrot.slane %v2541, 4
      %v2544 = vshll.u32 %v2340, 16
      %v2546 = vrot.slane %v2544, 5
      %v2547 = vsel %vm845, %v2542, %v2546
      %v2548 = vshrl.u32 %v2340, 16
      %v2550 = vrot.slane %v2548, 4
      %v2551 = vor.u32 %v2550, %v2546
      %v2552 = vrot.slane %v2551, 4
      %v2554 = vshll.u32 %v2341, 16
      %v2556 = vrot.slane %v2554, 5
      %v2557 = vsel %vm845, %v2552, %v2556
      %v2559 = vshrl.u32 %v2342, 16
      %v2561 = vrot.slane %v2559, 4
      %v2562 = vshll.u32 %v2342, 16
      %v2564 = vrot.slane %v2562, 5
      %v2565 = vor.u32 %v2561, %v2564
      %v2566 = vrot.slane %v2565, 4
      %v2568 = vshll.u32 %v2343, 16
      %v2570 = vrot.slane %v2568, 5
      %v2571 = vsel %vm845, %v2566, %v2570
      %v2572 = vshrl.u32 %v2343, 16
      %v2574 = vrot.slane %v2572, 4
      %v2575 = vor.u32 %v2574, %v2570
      %v2576 = vrot.slane %v2575, 4
      %v2578 = vshll.u32 %v2344, 16
      %v2580 = vrot.slane %v2578, 5
      %v2581 = vsel %vm845, %v2576, %v2580
      %v2583 = vshrl.u32 %v2345, 16
      %v2585 = vrot.slane %v2583, 4
      %v2586 = vshll.u32 %v2345, 16
      %v2588 = vrot.slane %v2586, 5
      %v2589 = vor.u32 %v2585, %v2588
      %v2590 = vrot.slane %v2589, 4
      %v2592 = vshll.u32 %v2346, 16
      %v2594 = vrot.slane %v2592, 5
      %v2595 = vsel %vm845, %v2590, %v2594
      %v2596 = vshrl.u32 %v2346, 16
      %v2598 = vrot.slane %v2596, 4
      %v2599 = vor.u32 %v2598, %v2594
      %v2600 = vrot.slane %v2599, 4
      %v2602 = vshll.u32 %v2347, 16
      %v2604 = vrot.slane %v2602, 5
      %v2605 = vsel %vm845, %v2600, %v2604
      %v2607 = vshrl.u32 %v2348, 16
      %v2609 = vrot.slane %v2607, 4
      %v2610 = vshll.u32 %v2348, 16
      %v2612 = vrot.slane %v2610, 5
      %v2613 = vor.u32 %v2609, %v2612
      %v2614 = vrot.slane %v2613, 4
      %v2616 = vshll.u32 %v2349, 16
      %v2618 = vrot.slane %v2616, 5
      %v2619 = vsel %vm845, %v2614, %v2618
      %v2620 = vshrl.u32 %v2349, 16
      %v2622 = vrot.slane %v2620, 4
      %v2623 = vor.u32 %v2622, %v2618
      %v2624 = vrot.slane %v2623, 4
      %v2626 = vshll.u32 %v2350, 16
      %v2628 = vrot.slane %v2626, 5
      %v2629 = vsel %vm845, %v2624, %v2628
      %v2631 = vshrl.u32 %v2351, 16
      %v2633 = vrot.slane %v2631, 4
      %v2634 = vshll.u32 %v2351, 16
      %v2636 = vrot.slane %v2634, 5
      %v2637 = vor.u32 %v2633, %v2636
      %v2638 = vrot.slane %v2637, 4
      %v2640 = vshll.u32 %v2352, 16
      %v2642 = vrot.slane %v2640, 5
      %v2643 = vsel %vm845, %v2638, %v2642
      %v2644 = vshrl.u32 %v2352, 16
      %v2646 = vrot.slane %v2644, 4
      %v2647 = vor.u32 %v2646, %v2642
      %v2648 = vrot.slane %v2647, 4
      %v2650 = vshll.u32 %v2353, 16
      %v2652 = vrot.slane %v2650, 5
      %v2653 = vsel %vm845, %v2648, %v2652
      %v2655 = vshrl.u32 %v2354, 16
      %v2657 = vrot.slane %v2655, 4
      %v2658 = vshll.u32 %v2354, 16
      %v2660 = vrot.slane %v2658, 5
      %v2661 = vor.u32 %v2657, %v2660
      %v2662 = vrot.slane %v2661, 4
      %v2664 = vshll.u32 %v2355, 16
      %v2666 = vrot.slane %v2664, 5
      %v2667 = vsel %vm845, %v2662, %v2666
      %v2668 = vshrl.u32 %v2355, 16
      %v2670 = vrot.slane %v2668, 4
      %v2671 = vor.u32 %v2670, %v2666
      %v2672 = vrot.slane %v2671, 4
      %v2674 = vshll.u32 %v2356, 16
      %v2676 = vrot.slane %v2674, 5
      %v2677 = vsel %vm845, %v2672, %v2676
      %v2679 = vshrl.u32 %v2357, 16
      %v2681 = vrot.slane %v2679, 4
      %v2682 = vshll.u32 %v2357, 16
      %v2684 = vrot.slane %v2682, 5
      %v2685 = vor.u32 %v2681, %v2684
      %v2686 = vrot.slane %v2685, 4
      %v2688 = vshll.u32 %v2358, 16
      %v2690 = vrot.slane %v2688, 5
      %v2691 = vsel %vm845, %v2686, %v2690
      %v2692 = vshrl.u32 %v2358, 16
      %v2694 = vrot.slane %v2692, 4
      %v2695 = vor.u32 %v2694, %v2690
      %v2696 = vrot.slane %v2695, 4
      %v2698 = vshll.u32 %v2359, 16
      %v2700 = vrot.slane %v2698, 5
      %v2701 = vsel %vm845, %v2696, %v2700
      %v2703 = vshrl.u32 %v2360, 16
      %v2705 = vrot.slane %v2703, 4
      %v2706 = vshll.u32 %v2360, 16
      %v2708 = vrot.slane %v2706, 5
      %v2709 = vor.u32 %v2705, %v2708
      %v2710 = vrot.slane %v2709, 4
      %v2712 = vshll.u32 %v2361, 16
      %v2714 = vrot.slane %v2712, 5
      %v2715 = vsel %vm845, %v2710, %v2714
      %v2716 = vshrl.u32 %v2361, 16
      %v2718 = vrot.slane %v2716, 4
      %v2719 = vor.u32 %v2718, %v2714
      %v2720 = vrot.slane %v2719, 4
      %v2722 = vshll.u32 %v2362, 16
      %v2724 = vrot.slane %v2722, 5
      %v2725 = vsel %vm845, %v2720, %v2724
      %v2727 = vshrl.u32 %v2363, 16
      %v2729 = vrot.slane %v2727, 4
      %v2730 = vshll.u32 %v2363, 16
      %v2732 = vrot.slane %v2730, 5
      %v2733 = vor.u32 %v2729, %v2732
      %v2734 = vrot.slane %v2733, 4
      %v2736 = vshll.u32 %v2364, 16
      %v2738 = vrot.slane %v2736, 5
      %v2739 = vsel %vm845, %v2734, %v2738
      %v2740 = vshrl.u32 %v2364, 16
      %v2742 = vrot.slane %v2740, 4
      %v2743 = vor.u32 %v2742, %v2738
      %v2744 = vrot.slane %v2743, 4
      %v2746 = vshll.u32 %v2365, 16
      %v2748 = vrot.slane %v2746, 5
      %v2749 = vsel %vm845, %v2744, %v2748
      %v2750 = vld [vmem:[%s1 + $0x8] sm:$0x3]
      %v2751 = vunpack.c.l.b16 %v2379
      %v2752 = vunpack.c.l.b16 %v2389
      %v2753 = vunpack.c.l.b16 %v2403
      %v2754 = vunpack.c.l.b16 %v2413
      %v2755 = vunpack.c.l.b16 %v2427
      %v2756 = vunpack.c.l.b16 %v2437
      %v2757 = vunpack.c.l.b16 %v2451
      %v2758 = vunpack.c.l.b16 %v2461
      %v2759 = vunpack.c.l.b16 %v2475
      %v2760 = vunpack.c.l.b16 %v2485
      %v2761 = vunpack.c.l.b16 %v2499
      %v2762 = vunpack.c.l.b16 %v2509
      %v2763 = vunpack.c.l.b16 %v2523
      %v2764 = vunpack.c.l.b16 %v2533
      %v2765 = vunpack.c.l.b16 %v2547
      %v2766 = vunpack.c.l.b16 %v2557
      %v2767 = vunpack.c.l.b16 %v2571
      %v2768 = vunpack.c.l.b16 %v2581
      %v2769 = vunpack.c.l.b16 %v2595
      %v2770 = vunpack.c.l.b16 %v2605
      %v2771 = vunpack.c.l.b16 %v2619
      %v2772 = vunpack.c.l.b16 %v2629
      %v2773 = vunpack.c.l.b16 %v2643
      %v2774 = vunpack.c.l.b16 %v2653
      %v2775 = vunpack.c.l.b16 %v2667
      %v2776 = vunpack.c.l.b16 %v2677
      %v2777 = vunpack.c.l.b16 %v2691
      %v2778 = vunpack.c.l.b16 %v2701
      %v2779 = vunpack.c.l.b16 %v2715
      %v2780 = vunpack.c.l.b16 %v2725
      %v2781 = vunpack.c.l.b16 %v2739
      %v2782 = vunpack.c.l.b16 %v2749
      %v2783 = vpack.c.b16 %v2752, %v2751
      %v2784 = vpack.c.b16 %v2754, %v2753
      %v2785 = vpack.c.b16 %v2756, %v2755
      %v2786 = vpack.c.b16 %v2758, %v2757
      %v2787 = vpack.c.b16 %v2760, %v2759
      %v2788 = vpack.c.b16 %v2762, %v2761
      %v2789 = vpack.c.b16 %v2764, %v2763
      %v2790 = vpack.c.b16 %v2766, %v2765
      %v2791 = vpack.c.b16 %v2768, %v2767
      %v2792 = vpack.c.b16 %v2770, %v2769
      %v2793 = vpack.c.b16 %v2772, %v2771
      %v2794 = vpack.c.b16 %v2774, %v2773
      %v2795 = vpack.c.b16 %v2776, %v2775
      %v2796 = vpack.c.b16 %v2778, %v2777
      %v2797 = vpack.c.b16 %v2780, %v2779
      %v2798 = vpack.c.b16 %v2782, %v2781
      %v2800 = vsel %vm1283, %v2783, 0
      %v2803 = vsel %vm1283, %v2784, 0
      %v2806 = vsel %vm1283, %v2785, 0
      %v2809 = vsel %vm1283, %v2786, 0
      %v2812 = vsel %vm1283, %v2787, 0
      %v2815 = vsel %vm1283, %v2788, 0
      %v2818 = vsel %vm1283, %v2789, 0
      %v2821 = vsel %vm1283, %v2790, 0
      %v2824 = vsel %vm1283, %v2791, 0
      %v2827 = vsel %vm1283, %v2792, 0
      %v2830 = vsel %vm1283, %v2793, 0
      %v2833 = vsel %vm1283, %v2794, 0
      %v2836 = vsel %vm1283, %v2795, 0
      %v2839 = vsel %vm1283, %v2796, 0
      %v2842 = vsel %vm1283, %v2797, 0
      %v2845 = vsel %vm1283, %v2798, 0
      %v2848 = vsel %vm1332, %v2750, 0
      %2850 = vmatpush.bf16.msra.mxu0 0
      %2851 = vmatpush.bf16.msra.mxu0 0
      %2852 = vmatpush.bf16.msra.mxu0 0
      %2853 = vmatpush.bf16.msra.mxu0 0
      %2854 = vmatpush.bf16.msra.mxu0 0
      %2855 = vmatpush.bf16.msra.mxu0 0
      %2856 = vmatpush.bf16.msra.mxu0 0
      %2857 = vmatpush.bf16.msra.mxu0 %v2848
      %2858 = vmatmul.bf16.gmra.mxu0 %v2800
      %v2859 = vpop.f32.mrf.mxu0
      %v2860 = vadd.f32 0.0, %v2859
      %v2861 = vpop.f32.mrf.mxu0
      %v2862 = vadd.f32 0.0, %v2861
      %2863 = vmatmul.bf16.gmra.mxu0 %v2803
      %v2864 = vpop.f32.mrf.mxu0
      %v2865 = vadd.f32 0.0, %v2864
      %v2866 = vpop.f32.mrf.mxu0
      %v2867 = vadd.f32 0.0, %v2866
      %2868 = vmatmul.bf16.gmra.mxu0 %v2806
      %v2869 = vpop.f32.mrf.mxu0
      %v2870 = vadd.f32 0.0, %v2869
      %v2871 = vpop.f32.mrf.mxu0
      %v2872 = vadd.f32 0.0, %v2871
      %2873 = vmatmul.bf16.gmra.mxu0 %v2809
      %v2874 = vpop.f32.mrf.mxu0
      %v2875 = vadd.f32 0.0, %v2874
      %v2876 = vpop.f32.mrf.mxu0
      %v2877 = vadd.f32 0.0, %v2876
      %2878 = vmatmul.bf16.gmra.mxu0 %v2812
      %v2879 = vpop.f32.mrf.mxu0
      %v2880 = vadd.f32 0.0, %v2879
      %v2881 = vpop.f32.mrf.mxu0
      %v2882 = vadd.f32 0.0, %v2881
      %2883 = vmatmul.bf16.gmra.mxu0 %v2815
      %v2884 = vpop.f32.mrf.mxu0
      %v2885 = vadd.f32 0.0, %v2884
      %v2886 = vpop.f32.mrf.mxu0
      %v2887 = vadd.f32 0.0, %v2886
      %2888 = vmatmul.bf16.gmra.mxu0 %v2818
      %v2889 = vpop.f32.mrf.mxu0
      %v2890 = vadd.f32 0.0, %v2889
      %v2891 = vpop.f32.mrf.mxu0
      %v2892 = vadd.f32 0.0, %v2891
      %2893 = vmatmul.bf16.gmra.mxu0 %v2821
      %v2894 = vpop.f32.mrf.mxu0
      %v2895 = vadd.f32 0.0, %v2894
      %v2896 = vpop.f32.mrf.mxu0
      %v2897 = vadd.f32 0.0, %v2896
      %2898 = vmatmul.bf16.gmra.mxu0 %v2824
      %v2899 = vpop.f32.mrf.mxu0
      %v2900 = vadd.f32 0.0, %v2899
      %v2901 = vpop.f32.mrf.mxu0
      %v2902 = vadd.f32 0.0, %v2901
      %2903 = vmatmul.bf16.gmra.mxu0 %v2827
      %v2904 = vpop.f32.mrf.mxu0
      %v2905 = vadd.f32 0.0, %v2904
      %v2906 = vpop.f32.mrf.mxu0
      %v2907 = vadd.f32 0.0, %v2906
      %2908 = vmatmul.bf16.gmra.mxu0 %v2830
      %v2909 = vpop.f32.mrf.mxu0
      %v2910 = vadd.f32 0.0, %v2909
      %v2911 = vpop.f32.mrf.mxu0
      %v2912 = vadd.f32 0.0, %v2911
      %2913 = vmatmul.bf16.gmra.mxu0 %v2833
      %v2914 = vpop.f32.mrf.mxu0
      %v2915 = vadd.f32 0.0, %v2914
      %v2916 = vpop.f32.mrf.mxu0
      %v2917 = vadd.f32 0.0, %v2916
      %2918 = vmatmul.bf16.gmra.mxu0 %v2836
      %v2919 = vpop.f32.mrf.mxu0
      %v2920 = vadd.f32 0.0, %v2919
      %v2921 = vpop.f32.mrf.mxu0
      %v2922 = vadd.f32 0.0, %v2921
      %2923 = vmatmul.bf16.gmra.mxu0 %v2839
      %v2924 = vpop.f32.mrf.mxu0
      %v2925 = vadd.f32 0.0, %v2924
      %v2926 = vpop.f32.mrf.mxu0
      %v2927 = vadd.f32 0.0, %v2926
      %2928 = vmatmul.bf16.gmra.mxu0 %v2842
      %v2929 = vpop.f32.mrf.mxu0
      %v2930 = vadd.f32 0.0, %v2929
      %v2931 = vpop.f32.mrf.mxu0
      %v2932 = vadd.f32 0.0, %v2931
      %2933 = vmatmul.bf16.gmra.mxu0 %v2845
      %v2934 = vpop.f32.mrf.mxu0
      %v2935 = vadd.f32 0.0, %v2934
      %v2936 = vpop.f32.mrf.mxu0
      %v2937 = vadd.f32 0.0, %v2936
      %2938 = vdwg.mxu0
      %v2939 = vadd.f32 %v2286, %v2860
      %v2940 = vadd.f32 %v2287, %v2862
      %v2941 = vadd.f32 %v2288, %v2865
      %v2942 = vadd.f32 %v2289, %v2867
      %v2943 = vadd.f32 %v2290, %v2870
      %v2944 = vadd.f32 %v2291, %v2872
      %v2945 = vadd.f32 %v2292, %v2875
      %v2946 = vadd.f32 %v2293, %v2877
      %v2947 = vadd.f32 %v2294, %v2880
      %v2948 = vadd.f32 %v2295, %v2882
      %v2949 = vadd.f32 %v2296, %v2885
      %v2950 = vadd.f32 %v2297, %v2887
      %v2951 = vadd.f32 %v2298, %v2890
      %v2952 = vadd.f32 %v2299, %v2892
      %v2953 = vadd.f32 %v2300, %v2895
      %v2954 = vadd.f32 %v2301, %v2897
      %v2955 = vadd.f32 %v2302, %v2900
      %v2956 = vadd.f32 %v2303, %v2902
      %v2957 = vadd.f32 %v2304, %v2905
      %v2958 = vadd.f32 %v2305, %v2907
      %v2959 = vadd.f32 %v2306, %v2910
      %v2960 = vadd.f32 %v2307, %v2912
      %v2961 = vadd.f32 %v2308, %v2915
      %v2962 = vadd.f32 %v2309, %v2917
      %v2963 = vadd.f32 %v2310, %v2920
      %v2964 = vadd.f32 %v2311, %v2922
      %v2965 = vadd.f32 %v2312, %v2925
      %v2966 = vadd.f32 %v2313, %v2927
      %v2967 = vadd.f32 %v2314, %v2930
      %v2968 = vadd.f32 %v2315, %v2932
      %v2969 = vadd.f32 %v2316, %v2935
      %v2970 = vadd.f32 %v2317, %v2937
      %v2971 = vld [vmem:[%s570] sm:$0xe]
      %v2972 = vld [vmem:[%s570 + $0xc] sm:$0xe]
      %v2973 = vld [vmem:[%s570 + $0x18] sm:$0xe]
      %v2974 = vld [vmem:[%s570 + $0x24] sm:$0xe]
      %v2975 = vld [vmem:[%s570 + $0x30] sm:$0xe]
      %v2976 = vld [vmem:[%s570 + $0x3c] sm:$0xe]
      %v2977 = vld [vmem:[%s570 + $0x48] sm:$0xe]
      %v2978 = vld [vmem:[%s570 + $0x54] sm:$0xe]
      %v2979 = vld [vmem:[%s570 + $0x60] sm:$0xe]
      %v2980 = vld [vmem:[%s570 + $0x6c] sm:$0xe]
      %v2981 = vld [vmem:[%s570 + $0x78] sm:$0xe]
      %v2982 = vld [vmem:[%s570 + $0x84] sm:$0xe]
      %v2983 = vld [vmem:[%s570 + $0x90] sm:$0xe]
      %v2984 = vld [vmem:[%s570 + $0x9c] sm:$0xe]
      %v2985 = vld [vmem:[%s570 + $0xa8] sm:$0xe]
      %v2986 = vld [vmem:[%s570 + $0xb4] sm:$0xe]
      %v3035 = vrot.slane %v2971, 5
      %v3036 = vrot.slane %v3035, 4
      %v3037 = vrot.slane %v2319, 5
      %v3038 = vsel %vm1695, %v3036, %v3037
      %v3039 = vrot.slane %v3037, 4
      %v3040 = vrot.slane %v2320, 5
      %v3041 = vsel %vm1695, %v3039, %v3040
      %v3042 = vrot.slane %v2972, 5
      %v3043 = vrot.slane %v3042, 4
      %v3044 = vrot.slane %v2322, 5
      %v3045 = vsel %vm1695, %v3043, %v3044
      %v3046 = vrot.slane %v3044, 4
      %v3047 = vrot.slane %v2323, 5
      %v3048 = vsel %vm1695, %v3046, %v3047
      %v3049 = vrot.slane %v2973, 5
      %v3050 = vrot.slane %v3049, 4
      %v3051 = vrot.slane %v2325, 5
      %v3052 = vsel %vm1695, %v3050, %v3051
      %v3053 = vrot.slane %v3051, 4
      %v3054 = vrot.slane %v2326, 5
      %v3055 = vsel %vm1695, %v3053, %v3054
      %v3056 = vrot.slane %v2974, 5
      %v3057 = vrot.slane %v3056, 4
      %v3058 = vrot.slane %v2328, 5
      %v3059 = vsel %vm1695, %v3057, %v3058
      %v3060 = vrot.slane %v3058, 4
      %v3061 = vrot.slane %v2329, 5
      %v3062 = vsel %vm1695, %v3060, %v3061
      %v3063 = vrot.slane %v2975, 5
      %v3064 = vrot.slane %v3063, 4
      %v3065 = vrot.slane %v2331, 5
      %v3066 = vsel %vm1695, %v3064, %v3065
      %v3067 = vrot.slane %v3065, 4
      %v3068 = vrot.slane %v2332, 5
      %v3069 = vsel %vm1695, %v3067, %v3068
      %v3070 = vrot.slane %v2976, 5
      %v3071 = vrot.slane %v3070, 4
      %v3072 = vrot.slane %v2334, 5
      %v3073 = vsel %vm1695, %v3071, %v3072
      %v3074 = vrot.slane %v3072, 4
      %v3075 = vrot.slane %v2335, 5
      %v3076 = vsel %vm1695, %v3074, %v3075
      %v3077 = vrot.slane %v2977, 5
      %v3078 = vrot.slane %v3077, 4
      %v3079 = vrot.slane %v2337, 5
      %v3080 = vsel %vm1695, %v3078, %v3079
      %v3081 = vrot.slane %v3079, 4
      %v3082 = vrot.slane %v2338, 5
      %v3083 = vsel %vm1695, %v3081, %v3082
      %v3084 = vrot.slane %v2978, 5
      %v3085 = vrot.slane %v3084, 4
      %v3086 = vrot.slane %v2340, 5
      %v3087 = vsel %vm1695, %v3085, %v3086
      %v3088 = vrot.slane %v3086, 4
      %v3089 = vrot.slane %v2341, 5
      %v3090 = vsel %vm1695, %v3088, %v3089
      %v3091 = vrot.slane %v2979, 5
      %v3092 = vrot.slane %v3091, 4
      %v3093 = vrot.slane %v2343, 5
      %v3094 = vsel %vm1695, %v3092, %v3093
      %v3095 = vrot.slane %v3093, 4
      %v3096 = vrot.slane %v2344, 5
      %v3097 = vsel %vm1695, %v3095, %v3096
      %v3098 = vrot.slane %v2980, 5
      %v3099 = vrot.slane %v3098, 4
      %v3100 = vrot.slane %v2346, 5
      %v3101 = vsel %vm1695, %v3099, %v3100
      %v3102 = vrot.slane %v3100, 4
      %v3103 = vrot.slane %v2347, 5
      %v3104 = vsel %vm1695, %v3102, %v3103
      %v3105 = vrot.slane %v2981, 5
      %v3106 = vrot.slane %v3105, 4
      %v3107 = vrot.slane %v2349, 5
      %v3108 = vsel %vm1695, %v3106, %v3107
      %v3109 = vrot.slane %v3107, 4
      %v3110 = vrot.slane %v2350, 5
      %v3111 = vsel %vm1695, %v3109, %v3110
      %v3112 = vrot.slane %v2982, 5
      %v3113 = vrot.slane %v3112, 4
      %v3114 = vrot.slane %v2352, 5
      %v3115 = vsel %vm1695, %v3113, %v3114
      %v3116 = vrot.slane %v3114, 4
      %v3117 = vrot.slane %v2353, 5
      %v3118 = vsel %vm1695, %v3116, %v3117
      %v3119 = vrot.slane %v2983, 5
      %v3120 = vrot.slane %v3119, 4
      %v3121 = vrot.slane %v2355, 5
      %v3122 = vsel %vm1695, %v3120, %v3121
      %v3123 = vrot.slane %v3121, 4
      %v3124 = vrot.slane %v2356, 5
      %v3125 = vsel %vm1695, %v3123, %v3124
      %v3126 = vrot.slane %v2984, 5
      %v3127 = vrot.slane %v3126, 4
      %v3128 = vrot.slane %v2358, 5
      %v3129 = vsel %vm1695, %v3127, %v3128
      %v3130 = vrot.slane %v3128, 4
      %v3131 = vrot.slane %v2359, 5
      %v3132 = vsel %vm1695, %v3130, %v3131
      %v3133 = vrot.slane %v2985, 5
      %v3134 = vrot.slane %v3133, 4
      %v3135 = vrot.slane %v2361, 5
      %v3136 = vsel %vm1695, %v3134, %v3135
      %v3137 = vrot.slane %v3135, 4
      %v3138 = vrot.slane %v2362, 5
      %v3139 = vsel %vm1695, %v3137, %v3138
      %v3140 = vrot.slane %v2986, 5
      %v3141 = vrot.slane %v3140, 4
      %v3142 = vrot.slane %v2364, 5
      %v3143 = vsel %vm1695, %v3141, %v3142
      %v3144 = vrot.slane %v3142, 4
      %v3145 = vrot.slane %v2365, 5
      %v3146 = vsel %vm1695, %v3144, %v3145
      %v3147 = vld [vmem:[%s1 + $0x8] sm:$0xc]
      %v3148 = vunpack.c.l.b16 %v3038
      %v3149 = vunpack.c.l.b16 %v3041
      %v3150 = vunpack.c.l.b16 %v3045
      %v3151 = vunpack.c.l.b16 %v3048
      %v3152 = vunpack.c.l.b16 %v3052
      %v3153 = vunpack.c.l.b16 %v3055
      %v3154 = vunpack.c.l.b16 %v3059
      %v3155 = vunpack.c.l.b16 %v3062
      %v3156 = vunpack.c.l.b16 %v3066
      %v3157 = vunpack.c.l.b16 %v3069
      %v3158 = vunpack.c.l.b16 %v3073
      %v3159 = vunpack.c.l.b16 %v3076
      %v3160 = vunpack.c.l.b16 %v3080
      %v3161 = vunpack.c.l.b16 %v3083
      %v3162 = vunpack.c.l.b16 %v3087
      %v3163 = vunpack.c.l.b16 %v3090
      %v3164 = vunpack.c.l.b16 %v3094
      %v3165 = vunpack.c.l.b16 %v3097
      %v3166 = vunpack.c.l.b16 %v3101
      %v3167 = vunpack.c.l.b16 %v3104
      %v3168 = vunpack.c.l.b16 %v3108
      %v3169 = vunpack.c.l.b16 %v3111
      %v3170 = vunpack.c.l.b16 %v3115
      %v3171 = vunpack.c.l.b16 %v3118
      %v3172 = vunpack.c.l.b16 %v3122
      %v3173 = vunpack.c.l.b16 %v3125
      %v3174 = vunpack.c.l.b16 %v3129
      %v3175 = vunpack.c.l.b16 %v3132
      %v3176 = vunpack.c.l.b16 %v3136
      %v3177 = vunpack.c.l.b16 %v3139
      %v3178 = vunpack.c.l.b16 %v3143
      %v3179 = vunpack.c.l.b16 %v3146
      %v3180 = vpack.c.b16 %v3149, %v3148
      %v3181 = vpack.c.b16 %v3151, %v3150
      %v3182 = vpack.c.b16 %v3153, %v3152
      %v3183 = vpack.c.b16 %v3155, %v3154
      %v3184 = vpack.c.b16 %v3157, %v3156
      %v3185 = vpack.c.b16 %v3159, %v3158
      %v3186 = vpack.c.b16 %v3161, %v3160
      %v3187 = vpack.c.b16 %v3163, %v3162
      %v3188 = vpack.c.b16 %v3165, %v3164
      %v3189 = vpack.c.b16 %v3167, %v3166
      %v3190 = vpack.c.b16 %v3169, %v3168
      %v3191 = vpack.c.b16 %v3171, %v3170
      %v3192 = vpack.c.b16 %v3173, %v3172
      %v3193 = vpack.c.b16 %v3175, %v3174
      %v3194 = vpack.c.b16 %v3177, %v3176
      %v3195 = vpack.c.b16 %v3179, %v3178
      %v3197 = vunpack.c.l.b16 %v3147
      %v3198 = vpack.c.b16 %v3197, %v3197
      %v3199 = vrot.slane %v3198, 2
      %v3201 = vsel %vm1283, %v3180, 0
      %v3204 = vsel %vm1283, %v3181, 0
      %v3207 = vsel %vm1283, %v3182, 0
      %v3210 = vsel %vm1283, %v3183, 0
      %v3213 = vsel %vm1283, %v3184, 0
      %v3216 = vsel %vm1283, %v3185, 0
      %v3219 = vsel %vm1283, %v3186, 0
      %v3222 = vsel %vm1283, %v3187, 0
      %v3225 = vsel %vm1283, %v3188, 0
      %v3228 = vsel %vm1283, %v3189, 0
      %v3231 = vsel %vm1283, %v3190, 0
      %v3234 = vsel %vm1283, %v3191, 0
      %v3237 = vsel %vm1283, %v3192, 0
      %v3240 = vsel %vm1283, %v3193, 0
      %v3243 = vsel %vm1283, %v3194, 0
      %v3246 = vsel %vm1283, %v3195, 0
      %v3249 = vsel %vm1332, %v3199, 0
      %3251 = vmatpush.bf16.msra.mxu0 0
      %3252 = vmatpush.bf16.msra.mxu0 0
      %3253 = vmatpush.bf16.msra.mxu0 0
      %3254 = vmatpush.bf16.msra.mxu0 0
      %3255 = vmatpush.bf16.msra.mxu0 0
      %3256 = vmatpush.bf16.msra.mxu0 0
      %3257 = vmatpush.bf16.msra.mxu0 0
      %3258 = vmatpush.bf16.msra.mxu0 %v3249
      %3259 = vmatmul.bf16.gmra.mxu0 %v3201
      %v3260 = vpop.f32.mrf.mxu0
      %v3261 = vadd.f32 0.0, %v3260
      %v3262 = vpop.f32.mrf.mxu0
      %v3263 = vadd.f32 0.0, %v3262
      %3264 = vmatmul.bf16.gmra.mxu0 %v3204
      %v3265 = vpop.f32.mrf.mxu0
      %v3266 = vadd.f32 0.0, %v3265
      %v3267 = vpop.f32.mrf.mxu0
      %v3268 = vadd.f32 0.0, %v3267
      %3269 = vmatmul.bf16.gmra.mxu0 %v3207
      %v3270 = vpop.f32.mrf.mxu0
      %v3271 = vadd.f32 0.0, %v3270
      %v3272 = vpop.f32.mrf.mxu0
      %v3273 = vadd.f32 0.0, %v3272
      %3274 = vmatmul.bf16.gmra.mxu0 %v3210
      %v3275 = vpop.f32.mrf.mxu0
      %v3276 = vadd.f32 0.0, %v3275
      %v3277 = vpop.f32.mrf.mxu0
      %v3278 = vadd.f32 0.0, %v3277
      %3279 = vmatmul.bf16.gmra.mxu0 %v3213
      %v3280 = vpop.f32.mrf.mxu0
      %v3281 = vadd.f32 0.0, %v3280
      %v3282 = vpop.f32.mrf.mxu0
      %v3283 = vadd.f32 0.0, %v3282
      %3284 = vmatmul.bf16.gmra.mxu0 %v3216
      %v3285 = vpop.f32.mrf.mxu0
      %v3286 = vadd.f32 0.0, %v3285
      %v3287 = vpop.f32.mrf.mxu0
      %v3288 = vadd.f32 0.0, %v3287
      %3289 = vmatmul.bf16.gmra.mxu0 %v3219
      %v3290 = vpop.f32.mrf.mxu0
      %v3291 = vadd.f32 0.0, %v3290
      %v3292 = vpop.f32.mrf.mxu0
      %v3293 = vadd.f32 0.0, %v3292
      %3294 = vmatmul.bf16.gmra.mxu0 %v3222
      %v3295 = vpop.f32.mrf.mxu0
      %v3296 = vadd.f32 0.0, %v3295
      %v3297 = vpop.f32.mrf.mxu0
      %v3298 = vadd.f32 0.0, %v3297
      %3299 = vmatmul.bf16.gmra.mxu0 %v3225
      %v3300 = vpop.f32.mrf.mxu0
      %v3301 = vadd.f32 0.0, %v3300
      %v3302 = vpop.f32.mrf.mxu0
      %v3303 = vadd.f32 0.0, %v3302
      %3304 = vmatmul.bf16.gmra.mxu0 %v3228
      %v3305 = vpop.f32.mrf.mxu0
      %v3306 = vadd.f32 0.0, %v3305
      %v3307 = vpop.f32.mrf.mxu0
      %v3308 = vadd.f32 0.0, %v3307
      %3309 = vmatmul.bf16.gmra.mxu0 %v3231
      %v3310 = vpop.f32.mrf.mxu0
      %v3311 = vadd.f32 0.0, %v3310
      %v3312 = vpop.f32.mrf.mxu0
      %v3313 = vadd.f32 0.0, %v3312
      %3314 = vmatmul.bf16.gmra.mxu0 %v3234
      %v3315 = vpop.f32.mrf.mxu0
      %v3316 = vadd.f32 0.0, %v3315
      %v3317 = vpop.f32.mrf.mxu0
      %v3318 = vadd.f32 0.0, %v3317
      %3319 = vmatmul.bf16.gmra.mxu0 %v3237
      %v3320 = vpop.f32.mrf.mxu0
      %v3321 = vadd.f32 0.0, %v3320
      %v3322 = vpop.f32.mrf.mxu0
      %v3323 = vadd.f32 0.0, %v3322
      %3324 = vmatmul.bf16.gmra.mxu0 %v3240
      %v3325 = vpop.f32.mrf.mxu0
      %v3326 = vadd.f32 0.0, %v3325
      %v3327 = vpop.f32.mrf.mxu0
      %v3328 = vadd.f32 0.0, %v3327
      %3329 = vmatmul.bf16.gmra.mxu0 %v3243
      %v3330 = vpop.f32.mrf.mxu0
      %v3331 = vadd.f32 0.0, %v3330
      %v3332 = vpop.f32.mrf.mxu0
      %v3333 = vadd.f32 0.0, %v3332
      %3334 = vmatmul.bf16.gmra.mxu0 %v3246
      %v3335 = vpop.f32.mrf.mxu0
      %v3336 = vadd.f32 0.0, %v3335
      %v3337 = vpop.f32.mrf.mxu0
      %v3338 = vadd.f32 0.0, %v3337
      %3339 = vdwg.mxu0
      %v3340 = vadd.f32 %v2939, %v3261
      %v3341 = vadd.f32 %v2940, %v3263
      %v3342 = vadd.f32 %v2941, %v3266
      %v3343 = vadd.f32 %v2942, %v3268
      %v3344 = vadd.f32 %v2943, %v3271
      %v3345 = vadd.f32 %v2944, %v3273
      %v3346 = vadd.f32 %v2945, %v3276
      %v3347 = vadd.f32 %v2946, %v3278
      %v3348 = vadd.f32 %v2947, %v3281
      %v3349 = vadd.f32 %v2948, %v3283
      %v3350 = vadd.f32 %v2949, %v3286
      %v3351 = vadd.f32 %v2950, %v3288
      %v3352 = vadd.f32 %v2951, %v3291
      %v3353 = vadd.f32 %v2952, %v3293
      %v3354 = vadd.f32 %v2953, %v3296
      %v3355 = vadd.f32 %v2954, %v3298
      %v3356 = vadd.f32 %v2955, %v3301
      %v3357 = vadd.f32 %v2956, %v3303
      %v3358 = vadd.f32 %v2957, %v3306
      %v3359 = vadd.f32 %v2958, %v3308
      %v3360 = vadd.f32 %v2959, %v3311
      %v3361 = vadd.f32 %v2960, %v3313
      %v3362 = vadd.f32 %v2961, %v3316
      %v3363 = vadd.f32 %v2962, %v3318
      %v3364 = vadd.f32 %v2963, %v3321
      %v3365 = vadd.f32 %v2964, %v3323
      %v3366 = vadd.f32 %v2965, %v3326
      %v3367 = vadd.f32 %v2966, %v3328
      %v3368 = vadd.f32 %v2967, %v3331
      %v3369 = vadd.f32 %v2968, %v3333
      %v3370 = vadd.f32 %v2969, %v3336
      %v3371 = vadd.f32 %v2970, %v3338
      %s3372 = scalar_lea.vmem [#allocation2], 24
      %v3373 = vld [vmem:[%s3372] sm:$0xf]
      %v3374 = vld [vmem:[%s3372 + $0x4] sm:$0xf]
      %v3375 = vld [vmem:[%s3372 + $0xc] sm:$0xf]
      %v3376 = vld [vmem:[%s3372 + $0x10] sm:$0xf]
      %v3377 = vld [vmem:[%s3372 + $0x18] sm:$0xf]
      %v3378 = vld [vmem:[%s3372 + $0x1c] sm:$0xf]
      %v3379 = vld [vmem:[%s3372 + $0x24] sm:$0xf]
      %v3380 = vld [vmem:[%s3372 + $0x28] sm:$0xf]
      %v3381 = vld [vmem:[%s3372 + $0x30] sm:$0xf]
      %v3382 = vld [vmem:[%s3372 + $0x34] sm:$0xf]
      %v3383 = vld [vmem:[%s3372 + $0x3c] sm:$0xf]
      %v3384 = vld [vmem:[%s3372 + $0x40] sm:$0xf]
      %v3385 = vld [vmem:[%s3372 + $0x48] sm:$0xf]
      %v3386 = vld [vmem:[%s3372 + $0x4c] sm:$0xf]
      %v3387 = vld [vmem:[%s3372 + $0x54] sm:$0xf]
      %v3388 = vld [vmem:[%s3372 + $0x58] sm:$0xf]
      %v3389 = vld [vmem:[%s3372 + $0x60] sm:$0xf]
      %v3390 = vld [vmem:[%s3372 + $0x64] sm:$0xf]
      %v3391 = vld [vmem:[%s3372 + $0x6c] sm:$0xf]
      %v3392 = vld [vmem:[%s3372 + $0x70] sm:$0xf]
      %v3393 = vld [vmem:[%s3372 + $0x78] sm:$0xf]
      %v3394 = vld [vmem:[%s3372 + $0x7c] sm:$0xf]
      %v3395 = vld [vmem:[%s3372 + $0x84] sm:$0xf]
      %v3396 = vld [vmem:[%s3372 + $0x88] sm:$0xf]
      %v3397 = vld [vmem:[%s3372 + $0x90] sm:$0xf]
      %v3398 = vld [vmem:[%s3372 + $0x94] sm:$0xf]
      %v3399 = vld [vmem:[%s3372 + $0x9c] sm:$0xf]
      %v3400 = vld [vmem:[%s3372 + $0xa0] sm:$0xf]
      %v3401 = vld [vmem:[%s3372 + $0xa8] sm:$0xf]
      %v3402 = vld [vmem:[%s3372 + $0xac] sm:$0xf]
      %v3403 = vld [vmem:[%s3372 + $0xb4] sm:$0xf]
      %v3404 = vld [vmem:[%s3372 + $0xb8] sm:$0xf]
      %v3405 = vld [vmem:[%s1 + $0xc] sm:$0x3]
      %v3438 = vunpack.c.l.b16 %v3373
      %v3439 = vunpack.c.l.b16 %v3374
      %v3440 = vunpack.c.l.b16 %v3375
      %v3441 = vunpack.c.l.b16 %v3376
      %v3442 = vunpack.c.l.b16 %v3377
      %v3443 = vunpack.c.l.b16 %v3378
      %v3444 = vunpack.c.l.b16 %v3379
      %v3445 = vunpack.c.l.b16 %v3380
      %v3446 = vunpack.c.l.b16 %v3381
      %v3447 = vunpack.c.l.b16 %v3382
      %v3448 = vunpack.c.l.b16 %v3383
      %v3449 = vunpack.c.l.b16 %v3384
      %v3450 = vunpack.c.l.b16 %v3385
      %v3451 = vunpack.c.l.b16 %v3386
      %v3452 = vunpack.c.l.b16 %v3387
      %v3453 = vunpack.c.l.b16 %v3388
      %v3454 = vunpack.c.l.b16 %v3389
      %v3455 = vunpack.c.l.b16 %v3390
      %v3456 = vunpack.c.l.b16 %v3391
      %v3457 = vunpack.c.l.b16 %v3392
      %v3458 = vunpack.c.l.b16 %v3393
      %v3459 = vunpack.c.l.b16 %v3394
      %v3460 = vunpack.c.l.b16 %v3395
      %v3461 = vunpack.c.l.b16 %v3396
      %v3462 = vunpack.c.l.b16 %v3397
      %v3463 = vunpack.c.l.b16 %v3398
      %v3464 = vunpack.c.l.b16 %v3399
      %v3465 = vunpack.c.l.b16 %v3400
      %v3466 = vunpack.c.l.b16 %v3401
      %v3467 = vunpack.c.l.b16 %v3402
      %v3468 = vunpack.c.l.b16 %v3403
      %v3469 = vunpack.c.l.b16 %v3404
      %v3470 = vpack.c.b16 %v3439, %v3438
      %v3471 = vpack.c.b16 %v3441, %v3440
      %v3472 = vpack.c.b16 %v3443, %v3442
      %v3473 = vpack.c.b16 %v3445, %v3444
      %v3474 = vpack.c.b16 %v3447, %v3446
      %v3475 = vpack.c.b16 %v3449, %v3448
      %v3476 = vpack.c.b16 %v3451, %v3450
      %v3477 = vpack.c.b16 %v3453, %v3452
      %v3478 = vpack.c.b16 %v3455, %v3454
      %v3479 = vpack.c.b16 %v3457, %v3456
      %v3480 = vpack.c.b16 %v3459, %v3458
      %v3481 = vpack.c.b16 %v3461, %v3460
      %v3482 = vpack.c.b16 %v3463, %v3462
      %v3483 = vpack.c.b16 %v3465, %v3464
      %v3484 = vpack.c.b16 %v3467, %v3466
      %v3485 = vpack.c.b16 %v3469, %v3468
      %v3487 = vsel %vm1283, %v3470, 0
      %v3490 = vsel %vm1283, %v3471, 0
      %v3493 = vsel %vm1283, %v3472, 0
      %v3496 = vsel %vm1283, %v3473, 0
      %v3499 = vsel %vm1283, %v3474, 0
      %v3502 = vsel %vm1283, %v3475, 0
      %v3505 = vsel %vm1283, %v3476, 0
      %v3508 = vsel %vm1283, %v3477, 0
      %v3511 = vsel %vm1283, %v3478, 0
      %v3514 = vsel %vm1283, %v3479, 0
      %v3517 = vsel %vm1283, %v3480, 0
      %v3520 = vsel %vm1283, %v3481, 0
      %v3523 = vsel %vm1283, %v3482, 0
      %v3526 = vsel %vm1283, %v3483, 0
      %v3529 = vsel %vm1283, %v3484, 0
      %v3532 = vsel %vm1283, %v3485, 0
      %v3535 = vsel %vm1332, %v3405, 0
      %3537 = vmatpush.bf16.msra.mxu0 0
      %3538 = vmatpush.bf16.msra.mxu0 0
      %3539 = vmatpush.bf16.msra.mxu0 0
      %3540 = vmatpush.bf16.msra.mxu0 0
      %3541 = vmatpush.bf16.msra.mxu0 0
      %3542 = vmatpush.bf16.msra.mxu0 0
      %3543 = vmatpush.bf16.msra.mxu0 0
      %3544 = vmatpush.bf16.msra.mxu0 %v3535
      %3545 = vmatmul.bf16.gmra.mxu0 %v3487
      %v3546 = vpop.f32.mrf.mxu0
      %v3547 = vadd.f32 0.0, %v3546
      %v3548 = vpop.f32.mrf.mxu0
      %v3549 = vadd.f32 0.0, %v3548
      %3550 = vmatmul.bf16.gmra.mxu0 %v3490
      %v3551 = vpop.f32.mrf.mxu0
      %v3552 = vadd.f32 0.0, %v3551
      %v3553 = vpop.f32.mrf.mxu0
      %v3554 = vadd.f32 0.0, %v3553
      %3555 = vmatmul.bf16.gmra.mxu0 %v3493
      %v3556 = vpop.f32.mrf.mxu0
      %v3557 = vadd.f32 0.0, %v3556
      %v3558 = vpop.f32.mrf.mxu0
      %v3559 = vadd.f32 0.0, %v3558
      %3560 = vmatmul.bf16.gmra.mxu0 %v3496
      %v3561 = vpop.f32.mrf.mxu0
      %v3562 = vadd.f32 0.0, %v3561
      %v3563 = vpop.f32.mrf.mxu0
      %v3564 = vadd.f32 0.0, %v3563
      %3565 = vmatmul.bf16.gmra.mxu0 %v3499
      %v3566 = vpop.f32.mrf.mxu0
      %v3567 = vadd.f32 0.0, %v3566
      %v3568 = vpop.f32.mrf.mxu0
      %v3569 = vadd.f32 0.0, %v3568
      %3570 = vmatmul.bf16.gmra.mxu0 %v3502
      %v3571 = vpop.f32.mrf.mxu0
      %v3572 = vadd.f32 0.0, %v3571
      %v3573 = vpop.f32.mrf.mxu0
      %v3574 = vadd.f32 0.0, %v3573
      %3575 = vmatmul.bf16.gmra.mxu0 %v3505
      %v3576 = vpop.f32.mrf.mxu0
      %v3577 = vadd.f32 0.0, %v3576
      %v3578 = vpop.f32.mrf.mxu0
      %v3579 = vadd.f32 0.0, %v3578
      %3580 = vmatmul.bf16.gmra.mxu0 %v3508
      %v3581 = vpop.f32.mrf.mxu0
      %v3582 = vadd.f32 0.0, %v3581
      %v3583 = vpop.f32.mrf.mxu0
      %v3584 = vadd.f32 0.0, %v3583
      %3585 = vmatmul.bf16.gmra.mxu0 %v3511
      %v3586 = vpop.f32.mrf.mxu0
      %v3587 = vadd.f32 0.0, %v3586
      %v3588 = vpop.f32.mrf.mxu0
      %v3589 = vadd.f32 0.0, %v3588
      %3590 = vmatmul.bf16.gmra.mxu0 %v3514
      %v3591 = vpop.f32.mrf.mxu0
      %v3592 = vadd.f32 0.0, %v3591
      %v3593 = vpop.f32.mrf.mxu0
      %v3594 = vadd.f32 0.0, %v3593
      %3595 = vmatmul.bf16.gmra.mxu0 %v3517
      %v3596 = vpop.f32.mrf.mxu0
      %v3597 = vadd.f32 0.0, %v3596
      %v3598 = vpop.f32.mrf.mxu0
      %v3599 = vadd.f32 0.0, %v3598
      %3600 = vmatmul.bf16.gmra.mxu0 %v3520
      %v3601 = vpop.f32.mrf.mxu0
      %v3602 = vadd.f32 0.0, %v3601
      %v3603 = vpop.f32.mrf.mxu0
      %v3604 = vadd.f32 0.0, %v3603
      %3605 = vmatmul.bf16.gmra.mxu0 %v3523
      %v3606 = vpop.f32.mrf.mxu0
      %v3607 = vadd.f32 0.0, %v3606
      %v3608 = vpop.f32.mrf.mxu0
      %v3609 = vadd.f32 0.0, %v3608
      %3610 = vmatmul.bf16.gmra.mxu0 %v3526
      %v3611 = vpop.f32.mrf.mxu0
      %v3612 = vadd.f32 0.0, %v3611
      %v3613 = vpop.f32.mrf.mxu0
      %v3614 = vadd.f32 0.0, %v3613
      %3615 = vmatmul.bf16.gmra.mxu0 %v3529
      %v3616 = vpop.f32.mrf.mxu0
      %v3617 = vadd.f32 0.0, %v3616
      %v3618 = vpop.f32.mrf.mxu0
      %v3619 = vadd.f32 0.0, %v3618
      %3620 = vmatmul.bf16.gmra.mxu0 %v3532
      %v3621 = vpop.f32.mrf.mxu0
      %v3622 = vadd.f32 0.0, %v3621
      %v3623 = vpop.f32.mrf.mxu0
      %v3624 = vadd.f32 0.0, %v3623
      %3625 = vdwg.mxu0
      %v3626 = vadd.f32 %v3340, %v3547
      %v3627 = vadd.f32 %v3341, %v3549
      %v3628 = vadd.f32 %v3342, %v3552
      %v3629 = vadd.f32 %v3343, %v3554
      %v3630 = vadd.f32 %v3344, %v3557
      %v3631 = vadd.f32 %v3345, %v3559
      %v3632 = vadd.f32 %v3346, %v3562
      %v3633 = vadd.f32 %v3347, %v3564
      %v3634 = vadd.f32 %v3348, %v3567
      %v3635 = vadd.f32 %v3349, %v3569
      %v3636 = vadd.f32 %v3350, %v3572
      %v3637 = vadd.f32 %v3351, %v3574
      %v3638 = vadd.f32 %v3352, %v3577
      %v3639 = vadd.f32 %v3353, %v3579
      %v3640 = vadd.f32 %v3354, %v3582
      %v3641 = vadd.f32 %v3355, %v3584
      %v3642 = vadd.f32 %v3356, %v3587
      %v3643 = vadd.f32 %v3357, %v3589
      %v3644 = vadd.f32 %v3358, %v3592
      %v3645 = vadd.f32 %v3359, %v3594
      %v3646 = vadd.f32 %v3360, %v3597
      %v3647 = vadd.f32 %v3361, %v3599
      %v3648 = vadd.f32 %v3362, %v3602
      %v3649 = vadd.f32 %v3363, %v3604
      %v3650 = vadd.f32 %v3364, %v3607
      %v3651 = vadd.f32 %v3365, %v3609
      %v3652 = vadd.f32 %v3366, %v3612
      %v3653 = vadd.f32 %v3367, %v3614
      %v3654 = vadd.f32 %v3368, %v3617
      %v3655 = vadd.f32 %v3369, %v3619
      %v3656 = vadd.f32 %v3370, %v3622
      %v3657 = vadd.f32 %v3371, %v3624
      %v3658 = vld [vmem:[%s3372] sm:$0xf]
      %v3659 = vld [vmem:[%s3372 + $0x4] sm:$0xf]
      %v3660 = vld [vmem:[%s3372 + $0x8] sm:$0x1]
      %v3661 = vld [vmem:[%s3372 + $0xc] sm:$0xf]
      %v3662 = vld [vmem:[%s3372 + $0x10] sm:$0xf]
      %v3663 = vld [vmem:[%s3372 + $0x14] sm:$0x1]
      %v3664 = vld [vmem:[%s3372 + $0x18] sm:$0xf]
      %v3665 = vld [vmem:[%s3372 + $0x1c] sm:$0xf]
      %v3666 = vld [vmem:[%s3372 + $0x20] sm:$0x1]
      %v3667 = vld [vmem:[%s3372 + $0x24] sm:$0xf]
      %v3668 = vld [vmem:[%s3372 + $0x28] sm:$0xf]
      %v3669 = vld [vmem:[%s3372 + $0x2c] sm:$0x1]
      %v3670 = vld [vmem:[%s3372 + $0x30] sm:$0xf]
      %v3671 = vld [vmem:[%s3372 + $0x34] sm:$0xf]
      %v3672 = vld [vmem:[%s3372 + $0x38] sm:$0x1]
      %v3673 = vld [vmem:[%s3372 + $0x3c] sm:$0xf]
      %v3674 = vld [vmem:[%s3372 + $0x40] sm:$0xf]
      %v3675 = vld [vmem:[%s3372 + $0x44] sm:$0x1]
      %v3676 = vld [vmem:[%s3372 + $0x48] sm:$0xf]
      %v3677 = vld [vmem:[%s3372 + $0x4c] sm:$0xf]
      %v3678 = vld [vmem:[%s3372 + $0x50] sm:$0x1]
      %v3679 = vld [vmem:[%s3372 + $0x54] sm:$0xf]
      %v3680 = vld [vmem:[%s3372 + $0x58] sm:$0xf]
      %v3681 = vld [vmem:[%s3372 + $0x5c] sm:$0x1]
      %v3682 = vld [vmem:[%s3372 + $0x60] sm:$0xf]
      %v3683 = vld [vmem:[%s3372 + $0x64] sm:$0xf]
      %v3684 = vld [vmem:[%s3372 + $0x68] sm:$0x1]
      %v3685 = vld [vmem:[%s3372 + $0x6c] sm:$0xf]
      %v3686 = vld [vmem:[%s3372 + $0x70] sm:$0xf]
      %v3687 = vld [vmem:[%s3372 + $0x74] sm:$0x1]
      %v3688 = vld [vmem:[%s3372 + $0x78] sm:$0xf]
      %v3689 = vld [vmem:[%s3372 + $0x7c] sm:$0xf]
      %v3690 = vld [vmem:[%s3372 + $0x80] sm:$0x1]
      %v3691 = vld [vmem:[%s3372 + $0x84] sm:$0xf]
      %v3692 = vld [vmem:[%s3372 + $0x88] sm:$0xf]
      %v3693 = vld [vmem:[%s3372 + $0x8c] sm:$0x1]
      %v3694 = vld [vmem:[%s3372 + $0x90] sm:$0xf]
      %v3695 = vld [vmem:[%s3372 + $0x94] sm:$0xf]
      %v3696 = vld [vmem:[%s3372 + $0x98] sm:$0x1]
      %v3697 = vld [vmem:[%s3372 + $0x9c] sm:$0xf]
      %v3698 = vld [vmem:[%s3372 + $0xa0] sm:$0xf]
      %v3699 = vld [vmem:[%s3372 + $0xa4] sm:$0x1]
      %v3700 = vld [vmem:[%s3372 + $0xa8] sm:$0xf]
      %v3701 = vld [vmem:[%s3372 + $0xac] sm:$0xf]
      %v3702 = vld [vmem:[%s3372 + $0xb0] sm:$0x1]
      %v3703 = vld [vmem:[%s3372 + $0xb4] sm:$0xf]
      %v3704 = vld [vmem:[%s3372 + $0xb8] sm:$0xf]
      %v3705 = vld [vmem:[%s3372 + $0xbc] sm:$0x1]
      %v3707 = vshrl.u32 %v3658, 16
      %v3709 = vrot.slane %v3707, 4
      %v3710 = vshll.u32 %v3658, 16
      %v3712 = vrot.slane %v3710, 5
      %v3713 = vor.u32 %v3709, %v3712
      %v3714 = vrot.slane %v3713, 4
      %v3716 = vshll.u32 %v3659, 16
      %v3718 = vrot.slane %v3716, 5
      %v3719 = vsel %vm845, %v3714, %v3718
      %v3720 = vshrl.u32 %v3659, 16
      %v3722 = vrot.slane %v3720, 4
      %v3723 = vor.u32 %v3722, %v3718
      %v3724 = vrot.slane %v3723, 4
      %v3726 = vshll.u32 %v3660, 16
      %v3728 = vrot.slane %v3726, 5
      %v3729 = vsel %vm845, %v3724, %v3728
      %v3731 = vshrl.u32 %v3661, 16
      %v3733 = vrot.slane %v3731, 4
      %v3734 = vshll.u32 %v3661, 16
      %v3736 = vrot.slane %v3734, 5
      %v3737 = vor.u32 %v3733, %v3736
      %v3738 = vrot.slane %v3737, 4
      %v3740 = vshll.u32 %v3662, 16
      %v3742 = vrot.slane %v3740, 5
      %v3743 = vsel %vm845, %v3738, %v3742
      %v3744 = vshrl.u32 %v3662, 16
      %v3746 = vrot.slane %v3744, 4
      %v3747 = vor.u32 %v3746, %v3742
      %v3748 = vrot.slane %v3747, 4
      %v3750 = vshll.u32 %v3663, 16
      %v3752 = vrot.slane %v3750, 5
      %v3753 = vsel %vm845, %v3748, %v3752
      %v3755 = vshrl.u32 %v3664, 16
      %v3757 = vrot.slane %v3755, 4
      %v3758 = vshll.u32 %v3664, 16
      %v3760 = vrot.slane %v3758, 5
      %v3761 = vor.u32 %v3757, %v3760
      %v3762 = vrot.slane %v3761, 4
      %v3764 = vshll.u32 %v3665, 16
      %v3766 = vrot.slane %v3764, 5
      %v3767 = vsel %vm845, %v3762, %v3766
      %v3768 = vshrl.u32 %v3665, 16
      %v3770 = vrot.slane %v3768, 4
      %v3771 = vor.u32 %v3770, %v3766
      %v3772 = vrot.slane %v3771, 4
      %v3774 = vshll.u32 %v3666, 16
      %v3776 = vrot.slane %v3774, 5
      %v3777 = vsel %vm845, %v3772, %v3776
      %v3779 = vshrl.u32 %v3667, 16
      %v3781 = vrot.slane %v3779, 4
      %v3782 = vshll.u32 %v3667, 16
      %v3784 = vrot.slane %v3782, 5
      %v3785 = vor.u32 %v3781, %v3784
      %v3786 = vrot.slane %v3785, 4
      %v3788 = vshll.u32 %v3668, 16
      %v3790 = vrot.slane %v3788, 5
      %v3791 = vsel %vm845, %v3786, %v3790
      %v3792 = vshrl.u32 %v3668, 16
      %v3794 = vrot.slane %v3792, 4
      %v3795 = vor.u32 %v3794, %v3790
      %v3796 = vrot.slane %v3795, 4
      %v3798 = vshll.u32 %v3669, 16
      %v3800 = vrot.slane %v3798, 5
      %v3801 = vsel %vm845, %v3796, %v3800
      %v3803 = vshrl.u32 %v3670, 16
      %v3805 = vrot.slane %v3803, 4
      %v3806 = vshll.u32 %v3670, 16
      %v3808 = vrot.slane %v3806, 5
      %v3809 = vor.u32 %v3805, %v3808
      %v3810 = vrot.slane %v3809, 4
      %v3812 = vshll.u32 %v3671, 16
      %v3814 = vrot.slane %v3812, 5
      %v3815 = vsel %vm845, %v3810, %v3814
      %v3816 = vshrl.u32 %v3671, 16
      %v3818 = vrot.slane %v3816, 4
      %v3819 = vor.u32 %v3818, %v3814
      %v3820 = vrot.slane %v3819, 4
      %v3822 = vshll.u32 %v3672, 16
      %v3824 = vrot.slane %v3822, 5
      %v3825 = vsel %vm845, %v3820, %v3824
      %v3827 = vshrl.u32 %v3673, 16
      %v3829 = vrot.slane %v3827, 4
      %v3830 = vshll.u32 %v3673, 16
      %v3832 = vrot.slane %v3830, 5
      %v3833 = vor.u32 %v3829, %v3832
      %v3834 = vrot.slane %v3833, 4
      %v3836 = vshll.u32 %v3674, 16
      %v3838 = vrot.slane %v3836, 5
      %v3839 = vsel %vm845, %v3834, %v3838
      %v3840 = vshrl.u32 %v3674, 16
      %v3842 = vrot.slane %v3840, 4
      %v3843 = vor.u32 %v3842, %v3838
      %v3844 = vrot.slane %v3843, 4
      %v3846 = vshll.u32 %v3675, 16
      %v3848 = vrot.slane %v3846, 5
      %v3849 = vsel %vm845, %v3844, %v3848
      %v3851 = vshrl.u32 %v3676, 16
      %v3853 = vrot.slane %v3851, 4
      %v3854 = vshll.u32 %v3676, 16
      %v3856 = vrot.slane %v3854, 5
      %v3857 = vor.u32 %v3853, %v3856
      %v3858 = vrot.slane %v3857, 4
      %v3860 = vshll.u32 %v3677, 16
      %v3862 = vrot.slane %v3860, 5
      %v3863 = vsel %vm845, %v3858, %v3862
      %v3864 = vshrl.u32 %v3677, 16
      %v3866 = vrot.slane %v3864, 4
      %v3867 = vor.u32 %v3866, %v3862
      %v3868 = vrot.slane %v3867, 4
      %v3870 = vshll.u32 %v3678, 16
      %v3872 = vrot.slane %v3870, 5
      %v3873 = vsel %vm845, %v3868, %v3872
      %v3875 = vshrl.u32 %v3679, 16
      %v3877 = vrot.slane %v3875, 4
      %v3878 = vshll.u32 %v3679, 16
      %v3880 = vrot.slane %v3878, 5
      %v3881 = vor.u32 %v3877, %v3880
      %v3882 = vrot.slane %v3881, 4
      %v3884 = vshll.u32 %v3680, 16
      %v3886 = vrot.slane %v3884, 5
      %v3887 = vsel %vm845, %v3882, %v3886
      %v3888 = vshrl.u32 %v3680, 16
      %v3890 = vrot.slane %v3888, 4
      %v3891 = vor.u32 %v3890, %v3886
      %v3892 = vrot.slane %v3891, 4
      %v3894 = vshll.u32 %v3681, 16
      %v3896 = vrot.slane %v3894, 5
      %v3897 = vsel %vm845, %v3892, %v3896
      %v3899 = vshrl.u32 %v3682, 16
      %v3901 = vrot.slane %v3899, 4
      %v3902 = vshll.u32 %v3682, 16
      %v3904 = vrot.slane %v3902, 5
      %v3905 = vor.u32 %v3901, %v3904
      %v3906 = vrot.slane %v3905, 4
      %v3908 = vshll.u32 %v3683, 16
      %v3910 = vrot.slane %v3908, 5
      %v3911 = vsel %vm845, %v3906, %v3910
      %v3912 = vshrl.u32 %v3683, 16
      %v3914 = vrot.slane %v3912, 4
      %v3915 = vor.u32 %v3914, %v3910
      %v3916 = vrot.slane %v3915, 4
      %v3918 = vshll.u32 %v3684, 16
      %v3920 = vrot.slane %v3918, 5
      %v3921 = vsel %vm845, %v3916, %v3920
      %v3923 = vshrl.u32 %v3685, 16
      %v3925 = vrot.slane %v3923, 4
      %v3926 = vshll.u32 %v3685, 16
      %v3928 = vrot.slane %v3926, 5
      %v3929 = vor.u32 %v3925, %v3928
      %v3930 = vrot.slane %v3929, 4
      %v3932 = vshll.u32 %v3686, 16
      %v3934 = vrot.slane %v3932, 5
      %v3935 = vsel %vm845, %v3930, %v3934
      %v3936 = vshrl.u32 %v3686, 16
      %v3938 = vrot.slane %v3936, 4
      %v3939 = vor.u32 %v3938, %v3934
      %v3940 = vrot.slane %v3939, 4
      %v3942 = vshll.u32 %v3687, 16
      %v3944 = vrot.slane %v3942, 5
      %v3945 = vsel %vm845, %v3940, %v3944
      %v3947 = vshrl.u32 %v3688, 16
      %v3949 = vrot.slane %v3947, 4
      %v3950 = vshll.u32 %v3688, 16
      %v3952 = vrot.slane %v3950, 5
      %v3953 = vor.u32 %v3949, %v3952
      %v3954 = vrot.slane %v3953, 4
      %v3956 = vshll.u32 %v3689, 16
      %v3958 = vrot.slane %v3956, 5
      %v3959 = vsel %vm845, %v3954, %v3958
      %v3960 = vshrl.u32 %v3689, 16
      %v3962 = vrot.slane %v3960, 4
      %v3963 = vor.u32 %v3962, %v3958
      %v3964 = vrot.slane %v3963, 4
      %v3966 = vshll.u32 %v3690, 16
      %v3968 = vrot.slane %v3966, 5
      %v3969 = vsel %vm845, %v3964, %v3968
      %v3971 = vshrl.u32 %v3691, 16
      %v3973 = vrot.slane %v3971, 4
      %v3974 = vshll.u32 %v3691, 16
      %v3976 = vrot.slane %v3974, 5
      %v3977 = vor.u32 %v3973, %v3976
      %v3978 = vrot.slane %v3977, 4
      %v3980 = vshll.u32 %v3692, 16
      %v3982 = vrot.slane %v3980, 5
      %v3983 = vsel %vm845, %v3978, %v3982
      %v3984 = vshrl.u32 %v3692, 16
      %v3986 = vrot.slane %v3984, 4
      %v3987 = vor.u32 %v3986, %v3982
      %v3988 = vrot.slane %v3987, 4
      %v3990 = vshll.u32 %v3693, 16
      %v3992 = vrot.slane %v3990, 5
      %v3993 = vsel %vm845, %v3988, %v3992
      %v3995 = vshrl.u32 %v3694, 16
      %v3997 = vrot.slane %v3995, 4
      %v3998 = vshll.u32 %v3694, 16
      %v4000 = vrot.slane %v3998, 5
      %v4001 = vor.u32 %v3997, %v4000
      %v4002 = vrot.slane %v4001, 4
      %v4004 = vshll.u32 %v3695, 16
      %v4006 = vrot.slane %v4004, 5
      %v4007 = vsel %vm845, %v4002, %v4006
      %v4008 = vshrl.u32 %v3695, 16
      %v4010 = vrot.slane %v4008, 4
      %v4011 = vor.u32 %v4010, %v4006
      %v4012 = vrot.slane %v4011, 4
      %v4014 = vshll.u32 %v3696, 16
      %v4016 = vrot.slane %v4014, 5
      %v4017 = vsel %vm845, %v4012, %v4016
      %v4019 = vshrl.u32 %v3697, 16
      %v4021 = vrot.slane %v4019, 4
      %v4022 = vshll.u32 %v3697, 16
      %v4024 = vrot.slane %v4022, 5
      %v4025 = vor.u32 %v4021, %v4024
      %v4026 = vrot.slane %v4025, 4
      %v4028 = vshll.u32 %v3698, 16
      %v4030 = vrot.slane %v4028, 5
      %v4031 = vsel %vm845, %v4026, %v4030
      %v4032 = vshrl.u32 %v3698, 16
      %v4034 = vrot.slane %v4032, 4
      %v4035 = vor.u32 %v4034, %v4030
      %v4036 = vrot.slane %v4035, 4
      %v4038 = vshll.u32 %v3699, 16
      %v4040 = vrot.slane %v4038, 5
      %v4041 = vsel %vm845, %v4036, %v4040
      %v4043 = vshrl.u32 %v3700, 16
      %v4045 = vrot.slane %v4043, 4
      %v4046 = vshll.u32 %v3700, 16
      %v4048 = vrot.slane %v4046, 5
      %v4049 = vor.u32 %v4045, %v4048
      %v4050 = vrot.slane %v4049, 4
      %v4052 = vshll.u32 %v3701, 16
      %v4054 = vrot.slane %v4052, 5
      %v4055 = vsel %vm845, %v4050, %v4054
      %v4056 = vshrl.u32 %v3701, 16
      %v4058 = vrot.slane %v4056, 4
      %v4059 = vor.u32 %v4058, %v4054
      %v4060 = vrot.slane %v4059, 4
      %v4062 = vshll.u32 %v3702, 16
      %v4064 = vrot.slane %v4062, 5
      %v4065 = vsel %vm845, %v4060, %v4064
      %v4067 = vshrl.u32 %v3703, 16
      %v4069 = vrot.slane %v4067, 4
      %v4070 = vshll.u32 %v3703, 16
      %v4072 = vrot.slane %v4070, 5
      %v4073 = vor.u32 %v4069, %v4072
      %v4074 = vrot.slane %v4073, 4
      %v4076 = vshll.u32 %v3704, 16
      %v4078 = vrot.slane %v4076, 5
      %v4079 = vsel %vm845, %v4074, %v4078
      %v4080 = vshrl.u32 %v3704, 16
      %v4082 = vrot.slane %v4080, 4
      %v4083 = vor.u32 %v4082, %v4078
      %v4084 = vrot.slane %v4083, 4
      %v4086 = vshll.u32 %v3705, 16
      %v4088 = vrot.slane %v4086, 5
      %v4089 = vsel %vm845, %v4084, %v4088
      %v4090 = vld [vmem:[%s1 + $0xc] sm:$0xc]
      %v4091 = vunpack.c.l.b16 %v3719
      %v4092 = vunpack.c.l.b16 %v3729
      %v4093 = vunpack.c.l.b16 %v3743
      %v4094 = vunpack.c.l.b16 %v3753
      %v4095 = vunpack.c.l.b16 %v3767
      %v4096 = vunpack.c.l.b16 %v3777
      %v4097 = vunpack.c.l.b16 %v3791
      %v4098 = vunpack.c.l.b16 %v3801
      %v4099 = vunpack.c.l.b16 %v3815
      %v4100 = vunpack.c.l.b16 %v3825
      %v4101 = vunpack.c.l.b16 %v3839
      %v4102 = vunpack.c.l.b16 %v3849
      %v4103 = vunpack.c.l.b16 %v3863
      %v4104 = vunpack.c.l.b16 %v3873
      %v4105 = vunpack.c.l.b16 %v3887
      %v4106 = vunpack.c.l.b16 %v3897
      %v4107 = vunpack.c.l.b16 %v3911
      %v4108 = vunpack.c.l.b16 %v3921
      %v4109 = vunpack.c.l.b16 %v3935
      %v4110 = vunpack.c.l.b16 %v3945
      %v4111 = vunpack.c.l.b16 %v3959
      %v4112 = vunpack.c.l.b16 %v3969
      %v4113 = vunpack.c.l.b16 %v3983
      %v4114 = vunpack.c.l.b16 %v3993
      %v4115 = vunpack.c.l.b16 %v4007
      %v4116 = vunpack.c.l.b16 %v4017
      %v4117 = vunpack.c.l.b16 %v4031
      %v4118 = vunpack.c.l.b16 %v4041
      %v4119 = vunpack.c.l.b16 %v4055
      %v4120 = vunpack.c.l.b16 %v4065
      %v4121 = vunpack.c.l.b16 %v4079
      %v4122 = vunpack.c.l.b16 %v4089
      %v4123 = vpack.c.b16 %v4092, %v4091
      %v4124 = vpack.c.b16 %v4094, %v4093
      %v4125 = vpack.c.b16 %v4096, %v4095
      %v4126 = vpack.c.b16 %v4098, %v4097
      %v4127 = vpack.c.b16 %v4100, %v4099
      %v4128 = vpack.c.b16 %v4102, %v4101
      %v4129 = vpack.c.b16 %v4104, %v4103
      %v4130 = vpack.c.b16 %v4106, %v4105
      %v4131 = vpack.c.b16 %v4108, %v4107
      %v4132 = vpack.c.b16 %v4110, %v4109
      %v4133 = vpack.c.b16 %v4112, %v4111
      %v4134 = vpack.c.b16 %v4114, %v4113
      %v4135 = vpack.c.b16 %v4116, %v4115
      %v4136 = vpack.c.b16 %v4118, %v4117
      %v4137 = vpack.c.b16 %v4120, %v4119
      %v4138 = vpack.c.b16 %v4122, %v4121
      %v4140 = vunpack.c.l.b16 %v4090
      %v4141 = vpack.c.b16 %v4140, %v4140
      %v4142 = vrot.slane %v4141, 2
      %v4144 = vsel %vm1283, %v4123, 0
      %v4147 = vsel %vm1283, %v4124, 0
      %v4150 = vsel %vm1283, %v4125, 0
      %v4153 = vsel %vm1283, %v4126, 0
      %v4156 = vsel %vm1283, %v4127, 0
      %v4159 = vsel %vm1283, %v4128, 0
      %v4162 = vsel %vm1283, %v4129, 0
      %v4165 = vsel %vm1283, %v4130, 0
      %v4168 = vsel %vm1283, %v4131, 0
      %v4171 = vsel %vm1283, %v4132, 0
      %v4174 = vsel %vm1283, %v4133, 0
      %v4177 = vsel %vm1283, %v4134, 0
      %v4180 = vsel %vm1283, %v4135, 0
      %v4183 = vsel %vm1283, %v4136, 0
      %v4186 = vsel %vm1283, %v4137, 0
      %v4189 = vsel %vm1283, %v4138, 0
      %v4192 = vsel %vm1332, %v4142, 0
      %4194 = vmatpush.bf16.msra.mxu0 0
      %4195 = vmatpush.bf16.msra.mxu0 0
      %4196 = vmatpush.bf16.msra.mxu0 0
      %4197 = vmatpush.bf16.msra.mxu0 0
      %4198 = vmatpush.bf16.msra.mxu0 0
      %4199 = vmatpush.bf16.msra.mxu0 0
      %4200 = vmatpush.bf16.msra.mxu0 0
      %4201 = vmatpush.bf16.msra.mxu0 %v4192
      %4202 = vmatmul.bf16.gmra.mxu0 %v4144
      %v4203 = vpop.f32.mrf.mxu0
      %v4204 = vadd.f32 0.0, %v4203
      %v4205 = vpop.f32.mrf.mxu0
      %v4206 = vadd.f32 0.0, %v4205
      %4207 = vmatmul.bf16.gmra.mxu0 %v4147
      %v4208 = vpop.f32.mrf.mxu0
      %v4209 = vadd.f32 0.0, %v4208
      %v4210 = vpop.f32.mrf.mxu0
      %v4211 = vadd.f32 0.0, %v4210
      %4212 = vmatmul.bf16.gmra.mxu0 %v4150
      %v4213 = vpop.f32.mrf.mxu0
      %v4214 = vadd.f32 0.0, %v4213
      %v4215 = vpop.f32.mrf.mxu0
      %v4216 = vadd.f32 0.0, %v4215
      %4217 = vmatmul.bf16.gmra.mxu0 %v4153
      %v4218 = vpop.f32.mrf.mxu0
      %v4219 = vadd.f32 0.0, %v4218
      %v4220 = vpop.f32.mrf.mxu0
      %v4221 = vadd.f32 0.0, %v4220
      %4222 = vmatmul.bf16.gmra.mxu0 %v4156
      %v4223 = vpop.f32.mrf.mxu0
      %v4224 = vadd.f32 0.0, %v4223
      %v4225 = vpop.f32.mrf.mxu0
      %v4226 = vadd.f32 0.0, %v4225
      %4227 = vmatmul.bf16.gmra.mxu0 %v4159
      %v4228 = vpop.f32.mrf.mxu0
      %v4229 = vadd.f32 0.0, %v4228
      %v4230 = vpop.f32.mrf.mxu0
      %v4231 = vadd.f32 0.0, %v4230
      %4232 = vmatmul.bf16.gmra.mxu0 %v4162
      %v4233 = vpop.f32.mrf.mxu0
      %v4234 = vadd.f32 0.0, %v4233
      %v4235 = vpop.f32.mrf.mxu0
      %v4236 = vadd.f32 0.0, %v4235
      %4237 = vmatmul.bf16.gmra.mxu0 %v4165
      %v4238 = vpop.f32.mrf.mxu0
      %v4239 = vadd.f32 0.0, %v4238
      %v4240 = vpop.f32.mrf.mxu0
      %v4241 = vadd.f32 0.0, %v4240
      %4242 = vmatmul.bf16.gmra.mxu0 %v4168
      %v4243 = vpop.f32.mrf.mxu0
      %v4244 = vadd.f32 0.0, %v4243
      %v4245 = vpop.f32.mrf.mxu0
      %v4246 = vadd.f32 0.0, %v4245
      %4247 = vmatmul.bf16.gmra.mxu0 %v4171
      %v4248 = vpop.f32.mrf.mxu0
      %v4249 = vadd.f32 0.0, %v4248
      %v4250 = vpop.f32.mrf.mxu0
      %v4251 = vadd.f32 0.0, %v4250
      %4252 = vmatmul.bf16.gmra.mxu0 %v4174
      %v4253 = vpop.f32.mrf.mxu0
      %v4254 = vadd.f32 0.0, %v4253
      %v4255 = vpop.f32.mrf.mxu0
      %v4256 = vadd.f32 0.0, %v4255
      %4257 = vmatmul.bf16.gmra.mxu0 %v4177
      %v4258 = vpop.f32.mrf.mxu0
      %v4259 = vadd.f32 0.0, %v4258
      %v4260 = vpop.f32.mrf.mxu0
      %v4261 = vadd.f32 0.0, %v4260
      %4262 = vmatmul.bf16.gmra.mxu0 %v4180
      %v4263 = vpop.f32.mrf.mxu0
      %v4264 = vadd.f32 0.0, %v4263
      %v4265 = vpop.f32.mrf.mxu0
      %v4266 = vadd.f32 0.0, %v4265
      %4267 = vmatmul.bf16.gmra.mxu0 %v4183
      %v4268 = vpop.f32.mrf.mxu0
      %v4269 = vadd.f32 0.0, %v4268
      %v4270 = vpop.f32.mrf.mxu0
      %v4271 = vadd.f32 0.0, %v4270
      %4272 = vmatmul.bf16.gmra.mxu0 %v4186
      %v4273 = vpop.f32.mrf.mxu0
      %v4274 = vadd.f32 0.0, %v4273
      %v4275 = vpop.f32.mrf.mxu0
      %v4276 = vadd.f32 0.0, %v4275
      %4277 = vmatmul.bf16.gmra.mxu0 %v4189
      %v4278 = vpop.f32.mrf.mxu0
      %v4279 = vadd.f32 0.0, %v4278
      %v4280 = vpop.f32.mrf.mxu0
      %v4281 = vadd.f32 0.0, %v4280
      %4282 = vdwg.mxu0
      %v4283 = vadd.f32 %v3626, %v4204
      %v4284 = vadd.f32 %v3627, %v4206
      %v4285 = vadd.f32 %v3628, %v4209
      %v4286 = vadd.f32 %v3629, %v4211
      %v4287 = vadd.f32 %v3630, %v4214
      %v4288 = vadd.f32 %v3631, %v4216
      %v4289 = vadd.f32 %v3632, %v4219
      %v4290 = vadd.f32 %v3633, %v4221
      %v4291 = vadd.f32 %v3634, %v4224
      %v4292 = vadd.f32 %v3635, %v4226
      %v4293 = vadd.f32 %v3636, %v4229
      %v4294 = vadd.f32 %v3637, %v4231
      %v4295 = vadd.f32 %v3638, %v4234
      %v4296 = vadd.f32 %v3639, %v4236
      %v4297 = vadd.f32 %v3640, %v4239
      %v4298 = vadd.f32 %v3641, %v4241
      %v4299 = vadd.f32 %v3642, %v4244
      %v4300 = vadd.f32 %v3643, %v4246
      %v4301 = vadd.f32 %v3644, %v4249
      %v4302 = vadd.f32 %v3645, %v4251
      %v4303 = vadd.f32 %v3646, %v4254
      %v4304 = vadd.f32 %v3647, %v4256
      %v4305 = vadd.f32 %v3648, %v4259
      %v4306 = vadd.f32 %v3649, %v4261
      %v4307 = vadd.f32 %v3650, %v4264
      %v4308 = vadd.f32 %v3651, %v4266
      %v4309 = vadd.f32 %v3652, %v4269
      %v4310 = vadd.f32 %v3653, %v4271
      %v4311 = vadd.f32 %v3654, %v4274
      %v4312 = vadd.f32 %v3655, %v4276
      %v4313 = vadd.f32 %v3656, %v4279
      %v4314 = vadd.f32 %v3657, %v4281
      %v4315 = vld [vmem:[%s3372] sm:$0xe]
      %v4316 = vld [vmem:[%s3372 + $0xc] sm:$0xe]
      %v4317 = vld [vmem:[%s3372 + $0x18] sm:$0xe]
      %v4318 = vld [vmem:[%s3372 + $0x24] sm:$0xe]
      %v4319 = vld [vmem:[%s3372 + $0x30] sm:$0xe]
      %v4320 = vld [vmem:[%s3372 + $0x3c] sm:$0xe]
      %v4321 = vld [vmem:[%s3372 + $0x48] sm:$0xe]
      %v4322 = vld [vmem:[%s3372 + $0x54] sm:$0xe]
      %v4323 = vld [vmem:[%s3372 + $0x60] sm:$0xe]
      %v4324 = vld [vmem:[%s3372 + $0x6c] sm:$0xe]
      %v4325 = vld [vmem:[%s3372 + $0x78] sm:$0xe]
      %v4326 = vld [vmem:[%s3372 + $0x84] sm:$0xe]
      %v4327 = vld [vmem:[%s3372 + $0x90] sm:$0xe]
      %v4328 = vld [vmem:[%s3372 + $0x9c] sm:$0xe]
      %v4329 = vld [vmem:[%s3372 + $0xa8] sm:$0xe]
      %v4330 = vld [vmem:[%s3372 + $0xb4] sm:$0xe]
      %v4379 = vrot.slane %v4315, 5
      %v4380 = vrot.slane %v4379, 4
      %v4381 = vrot.slane %v3659, 5
      %v4382 = vsel %vm1695, %v4380, %v4381
      %v4383 = vrot.slane %v4381, 4
      %v4384 = vrot.slane %v3660, 5
      %v4385 = vsel %vm1695, %v4383, %v4384
      %v4386 = vrot.slane %v4316, 5
      %v4387 = vrot.slane %v4386, 4
      %v4388 = vrot.slane %v3662, 5
      %v4389 = vsel %vm1695, %v4387, %v4388
      %v4390 = vrot.slane %v4388, 4
      %v4391 = vrot.slane %v3663, 5
      %v4392 = vsel %vm1695, %v4390, %v4391
      %v4393 = vrot.slane %v4317, 5
      %v4394 = vrot.slane %v4393, 4
      %v4395 = vrot.slane %v3665, 5
      %v4396 = vsel %vm1695, %v4394, %v4395
      %v4397 = vrot.slane %v4395, 4
      %v4398 = vrot.slane %v3666, 5
      %v4399 = vsel %vm1695, %v4397, %v4398
      %v4400 = vrot.slane %v4318, 5
      %v4401 = vrot.slane %v4400, 4
      %v4402 = vrot.slane %v3668, 5
      %v4403 = vsel %vm1695, %v4401, %v4402
      %v4404 = vrot.slane %v4402, 4
      %v4405 = vrot.slane %v3669, 5
      %v4406 = vsel %vm1695, %v4404, %v4405
      %v4407 = vrot.slane %v4319, 5
      %v4408 = vrot.slane %v4407, 4
      %v4409 = vrot.slane %v3671, 5
      %v4410 = vsel %vm1695, %v4408, %v4409
      %v4411 = vrot.slane %v4409, 4
      %v4412 = vrot.slane %v3672, 5
      %v4413 = vsel %vm1695, %v4411, %v4412
      %v4414 = vrot.slane %v4320, 5
      %v4415 = vrot.slane %v4414, 4
      %v4416 = vrot.slane %v3674, 5
      %v4417 = vsel %vm1695, %v4415, %v4416
      %v4418 = vrot.slane %v4416, 4
      %v4419 = vrot.slane %v3675, 5
      %v4420 = vsel %vm1695, %v4418, %v4419
      %v4421 = vrot.slane %v4321, 5
      %v4422 = vrot.slane %v4421, 4
      %v4423 = vrot.slane %v3677, 5
      %v4424 = vsel %vm1695, %v4422, %v4423
      %v4425 = vrot.slane %v4423, 4
      %v4426 = vrot.slane %v3678, 5
      %v4427 = vsel %vm1695, %v4425, %v4426
      %v4428 = vrot.slane %v4322, 5
      %v4429 = vrot.slane %v4428, 4
      %v4430 = vrot.slane %v3680, 5
      %v4431 = vsel %vm1695, %v4429, %v4430
      %v4432 = vrot.slane %v4430, 4
      %v4433 = vrot.slane %v3681, 5
      %v4434 = vsel %vm1695, %v4432, %v4433
      %v4435 = vrot.slane %v4323, 5
      %v4436 = vrot.slane %v4435, 4
      %v4437 = vrot.slane %v3683, 5
      %v4438 = vsel %vm1695, %v4436, %v4437
      %v4439 = vrot.slane %v4437, 4
      %v4440 = vrot.slane %v3684, 5
      %v4441 = vsel %vm1695, %v4439, %v4440
      %v4442 = vrot.slane %v4324, 5
      %v4443 = vrot.slane %v4442, 4
      %v4444 = vrot.slane %v3686, 5
      %v4445 = vsel %vm1695, %v4443, %v4444
      %v4446 = vrot.slane %v4444, 4
      %v4447 = vrot.slane %v3687, 5
      %v4448 = vsel %vm1695, %v4446, %v4447
      %v4449 = vrot.slane %v4325, 5
      %v4450 = vrot.slane %v4449, 4
      %v4451 = vrot.slane %v3689, 5
      %v4452 = vsel %vm1695, %v4450, %v4451
      %v4453 = vrot.slane %v4451, 4
      %v4454 = vrot.slane %v3690, 5
      %v4455 = vsel %vm1695, %v4453, %v4454
      %v4456 = vrot.slane %v4326, 5
      %v4457 = vrot.slane %v4456, 4
      %v4458 = vrot.slane %v3692, 5
      %v4459 = vsel %vm1695, %v4457, %v4458
      %v4460 = vrot.slane %v4458, 4
      %v4461 = vrot.slane %v3693, 5
      %v4462 = vsel %vm1695, %v4460, %v4461
      %v4463 = vrot.slane %v4327, 5
      %v4464 = vrot.slane %v4463, 4
      %v4465 = vrot.slane %v3695, 5
      %v4466 = vsel %vm1695, %v4464, %v4465
      %v4467 = vrot.slane %v4465, 4
      %v4468 = vrot.slane %v3696, 5
      %v4469 = vsel %vm1695, %v4467, %v4468
      %v4470 = vrot.slane %v4328, 5
      %v4471 = vrot.slane %v4470, 4
      %v4472 = vrot.slane %v3698, 5
      %v4473 = vsel %vm1695, %v4471, %v4472
      %v4474 = vrot.slane %v4472, 4
      %v4475 = vrot.slane %v3699, 5
      %v4476 = vsel %vm1695, %v4474, %v4475
      %v4477 = vrot.slane %v4329, 5
      %v4478 = vrot.slane %v4477, 4
      %v4479 = vrot.slane %v3701, 5
      %v4480 = vsel %vm1695, %v4478, %v4479
      %v4481 = vrot.slane %v4479, 4
      %v4482 = vrot.slane %v3702, 5
      %v4483 = vsel %vm1695, %v4481, %v4482
      %v4484 = vrot.slane %v4330, 5
      %v4485 = vrot.slane %v4484, 4
      %v4486 = vrot.slane %v3704, 5
      %v4487 = vsel %vm1695, %v4485, %v4486
      %v4488 = vrot.slane %v4486, 4
      %v4489 = vrot.slane %v3705, 5
      %v4490 = vsel %vm1695, %v4488, %v4489
      %v4491 = vld [vmem:[%s1 + $0x10] sm:$0x3]
      %v4492 = vunpack.c.l.b16 %v4382
      %v4493 = vunpack.c.l.b16 %v4385
      %v4494 = vunpack.c.l.b16 %v4389
      %v4495 = vunpack.c.l.b16 %v4392
      %v4496 = vunpack.c.l.b16 %v4396
      %v4497 = vunpack.c.l.b16 %v4399
      %v4498 = vunpack.c.l.b16 %v4403
      %v4499 = vunpack.c.l.b16 %v4406
      %v4500 = vunpack.c.l.b16 %v4410
      %v4501 = vunpack.c.l.b16 %v4413
      %v4502 = vunpack.c.l.b16 %v4417
      %v4503 = vunpack.c.l.b16 %v4420
      %v4504 = vunpack.c.l.b16 %v4424
      %v4505 = vunpack.c.l.b16 %v4427
      %v4506 = vunpack.c.l.b16 %v4431
      %v4507 = vunpack.c.l.b16 %v4434
      %v4508 = vunpack.c.l.b16 %v4438
      %v4509 = vunpack.c.l.b16 %v4441
      %v4510 = vunpack.c.l.b16 %v4445
      %v4511 = vunpack.c.l.b16 %v4448
      %v4512 = vunpack.c.l.b16 %v4452
      %v4513 = vunpack.c.l.b16 %v4455
      %v4514 = vunpack.c.l.b16 %v4459
      %v4515 = vunpack.c.l.b16 %v4462
      %v4516 = vunpack.c.l.b16 %v4466
      %v4517 = vunpack.c.l.b16 %v4469
      %v4518 = vunpack.c.l.b16 %v4473
      %v4519 = vunpack.c.l.b16 %v4476
      %v4520 = vunpack.c.l.b16 %v4480
      %v4521 = vunpack.c.l.b16 %v4483
      %v4522 = vunpack.c.l.b16 %v4487
      %v4523 = vunpack.c.l.b16 %v4490
      %v4524 = vpack.c.b16 %v4493, %v4492
      %v4525 = vpack.c.b16 %v4495, %v4494
      %v4526 = vpack.c.b16 %v4497, %v4496
      %v4527 = vpack.c.b16 %v4499, %v4498
      %v4528 = vpack.c.b16 %v4501, %v4500
      %v4529 = vpack.c.b16 %v4503, %v4502
      %v4530 = vpack.c.b16 %v4505, %v4504
      %v4531 = vpack.c.b16 %v4507, %v4506
      %v4532 = vpack.c.b16 %v4509, %v4508
      %v4533 = vpack.c.b16 %v4511, %v4510
      %v4534 = vpack.c.b16 %v4513, %v4512
      %v4535 = vpack.c.b16 %v4515, %v4514
      %v4536 = vpack.c.b16 %v4517, %v4516
      %v4537 = vpack.c.b16 %v4519, %v4518
      %v4538 = vpack.c.b16 %v4521, %v4520
      %v4539 = vpack.c.b16 %v4523, %v4522
      %v4541 = vsel %vm1283, %v4524, 0
      %v4544 = vsel %vm1283, %v4525, 0
      %v4547 = vsel %vm1283, %v4526, 0
      %v4550 = vsel %vm1283, %v4527, 0
      %v4553 = vsel %vm1283, %v4528, 0
      %v4556 = vsel %vm1283, %v4529, 0
      %v4559 = vsel %vm1283, %v4530, 0
      %v4562 = vsel %vm1283, %v4531, 0
      %v4565 = vsel %vm1283, %v4532, 0
      %v4568 = vsel %vm1283, %v4533, 0
      %v4571 = vsel %vm1283, %v4534, 0
      %v4574 = vsel %vm1283, %v4535, 0
      %v4577 = vsel %vm1283, %v4536, 0
      %v4580 = vsel %vm1283, %v4537, 0
      %v4583 = vsel %vm1283, %v4538, 0
      %v4586 = vsel %vm1283, %v4539, 0
      %v4589 = vsel %vm1332, %v4491, 0
      %4591 = vmatpush.bf16.msra.mxu0 0
      %4592 = vmatpush.bf16.msra.mxu0 0
      %4593 = vmatpush.bf16.msra.mxu0 0
      %4594 = vmatpush.bf16.msra.mxu0 0
      %4595 = vmatpush.bf16.msra.mxu0 0
      %4596 = vmatpush.bf16.msra.mxu0 0
      %4597 = vmatpush.bf16.msra.mxu0 0
      %4598 = vmatpush.bf16.msra.mxu0 %v4589
      %4599 = vmatmul.bf16.gmra.mxu0 %v4541
      %v4600 = vpop.f32.mrf.mxu0
      %v4601 = vadd.f32 0.0, %v4600
      %v4602 = vpop.f32.mrf.mxu0
      %v4603 = vadd.f32 0.0, %v4602
      %4604 = vmatmul.bf16.gmra.mxu0 %v4544
      %v4605 = vpop.f32.mrf.mxu0
      %v4606 = vadd.f32 0.0, %v4605
      %v4607 = vpop.f32.mrf.mxu0
      %v4608 = vadd.f32 0.0, %v4607
      %4609 = vmatmul.bf16.gmra.mxu0 %v4547
      %v4610 = vpop.f32.mrf.mxu0
      %v4611 = vadd.f32 0.0, %v4610
      %v4612 = vpop.f32.mrf.mxu0
      %v4613 = vadd.f32 0.0, %v4612
      %4614 = vmatmul.bf16.gmra.mxu0 %v4550
      %v4615 = vpop.f32.mrf.mxu0
      %v4616 = vadd.f32 0.0, %v4615
      %v4617 = vpop.f32.mrf.mxu0
      %v4618 = vadd.f32 0.0, %v4617
      %4619 = vmatmul.bf16.gmra.mxu0 %v4553
      %v4620 = vpop.f32.mrf.mxu0
      %v4621 = vadd.f32 0.0, %v4620
      %v4622 = vpop.f32.mrf.mxu0
      %v4623 = vadd.f32 0.0, %v4622
      %4624 = vmatmul.bf16.gmra.mxu0 %v4556
      %v4625 = vpop.f32.mrf.mxu0
      %v4626 = vadd.f32 0.0, %v4625
      %v4627 = vpop.f32.mrf.mxu0
      %v4628 = vadd.f32 0.0, %v4627
      %4629 = vmatmul.bf16.gmra.mxu0 %v4559
      %v4630 = vpop.f32.mrf.mxu0
      %v4631 = vadd.f32 0.0, %v4630
      %v4632 = vpop.f32.mrf.mxu0
      %v4633 = vadd.f32 0.0, %v4632
      %4634 = vmatmul.bf16.gmra.mxu0 %v4562
      %v4635 = vpop.f32.mrf.mxu0
      %v4636 = vadd.f32 0.0, %v4635
      %v4637 = vpop.f32.mrf.mxu0
      %v4638 = vadd.f32 0.0, %v4637
      %4639 = vmatmul.bf16.gmra.mxu0 %v4565
      %v4640 = vpop.f32.mrf.mxu0
      %v4641 = vadd.f32 0.0, %v4640
      %v4642 = vpop.f32.mrf.mxu0
      %v4643 = vadd.f32 0.0, %v4642
      %4644 = vmatmul.bf16.gmra.mxu0 %v4568
      %v4645 = vpop.f32.mrf.mxu0
      %v4646 = vadd.f32 0.0, %v4645
      %v4647 = vpop.f32.mrf.mxu0
      %v4648 = vadd.f32 0.0, %v4647
      %4649 = vmatmul.bf16.gmra.mxu0 %v4571
      %v4650 = vpop.f32.mrf.mxu0
      %v4651 = vadd.f32 0.0, %v4650
      %v4652 = vpop.f32.mrf.mxu0
      %v4653 = vadd.f32 0.0, %v4652
      %4654 = vmatmul.bf16.gmra.mxu0 %v4574
      %v4655 = vpop.f32.mrf.mxu0
      %v4656 = vadd.f32 0.0, %v4655
      %v4657 = vpop.f32.mrf.mxu0
      %v4658 = vadd.f32 0.0, %v4657
      %4659 = vmatmul.bf16.gmra.mxu0 %v4577
      %v4660 = vpop.f32.mrf.mxu0
      %v4661 = vadd.f32 0.0, %v4660
      %v4662 = vpop.f32.mrf.mxu0
      %v4663 = vadd.f32 0.0, %v4662
      %4664 = vmatmul.bf16.gmra.mxu0 %v4580
      %v4665 = vpop.f32.mrf.mxu0
      %v4666 = vadd.f32 0.0, %v4665
      %v4667 = vpop.f32.mrf.mxu0
      %v4668 = vadd.f32 0.0, %v4667
      %4669 = vmatmul.bf16.gmra.mxu0 %v4583
      %v4670 = vpop.f32.mrf.mxu0
      %v4671 = vadd.f32 0.0, %v4670
      %v4672 = vpop.f32.mrf.mxu0
      %v4673 = vadd.f32 0.0, %v4672
      %4674 = vmatmul.bf16.gmra.mxu0 %v4586
      %v4675 = vpop.f32.mrf.mxu0
      %v4676 = vadd.f32 0.0, %v4675
      %v4677 = vpop.f32.mrf.mxu0
      %v4678 = vadd.f32 0.0, %v4677
      %4679 = vdwg.mxu0
      %v4680 = vadd.f32 %v4283, %v4601
      %v4681 = vadd.f32 %v4284, %v4603
      %v4682 = vadd.f32 %v4285, %v4606
      %v4683 = vadd.f32 %v4286, %v4608
      %v4684 = vadd.f32 %v4287, %v4611
      %v4685 = vadd.f32 %v4288, %v4613
      %v4686 = vadd.f32 %v4289, %v4616
      %v4687 = vadd.f32 %v4290, %v4618
      %v4688 = vadd.f32 %v4291, %v4621
      %v4689 = vadd.f32 %v4292, %v4623
      %v4690 = vadd.f32 %v4293, %v4626
      %v4691 = vadd.f32 %v4294, %v4628
      %v4692 = vadd.f32 %v4295, %v4631
      %v4693 = vadd.f32 %v4296, %v4633
      %v4694 = vadd.f32 %v4297, %v4636
      %v4695 = vadd.f32 %v4298, %v4638
      %v4696 = vadd.f32 %v4299, %v4641
      %v4697 = vadd.f32 %v4300, %v4643
      %v4698 = vadd.f32 %v4301, %v4646
      %v4699 = vadd.f32 %v4302, %v4648
      %v4700 = vadd.f32 %v4303, %v4651
      %v4701 = vadd.f32 %v4304, %v4653
      %v4702 = vadd.f32 %v4305, %v4656
      %v4703 = vadd.f32 %v4306, %v4658
      %v4704 = vadd.f32 %v4307, %v4661
      %v4705 = vadd.f32 %v4308, %v4663
      %v4706 = vadd.f32 %v4309, %v4666
      %v4707 = vadd.f32 %v4310, %v4668
      %v4708 = vadd.f32 %v4311, %v4671
      %v4709 = vadd.f32 %v4312, %v4673
      %v4710 = vadd.f32 %v4313, %v4676
      %v4711 = vadd.f32 %v4314, %v4678
      %4712 = vst [vmem:[%s177] sm:$0xff] %v4680
      %4713 = vst [vmem:[%s177 + $0x8] sm:$0xff] %v4681
      %4714 = vst [vmem:[%s177 + $0x10] sm:$0xff] %v4682
      %4715 = vst [vmem:[%s177 + $0x18] sm:$0xff] %v4683
      %4716 = vst [vmem:[%s177 + $0x20] sm:$0xff] %v4684
      %4717 = vst [vmem:[%s177 + $0x28] sm:$0xff] %v4685
      %4718 = vst [vmem:[%s177 + $0x30] sm:$0xff] %v4686
      %4719 = vst [vmem:[%s177 + $0x38] sm:$0xff] %v4687
      %4720 = vst [vmem:[%s177 + $0x40] sm:$0xff] %v4688
      %4721 = vst [vmem:[%s177 + $0x48] sm:$0xff] %v4689
      %4722 = vst [vmem:[%s177 + $0x50] sm:$0xff] %v4690
      %4723 = vst [vmem:[%s177 + $0x58] sm:$0xff] %v4691
      %4724 = vst [vmem:[%s177 + $0x60] sm:$0xff] %v4692
      %4725 = vst [vmem:[%s177 + $0x68] sm:$0xff] %v4693
      %4726 = vst [vmem:[%s177 + $0x70] sm:$0xff] %v4694
      %4727 = vst [vmem:[%s177 + $0x78] sm:$0xff] %v4695
      %4728 = vst [vmem:[%s177 + $0x80] sm:$0xff] %v4696
      %4729 = vst [vmem:[%s177 + $0x88] sm:$0xff] %v4697
      %4730 = vst [vmem:[%s177 + $0x90] sm:$0xff] %v4698
      %4731 = vst [vmem:[%s177 + $0x98] sm:$0xff] %v4699
      %4732 = vst [vmem:[%s177 + $0xa0] sm:$0xff] %v4700
      %4733 = vst [vmem:[%s177 + $0xa8] sm:$0xff] %v4701
      %4734 = vst [vmem:[%s177 + $0xb0] sm:$0xff] %v4702
      %4735 = vst [vmem:[%s177 + $0xb8] sm:$0xff] %v4703
      %4736 = vst [vmem:[%s177 + $0xc0] sm:$0xff] %v4704
      %4737 = vst [vmem:[%s177 + $0xc8] sm:$0xff] %v4705
      %4738 = vst [vmem:[%s177 + $0xd0] sm:$0xff] %v4706
      %4739 = vst [vmem:[%s177 + $0xd8] sm:$0xff] %v4707
      %4740 = vst [vmem:[%s177 + $0xe0] sm:$0xff] %v4708
      %4741 = vst [vmem:[%s177 + $0xe8] sm:$0xff] %v4709
      %4742 = vst [vmem:[%s177 + $0xf0] sm:$0xff] %v4710
      %4743 = vst [vmem:[%s177 + $0xf8] sm:$0xff] %v4711
      %v4744 = vadd.f32 %v4680, %v4681
      %v4745 = vadd.f32 %v4744, %v4682
      %v4746 = vadd.f32 %v4745, %v4683
      %v4747 = vadd.f32 %v4746, %v4684
      %v4748 = vadd.f32 %v4747, %v4685
      %v4749 = vadd.f32 %v4748, %v4686
      %v4750 = vadd.f32 %v4749, %v4687
      %v4751 = vadd.f32 %v4750, %v4688
      %v4752 = vadd.f32 %v4751, %v4689
      %v4753 = vadd.f32 %v4752, %v4690
      %v4754 = vadd.f32 %v4753, %v4691
      %v4755 = vadd.f32 %v4754, %v4692
      %v4756 = vadd.f32 %v4755, %v4693
      %v4757 = vadd.f32 %v4756, %v4694
      %v4758 = vadd.f32 %v4757, %v4695
      %v4759 = vadd.f32 %v4758, %v4696
      %v4760 = vadd.f32 %v4759, %v4697
      %v4761 = vadd.f32 %v4760, %v4698
      %v4762 = vadd.f32 %v4761, %v4699
      %v4763 = vadd.f32 %v4762, %v4700
      %v4764 = vadd.f32 %v4763, %v4701
      %v4765 = vadd.f32 %v4764, %v4702
      %v4766 = vadd.f32 %v4765, %v4703
      %v4767 = vadd.f32 %v4766, %v4704
      %v4768 = vadd.f32 %v4767, %v4705
      %v4769 = vadd.f32 %v4768, %v4706
      %v4770 = vadd.f32 %v4769, %v4707
      %v4771 = vadd.f32 %v4770, %v4708
      %v4772 = vadd.f32 %v4771, %v4709
      %v4773 = vadd.f32 %v4772, %v4710
      %v4774 = vadd.f32 %v4773, %v4711
      %v4775 = vrot.slane %v4774, 4
      %v4776 = vadd.f32 %v4774, %v4775
      %v4777 = vrot.slane %v4776, 2
      %v4778 = vadd.f32 %v4776, %v4777
      %v4779 = vrot.slane %v4778, 1
      %v4780 = vadd.f32 %v4778, %v4779
      %v4781 = vmul.f32 %v4780, 0.00390625
      %v4782 = vsub.f32 %v4680, %v4781
      %v4783 = vsub.f32 %v4681, %v4781
      %v4784 = vsub.f32 %v4682, %v4781
      %v4785 = vsub.f32 %v4683, %v4781
      %v4786 = vsub.f32 %v4684, %v4781
      %v4787 = vsub.f32 %v4685, %v4781
      %v4788 = vsub.f32 %v4686, %v4781
      %v4789 = vsub.f32 %v4687, %v4781
      %v4790 = vsub.f32 %v4688, %v4781
      %v4791 = vsub.f32 %v4689, %v4781
      %v4792 = vsub.f32 %v4690, %v4781
      %v4793 = vsub.f32 %v4691, %v4781
      %v4794 = vsub.f32 %v4692, %v4781
      %v4795 = vsub.f32 %v4693, %v4781
      %v4796 = vsub.f32 %v4694, %v4781
      %v4797 = vsub.f32 %v4695, %v4781
      %v4798 = vsub.f32 %v4696, %v4781
      %v4799 = vsub.f32 %v4697, %v4781
      %v4800 = vsub.f32 %v4698, %v4781
      %v4801 = vsub.f32 %v4699, %v4781
      %v4802 = vsub.f32 %v4700, %v4781
      %v4803 = vsub.f32 %v4701, %v4781
      %v4804 = vsub.f32 %v4702, %v4781
      %v4805 = vsub.f32 %v4703, %v4781
      %v4806 = vsub.f32 %v4704, %v4781
      %v4807 = vsub.f32 %v4705, %v4781
      %v4808 = vsub.f32 %v4706, %v4781
      %v4809 = vsub.f32 %v4707, %v4781
      %v4810 = vsub.f32 %v4708, %v4781
      %v4811 = vsub.f32 %v4709, %v4781
      %v4812 = vsub.f32 %v4710, %v4781
      %v4813 = vsub.f32 %v4711, %v4781
      %v4814 = vmul.f32 %v4782, %v4782
      %v4815 = vmul.f32 %v4783, %v4783
      %v4816 = vmul.f32 %v4784, %v4784
      %v4817 = vmul.f32 %v4785, %v4785
      %v4818 = vmul.f32 %v4786, %v4786
      %v4819 = vmul.f32 %v4787, %v4787
      %v4820 = vmul.f32 %v4788, %v4788
      %v4821 = vmul.f32 %v4789, %v4789
      %v4822 = vmul.f32 %v4790, %v4790
      %v4823 = vmul.f32 %v4791, %v4791
      %v4824 = vmul.f32 %v4792, %v4792
      %v4825 = vmul.f32 %v4793, %v4793
      %v4826 = vmul.f32 %v4794, %v4794
      %v4827 = vmul.f32 %v4795, %v4795
      %v4828 = vmul.f32 %v4796, %v4796
      %v4829 = vmul.f32 %v4797, %v4797
      %v4830 = vmul.f32 %v4798, %v4798
      %v4831 = vmul.f32 %v4799, %v4799
      %v4832 = vmul.f32 %v4800, %v4800
      %v4833 = vmul.f32 %v4801, %v4801
      %v4834 = vmul.f32 %v4802, %v4802
      %v4835 = vmul.f32 %v4803, %v4803
      %v4836 = vmul.f32 %v4804, %v4804
      %v4837 = vmul.f32 %v4805, %v4805
      %v4838 = vmul.f32 %v4806, %v4806
      %v4839 = vmul.f32 %v4807, %v4807
      %v4840 = vmul.f32 %v4808, %v4808
      %v4841 = vmul.f32 %v4809, %v4809
      %v4842 = vmul.f32 %v4810, %v4810
      %v4843 = vmul.f32 %v4811, %v4811
      %v4844 = vmul.f32 %v4812, %v4812
      %v4845 = vmul.f32 %v4813, %v4813
      %v4846 = vadd.f32 %v4814, %v4815
      %v4847 = vadd.f32 %v4846, %v4816
      %v4848 = vadd.f32 %v4847, %v4817
      %v4849 = vadd.f32 %v4848, %v4818
      %v4850 = vadd.f32 %v4849, %v4819
      %v4851 = vadd.f32 %v4850, %v4820
      %v4852 = vadd.f32 %v4851, %v4821
      %v4853 = vadd.f32 %v4852, %v4822
      %v4854 = vadd.f32 %v4853, %v4823
      %v4855 = vadd.f32 %v4854, %v4824
      %v4856 = vadd.f32 %v4855, %v4825
      %v4857 = vadd.f32 %v4856, %v4826
      %v4858 = vadd.f32 %v4857, %v4827
      %v4859 = vadd.f32 %v4858, %v4828
      %v4860 = vadd.f32 %v4859, %v4829
      %v4861 = vadd.f32 %v4860, %v4830
      %v4862 = vadd.f32 %v4861, %v4831
      %v4863 = vadd.f32 %v4862, %v4832
      %v4864 = vadd.f32 %v4863, %v4833
      %v4865 = vadd.f32 %v4864, %v4834
      %v4866 = vadd.f32 %v4865, %v4835
      %v4867 = vadd.f32 %v4866, %v4836
      %v4868 = vadd.f32 %v4867, %v4837
      %v4869 = vadd.f32 %v4868, %v4838
      %v4870 = vadd.f32 %v4869, %v4839
      %v4871 = vadd.f32 %v4870, %v4840
      %v4872 = vadd.f32 %v4871, %v4841
      %v4873 = vadd.f32 %v4872, %v4842
      %v4874 = vadd.f32 %v4873, %v4843
      %v4875 = vadd.f32 %v4874, %v4844
      %v4876 = vadd.f32 %v4875, %v4845
      %v4877 = vrot.slane %v4876, 4
      %v4878 = vadd.f32 %v4876, %v4877
      %v4879 = vrot.slane %v4878, 2
      %v4880 = vadd.f32 %v4878, %v4879
      %v4881 = vrot.slane %v4880, 1
      %v4882 = vadd.f32 %v4880, %v4881
      %4883 = vst [vmem:[%s181] sm:$0x1] %v4781
      %4884 = vst [vmem:[%s181 + $0x1] sm:$0x1] %v4882
      %p4885 = scmp.lt.s32.totalorder %s15, 1
      %s4886 = scalar_select %p4885, %s15, 1
      %s4887 = smul.addr %s4886, 32
      %s4888 = smul.addr %s4887, 8
      %s4889 = scalar_lea.vmem %s2, %s4888
      %p4890 = scmp.lt.s32.totalorder %s15, 1
      %s4891 = scalar_select %p4890, %s15, 1
      %s4892 = smul.addr %s4891, 2
      %s4893 = scalar_lea.vmem %s3, %s4892
      // Predicated region
      $region29: #{double_conv.3} parent=27 // pred_check
        %p4894 = pneg %p80
      $region30: #{double_conv.3} parent=27 // pred_check_branch
        %4896 = sbr.rel (%p4894) target = $region32
      $region31: #{double_conv.3} parent=27 // pred_region
        _
      $region32: #{double_conv.3} parent=27 // pred_fallthru
        _
      // Predicated region
      $region33: #{double_conv.3} parent=27 // pred_check
        %p4897 = pneg %p106
      $region34: #{double_conv.3} parent=27 // pred_check_branch
        %4899 = sbr.rel (%p4897) target = $region36
      $region35: #{double_conv.3} parent=27 // pred_region
        _
      $region36: #{double_conv.3} parent=27 // pred_fallthru
        _
    $region28: #{double_conv.3} parent=5 // pred_fallthru
      _
    %p4900 = scmp.le.s32.totalorder 2, %s10
    // Predicated region
    $region37: #{double_conv.3} parent=5 // pred_check
      %p4901 = pneg %p4900
    $region38: #{double_conv.3} parent=5 // pred_check_branch
      %4903 = sbr.rel (%p4901) target = $region40
    $region39: #{double_conv.3} parent=5 // pred_region
      %s4904 = ssub.s32 %s10, 2
      // Predicated region
      $region41: #{double_conv.3} parent=39 // pred_check
        %p4905 = pneg %p86
      $region42: #{double_conv.3} parent=39 // pred_check_branch
        %4907 = sbr.rel (%p4905) target = $region44
      $region43: #{double_conv.3} parent=39 // pred_region
        %p4908 = scmp.lt.s32.totalorder %s16, 1
        %s4909 = scalar_select %p4908, %s16, 1
        %s4910 = smul.addr %s4909, 32
        %s4911 = smul.addr %s4910, 8
        %s4912 = scalar_lea.vmem %s2, %s4911
      $region44: #{double_conv.3} parent=39 // pred_fallthru
        _
      // Predicated region
      $region45: #{double_conv.3} parent=39 // pred_check
        %p4913 = pneg %p112
      $region46: #{double_conv.3} parent=39 // pred_check_branch
        %4915 = sbr.rel (%p4913) target = $region48
      $region47: #{double_conv.3} parent=39 // pred_region
        %p4916 = scmp.lt.s32.totalorder %s16, 1
        %s4917 = scalar_select %p4916, %s16, 1
        %s4918 = smul.addr %s4917, 2
        %s4919 = scalar_lea.vmem %s3, %s4918
      $region48: #{double_conv.3} parent=39 // pred_fallthru
        _
    $region40: #{double_conv.3} parent=5 // pred_fallthru
      _
  $region6: #{double_conv.3} parent=0 // loop_footer
    %s14 = sadd.s32 1, %s10
  $region7: #{double_conv.3} parent=0 // loop_footer_branch
    %9 = sbr.rel target = $region3
  $region8: #{double_conv.3} parent=0 // loop_exit
    _

// kernel: double_conv.4
$region0: #{double_conv.4}
  #allocation0 [shape = 'u32[]', space=smem, size = 0x4, offset = 0x4, fixed_abs, tag = 'smem constant byte address 0x4 - core index']
  #allocation1 [shape = 'u32[72,128]{1,0:T(1,128)}', space=vmem, size = 0x9000, scoped, tag = 'internal scratch']
  #allocation2 [shape = 'bf16[1,18,18,128]{3,2,1,0:T(8,128)(2,1)}', space=vmem, size = 0x1b000, scoped, tag = 'scratch operand']
  %s0 = inlined_call_operand.vmem [shape: f32[2,16,16,128], index: 0, kind: input, shape index: {}]
  %s1 = inlined_call_operand.vmem [shape: f32[1,128], index: 1, kind: input, shape index: {}]
  %s2 = inlined_call_operand.vmem [shape: f32[1,128], index: 2, kind: input, shape index: {}]
  %s3 = inlined_call_operand.vmem [shape: bf16[1152,128], index: 3, kind: input, shape index: {}]
  %s4 = inlined_call_operand.vmem [shape: f32[2,16,16,128], index: 4, kind: output, shape index: {0}]
  %s5 = inlined_call_operand.vmem [shape: f32[2,2,128], index: 5, kind: output, shape index: {1}]
  %6 = xla_tuple %s4, %s5
  %s7 = sld [smem:[#allocation0]]
  $region57: #{double_conv.4} parent=0
    _
  %s9 = ssub.s32 1, %s7
  %s10 = scalar_select 0, %s9, %s7
  loop: start=0, step=1, limit=4
  $region2: #{double_conv.4} parent=0 // loop_pre_header
    _
  $region3: #{double_conv.4} parent=0 // loop_header
    %s12 = sphi 0, %s16
    %p13 = scmp.ge.s32.totalorder %s12, 4
    %s22 = sphi 0, %s24
    %s25 = sphi 0, %s22
    %s26 = sphi 0, %s25
    %s42 = sphi 0, %s26
    %s46 = sphi 0, %s46
    %s48 = sphi 0, %s46
    %s49 = sphi 0, %s48
    %s63 = sphi 0, %s49
    %s67 = sphi 0, %s67
    %s69 = sphi 0, %s67
    %s70 = sphi 0, %s69
    %s84 = sphi 0, %s70
    %s88 = sphi 0, %s88
    %s90 = sphi 0, %s88
    %s91 = sphi 0, %s90
    %s105 = sphi 0, %s91
    %s111 = sphi 0, %s113
    %s114 = sphi 0, %s111
    %s115 = sphi 0, %s114
    %s131 = sphi 0, %s115
    %s137 = sphi 0, %s139
    %s140 = sphi 0, %s137
    %s141 = sphi 0, %s140
    %s157 = sphi 0, %s141
  $region4: #{double_conv.4} parent=0 // loop_header_branch
    %15 = sbr.rel (%p13) target = $region8
  $region5: #{double_conv.4} parent=0 // loop_body
    %s17 = ssub.s32 %s12, 1
    %s18 = ssub.s32 %s12, 2
    %s19 = sadd.s32 %s12, 1
    %s20 = ssub.s32 %s12, %s19
    %p21 = scmp.eq.s32.totalorder %s20, 0
    %s23 = sadd.s32 %s22, 1
    %s24 = scalar_select %p21, %s22, %s23
    %p27 = pneg %p21
    %p28 = scmp.eq.s32.totalorder %s12, 1
    %p29 = por %p27, %p28
    %p30 = scmp.ne.s32.totalorder %s22, %s25
    %p31 = scmp.eq.s32.totalorder %s12, 0
    %p32 = por %p30, %p31
    %p33 = scmp.ne.s32.totalorder %s22, %s25
    %p34 = scmp.eq.s32.totalorder %s17, 1
    %p35 = por %p33, %p34
    %p36 = scmp.ne.s32.totalorder %s25, %s26
    %p37 = scmp.eq.s32.totalorder %s17, 0
    %p38 = por %p36, %p37
    %p39 = scmp.ne.s32.totalorder %s25, %s26
    %p40 = scmp.eq.s32.totalorder %s18, 1
    %p41 = por %p39, %p40
    %p43 = scmp.ne.s32.totalorder %s26, %s42
    %p44 = scmp.eq.s32.totalorder %s18, 0
    %p45 = por %p43, %p44
    %s47 = sadd.s32 %s46, 1
    %p50 = scmp.eq.s32.totalorder %s12, 1
    %p51 = scmp.ne.s32.totalorder %s46, %s48
    %p52 = scmp.eq.s32.totalorder %s12, 0
    %p53 = por %p51, %p52
    %p54 = scmp.ne.s32.totalorder %s46, %s48
    %p55 = scmp.eq.s32.totalorder %s17, 1
    %p56 = por %p54, %p55
    %p57 = scmp.ne.s32.totalorder %s48, %s49
    %p58 = scmp.eq.s32.totalorder %s17, 0
    %p59 = por %p57, %p58
    %p60 = scmp.ne.s32.totalorder %s48, %s49
    %p61 = scmp.eq.s32.totalorder %s18, 1
    %p62 = por %p60, %p61
    %p64 = scmp.ne.s32.totalorder %s49, %s63
    %p65 = scmp.eq.s32.totalorder %s18, 0
    %p66 = por %p64, %p65
    %s68 = sadd.s32 %s67, 1
    %p71 = scmp.eq.s32.totalorder %s12, 1
    %p72 = scmp.ne.s32.totalorder %s67, %s69
    %p73 = scmp.eq.s32.totalorder %s12, 0
    %p74 = por %p72, %p73
    %p75 = scmp.ne.s32.totalorder %s67, %s69
    %p76 = scmp.eq.s32.totalorder %s17, 1
    %p77 = por %p75, %p76
    %p78 = scmp.ne.s32.totalorder %s69, %s70
    %p79 = scmp.eq.s32.totalorder %s17, 0
    %p80 = por %p78, %p79
    %p81 = scmp.ne.s32.totalorder %s69, %s70
    %p82 = scmp.eq.s32.totalorder %s18, 1
    %p83 = por %p81, %p82
    %p85 = scmp.ne.s32.totalorder %s70, %s84
    %p86 = scmp.eq.s32.totalorder %s18, 0
    %p87 = por %p85, %p86
    %s89 = sadd.s32 %s88, 1
    %p92 = scmp.eq.s32.totalorder %s12, 1
    %p93 = scmp.ne.s32.totalorder %s88, %s90
    %p94 = scmp.eq.s32.totalorder %s12, 0
    %p95 = por %p93, %p94
    %p96 = scmp.ne.s32.totalorder %s88, %s90
    %p97 = scmp.eq.s32.totalorder %s17, 1
    %p98 = por %p96, %p97
    %p99 = scmp.ne.s32.totalorder %s90, %s91
    %p100 = scmp.eq.s32.totalorder %s17, 0
    %p101 = por %p99, %p100
    %p102 = scmp.ne.s32.totalorder %s90, %s91
    %p103 = scmp.eq.s32.totalorder %s18, 1
    %p104 = por %p102, %p103
    %p106 = scmp.ne.s32.totalorder %s91, %s105
    %p107 = scmp.eq.s32.totalorder %s18, 0
    %p108 = por %p106, %p107
    %s109 = ssub.s32 %s12, %s19
    %p110 = scmp.eq.s32.totalorder %s109, 0
    %s112 = sadd.s32 %s111, 1
    %s113 = scalar_select %p110, %s111, %s112
    %p116 = pneg %p110
    %p117 = scmp.eq.s32.totalorder %s12, 1
    %p118 = por %p116, %p117
    %p119 = scmp.ne.s32.totalorder %s111, %s114
    %p120 = scmp.eq.s32.totalorder %s12, 0
    %p121 = por %p119, %p120
    %p122 = scmp.ne.s32.totalorder %s111, %s114
    %p123 = scmp.eq.s32.totalorder %s17, 1
    %p124 = por %p122, %p123
    %p125 = scmp.ne.s32.totalorder %s114, %s115
    %p126 = scmp.eq.s32.totalorder %s17, 0
    %p127 = por %p125, %p126
    %p128 = scmp.ne.s32.totalorder %s114, %s115
    %p129 = scmp.eq.s32.totalorder %s18, 1
    %p130 = por %p128, %p129
    %p132 = scmp.ne.s32.totalorder %s115, %s131
    %p133 = scmp.eq.s32.totalorder %s18, 0
    %p134 = por %p132, %p133
    %s135 = ssub.s32 %s12, %s19
    %p136 = scmp.eq.s32.totalorder %s135, 0
    %s138 = sadd.s32 %s137, 1
    %s139 = scalar_select %p136, %s137, %s138
    %p142 = pneg %p136
    %p143 = scmp.eq.s32.totalorder %s12, 1
    %p144 = por %p142, %p143
    %p145 = scmp.ne.s32.totalorder %s137, %s140
    %p146 = scmp.eq.s32.totalorder %s12, 0
    %p147 = por %p145, %p146
    %p148 = scmp.ne.s32.totalorder %s137, %s140
    %p149 = scmp.eq.s32.totalorder %s17, 1
    %p150 = por %p148, %p149
    %p151 = scmp.ne.s32.totalorder %s140, %s141
    %p152 = scmp.eq.s32.totalorder %s17, 0
    %p153 = por %p151, %p152
    %p154 = scmp.ne.s32.totalorder %s140, %s141
    %p155 = scmp.eq.s32.totalorder %s18, 1
    %p156 = por %p154, %p155
    %p158 = scmp.ne.s32.totalorder %s141, %s157
    %p159 = scmp.eq.s32.totalorder %s18, 0
    %p160 = por %p158, %p159
    %p161 = scmp.le.s32.totalorder 1, %s12
    %p162 = scmp.lt.s32.totalorder %s12, 3
    %p163 = pnand %p161, %p162
    %p164 = pneg %p163
    // Predicated region
    $region9: #{double_conv.4} parent=5 // pred_check
      _
    $region10: #{double_conv.4} parent=5 // pred_check_branch
      %166 = sbr.rel (%p163) target = $region12
    $region11: #{double_conv.4} parent=5 // pred_region
      %s167 = ssub.s32 %s12, 1
      // Predicated region
      $region13: #{double_conv.4} parent=11 // pred_check
        %p168 = pneg %p59
      $region14: #{double_conv.4} parent=11 // pred_check_branch
        %170 = sbr.rel (%p168) target = $region16
      $region15: #{double_conv.4} parent=11 // pred_region
        _
      $region16: #{double_conv.4} parent=11 // pred_fallthru
        _
      // Predicated region
      $region17: #{double_conv.4} parent=11 // pred_check
        %p171 = pneg %p80
      $region18: #{double_conv.4} parent=11 // pred_check_branch
        %173 = sbr.rel (%p171) target = $region20
      $region19: #{double_conv.4} parent=11 // pred_region
        _
      $region20: #{double_conv.4} parent=11 // pred_fallthru
        _
      // Predicated region
      $region21: #{double_conv.4} parent=11 // pred_check
        %p174 = pneg %p101
      $region22: #{double_conv.4} parent=11 // pred_check_branch
        %176 = sbr.rel (%p174) target = $region24
      $region23: #{double_conv.4} parent=11 // pred_region
        _
      $region24: #{double_conv.4} parent=11 // pred_fallthru
        _
    $region12: #{double_conv.4} parent=5 // pred_fallthru
      _
    %p177 = scmp.lt.s32.totalorder %s12, 2
    // Predicated region
    $region25: #{double_conv.4} parent=5 // pred_check
      %p178 = pneg %p177
    $region26: #{double_conv.4} parent=5 // pred_check_branch
      %180 = sbr.rel (%p178) target = $region28
    $region27: #{double_conv.4} parent=5 // pred_region
      // Predicated region
      $region29: #{double_conv.4} parent=27 // pred_check
        %p181 = pneg %p32
      $region30: #{double_conv.4} parent=27 // pred_check_branch
        %183 = sbr.rel (%p181) target = $region32
      $region31: #{double_conv.4} parent=27 // pred_region
        %p184 = scmp.lt.s32.totalorder %s12, 1
        %s185 = scalar_select %p184, %s12, 1
        %s186 = smul.addr %s185, 32
        %s187 = smul.addr %s186, 8
        %s188 = scalar_lea.vmem %s0, %s187
      $region32: #{double_conv.4} parent=27 // pred_fallthru
        _
    $region28: #{double_conv.4} parent=5 // pred_fallthru
      _
    %p189 = scmp.le.s32.totalorder 1, %s12
    %p190 = scmp.lt.s32.totalorder %s12, 3
    %p191 = pnand %p189, %p190
    %p192 = pneg %p191
    // Predicated region
    $region33: #{double_conv.4} parent=5 // pred_check
      _
    $region34: #{double_conv.4} parent=5 // pred_check_branch
      %194 = sbr.rel (%p191) target = $region36
    $region35: #{double_conv.4} parent=5 // pred_region
      %s195 = ssub.s32 %s12, 1
      %p196 = scmp.lt.s32.totalorder %s17, 1
      %s197 = scalar_select %p196, %s17, 1
      %s198 = smul.addr %s197, 32
      %s199 = smul.addr %s198, 8
      %s200 = scalar_lea.vmem %s0, %s199
      %p201 = pneg %p38
      %p202 = pneg %p35
      %p203 = pneg %p59
      %p204 = pneg %p56
      %p205 = pneg %p80
      %p206 = pneg %p77
      %p207 = pneg %p101
      %p208 = pneg %p98
      %p209 = pneg %p127
      %p210 = pneg %p124
      %p211 = scmp.lt.s32.totalorder %s17, 1
      %s212 = scalar_select %p211, %s17, 1
      %s213 = smul.addr %s212, 32
      %s214 = smul.addr %s213, 8
      %s215 = scalar_lea.vmem %s4, %s214
      %p216 = pneg %p153
      %p217 = pneg %p150
      %p218 = scmp.lt.s32.totalorder %s17, 1
      %s219 = scalar_select %p218, %s17, 1
      %s220 = smul.addr %s219, 2
      %s221 = scalar_lea.vmem %s5, %s220
      %p222 = scmp.lt.s32.totalorder %s17, 1
      %s223 = scalar_select %p222, %s17, 1
      %s224 = smul.addr %s223, 32
      %s225 = smul.addr %s224, 8
      %s226 = scalar_lea.vmem %s0, %s225
      %p227 = scmp.lt.s32.totalorder %s17, 1
      %s228 = scalar_select %p227, %s17, 1
      %s229 = smul.addr %s228, 32
      %s230 = smul.addr %s229, 8
      %s231 = scalar_lea.vmem %s4, %s230
      %p232 = scmp.lt.s32.totalorder %s17, 1
      %s233 = scalar_select %p232, %s17, 1
      %s234 = smul.addr %s233, 2
      %s235 = scalar_lea.vmem %s5, %s234
      %v237 = vld [vmem:[%s226] sm:$0xff]
      %v238 = vld [vmem:[%s226 + $0x8] sm:$0xff]
      %v239 = vld [vmem:[%s226 + $0x10] sm:$0xff]
      %v240 = vld [vmem:[%s226 + $0x18] sm:$0xff]
      %v241 = vld [vmem:[%s226 + $0x20] sm:$0xff]
      %v242 = vld [vmem:[%s226 + $0x28] sm:$0xff]
      %v243 = vld [vmem:[%s226 + $0x30] sm:$0xff]
      %v244 = vld [vmem:[%s226 + $0x38] sm:$0xff]
      %v245 = vld [vmem:[%s226 + $0x40] sm:$0xff]
      %v246 = vld [vmem:[%s226 + $0x48] sm:$0xff]
      %v247 = vld [vmem:[%s226 + $0x50] sm:$0xff]
      %v248 = vld [vmem:[%s226 + $0x58] sm:$0xff]
      %v249 = vld [vmem:[%s226 + $0x60] sm:$0xff]
      %v250 = vld [vmem:[%s226 + $0x68] sm:$0xff]
      %v251 = vld [vmem:[%s226 + $0x70] sm:$0xff]
      %v252 = vld [vmem:[%s226 + $0x78] sm:$0xff]
      %v253 = vld [vmem:[%s226 + $0x80] sm:$0xff]
      %v254 = vld [vmem:[%s226 + $0x88] sm:$0xff]
      %v255 = vld [vmem:[%s226 + $0x90] sm:$0xff]
      %v256 = vld [vmem:[%s226 + $0x98] sm:$0xff]
      %v257 = vld [vmem:[%s226 + $0xa0] sm:$0xff]
      %v258 = vld [vmem:[%s226 + $0xa8] sm:$0xff]
      %v259 = vld [vmem:[%s226 + $0xb0] sm:$0xff]
      %v260 = vld [vmem:[%s226 + $0xb8] sm:$0xff]
      %v261 = vld [vmem:[%s226 + $0xc0] sm:$0xff]
      %v262 = vld [vmem:[%s226 + $0xc8] sm:$0xff]
      %v263 = vld [vmem:[%s226 + $0xd0] sm:$0xff]
      %v264 = vld [vmem:[%s226 + $0xd8] sm:$0xff]
      %v265 = vld [vmem:[%s226 + $0xe0] sm:$0xff]
      %v266 = vld [vmem:[%s226 + $0xe8] sm:$0xff]
      %v267 = vld [vmem:[%s226 + $0xf0] sm:$0xff]
      %v268 = vld [vmem:[%s226 + $0xf8] sm:$0xff]
      %v269 = vld [vmem:[%s1] sm:$0x1]
      %v271 = vperm.slane %v269, 0
      %v273 = vmul.f32 %v237, %v271
      %v274 = vmul.f32 %v238, %v271
      %v275 = vmul.f32 %v239, %v271
      %v276 = vmul.f32 %v240, %v271
      %v277 = vmul.f32 %v241, %v271
      %v278 = vmul.f32 %v242, %v271
      %v279 = vmul.f32 %v243, %v271
      %v280 = vmul.f32 %v244, %v271
      %v281 = vmul.f32 %v245, %v271
      %v282 = vmul.f32 %v246, %v271
      %v283 = vmul.f32 %v247, %v271
      %v284 = vmul.f32 %v248, %v271
      %v285 = vmul.f32 %v249, %v271
      %v286 = vmul.f32 %v250, %v271
      %v287 = vmul.f32 %v251, %v271
      %v288 = vmul.f32 %v252, %v271
      %v289 = vmul.f32 %v253, %v271
      %v290 = vmul.f32 %v254, %v271
      %v291 = vmul.f32 %v255, %v271
      %v292 = vmul.f32 %v256, %v271
      %v293 = vmul.f32 %v257, %v271
      %v294 = vmul.f32 %v258, %v271
      %v295 = vmul.f32 %v259, %v271
      %v296 = vmul.f32 %v260, %v271
      %v297 = vmul.f32 %v261, %v271
      %v298 = vmul.f32 %v262, %v271
      %v299 = vmul.f32 %v263, %v271
      %v300 = vmul.f32 %v264, %v271
      %v301 = vmul.f32 %v265, %v271
      %v302 = vmul.f32 %v266, %v271
      %v303 = vmul.f32 %v267, %v271
      %v304 = vmul.f32 %v268, %v271
      %v305 = vld [vmem:[%s2] sm:$0x1]
      %v307 = vperm.slane %v305, 0
      %v309 = vadd.f32 %v273, %v307
      %v310 = vadd.f32 %v274, %v307
      %v311 = vadd.f32 %v275, %v307
      %v312 = vadd.f32 %v276, %v307
      %v313 = vadd.f32 %v277, %v307
      %v314 = vadd.f32 %v278, %v307
      %v315 = vadd.f32 %v279, %v307
      %v316 = vadd.f32 %v280, %v307
      %v317 = vadd.f32 %v281, %v307
      %v318 = vadd.f32 %v282, %v307
      %v319 = vadd.f32 %v283, %v307
      %v320 = vadd.f32 %v284, %v307
      %v321 = vadd.f32 %v285, %v307
      %v322 = vadd.f32 %v286, %v307
      %v323 = vadd.f32 %v287, %v307
      %v324 = vadd.f32 %v288, %v307
      %v325 = vadd.f32 %v289, %v307
      %v326 = vadd.f32 %v290, %v307
      %v327 = vadd.f32 %v291, %v307
      %v328 = vadd.f32 %v292, %v307
      %v329 = vadd.f32 %v293, %v307
      %v330 = vadd.f32 %v294, %v307
      %v331 = vadd.f32 %v295, %v307
      %v332 = vadd.f32 %v296, %v307
      %v333 = vadd.f32 %v297, %v307
      %v334 = vadd.f32 %v298, %v307
      %v335 = vadd.f32 %v299, %v307
      %v336 = vadd.f32 %v300, %v307
      %v337 = vadd.f32 %v301, %v307
      %v338 = vadd.f32 %v302, %v307
      %v339 = vadd.f32 %v303, %v307
      %v340 = vadd.f32 %v304, %v307
      %v341 = vmax.f32 %v309, 0.0
      %v342 = vmax.f32 %v310, 0.0
      %v343 = vmax.f32 %v311, 0.0
      %v344 = vmax.f32 %v312, 0.0
      %v345 = vmax.f32 %v313, 0.0
      %v346 = vmax.f32 %v314, 0.0
      %v347 = vmax.f32 %v315, 0.0
      %v348 = vmax.f32 %v316, 0.0
      %v349 = vmax.f32 %v317, 0.0
      %v350 = vmax.f32 %v318, 0.0
      %v351 = vmax.f32 %v319, 0.0
      %v352 = vmax.f32 %v320, 0.0
      %v353 = vmax.f32 %v321, 0.0
      %v354 = vmax.f32 %v322, 0.0
      %v355 = vmax.f32 %v323, 0.0
      %v356 = vmax.f32 %v324, 0.0
      %v357 = vmax.f32 %v325, 0.0
      %v358 = vmax.f32 %v326, 0.0
      %v359 = vmax.f32 %v327, 0.0
      %v360 = vmax.f32 %v328, 0.0
      %v361 = vmax.f32 %v329, 0.0
      %v362 = vmax.f32 %v330, 0.0
      %v363 = vmax.f32 %v331, 0.0
      %v364 = vmax.f32 %v332, 0.0
      %v365 = vmax.f32 %v333, 0.0
      %v366 = vmax.f32 %v334, 0.0
      %v367 = vmax.f32 %v335, 0.0
      %v368 = vmax.f32 %v336, 0.0
      %v369 = vmax.f32 %v337, 0.0
      %v370 = vmax.f32 %v338, 0.0
      %v371 = vmax.f32 %v339, 0.0
      %v372 = vmax.f32 %v340, 0.0
      %v373 = vpack.c.bf16 %v341, %v341
      %v374 = vpack.c.bf16 %v342, %v342
      %v375 = vpack.c.bf16 %v343, %v343
      %v376 = vpack.c.bf16 %v344, %v344
      %v377 = vpack.c.bf16 %v345, %v345
      %v378 = vpack.c.bf16 %v346, %v346
      %v379 = vpack.c.bf16 %v347, %v347
      %v380 = vpack.c.bf16 %v348, %v348
      %v381 = vpack.c.bf16 %v349, %v349
      %v382 = vpack.c.bf16 %v350, %v350
      %v383 = vpack.c.bf16 %v351, %v351
      %v384 = vpack.c.bf16 %v352, %v352
      %v385 = vpack.c.bf16 %v353, %v353
      %v386 = vpack.c.bf16 %v354, %v354
      %v387 = vpack.c.bf16 %v355, %v355
      %v388 = vpack.c.bf16 %v356, %v356
      %v389 = vpack.c.bf16 %v357, %v357
      %v390 = vpack.c.bf16 %v358, %v358
      %v391 = vpack.c.bf16 %v359, %v359
      %v392 = vpack.c.bf16 %v360, %v360
      %v393 = vpack.c.bf16 %v361, %v361
      %v394 = vpack.c.bf16 %v362, %v362
      %v395 = vpack.c.bf16 %v363, %v363
      %v396 = vpack.c.bf16 %v364, %v364
      %v397 = vpack.c.bf16 %v365, %v365
      %v398 = vpack.c.bf16 %v366, %v366
      %v399 = vpack.c.bf16 %v367, %v367
      %v400 = vpack.c.bf16 %v368, %v368
      %v401 = vpack.c.bf16 %v369, %v369
      %v402 = vpack.c.bf16 %v370, %v370
      %v403 = vpack.c.bf16 %v371, %v371
      %v404 = vpack.c.bf16 %v372, %v372
      %vm405 = vsmask.f32 256
      %vm406 = vsmask.f32 4368
      %vm407 = vmor %vm405, %vm406
      %v409 = vshrl.u32 %v373, 16
      %v411 = vrot.slane %v409, 7
      %v412 = vshll.u32 %v373, 16
      %v414 = vor.u32 %v411, %v412
      %v415 = vrot.slane %v411, 4
      %v417 = vshrl.u32 %v374, 16
      %v419 = vrot.slane %v417, 7
      %v420 = vshll.u32 %v374, 16
      %v422 = vor.u32 %v419, %v420
      %v423 = vsel %vm407, %v415, %v422
      %v424 = vrot.slane %v419, 4
      %v426 = vshrl.u32 %v375, 16
      %v428 = vrot.slane %v426, 7
      %v429 = vshll.u32 %v375, 16
      %v431 = vor.u32 %v428, %v429
      %v432 = vrot.slane %v428, 4
      %v434 = vshrl.u32 %v376, 16
      %v436 = vrot.slane %v434, 7
      %v437 = vshll.u32 %v376, 16
      %v439 = vor.u32 %v436, %v437
      %v440 = vsel %vm407, %v432, %v439
      %v441 = vrot.slane %v436, 4
      %v443 = vshrl.u32 %v377, 16
      %v445 = vrot.slane %v443, 7
      %v446 = vshll.u32 %v377, 16
      %v448 = vor.u32 %v445, %v446
      %v449 = vrot.slane %v445, 4
      %v451 = vshrl.u32 %v378, 16
      %v453 = vrot.slane %v451, 7
      %v454 = vshll.u32 %v378, 16
      %v456 = vor.u32 %v453, %v454
      %v457 = vsel %vm407, %v449, %v456
      %v458 = vrot.slane %v453, 4
      %v460 = vshrl.u32 %v379, 16
      %v462 = vrot.slane %v460, 7
      %v463 = vshll.u32 %v379, 16
      %v465 = vor.u32 %v462, %v463
      %v466 = vrot.slane %v462, 4
      %v468 = vshrl.u32 %v380, 16
      %v470 = vrot.slane %v468, 7
      %v471 = vshll.u32 %v380, 16
      %v473 = vor.u32 %v470, %v471
      %v474 = vsel %vm407, %v466, %v473
      %v475 = vrot.slane %v470, 4
      %v477 = vshrl.u32 %v381, 16
      %v479 = vrot.slane %v477, 7
      %v480 = vshll.u32 %v381, 16
      %v482 = vor.u32 %v479, %v480
      %v483 = vrot.slane %v479, 4
      %v485 = vshrl.u32 %v382, 16
      %v487 = vrot.slane %v485, 7
      %v488 = vshll.u32 %v382, 16
      %v490 = vor.u32 %v487, %v488
      %v491 = vsel %vm407, %v483, %v490
      %v492 = vrot.slane %v487, 4
      %v494 = vshrl.u32 %v383, 16
      %v496 = vrot.slane %v494, 7
      %v497 = vshll.u32 %v383, 16
      %v499 = vor.u32 %v496, %v497
      %v500 = vrot.slane %v496, 4
      %v502 = vshrl.u32 %v384, 16
      %v504 = vrot.slane %v502, 7
      %v505 = vshll.u32 %v384, 16
      %v507 = vor.u32 %v504, %v505
      %v508 = vsel %vm407, %v500, %v507
      %v509 = vrot.slane %v504, 4
      %v511 = vshrl.u32 %v385, 16
      %v513 = vrot.slane %v511, 7
      %v514 = vshll.u32 %v385, 16
      %v516 = vor.u32 %v513, %v514
      %v517 = vrot.slane %v513, 4
      %v519 = vshrl.u32 %v386, 16
      %v521 = vrot.slane %v519, 7
      %v522 = vshll.u32 %v386, 16
      %v524 = vor.u32 %v521, %v522
      %v525 = vsel %vm407, %v517, %v524
      %v526 = vrot.slane %v521, 4
      %v528 = vshrl.u32 %v387, 16
      %v530 = vrot.slane %v528, 7
      %v531 = vshll.u32 %v387, 16
      %v533 = vor.u32 %v530, %v531
      %v534 = vrot.slane %v530, 4
      %v536 = vshrl.u32 %v388, 16
      %v538 = vrot.slane %v536, 7
      %v539 = vshll.u32 %v388, 16
      %v541 = vor.u32 %v538, %v539
      %v542 = vsel %vm407, %v534, %v541
      %v543 = vrot.slane %v538, 4
      %v545 = vshrl.u32 %v389, 16
      %v547 = vrot.slane %v545, 7
      %v548 = vshll.u32 %v389, 16
      %v550 = vor.u32 %v547, %v548
      %v551 = vrot.slane %v547, 4
      %v553 = vshrl.u32 %v390, 16
      %v555 = vrot.slane %v553, 7
      %v556 = vshll.u32 %v390, 16
      %v558 = vor.u32 %v555, %v556
      %v559 = vsel %vm407, %v551, %v558
      %v560 = vrot.slane %v555, 4
      %v562 = vshrl.u32 %v391, 16
      %v564 = vrot.slane %v562, 7
      %v565 = vshll.u32 %v391, 16
      %v567 = vor.u32 %v564, %v565
      %v568 = vrot.slane %v564, 4
      %v570 = vshrl.u32 %v392, 16
      %v572 = vrot.slane %v570, 7
      %v573 = vshll.u32 %v392, 16
      %v575 = vor.u32 %v572, %v573
      %v576 = vsel %vm407, %v568, %v575
      %v577 = vrot.slane %v572, 4
      %v579 = vshrl.u32 %v393, 16
      %v581 = vrot.slane %v579, 7
      %v582 = vshll.u32 %v393, 16
      %v584 = vor.u32 %v581, %v582
      %v585 = vrot.slane %v581, 4
      %v587 = vshrl.u32 %v394, 16
      %v589 = vrot.slane %v587, 7
      %v590 = vshll.u32 %v394, 16
      %v592 = vor.u32 %v589, %v590
      %v593 = vsel %vm407, %v585, %v592
      %v594 = vrot.slane %v589, 4
      %v596 = vshrl.u32 %v395, 16
      %v598 = vrot.slane %v596, 7
      %v599 = vshll.u32 %v395, 16
      %v601 = vor.u32 %v598, %v599
      %v602 = vrot.slane %v598, 4
      %v604 = vshrl.u32 %v396, 16
      %v606 = vrot.slane %v604, 7
      %v607 = vshll.u32 %v396, 16
      %v609 = vor.u32 %v606, %v607
      %v610 = vsel %vm407, %v602, %v609
      %v611 = vrot.slane %v606, 4
      %v613 = vshrl.u32 %v397, 16
      %v615 = vrot.slane %v613, 7
      %v616 = vshll.u32 %v397, 16
      %v618 = vor.u32 %v615, %v616
      %v619 = vrot.slane %v615, 4
      %v621 = vshrl.u32 %v398, 16
      %v623 = vrot.slane %v621, 7
      %v624 = vshll.u32 %v398, 16
      %v626 = vor.u32 %v623, %v624
      %v627 = vsel %vm407, %v619, %v626
      %v628 = vrot.slane %v623, 4
      %v630 = vshrl.u32 %v399, 16
      %v632 = vrot.slane %v630, 7
      %v633 = vshll.u32 %v399, 16
      %v635 = vor.u32 %v632, %v633
      %v636 = vrot.slane %v632, 4
      %v638 = vshrl.u32 %v400, 16
      %v640 = vrot.slane %v638, 7
      %v641 = vshll.u32 %v400, 16
      %v643 = vor.u32 %v640, %v641
      %v644 = vsel %vm407, %v636, %v643
      %v645 = vrot.slane %v640, 4
      %v647 = vshrl.u32 %v401, 16
      %v649 = vrot.slane %v647, 7
      %v650 = vshll.u32 %v401, 16
      %v652 = vor.u32 %v649, %v650
      %v653 = vrot.slane %v649, 4
      %v655 = vshrl.u32 %v402, 16
      %v657 = vrot.slane %v655, 7
      %v658 = vshll.u32 %v402, 16
      %v660 = vor.u32 %v657, %v658
      %v661 = vsel %vm407, %v653, %v660
      %v662 = vrot.slane %v657, 4
      %v664 = vshrl.u32 %v403, 16
      %v666 = vrot.slane %v664, 7
      %v667 = vshll.u32 %v403, 16
      %v669 = vor.u32 %v666, %v667
      %v670 = vrot.slane %v666, 4
      %v672 = vshrl.u32 %v404, 16
      %v674 = vrot.slane %v672, 7
      %v675 = vshll.u32 %v404, 16
      %v677 = vor.u32 %v674, %v675
      %v678 = vsel %vm407, %v670, %v677
      %v679 = vrot.slane %v674, 4
      %s728 = scalar_lea.vmem [#allocation2], 12
      %vm729 = vcmask 1043456
      %vm730 = vsmask.f32 7938
      %vm731 = vmand %vm729, %vm730
      %v732 = vld [vmem:[%s728] sm:$0xf]
      %v733 = vsel %vm731, %v414, %v732
      %734 = vst [vmem:[%s728] sm:$0xf] %v733
      %735 = vst [vmem:[%s728 + $0x4] sm:$0xf] %v423
      %vm736 = vcmask 1040384
      %vm737 = vmand %vm736, %vm405
      %v738 = vld [vmem:[%s728 + $0x8] sm:$0x1]
      %v739 = vsel %vm737, %v424, %v738
      %740 = vst [vmem:[%s728 + $0x8] sm:$0x1] %v739
      %v741 = vld [vmem:[%s728 + $0xc] sm:$0xf]
      %v742 = vsel %vm731, %v431, %v741
      %743 = vst [vmem:[%s728 + $0xc] sm:$0xf] %v742
      %744 = vst [vmem:[%s728 + $0x10] sm:$0xf] %v440
      %v745 = vld [vmem:[%s728 + $0x14] sm:$0x1]
      %v746 = vsel %vm737, %v441, %v745
      %747 = vst [vmem:[%s728 + $0x14] sm:$0x1] %v746
      %v748 = vld [vmem:[%s728 + $0x18] sm:$0xf]
      %v749 = vsel %vm731, %v448, %v748
      %750 = vst [vmem:[%s728 + $0x18] sm:$0xf] %v749
      %751 = vst [vmem:[%s728 + $0x1c] sm:$0xf] %v457
      %v752 = vld [vmem:[%s728 + $0x20] sm:$0x1]
      %v753 = vsel %vm737, %v458, %v752
      %754 = vst [vmem:[%s728 + $0x20] sm:$0x1] %v753
      %v755 = vld [vmem:[%s728 + $0x24] sm:$0xf]
      %v756 = vsel %vm731, %v465, %v755
      %757 = vst [vmem:[%s728 + $0x24] sm:$0xf] %v756
      %758 = vst [vmem:[%s728 + $0x28] sm:$0xf] %v474
      %v759 = vld [vmem:[%s728 + $0x2c] sm:$0x1]
      %v760 = vsel %vm737, %v475, %v759
      %761 = vst [vmem:[%s728 + $0x2c] sm:$0x1] %v760
      %v762 = vld [vmem:[%s728 + $0x30] sm:$0xf]
      %v763 = vsel %vm731, %v482, %v762
      %764 = vst [vmem:[%s728 + $0x30] sm:$0xf] %v763
      %765 = vst [vmem:[%s728 + $0x34] sm:$0xf] %v491
      %v766 = vld [vmem:[%s728 + $0x38] sm:$0x1]
      %v767 = vsel %vm737, %v492, %v766
      %768 = vst [vmem:[%s728 + $0x38] sm:$0x1] %v767
      %v769 = vld [vmem:[%s728 + $0x3c] sm:$0xf]
      %v770 = vsel %vm731, %v499, %v769
      %771 = vst [vmem:[%s728 + $0x3c] sm:$0xf] %v770
      %772 = vst [vmem:[%s728 + $0x40] sm:$0xf] %v508
      %v773 = vld [vmem:[%s728 + $0x44] sm:$0x1]
      %v774 = vsel %vm737, %v509, %v773
      %775 = vst [vmem:[%s728 + $0x44] sm:$0x1] %v774
      %v776 = vld [vmem:[%s728 + $0x48] sm:$0xf]
      %v777 = vsel %vm731, %v516, %v776
      %778 = vst [vmem:[%s728 + $0x48] sm:$0xf] %v777
      %779 = vst [vmem:[%s728 + $0x4c] sm:$0xf] %v525
      %v780 = vld [vmem:[%s728 + $0x50] sm:$0x1]
      %v781 = vsel %vm737, %v526, %v780
      %782 = vst [vmem:[%s728 + $0x50] sm:$0x1] %v781
      %v783 = vld [vmem:[%s728 + $0x54] sm:$0xf]
      %v784 = vsel %vm731, %v533, %v783
      %785 = vst [vmem:[%s728 + $0x54] sm:$0xf] %v784
      %786 = vst [vmem:[%s728 + $0x58] sm:$0xf] %v542
      %v787 = vld [vmem:[%s728 + $0x5c] sm:$0x1]
      %v788 = vsel %vm737, %v543, %v787
      %789 = vst [vmem:[%s728 + $0x5c] sm:$0x1] %v788
      %v790 = vld [vmem:[%s728 + $0x60] sm:$0xf]
      %v791 = vsel %vm731, %v550, %v790
      %792 = vst [vmem:[%s728 + $0x60] sm:$0xf] %v791
      %793 = vst [vmem:[%s728 + $0x64] sm:$0xf] %v559
      %v794 = vld [vmem:[%s728 + $0x68] sm:$0x1]
      %v795 = vsel %vm737, %v560, %v794
      %796 = vst [vmem:[%s728 + $0x68] sm:$0x1] %v795
      %v797 = vld [vmem:[%s728 + $0x6c] sm:$0xf]
      %v798 = vsel %vm731, %v567, %v797
      %799 = vst [vmem:[%s728 + $0x6c] sm:$0xf] %v798
      %800 = vst [vmem:[%s728 + $0x70] sm:$0xf] %v576
      %v801 = vld [vmem:[%s728 + $0x74] sm:$0x1]
      %v802 = vsel %vm737, %v577, %v801
      %803 = vst [vmem:[%s728 + $0x74] sm:$0x1] %v802
      %v804 = vld [vmem:[%s728 + $0x78] sm:$0xf]
      %v805 = vsel %vm731, %v584, %v804
      %806 = vst [vmem:[%s728 + $0x78] sm:$0xf] %v805
      %807 = vst [vmem:[%s728 + $0x7c] sm:$0xf] %v593
      %v808 = vld [vmem:[%s728 + $0x80] sm:$0x1]
      %v809 = vsel %vm737, %v594, %v808
      %810 = vst [vmem:[%s728 + $0x80] sm:$0x1] %v809
      %v811 = vld [vmem:[%s728 + $0x84] sm:$0xf]
      %v812 = vsel %vm731, %v601, %v811
      %813 = vst [vmem:[%s728 + $0x84] sm:$0xf] %v812
      %814 = vst [vmem:[%s728 + $0x88] sm:$0xf] %v610
      %v815 = vld [vmem:[%s728 + $0x8c] sm:$0x1]
      %v816 = vsel %vm737, %v611, %v815
      %817 = vst [vmem:[%s728 + $0x8c] sm:$0x1] %v816
      %v818 = vld [vmem:[%s728 + $0x90] sm:$0xf]
      %v819 = vsel %vm731, %v618, %v818
      %820 = vst [vmem:[%s728 + $0x90] sm:$0xf] %v819
      %821 = vst [vmem:[%s728 + $0x94] sm:$0xf] %v627
      %v822 = vld [vmem:[%s728 + $0x98] sm:$0x1]
      %v823 = vsel %vm737, %v628, %v822
      %824 = vst [vmem:[%s728 + $0x98] sm:$0x1] %v823
      %v825 = vld [vmem:[%s728 + $0x9c] sm:$0xf]
      %v826 = vsel %vm731, %v635, %v825
      %827 = vst [vmem:[%s728 + $0x9c] sm:$0xf] %v826
      %828 = vst [vmem:[%s728 + $0xa0] sm:$0xf] %v644
      %v829 = vld [vmem:[%s728 + $0xa4] sm:$0x1]
      %v830 = vsel %vm737, %v645, %v829
      %831 = vst [vmem:[%s728 + $0xa4] sm:$0x1] %v830
      %v832 = vld [vmem:[%s728 + $0xa8] sm:$0xf]
      %v833 = vsel %vm731, %v652, %v832
      %834 = vst [vmem:[%s728 + $0xa8] sm:$0xf] %v833
      %835 = vst [vmem:[%s728 + $0xac] sm:$0xf] %v661
      %v836 = vld [vmem:[%s728 + $0xb0] sm:$0x1]
      %v837 = vsel %vm737, %v662, %v836
      %838 = vst [vmem:[%s728 + $0xb0] sm:$0x1] %v837
      %v839 = vld [vmem:[%s728 + $0xb4] sm:$0xf]
      %v840 = vsel %vm731, %v669, %v839
      %841 = vst [vmem:[%s728 + $0xb4] sm:$0xf] %v840
      %842 = vst [vmem:[%s728 + $0xb8] sm:$0xf] %v678
      %v843 = vld [vmem:[%s728 + $0xbc] sm:$0x1]
      %v844 = vsel %vm737, %v679, %v843
      %845 = vst [vmem:[%s728 + $0xbc] sm:$0x1] %v844
      %846 = vst [vmem:[#allocation2] sm:$0xf] 0
      %847 = vst [vmem:[#allocation2 + $0x4] sm:$0xf] 0
      %848 = vst [vmem:[#allocation2 + $0x8] sm:$0x1] 0
      %s849 = scalar_lea.vmem [#allocation2], 204
      %850 = vst [vmem:[%s849] sm:$0xf] 0
      %851 = vst [vmem:[%s849 + $0x4] sm:$0xf] 0
      %852 = vst [vmem:[%s849 + $0x8] sm:$0x1] 0
      %v853 = vld [vmem:[%s728] sm:$0x1]
      %v854 = vsel %vm737, 0, %v853
      %855 = vst [vmem:[%s728] sm:$0x1] %v854
      %v856 = vld [vmem:[%s728 + $0xc] sm:$0x1]
      %v857 = vsel %vm737, 0, %v856
      %858 = vst [vmem:[%s728 + $0xc] sm:$0x1] %v857
      %v859 = vld [vmem:[%s728 + $0x18] sm:$0x1]
      %v860 = vsel %vm737, 0, %v859
      %861 = vst [vmem:[%s728 + $0x18] sm:$0x1] %v860
      %v862 = vld [vmem:[%s728 + $0x24] sm:$0x1]
      %v863 = vsel %vm737, 0, %v862
      %864 = vst [vmem:[%s728 + $0x24] sm:$0x1] %v863
      %v865 = vld [vmem:[%s728 + $0x30] sm:$0x1]
      %v866 = vsel %vm737, 0, %v865
      %867 = vst [vmem:[%s728 + $0x30] sm:$0x1] %v866
      %v868 = vld [vmem:[%s728 + $0x3c] sm:$0x1]
      %v869 = vsel %vm737, 0, %v868
      %870 = vst [vmem:[%s728 + $0x3c] sm:$0x1] %v869
      %v871 = vld [vmem:[%s728 + $0x48] sm:$0x1]
      %v872 = vsel %vm737, 0, %v871
      %873 = vst [vmem:[%s728 + $0x48] sm:$0x1] %v872
      %v874 = vld [vmem:[%s728 + $0x54] sm:$0x1]
      %v875 = vsel %vm737, 0, %v874
      %876 = vst [vmem:[%s728 + $0x54] sm:$0x1] %v875
      %v877 = vld [vmem:[%s728 + $0x60] sm:$0x1]
      %v878 = vsel %vm737, 0, %v877
      %879 = vst [vmem:[%s728 + $0x60] sm:$0x1] %v878
      %v880 = vld [vmem:[%s728 + $0x6c] sm:$0x1]
      %v881 = vsel %vm737, 0, %v880
      %882 = vst [vmem:[%s728 + $0x6c] sm:$0x1] %v881
      %v883 = vld [vmem:[%s728 + $0x78] sm:$0x1]
      %v884 = vsel %vm737, 0, %v883
      %885 = vst [vmem:[%s728 + $0x78] sm:$0x1] %v884
      %v886 = vld [vmem:[%s728 + $0x84] sm:$0x1]
      %v887 = vsel %vm737, 0, %v886
      %888 = vst [vmem:[%s728 + $0x84] sm:$0x1] %v887
      %v889 = vld [vmem:[%s728 + $0x90] sm:$0x1]
      %v890 = vsel %vm737, 0, %v889
      %891 = vst [vmem:[%s728 + $0x90] sm:$0x1] %v890
      %v892 = vld [vmem:[%s728 + $0x9c] sm:$0x1]
      %v893 = vsel %vm737, 0, %v892
      %894 = vst [vmem:[%s728 + $0x9c] sm:$0x1] %v893
      %v895 = vld [vmem:[%s728 + $0xa8] sm:$0x1]
      %v896 = vsel %vm737, 0, %v895
      %897 = vst [vmem:[%s728 + $0xa8] sm:$0x1] %v896
      %v898 = vld [vmem:[%s728 + $0xb4] sm:$0x1]
      %v899 = vsel %vm737, 0, %v898
      %900 = vst [vmem:[%s728 + $0xb4] sm:$0x1] %v899
      %vm901 = vmand %vm736, %vm730
      %v902 = vld [vmem:[%s728 + $0x8] sm:$0x1]
      %v903 = vsel %vm901, 0, %v902
      %904 = vst [vmem:[%s728 + $0x8] sm:$0x1] %v903
      %v905 = vld [vmem:[%s728 + $0x14] sm:$0x1]
      %v906 = vsel %vm901, 0, %v905
      %907 = vst [vmem:[%s728 + $0x14] sm:$0x1] %v906
      %v908 = vld [vmem:[%s728 + $0x20] sm:$0x1]
      %v909 = vsel %vm901, 0, %v908
      %910 = vst [vmem:[%s728 + $0x20] sm:$0x1] %v909
      %v911 = vld [vmem:[%s728 + $0x2c] sm:$0x1]
      %v912 = vsel %vm901, 0, %v911
      %913 = vst [vmem:[%s728 + $0x2c] sm:$0x1] %v912
      %v914 = vld [vmem:[%s728 + $0x38] sm:$0x1]
      %v915 = vsel %vm901, 0, %v914
      %916 = vst [vmem:[%s728 + $0x38] sm:$0x1] %v915
      %v917 = vld [vmem:[%s728 + $0x44] sm:$0x1]
      %v918 = vsel %vm901, 0, %v917
      %919 = vst [vmem:[%s728 + $0x44] sm:$0x1] %v918
      %v920 = vld [vmem:[%s728 + $0x50] sm:$0x1]
      %v921 = vsel %vm901, 0, %v920
      %922 = vst [vmem:[%s728 + $0x50] sm:$0x1] %v921
      %v923 = vld [vmem:[%s728 + $0x5c] sm:$0x1]
      %v924 = vsel %vm901, 0, %v923
      %925 = vst [vmem:[%s728 + $0x5c] sm:$0x1] %v924
      %v926 = vld [vmem:[%s728 + $0x68] sm:$0x1]
      %v927 = vsel %vm901, 0, %v926
      %928 = vst [vmem:[%s728 + $0x68] sm:$0x1] %v927
      %v929 = vld [vmem:[%s728 + $0x74] sm:$0x1]
      %v930 = vsel %vm901, 0, %v929
      %931 = vst [vmem:[%s728 + $0x74] sm:$0x1] %v930
      %v932 = vld [vmem:[%s728 + $0x80] sm:$0x1]
      %v933 = vsel %vm901, 0, %v932
      %934 = vst [vmem:[%s728 + $0x80] sm:$0x1] %v933
      %v935 = vld [vmem:[%s728 + $0x8c] sm:$0x1]
      %v936 = vsel %vm901, 0, %v935
      %937 = vst [vmem:[%s728 + $0x8c] sm:$0x1] %v936
      %v938 = vld [vmem:[%s728 + $0x98] sm:$0x1]
      %v939 = vsel %vm901, 0, %v938
      %940 = vst [vmem:[%s728 + $0x98] sm:$0x1] %v939
      %v941 = vld [vmem:[%s728 + $0xa4] sm:$0x1]
      %v942 = vsel %vm901, 0, %v941
      %943 = vst [vmem:[%s728 + $0xa4] sm:$0x1] %v942
      %v944 = vld [vmem:[%s728 + $0xb0] sm:$0x1]
      %v945 = vsel %vm901, 0, %v944
      %946 = vst [vmem:[%s728 + $0xb0] sm:$0x1] %v945
      %v947 = vld [vmem:[%s728 + $0xbc] sm:$0x1]
      %v948 = vsel %vm901, 0, %v947
      %949 = vst [vmem:[%s728 + $0xbc] sm:$0x1] %v948
      %v950 = vld [vmem:[#allocation2] sm:$0xf]
      %v951 = vld [vmem:[#allocation2 + $0x4] sm:$0xf]
      %v952 = vld [vmem:[#allocation2 + $0xc] sm:$0xf]
      %v953 = vld [vmem:[#allocation2 + $0x10] sm:$0xf]
      %v954 = vld [vmem:[#allocation2 + $0x18] sm:$0xf]
      %v955 = vld [vmem:[#allocation2 + $0x1c] sm:$0xf]
      %v956 = vld [vmem:[#allocation2 + $0x24] sm:$0xf]
      %v957 = vld [vmem:[#allocation2 + $0x28] sm:$0xf]
      %v958 = vld [vmem:[#allocation2 + $0x30] sm:$0xf]
      %v959 = vld [vmem:[#allocation2 + $0x34] sm:$0xf]
      %v960 = vld [vmem:[#allocation2 + $0x3c] sm:$0xf]
      %v961 = vld [vmem:[#allocation2 + $0x40] sm:$0xf]
      %v962 = vld [vmem:[#allocation2 + $0x48] sm:$0xf]
      %v963 = vld [vmem:[#allocation2 + $0x4c] sm:$0xf]
      %v964 = vld [vmem:[#allocation2 + $0x54] sm:$0xf]
      %v965 = vld [vmem:[#allocation2 + $0x58] sm:$0xf]
      %v966 = vld [vmem:[#allocation2 + $0x60] sm:$0xf]
      %v967 = vld [vmem:[#allocation2 + $0x64] sm:$0xf]
      %v968 = vld [vmem:[#allocation2 + $0x6c] sm:$0xf]
      %v969 = vld [vmem:[#allocation2 + $0x70] sm:$0xf]
      %v970 = vld [vmem:[#allocation2 + $0x78] sm:$0xf]
      %v971 = vld [vmem:[#allocation2 + $0x7c] sm:$0xf]
      %v972 = vld [vmem:[#allocation2 + $0x84] sm:$0xf]
      %v973 = vld [vmem:[#allocation2 + $0x88] sm:$0xf]
      %v974 = vld [vmem:[#allocation2 + $0x90] sm:$0xf]
      %v975 = vld [vmem:[#allocation2 + $0x94] sm:$0xf]
      %v976 = vld [vmem:[#allocation2 + $0x9c] sm:$0xf]
      %v977 = vld [vmem:[#allocation2 + $0xa0] sm:$0xf]
      %v978 = vld [vmem:[#allocation2 + $0xa8] sm:$0xf]
      %v979 = vld [vmem:[#allocation2 + $0xac] sm:$0xf]
      %v980 = vld [vmem:[#allocation2 + $0xb4] sm:$0xf]
      %v981 = vld [vmem:[#allocation2 + $0xb8] sm:$0xf]
      %v982 = vld [vmem:[#allocation2 + $0x8] sm:$0x1]
      %v983 = vld [vmem:[#allocation2 + $0x14] sm:$0x1]
      %v984 = vld [vmem:[#allocation2 + $0x20] sm:$0x1]
      %v985 = vld [vmem:[#allocation2 + $0x2c] sm:$0x1]
      %v986 = vld [vmem:[#allocation2 + $0x38] sm:$0x1]
      %v987 = vld [vmem:[#allocation2 + $0x44] sm:$0x1]
      %v988 = vld [vmem:[#allocation2 + $0x50] sm:$0x1]
      %v989 = vld [vmem:[#allocation2 + $0x5c] sm:$0x1]
      %v990 = vld [vmem:[#allocation2 + $0x68] sm:$0x1]
      %v991 = vld [vmem:[#allocation2 + $0x74] sm:$0x1]
      %v992 = vld [vmem:[#allocation2 + $0x80] sm:$0x1]
      %v993 = vld [vmem:[#allocation2 + $0x8c] sm:$0x1]
      %v994 = vld [vmem:[#allocation2 + $0x98] sm:$0x1]
      %v995 = vld [vmem:[#allocation2 + $0xa4] sm:$0x1]
      %v996 = vld [vmem:[#allocation2 + $0xb0] sm:$0x1]
      %v997 = vld [vmem:[#allocation2 + $0xbc] sm:$0x1]
      %vm998 = vsmask.f32 3328
      %vm999 = vsmask.f32 7440
      %vm1000 = vmor %vm998, %vm999
      %v1002 = vshrl.u32 %v950, 16
      %v1004 = vrot.slane %v1002, 4
      %v1005 = vshll.u32 %v950, 16
      %v1007 = vrot.slane %v1005, 5
      %v1008 = vor.u32 %v1004, %v1007
      %v1009 = vrot.slane %v1008, 4
      %v1011 = vshll.u32 %v951, 16
      %v1013 = vrot.slane %v1011, 5
      %v1014 = vsel %vm1000, %v1009, %v1013
      %v1015 = vshrl.u32 %v951, 16
      %v1017 = vrot.slane %v1015, 4
      %v1018 = vor.u32 %v1017, %v1013
      %v1019 = vrot.slane %v1018, 4
      %v1021 = vshll.u32 %v982, 16
      %v1023 = vrot.slane %v1021, 5
      %v1024 = vsel %vm1000, %v1019, %v1023
      %v1026 = vshrl.u32 %v952, 16
      %v1028 = vrot.slane %v1026, 4
      %v1029 = vshll.u32 %v952, 16
      %v1031 = vrot.slane %v1029, 5
      %v1032 = vor.u32 %v1028, %v1031
      %v1033 = vrot.slane %v1032, 4
      %v1035 = vshll.u32 %v953, 16
      %v1037 = vrot.slane %v1035, 5
      %v1038 = vsel %vm1000, %v1033, %v1037
      %v1039 = vshrl.u32 %v953, 16
      %v1041 = vrot.slane %v1039, 4
      %v1042 = vor.u32 %v1041, %v1037
      %v1043 = vrot.slane %v1042, 4
      %v1045 = vshll.u32 %v983, 16
      %v1047 = vrot.slane %v1045, 5
      %v1048 = vsel %vm1000, %v1043, %v1047
      %v1050 = vshrl.u32 %v954, 16
      %v1052 = vrot.slane %v1050, 4
      %v1053 = vshll.u32 %v954, 16
      %v1055 = vrot.slane %v1053, 5
      %v1056 = vor.u32 %v1052, %v1055
      %v1057 = vrot.slane %v1056, 4
      %v1059 = vshll.u32 %v955, 16
      %v1061 = vrot.slane %v1059, 5
      %v1062 = vsel %vm1000, %v1057, %v1061
      %v1063 = vshrl.u32 %v955, 16
      %v1065 = vrot.slane %v1063, 4
      %v1066 = vor.u32 %v1065, %v1061
      %v1067 = vrot.slane %v1066, 4
      %v1069 = vshll.u32 %v984, 16
      %v1071 = vrot.slane %v1069, 5
      %v1072 = vsel %vm1000, %v1067, %v1071
      %v1074 = vshrl.u32 %v956, 16
      %v1076 = vrot.slane %v1074, 4
      %v1077 = vshll.u32 %v956, 16
      %v1079 = vrot.slane %v1077, 5
      %v1080 = vor.u32 %v1076, %v1079
      %v1081 = vrot.slane %v1080, 4
      %v1083 = vshll.u32 %v957, 16
      %v1085 = vrot.slane %v1083, 5
      %v1086 = vsel %vm1000, %v1081, %v1085
      %v1087 = vshrl.u32 %v957, 16
      %v1089 = vrot.slane %v1087, 4
      %v1090 = vor.u32 %v1089, %v1085
      %v1091 = vrot.slane %v1090, 4
      %v1093 = vshll.u32 %v985, 16
      %v1095 = vrot.slane %v1093, 5
      %v1096 = vsel %vm1000, %v1091, %v1095
      %v1098 = vshrl.u32 %v958, 16
      %v1100 = vrot.slane %v1098, 4
      %v1101 = vshll.u32 %v958, 16
      %v1103 = vrot.slane %v1101, 5
      %v1104 = vor.u32 %v1100, %v1103
      %v1105 = vrot.slane %v1104, 4
      %v1107 = vshll.u32 %v959, 16
      %v1109 = vrot.slane %v1107, 5
      %v1110 = vsel %vm1000, %v1105, %v1109
      %v1111 = vshrl.u32 %v959, 16
      %v1113 = vrot.slane %v1111, 4
      %v1114 = vor.u32 %v1113, %v1109
      %v1115 = vrot.slane %v1114, 4
      %v1117 = vshll.u32 %v986, 16
      %v1119 = vrot.slane %v1117, 5
      %v1120 = vsel %vm1000, %v1115, %v1119
      %v1122 = vshrl.u32 %v960, 16
      %v1124 = vrot.slane %v1122, 4
      %v1125 = vshll.u32 %v960, 16
      %v1127 = vrot.slane %v1125, 5
      %v1128 = vor.u32 %v1124, %v1127
      %v1129 = vrot.slane %v1128, 4
      %v1131 = vshll.u32 %v961, 16
      %v1133 = vrot.slane %v1131, 5
      %v1134 = vsel %vm1000, %v1129, %v1133
      %v1135 = vshrl.u32 %v961, 16
      %v1137 = vrot.slane %v1135, 4
      %v1138 = vor.u32 %v1137, %v1133
      %v1139 = vrot.slane %v1138, 4
      %v1141 = vshll.u32 %v987, 16
      %v1143 = vrot.slane %v1141, 5
      %v1144 = vsel %vm1000, %v1139, %v1143
      %v1146 = vshrl.u32 %v962, 16
      %v1148 = vrot.slane %v1146, 4
      %v1149 = vshll.u32 %v962, 16
      %v1151 = vrot.slane %v1149, 5
      %v1152 = vor.u32 %v1148, %v1151
      %v1153 = vrot.slane %v1152, 4
      %v1155 = vshll.u32 %v963, 16
      %v1157 = vrot.slane %v1155, 5
      %v1158 = vsel %vm1000, %v1153, %v1157
      %v1159 = vshrl.u32 %v963, 16
      %v1161 = vrot.slane %v1159, 4
      %v1162 = vor.u32 %v1161, %v1157
      %v1163 = vrot.slane %v1162, 4
      %v1165 = vshll.u32 %v988, 16
      %v1167 = vrot.slane %v1165, 5
      %v1168 = vsel %vm1000, %v1163, %v1167
      %v1170 = vshrl.u32 %v964, 16
      %v1172 = vrot.slane %v1170, 4
      %v1173 = vshll.u32 %v964, 16
      %v1175 = vrot.slane %v1173, 5
      %v1176 = vor.u32 %v1172, %v1175
      %v1177 = vrot.slane %v1176, 4
      %v1179 = vshll.u32 %v965, 16
      %v1181 = vrot.slane %v1179, 5
      %v1182 = vsel %vm1000, %v1177, %v1181
      %v1183 = vshrl.u32 %v965, 16
      %v1185 = vrot.slane %v1183, 4
      %v1186 = vor.u32 %v1185, %v1181
      %v1187 = vrot.slane %v1186, 4
      %v1189 = vshll.u32 %v989, 16
      %v1191 = vrot.slane %v1189, 5
      %v1192 = vsel %vm1000, %v1187, %v1191
      %v1194 = vshrl.u32 %v966, 16
      %v1196 = vrot.slane %v1194, 4
      %v1197 = vshll.u32 %v966, 16
      %v1199 = vrot.slane %v1197, 5
      %v1200 = vor.u32 %v1196, %v1199
      %v1201 = vrot.slane %v1200, 4
      %v1203 = vshll.u32 %v967, 16
      %v1205 = vrot.slane %v1203, 5
      %v1206 = vsel %vm1000, %v1201, %v1205
      %v1207 = vshrl.u32 %v967, 16
      %v1209 = vrot.slane %v1207, 4
      %v1210 = vor.u32 %v1209, %v1205
      %v1211 = vrot.slane %v1210, 4
      %v1213 = vshll.u32 %v990, 16
      %v1215 = vrot.slane %v1213, 5
      %v1216 = vsel %vm1000, %v1211, %v1215
      %v1218 = vshrl.u32 %v968, 16
      %v1220 = vrot.slane %v1218, 4
      %v1221 = vshll.u32 %v968, 16
      %v1223 = vrot.slane %v1221, 5
      %v1224 = vor.u32 %v1220, %v1223
      %v1225 = vrot.slane %v1224, 4
      %v1227 = vshll.u32 %v969, 16
      %v1229 = vrot.slane %v1227, 5
      %v1230 = vsel %vm1000, %v1225, %v1229
      %v1231 = vshrl.u32 %v969, 16
      %v1233 = vrot.slane %v1231, 4
      %v1234 = vor.u32 %v1233, %v1229
      %v1235 = vrot.slane %v1234, 4
      %v1237 = vshll.u32 %v991, 16
      %v1239 = vrot.slane %v1237, 5
      %v1240 = vsel %vm1000, %v1235, %v1239
      %v1242 = vshrl.u32 %v970, 16
      %v1244 = vrot.slane %v1242, 4
      %v1245 = vshll.u32 %v970, 16
      %v1247 = vrot.slane %v1245, 5
      %v1248 = vor.u32 %v1244, %v1247
      %v1249 = vrot.slane %v1248, 4
      %v1251 = vshll.u32 %v971, 16
      %v1253 = vrot.slane %v1251, 5
      %v1254 = vsel %vm1000, %v1249, %v1253
      %v1255 = vshrl.u32 %v971, 16
      %v1257 = vrot.slane %v1255, 4
      %v1258 = vor.u32 %v1257, %v1253
      %v1259 = vrot.slane %v1258, 4
      %v1261 = vshll.u32 %v992, 16
      %v1263 = vrot.slane %v1261, 5
      %v1264 = vsel %vm1000, %v1259, %v1263
      %v1266 = vshrl.u32 %v972, 16
      %v1268 = vrot.slane %v1266, 4
      %v1269 = vshll.u32 %v972, 16
      %v1271 = vrot.slane %v1269, 5
      %v1272 = vor.u32 %v1268, %v1271
      %v1273 = vrot.slane %v1272, 4
      %v1275 = vshll.u32 %v973, 16
      %v1277 = vrot.slane %v1275, 5
      %v1278 = vsel %vm1000, %v1273, %v1277
      %v1279 = vshrl.u32 %v973, 16
      %v1281 = vrot.slane %v1279, 4
      %v1282 = vor.u32 %v1281, %v1277
      %v1283 = vrot.slane %v1282, 4
      %v1285 = vshll.u32 %v993, 16
      %v1287 = vrot.slane %v1285, 5
      %v1288 = vsel %vm1000, %v1283, %v1287
      %v1290 = vshrl.u32 %v974, 16
      %v1292 = vrot.slane %v1290, 4
      %v1293 = vshll.u32 %v974, 16
      %v1295 = vrot.slane %v1293, 5
      %v1296 = vor.u32 %v1292, %v1295
      %v1297 = vrot.slane %v1296, 4
      %v1299 = vshll.u32 %v975, 16
      %v1301 = vrot.slane %v1299, 5
      %v1302 = vsel %vm1000, %v1297, %v1301
      %v1303 = vshrl.u32 %v975, 16
      %v1305 = vrot.slane %v1303, 4
      %v1306 = vor.u32 %v1305, %v1301
      %v1307 = vrot.slane %v1306, 4
      %v1309 = vshll.u32 %v994, 16
      %v1311 = vrot.slane %v1309, 5
      %v1312 = vsel %vm1000, %v1307, %v1311
      %v1314 = vshrl.u32 %v976, 16
      %v1316 = vrot.slane %v1314, 4
      %v1317 = vshll.u32 %v976, 16
      %v1319 = vrot.slane %v1317, 5
      %v1320 = vor.u32 %v1316, %v1319
      %v1321 = vrot.slane %v1320, 4
      %v1323 = vshll.u32 %v977, 16
      %v1325 = vrot.slane %v1323, 5
      %v1326 = vsel %vm1000, %v1321, %v1325
      %v1327 = vshrl.u32 %v977, 16
      %v1329 = vrot.slane %v1327, 4
      %v1330 = vor.u32 %v1329, %v1325
      %v1331 = vrot.slane %v1330, 4
      %v1333 = vshll.u32 %v995, 16
      %v1335 = vrot.slane %v1333, 5
      %v1336 = vsel %vm1000, %v1331, %v1335
      %v1338 = vshrl.u32 %v978, 16
      %v1340 = vrot.slane %v1338, 4
      %v1341 = vshll.u32 %v978, 16
      %v1343 = vrot.slane %v1341, 5
      %v1344 = vor.u32 %v1340, %v1343
      %v1345 = vrot.slane %v1344, 4
      %v1347 = vshll.u32 %v979, 16
      %v1349 = vrot.slane %v1347, 5
      %v1350 = vsel %vm1000, %v1345, %v1349
      %v1351 = vshrl.u32 %v979, 16
      %v1353 = vrot.slane %v1351, 4
      %v1354 = vor.u32 %v1353, %v1349
      %v1355 = vrot.slane %v1354, 4
      %v1357 = vshll.u32 %v996, 16
      %v1359 = vrot.slane %v1357, 5
      %v1360 = vsel %vm1000, %v1355, %v1359
      %v1362 = vshrl.u32 %v980, 16
      %v1364 = vrot.slane %v1362, 4
      %v1365 = vshll.u32 %v980, 16
      %v1367 = vrot.slane %v1365, 5
      %v1368 = vor.u32 %v1364, %v1367
      %v1369 = vrot.slane %v1368, 4
      %v1371 = vshll.u32 %v981, 16
      %v1373 = vrot.slane %v1371, 5
      %v1374 = vsel %vm1000, %v1369, %v1373
      %v1375 = vshrl.u32 %v981, 16
      %v1377 = vrot.slane %v1375, 4
      %v1378 = vor.u32 %v1377, %v1373
      %v1379 = vrot.slane %v1378, 4
      %v1381 = vshll.u32 %v997, 16
      %v1383 = vrot.slane %v1381, 5
      %v1384 = vsel %vm1000, %v1379, %v1383
      %v1385 = vld [vmem:[#allocation2] sm:$0xe]
      %v1386 = vld [vmem:[#allocation2 + $0xc] sm:$0xe]
      %v1387 = vld [vmem:[#allocation2 + $0x18] sm:$0xe]
      %v1388 = vld [vmem:[#allocation2 + $0x24] sm:$0xe]
      %v1389 = vld [vmem:[#allocation2 + $0x30] sm:$0xe]
      %v1390 = vld [vmem:[#allocation2 + $0x3c] sm:$0xe]
      %v1391 = vld [vmem:[#allocation2 + $0x48] sm:$0xe]
      %v1392 = vld [vmem:[#allocation2 + $0x54] sm:$0xe]
      %v1393 = vld [vmem:[#allocation2 + $0x60] sm:$0xe]
      %v1394 = vld [vmem:[#allocation2 + $0x6c] sm:$0xe]
      %v1395 = vld [vmem:[#allocation2 + $0x78] sm:$0xe]
      %v1396 = vld [vmem:[#allocation2 + $0x84] sm:$0xe]
      %v1397 = vld [vmem:[#allocation2 + $0x90] sm:$0xe]
      %v1398 = vld [vmem:[#allocation2 + $0x9c] sm:$0xe]
      %v1399 = vld [vmem:[#allocation2 + $0xa8] sm:$0xe]
      %v1400 = vld [vmem:[#allocation2 + $0xb4] sm:$0xe]
      %vm1449 = vcmask 1042432
      %vm1450 = vcmask 1046532
      %vm1451 = vmor %vm1449, %vm1450
      %v1452 = vrot.slane %v1385, 5
      %v1453 = vrot.slane %v1452, 4
      %v1454 = vrot.slane %v951, 5
      %v1455 = vsel %vm1451, %v1453, %v1454
      %v1456 = vrot.slane %v1454, 4
      %v1457 = vrot.slane %v982, 5
      %v1458 = vsel %vm1451, %v1456, %v1457
      %v1459 = vrot.slane %v1386, 5
      %v1460 = vrot.slane %v1459, 4
      %v1461 = vrot.slane %v953, 5
      %v1462 = vsel %vm1451, %v1460, %v1461
      %v1463 = vrot.slane %v1461, 4
      %v1464 = vrot.slane %v983, 5
      %v1465 = vsel %vm1451, %v1463, %v1464
      %v1466 = vrot.slane %v1387, 5
      %v1467 = vrot.slane %v1466, 4
      %v1468 = vrot.slane %v955, 5
      %v1469 = vsel %vm1451, %v1467, %v1468
      %v1470 = vrot.slane %v1468, 4
      %v1471 = vrot.slane %v984, 5
      %v1472 = vsel %vm1451, %v1470, %v1471
      %v1473 = vrot.slane %v1388, 5
      %v1474 = vrot.slane %v1473, 4
      %v1475 = vrot.slane %v957, 5
      %v1476 = vsel %vm1451, %v1474, %v1475
      %v1477 = vrot.slane %v1475, 4
      %v1478 = vrot.slane %v985, 5
      %v1479 = vsel %vm1451, %v1477, %v1478
      %v1480 = vrot.slane %v1389, 5
      %v1481 = vrot.slane %v1480, 4
      %v1482 = vrot.slane %v959, 5
      %v1483 = vsel %vm1451, %v1481, %v1482
      %v1484 = vrot.slane %v1482, 4
      %v1485 = vrot.slane %v986, 5
      %v1486 = vsel %vm1451, %v1484, %v1485
      %v1487 = vrot.slane %v1390, 5
      %v1488 = vrot.slane %v1487, 4
      %v1489 = vrot.slane %v961, 5
      %v1490 = vsel %vm1451, %v1488, %v1489
      %v1491 = vrot.slane %v1489, 4
      %v1492 = vrot.slane %v987, 5
      %v1493 = vsel %vm1451, %v1491, %v1492
      %v1494 = vrot.slane %v1391, 5
      %v1495 = vrot.slane %v1494, 4
      %v1496 = vrot.slane %v963, 5
      %v1497 = vsel %vm1451, %v1495, %v1496
      %v1498 = vrot.slane %v1496, 4
      %v1499 = vrot.slane %v988, 5
      %v1500 = vsel %vm1451, %v1498, %v1499
      %v1501 = vrot.slane %v1392, 5
      %v1502 = vrot.slane %v1501, 4
      %v1503 = vrot.slane %v965, 5
      %v1504 = vsel %vm1451, %v1502, %v1503
      %v1505 = vrot.slane %v1503, 4
      %v1506 = vrot.slane %v989, 5
      %v1507 = vsel %vm1451, %v1505, %v1506
      %v1508 = vrot.slane %v1393, 5
      %v1509 = vrot.slane %v1508, 4
      %v1510 = vrot.slane %v967, 5
      %v1511 = vsel %vm1451, %v1509, %v1510
      %v1512 = vrot.slane %v1510, 4
      %v1513 = vrot.slane %v990, 5
      %v1514 = vsel %vm1451, %v1512, %v1513
      %v1515 = vrot.slane %v1394, 5
      %v1516 = vrot.slane %v1515, 4
      %v1517 = vrot.slane %v969, 5
      %v1518 = vsel %vm1451, %v1516, %v1517
      %v1519 = vrot.slane %v1517, 4
      %v1520 = vrot.slane %v991, 5
      %v1521 = vsel %vm1451, %v1519, %v1520
      %v1522 = vrot.slane %v1395, 5
      %v1523 = vrot.slane %v1522, 4
      %v1524 = vrot.slane %v971, 5
      %v1525 = vsel %vm1451, %v1523, %v1524
      %v1526 = vrot.slane %v1524, 4
      %v1527 = vrot.slane %v992, 5
      %v1528 = vsel %vm1451, %v1526, %v1527
      %v1529 = vrot.slane %v1396, 5
      %v1530 = vrot.slane %v1529, 4
      %v1531 = vrot.slane %v973, 5
      %v1532 = vsel %vm1451, %v1530, %v1531
      %v1533 = vrot.slane %v1531, 4
      %v1534 = vrot.slane %v993, 5
      %v1535 = vsel %vm1451, %v1533, %v1534
      %v1536 = vrot.slane %v1397, 5
      %v1537 = vrot.slane %v1536, 4
      %v1538 = vrot.slane %v975, 5
      %v1539 = vsel %vm1451, %v1537, %v1538
      %v1540 = vrot.slane %v1538, 4
      %v1541 = vrot.slane %v994, 5
      %v1542 = vsel %vm1451, %v1540, %v1541
      %v1543 = vrot.slane %v1398, 5
      %v1544 = vrot.slane %v1543, 4
      %v1545 = vrot.slane %v977, 5
      %v1546 = vsel %vm1451, %v1544, %v1545
      %v1547 = vrot.slane %v1545, 4
      %v1548 = vrot.slane %v995, 5
      %v1549 = vsel %vm1451, %v1547, %v1548
      %v1550 = vrot.slane %v1399, 5
      %v1551 = vrot.slane %v1550, 4
      %v1552 = vrot.slane %v979, 5
      %v1553 = vsel %vm1451, %v1551, %v1552
      %v1554 = vrot.slane %v1552, 4
      %v1555 = vrot.slane %v996, 5
      %v1556 = vsel %vm1451, %v1554, %v1555
      %v1557 = vrot.slane %v1400, 5
      %v1558 = vrot.slane %v1557, 4
      %v1559 = vrot.slane %v981, 5
      %v1560 = vsel %vm1451, %v1558, %v1559
      %v1561 = vrot.slane %v1559, 4
      %v1562 = vrot.slane %v997, 5
      %v1563 = vsel %vm1451, %v1561, %v1562
      %v1580 = vunpack.c.l.b16 %v950
      %v1581 = vunpack.c.l.b16 %v951
      %v1582 = vunpack.c.l.b16 %v952
      %v1583 = vunpack.c.l.b16 %v953
      %v1584 = vunpack.c.l.b16 %v954
      %v1585 = vunpack.c.l.b16 %v955
      %v1586 = vunpack.c.l.b16 %v956
      %v1587 = vunpack.c.l.b16 %v957
      %v1588 = vunpack.c.l.b16 %v958
      %v1589 = vunpack.c.l.b16 %v959
      %v1590 = vunpack.c.l.b16 %v960
      %v1591 = vunpack.c.l.b16 %v961
      %v1592 = vunpack.c.l.b16 %v962
      %v1593 = vunpack.c.l.b16 %v963
      %v1594 = vunpack.c.l.b16 %v964
      %v1595 = vunpack.c.l.b16 %v965
      %v1596 = vunpack.c.l.b16 %v966
      %v1597 = vunpack.c.l.b16 %v967
      %v1598 = vunpack.c.l.b16 %v968
      %v1599 = vunpack.c.l.b16 %v969
      %v1600 = vunpack.c.l.b16 %v970
      %v1601 = vunpack.c.l.b16 %v971
      %v1602 = vunpack.c.l.b16 %v972
      %v1603 = vunpack.c.l.b16 %v973
      %v1604 = vunpack.c.l.b16 %v974
      %v1605 = vunpack.c.l.b16 %v975
      %v1606 = vunpack.c.l.b16 %v976
      %v1607 = vunpack.c.l.b16 %v977
      %v1608 = vunpack.c.l.b16 %v978
      %v1609 = vunpack.c.l.b16 %v979
      %v1610 = vunpack.c.l.b16 %v980
      %v1611 = vunpack.c.l.b16 %v981
      %v1612 = vpack.c.b16 %v1581, %v1580
      %v1613 = vpack.c.b16 %v1583, %v1582
      %v1614 = vpack.c.b16 %v1585, %v1584
      %v1615 = vpack.c.b16 %v1587, %v1586
      %v1616 = vpack.c.b16 %v1589, %v1588
      %v1617 = vpack.c.b16 %v1591, %v1590
      %v1618 = vpack.c.b16 %v1593, %v1592
      %v1619 = vpack.c.b16 %v1595, %v1594
      %v1620 = vpack.c.b16 %v1597, %v1596
      %v1621 = vpack.c.b16 %v1599, %v1598
      %v1622 = vpack.c.b16 %v1601, %v1600
      %v1623 = vpack.c.b16 %v1603, %v1602
      %v1624 = vpack.c.b16 %v1605, %v1604
      %v1625 = vpack.c.b16 %v1607, %v1606
      %v1626 = vpack.c.b16 %v1609, %v1608
      %v1627 = vpack.c.b16 %v1611, %v1610
      %v1644 = vunpack.c.l.b16 %v1014
      %v1645 = vunpack.c.l.b16 %v1024
      %v1646 = vunpack.c.l.b16 %v1038
      %v1647 = vunpack.c.l.b16 %v1048
      %v1648 = vunpack.c.l.b16 %v1062
      %v1649 = vunpack.c.l.b16 %v1072
      %v1650 = vunpack.c.l.b16 %v1086
      %v1651 = vunpack.c.l.b16 %v1096
      %v1652 = vunpack.c.l.b16 %v1110
      %v1653 = vunpack.c.l.b16 %v1120
      %v1654 = vunpack.c.l.b16 %v1134
      %v1655 = vunpack.c.l.b16 %v1144
      %v1656 = vunpack.c.l.b16 %v1158
      %v1657 = vunpack.c.l.b16 %v1168
      %v1658 = vunpack.c.l.b16 %v1182
      %v1659 = vunpack.c.l.b16 %v1192
      %v1660 = vunpack.c.l.b16 %v1206
      %v1661 = vunpack.c.l.b16 %v1216
      %v1662 = vunpack.c.l.b16 %v1230
      %v1663 = vunpack.c.l.b16 %v1240
      %v1664 = vunpack.c.l.b16 %v1254
      %v1665 = vunpack.c.l.b16 %v1264
      %v1666 = vunpack.c.l.b16 %v1278
      %v1667 = vunpack.c.l.b16 %v1288
      %v1668 = vunpack.c.l.b16 %v1302
      %v1669 = vunpack.c.l.b16 %v1312
      %v1670 = vunpack.c.l.b16 %v1326
      %v1671 = vunpack.c.l.b16 %v1336
      %v1672 = vunpack.c.l.b16 %v1350
      %v1673 = vunpack.c.l.b16 %v1360
      %v1674 = vunpack.c.l.b16 %v1374
      %v1675 = vunpack.c.l.b16 %v1384
      %v1676 = vpack.c.b16 %v1645, %v1644
      %v1677 = vpack.c.b16 %v1647, %v1646
      %v1678 = vpack.c.b16 %v1649, %v1648
      %v1679 = vpack.c.b16 %v1651, %v1650
      %v1680 = vpack.c.b16 %v1653, %v1652
      %v1681 = vpack.c.b16 %v1655, %v1654
      %v1682 = vpack.c.b16 %v1657, %v1656
      %v1683 = vpack.c.b16 %v1659, %v1658
      %v1684 = vpack.c.b16 %v1661, %v1660
      %v1685 = vpack.c.b16 %v1663, %v1662
      %v1686 = vpack.c.b16 %v1665, %v1664
      %v1687 = vpack.c.b16 %v1667, %v1666
      %v1688 = vpack.c.b16 %v1669, %v1668
      %v1689 = vpack.c.b16 %v1671, %v1670
      %v1690 = vpack.c.b16 %v1673, %v1672
      %v1691 = vpack.c.b16 %v1675, %v1674
      %v1708 = vunpack.c.l.b16 %v1455
      %v1709 = vunpack.c.l.b16 %v1458
      %v1710 = vunpack.c.l.b16 %v1462
      %v1711 = vunpack.c.l.b16 %v1465
      %v1712 = vunpack.c.l.b16 %v1469
      %v1713 = vunpack.c.l.b16 %v1472
      %v1714 = vunpack.c.l.b16 %v1476
      %v1715 = vunpack.c.l.b16 %v1479
      %v1716 = vunpack.c.l.b16 %v1483
      %v1717 = vunpack.c.l.b16 %v1486
      %v1718 = vunpack.c.l.b16 %v1490
      %v1719 = vunpack.c.l.b16 %v1493
      %v1720 = vunpack.c.l.b16 %v1497
      %v1721 = vunpack.c.l.b16 %v1500
      %v1722 = vunpack.c.l.b16 %v1504
      %v1723 = vunpack.c.l.b16 %v1507
      %v1724 = vunpack.c.l.b16 %v1511
      %v1725 = vunpack.c.l.b16 %v1514
      %v1726 = vunpack.c.l.b16 %v1518
      %v1727 = vunpack.c.l.b16 %v1521
      %v1728 = vunpack.c.l.b16 %v1525
      %v1729 = vunpack.c.l.b16 %v1528
      %v1730 = vunpack.c.l.b16 %v1532
      %v1731 = vunpack.c.l.b16 %v1535
      %v1732 = vunpack.c.l.b16 %v1539
      %v1733 = vunpack.c.l.b16 %v1542
      %v1734 = vunpack.c.l.b16 %v1546
      %v1735 = vunpack.c.l.b16 %v1549
      %v1736 = vunpack.c.l.b16 %v1553
      %v1737 = vunpack.c.l.b16 %v1556
      %v1738 = vunpack.c.l.b16 %v1560
      %v1739 = vunpack.c.l.b16 %v1563
      %v1740 = vpack.c.b16 %v1709, %v1708
      %v1741 = vpack.c.b16 %v1711, %v1710
      %v1742 = vpack.c.b16 %v1713, %v1712
      %v1743 = vpack.c.b16 %v1715, %v1714
      %v1744 = vpack.c.b16 %v1717, %v1716
      %v1745 = vpack.c.b16 %v1719, %v1718
      %v1746 = vpack.c.b16 %v1721, %v1720
      %v1747 = vpack.c.b16 %v1723, %v1722
      %v1748 = vpack.c.b16 %v1725, %v1724
      %v1749 = vpack.c.b16 %v1727, %v1726
      %v1750 = vpack.c.b16 %v1729, %v1728
      %v1751 = vpack.c.b16 %v1731, %v1730
      %v1752 = vpack.c.b16 %v1733, %v1732
      %v1753 = vpack.c.b16 %v1735, %v1734
      %v1754 = vpack.c.b16 %v1737, %v1736
      %v1755 = vpack.c.b16 %v1739, %v1738
      %v1772 = vld [vmem:[%s3] sm:$0xf]
      %v1773 = vld [vmem:[%s3 + $0x4] sm:$0xf]
      %v1774 = vld [vmem:[%s3 + $0x8] sm:$0xf]
      %v1775 = vld [vmem:[%s3 + $0xc] sm:$0xf]
      %v1776 = vld [vmem:[%s3 + $0x10] sm:$0xf]
      %v1777 = vld [vmem:[%s3 + $0x14] sm:$0xf]
      %v1778 = vld [vmem:[%s3 + $0x18] sm:$0xf]
      %v1779 = vld [vmem:[%s3 + $0x1c] sm:$0xf]
      %v1780 = vld [vmem:[%s3 + $0x20] sm:$0xf]
      %v1781 = vld [vmem:[%s3 + $0x24] sm:$0xf]
      %v1782 = vld [vmem:[%s3 + $0x28] sm:$0xf]
      %v1783 = vld [vmem:[%s3 + $0x2c] sm:$0xf]
      %v1784 = vld [vmem:[%s3 + $0x30] sm:$0xf]
      %v1785 = vld [vmem:[%s3 + $0x34] sm:$0xf]
      %v1786 = vld [vmem:[%s3 + $0x38] sm:$0xf]
      %v1787 = vld [vmem:[%s3 + $0x3c] sm:$0xf]
      %v1788 = vld [vmem:[%s3 + $0x40] sm:$0xf]
      %v1789 = vld [vmem:[%s3 + $0x44] sm:$0xf]
      %v1790 = vld [vmem:[%s3 + $0x48] sm:$0xf]
      %v1791 = vld [vmem:[%s3 + $0x4c] sm:$0xf]
      %v1792 = vld [vmem:[%s3 + $0x50] sm:$0xf]
      %v1793 = vld [vmem:[%s3 + $0x54] sm:$0xf]
      %v1794 = vld [vmem:[%s3 + $0x58] sm:$0xf]
      %v1795 = vld [vmem:[%s3 + $0x5c] sm:$0xf]
      %v1796 = vld [vmem:[%s3 + $0x60] sm:$0xf]
      %v1797 = vld [vmem:[%s3 + $0x64] sm:$0xf]
      %v1798 = vld [vmem:[%s3 + $0x68] sm:$0xf]
      %v1799 = vld [vmem:[%s3 + $0x6c] sm:$0xf]
      %v1800 = vld [vmem:[%s3 + $0x70] sm:$0xf]
      %v1801 = vld [vmem:[%s3 + $0x74] sm:$0xf]
      %v1802 = vld [vmem:[%s3 + $0x78] sm:$0xf]
      %v1803 = vld [vmem:[%s3 + $0x7c] sm:$0xf]
      %v1804 = vld [vmem:[%s3 + $0x80] sm:$0xf]
      %v1805 = vld [vmem:[%s3 + $0x84] sm:$0xf]
      %v1806 = vld [vmem:[%s3 + $0x88] sm:$0xf]
      %v1807 = vld [vmem:[%s3 + $0x8c] sm:$0xf]
      %v1808 = vld [vmem:[%s3 + $0x90] sm:$0xf]
      %v1809 = vld [vmem:[%s3 + $0x94] sm:$0xf]
      %v1810 = vld [vmem:[%s3 + $0x98] sm:$0xf]
      %v1811 = vld [vmem:[%s3 + $0x9c] sm:$0xf]
      %v1812 = vld [vmem:[%s3 + $0xa0] sm:$0xf]
      %v1813 = vld [vmem:[%s3 + $0xa4] sm:$0xf]
      %v1814 = vld [vmem:[%s3 + $0xa8] sm:$0xf]
      %v1815 = vld [vmem:[%s3 + $0xac] sm:$0xf]
      %v1816 = vld [vmem:[%s3 + $0xb0] sm:$0xf]
      %v1817 = vld [vmem:[%s3 + $0xb4] sm:$0xf]
      %v1818 = vld [vmem:[%s3 + $0xb8] sm:$0xf]
      %v1819 = vld [vmem:[%s3 + $0xbc] sm:$0xf]
      %v1820 = vld [vmem:[%s728] sm:$0xf]
      %v1821 = vld [vmem:[%s728 + $0x4] sm:$0xf]
      %v1822 = vld [vmem:[%s728 + $0xc] sm:$0xf]
      %v1823 = vld [vmem:[%s728 + $0x10] sm:$0xf]
      %v1824 = vld [vmem:[%s728 + $0x18] sm:$0xf]
      %v1825 = vld [vmem:[%s728 + $0x1c] sm:$0xf]
      %v1826 = vld [vmem:[%s728 + $0x24] sm:$0xf]
      %v1827 = vld [vmem:[%s728 + $0x28] sm:$0xf]
      %v1828 = vld [vmem:[%s728 + $0x30] sm:$0xf]
      %v1829 = vld [vmem:[%s728 + $0x34] sm:$0xf]
      %v1830 = vld [vmem:[%s728 + $0x3c] sm:$0xf]
      %v1831 = vld [vmem:[%s728 + $0x40] sm:$0xf]
      %v1832 = vld [vmem:[%s728 + $0x48] sm:$0xf]
      %v1833 = vld [vmem:[%s728 + $0x4c] sm:$0xf]
      %v1834 = vld [vmem:[%s728 + $0x54] sm:$0xf]
      %v1835 = vld [vmem:[%s728 + $0x58] sm:$0xf]
      %v1836 = vld [vmem:[%s728 + $0x60] sm:$0xf]
      %v1837 = vld [vmem:[%s728 + $0x64] sm:$0xf]
      %v1838 = vld [vmem:[%s728 + $0x6c] sm:$0xf]
      %v1839 = vld [vmem:[%s728 + $0x70] sm:$0xf]
      %v1840 = vld [vmem:[%s728 + $0x78] sm:$0xf]
      %v1841 = vld [vmem:[%s728 + $0x7c] sm:$0xf]
      %v1842 = vld [vmem:[%s728 + $0x84] sm:$0xf]
      %v1843 = vld [vmem:[%s728 + $0x88] sm:$0xf]
      %v1844 = vld [vmem:[%s728 + $0x90] sm:$0xf]
      %v1845 = vld [vmem:[%s728 + $0x94] sm:$0xf]
      %v1846 = vld [vmem:[%s728 + $0x9c] sm:$0xf]
      %v1847 = vld [vmem:[%s728 + $0xa0] sm:$0xf]
      %v1848 = vld [vmem:[%s728 + $0xa8] sm:$0xf]
      %v1849 = vld [vmem:[%s728 + $0xac] sm:$0xf]
      %v1850 = vld [vmem:[%s728 + $0xb4] sm:$0xf]
      %v1851 = vld [vmem:[%s728 + $0xb8] sm:$0xf]
      %v1852 = vld [vmem:[%s728 + $0x8] sm:$0x1]
      %v1853 = vld [vmem:[%s728 + $0x14] sm:$0x1]
      %v1854 = vld [vmem:[%s728 + $0x20] sm:$0x1]
      %v1855 = vld [vmem:[%s728 + $0x2c] sm:$0x1]
      %v1856 = vld [vmem:[%s728 + $0x38] sm:$0x1]
      %v1857 = vld [vmem:[%s728 + $0x44] sm:$0x1]
      %v1858 = vld [vmem:[%s728 + $0x50] sm:$0x1]
      %v1859 = vld [vmem:[%s728 + $0x5c] sm:$0x1]
      %v1860 = vld [vmem:[%s728 + $0x68] sm:$0x1]
      %v1861 = vld [vmem:[%s728 + $0x74] sm:$0x1]
      %v1862 = vld [vmem:[%s728 + $0x80] sm:$0x1]
      %v1863 = vld [vmem:[%s728 + $0x8c] sm:$0x1]
      %v1864 = vld [vmem:[%s728 + $0x98] sm:$0x1]
      %v1865 = vld [vmem:[%s728 + $0xa4] sm:$0x1]
      %v1866 = vld [vmem:[%s728 + $0xb0] sm:$0x1]
      %v1867 = vld [vmem:[%s728 + $0xbc] sm:$0x1]
      %v1869 = vshrl.u32 %v1820, 16
      %v1871 = vrot.slane %v1869, 4
      %v1872 = vshll.u32 %v1820, 16
      %v1874 = vrot.slane %v1872, 5
      %v1875 = vor.u32 %v1871, %v1874
      %v1876 = vrot.slane %v1875, 4
      %v1878 = vshll.u32 %v1821, 16
      %v1880 = vrot.slane %v1878, 5
      %v1881 = vsel %vm1000, %v1876, %v1880
      %v1882 = vshrl.u32 %v1821, 16
      %v1884 = vrot.slane %v1882, 4
      %v1885 = vor.u32 %v1884, %v1880
      %v1886 = vrot.slane %v1885, 4
      %v1888 = vshll.u32 %v1852, 16
      %v1890 = vrot.slane %v1888, 5
      %v1891 = vsel %vm1000, %v1886, %v1890
      %v1893 = vshrl.u32 %v1822, 16
      %v1895 = vrot.slane %v1893, 4
      %v1896 = vshll.u32 %v1822, 16
      %v1898 = vrot.slane %v1896, 5
      %v1899 = vor.u32 %v1895, %v1898
      %v1900 = vrot.slane %v1899, 4
      %v1902 = vshll.u32 %v1823, 16
      %v1904 = vrot.slane %v1902, 5
      %v1905 = vsel %vm1000, %v1900, %v1904
      %v1906 = vshrl.u32 %v1823, 16
      %v1908 = vrot.slane %v1906, 4
      %v1909 = vor.u32 %v1908, %v1904
      %v1910 = vrot.slane %v1909, 4
      %v1912 = vshll.u32 %v1853, 16
      %v1914 = vrot.slane %v1912, 5
      %v1915 = vsel %vm1000, %v1910, %v1914
      %v1917 = vshrl.u32 %v1824, 16
      %v1919 = vrot.slane %v1917, 4
      %v1920 = vshll.u32 %v1824, 16
      %v1922 = vrot.slane %v1920, 5
      %v1923 = vor.u32 %v1919, %v1922
      %v1924 = vrot.slane %v1923, 4
      %v1926 = vshll.u32 %v1825, 16
      %v1928 = vrot.slane %v1926, 5
      %v1929 = vsel %vm1000, %v1924, %v1928
      %v1930 = vshrl.u32 %v1825, 16
      %v1932 = vrot.slane %v1930, 4
      %v1933 = vor.u32 %v1932, %v1928
      %v1934 = vrot.slane %v1933, 4
      %v1936 = vshll.u32 %v1854, 16
      %v1938 = vrot.slane %v1936, 5
      %v1939 = vsel %vm1000, %v1934, %v1938
      %v1941 = vshrl.u32 %v1826, 16
      %v1943 = vrot.slane %v1941, 4
      %v1944 = vshll.u32 %v1826, 16
      %v1946 = vrot.slane %v1944, 5
      %v1947 = vor.u32 %v1943, %v1946
      %v1948 = vrot.slane %v1947, 4
      %v1950 = vshll.u32 %v1827, 16
      %v1952 = vrot.slane %v1950, 5
      %v1953 = vsel %vm1000, %v1948, %v1952
      %v1954 = vshrl.u32 %v1827, 16
      %v1956 = vrot.slane %v1954, 4
      %v1957 = vor.u32 %v1956, %v1952
      %v1958 = vrot.slane %v1957, 4
      %v1960 = vshll.u32 %v1855, 16
      %v1962 = vrot.slane %v1960, 5
      %v1963 = vsel %vm1000, %v1958, %v1962
      %v1965 = vshrl.u32 %v1828, 16
      %v1967 = vrot.slane %v1965, 4
      %v1968 = vshll.u32 %v1828, 16
      %v1970 = vrot.slane %v1968, 5
      %v1971 = vor.u32 %v1967, %v1970
      %v1972 = vrot.slane %v1971, 4
      %v1974 = vshll.u32 %v1829, 16
      %v1976 = vrot.slane %v1974, 5
      %v1977 = vsel %vm1000, %v1972, %v1976
      %v1978 = vshrl.u32 %v1829, 16
      %v1980 = vrot.slane %v1978, 4
      %v1981 = vor.u32 %v1980, %v1976
      %v1982 = vrot.slane %v1981, 4
      %v1984 = vshll.u32 %v1856, 16
      %v1986 = vrot.slane %v1984, 5
      %v1987 = vsel %vm1000, %v1982, %v1986
      %v1989 = vshrl.u32 %v1830, 16
      %v1991 = vrot.slane %v1989, 4
      %v1992 = vshll.u32 %v1830, 16
      %v1994 = vrot.slane %v1992, 5
      %v1995 = vor.u32 %v1991, %v1994
      %v1996 = vrot.slane %v1995, 4
      %v1998 = vshll.u32 %v1831, 16
      %v2000 = vrot.slane %v1998, 5
      %v2001 = vsel %vm1000, %v1996, %v2000
      %v2002 = vshrl.u32 %v1831, 16
      %v2004 = vrot.slane %v2002, 4
      %v2005 = vor.u32 %v2004, %v2000
      %v2006 = vrot.slane %v2005, 4
      %v2008 = vshll.u32 %v1857, 16
      %v2010 = vrot.slane %v2008, 5
      %v2011 = vsel %vm1000, %v2006, %v2010
      %v2013 = vshrl.u32 %v1832, 16
      %v2015 = vrot.slane %v2013, 4
      %v2016 = vshll.u32 %v1832, 16
      %v2018 = vrot.slane %v2016, 5
      %v2019 = vor.u32 %v2015, %v2018
      %v2020 = vrot.slane %v2019, 4
      %v2022 = vshll.u32 %v1833, 16
      %v2024 = vrot.slane %v2022, 5
      %v2025 = vsel %vm1000, %v2020, %v2024
      %v2026 = vshrl.u32 %v1833, 16
      %v2028 = vrot.slane %v2026, 4
      %v2029 = vor.u32 %v2028, %v2024
      %v2030 = vrot.slane %v2029, 4
      %v2032 = vshll.u32 %v1858, 16
      %v2034 = vrot.slane %v2032, 5
      %v2035 = vsel %vm1000, %v2030, %v2034
      %v2037 = vshrl.u32 %v1834, 16
      %v2039 = vrot.slane %v2037, 4
      %v2040 = vshll.u32 %v1834, 16
      %v2042 = vrot.slane %v2040, 5
      %v2043 = vor.u32 %v2039, %v2042
      %v2044 = vrot.slane %v2043, 4
      %v2046 = vshll.u32 %v1835, 16
      %v2048 = vrot.slane %v2046, 5
      %v2049 = vsel %vm1000, %v2044, %v2048
      %v2050 = vshrl.u32 %v1835, 16
      %v2052 = vrot.slane %v2050, 4
      %v2053 = vor.u32 %v2052, %v2048
      %v2054 = vrot.slane %v2053, 4
      %v2056 = vshll.u32 %v1859, 16
      %v2058 = vrot.slane %v2056, 5
      %v2059 = vsel %vm1000, %v2054, %v2058
      %v2061 = vshrl.u32 %v1836, 16
      %v2063 = vrot.slane %v2061, 4
      %v2064 = vshll.u32 %v1836, 16
      %v2066 = vrot.slane %v2064, 5
      %v2067 = vor.u32 %v2063, %v2066
      %v2068 = vrot.slane %v2067, 4
      %v2070 = vshll.u32 %v1837, 16
      %v2072 = vrot.slane %v2070, 5
      %v2073 = vsel %vm1000, %v2068, %v2072
      %v2074 = vshrl.u32 %v1837, 16
      %v2076 = vrot.slane %v2074, 4
      %v2077 = vor.u32 %v2076, %v2072
      %v2078 = vrot.slane %v2077, 4
      %v2080 = vshll.u32 %v1860, 16
      %v2082 = vrot.slane %v2080, 5
      %v2083 = vsel %vm1000, %v2078, %v2082
      %v2085 = vshrl.u32 %v1838, 16
      %v2087 = vrot.slane %v2085, 4
      %v2088 = vshll.u32 %v1838, 16
      %v2090 = vrot.slane %v2088, 5
      %v2091 = vor.u32 %v2087, %v2090
      %v2092 = vrot.slane %v2091, 4
      %v2094 = vshll.u32 %v1839, 16
      %v2096 = vrot.slane %v2094, 5
      %v2097 = vsel %vm1000, %v2092, %v2096
      %v2098 = vshrl.u32 %v1839, 16
      %v2100 = vrot.slane %v2098, 4
      %v2101 = vor.u32 %v2100, %v2096
      %v2102 = vrot.slane %v2101, 4
      %v2104 = vshll.u32 %v1861, 16
      %v2106 = vrot.slane %v2104, 5
      %v2107 = vsel %vm1000, %v2102, %v2106
      %v2109 = vshrl.u32 %v1840, 16
      %v2111 = vrot.slane %v2109, 4
      %v2112 = vshll.u32 %v1840, 16
      %v2114 = vrot.slane %v2112, 5
      %v2115 = vor.u32 %v2111, %v2114
      %v2116 = vrot.slane %v2115, 4
      %v2118 = vshll.u32 %v1841, 16
      %v2120 = vrot.slane %v2118, 5
      %v2121 = vsel %vm1000, %v2116, %v2120
      %v2122 = vshrl.u32 %v1841, 16
      %v2124 = vrot.slane %v2122, 4
      %v2125 = vor.u32 %v2124, %v2120
      %v2126 = vrot.slane %v2125, 4
      %v2128 = vshll.u32 %v1862, 16
      %v2130 = vrot.slane %v2128, 5
      %v2131 = vsel %vm1000, %v2126, %v2130
      %v2133 = vshrl.u32 %v1842, 16
      %v2135 = vrot.slane %v2133, 4
      %v2136 = vshll.u32 %v1842, 16
      %v2138 = vrot.slane %v2136, 5
      %v2139 = vor.u32 %v2135, %v2138
      %v2140 = vrot.slane %v2139, 4
      %v2142 = vshll.u32 %v1843, 16
      %v2144 = vrot.slane %v2142, 5
      %v2145 = vsel %vm1000, %v2140, %v2144
      %v2146 = vshrl.u32 %v1843, 16
      %v2148 = vrot.slane %v2146, 4
      %v2149 = vor.u32 %v2148, %v2144
      %v2150 = vrot.slane %v2149, 4
      %v2152 = vshll.u32 %v1863, 16
      %v2154 = vrot.slane %v2152, 5
      %v2155 = vsel %vm1000, %v2150, %v2154
      %v2157 = vshrl.u32 %v1844, 16
      %v2159 = vrot.slane %v2157, 4
      %v2160 = vshll.u32 %v1844, 16
      %v2162 = vrot.slane %v2160, 5
      %v2163 = vor.u32 %v2159, %v2162
      %v2164 = vrot.slane %v2163, 4
      %v2166 = vshll.u32 %v1845, 16
      %v2168 = vrot.slane %v2166, 5
      %v2169 = vsel %vm1000, %v2164, %v2168
      %v2170 = vshrl.u32 %v1845, 16
      %v2172 = vrot.slane %v2170, 4
      %v2173 = vor.u32 %v2172, %v2168
      %v2174 = vrot.slane %v2173, 4
      %v2176 = vshll.u32 %v1864, 16
      %v2178 = vrot.slane %v2176, 5
      %v2179 = vsel %vm1000, %v2174, %v2178
      %v2181 = vshrl.u32 %v1846, 16
      %v2183 = vrot.slane %v2181, 4
      %v2184 = vshll.u32 %v1846, 16
      %v2186 = vrot.slane %v2184, 5
      %v2187 = vor.u32 %v2183, %v2186
      %v2188 = vrot.slane %v2187, 4
      %v2190 = vshll.u32 %v1847, 16
      %v2192 = vrot.slane %v2190, 5
      %v2193 = vsel %vm1000, %v2188, %v2192
      %v2194 = vshrl.u32 %v1847, 16
      %v2196 = vrot.slane %v2194, 4
      %v2197 = vor.u32 %v2196, %v2192
      %v2198 = vrot.slane %v2197, 4
      %v2200 = vshll.u32 %v1865, 16
      %v2202 = vrot.slane %v2200, 5
      %v2203 = vsel %vm1000, %v2198, %v2202
      %v2205 = vshrl.u32 %v1848, 16
      %v2207 = vrot.slane %v2205, 4
      %v2208 = vshll.u32 %v1848, 16
      %v2210 = vrot.slane %v2208, 5
      %v2211 = vor.u32 %v2207, %v2210
      %v2212 = vrot.slane %v2211, 4
      %v2214 = vshll.u32 %v1849, 16
      %v2216 = vrot.slane %v2214, 5
      %v2217 = vsel %vm1000, %v2212, %v2216
      %v2218 = vshrl.u32 %v1849, 16
      %v2220 = vrot.slane %v2218, 4
      %v2221 = vor.u32 %v2220, %v2216
      %v2222 = vrot.slane %v2221, 4
      %v2224 = vshll.u32 %v1866, 16
      %v2226 = vrot.slane %v2224, 5
      %v2227 = vsel %vm1000, %v2222, %v2226
      %v2229 = vshrl.u32 %v1850, 16
      %v2231 = vrot.slane %v2229, 4
      %v2232 = vshll.u32 %v1850, 16
      %v2234 = vrot.slane %v2232, 5
      %v2235 = vor.u32 %v2231, %v2234
      %v2236 = vrot.slane %v2235, 4
      %v2238 = vshll.u32 %v1851, 16
      %v2240 = vrot.slane %v2238, 5
      %v2241 = vsel %vm1000, %v2236, %v2240
      %v2242 = vshrl.u32 %v1851, 16
      %v2244 = vrot.slane %v2242, 4
      %v2245 = vor.u32 %v2244, %v2240
      %v2246 = vrot.slane %v2245, 4
      %v2248 = vshll.u32 %v1867, 16
      %v2250 = vrot.slane %v2248, 5
      %v2251 = vsel %vm1000, %v2246, %v2250
      %v2252 = vld [vmem:[%s728] sm:$0xe]
      %v2253 = vld [vmem:[%s728 + $0xc] sm:$0xe]
      %v2254 = vld [vmem:[%s728 + $0x18] sm:$0xe]
      %v2255 = vld [vmem:[%s728 + $0x24] sm:$0xe]
      %v2256 = vld [vmem:[%s728 + $0x30] sm:$0xe]
      %v2257 = vld [vmem:[%s728 + $0x3c] sm:$0xe]
      %v2258 = vld [vmem:[%s728 + $0x48] sm:$0xe]
      %v2259 = vld [vmem:[%s728 + $0x54] sm:$0xe]
      %v2260 = vld [vmem:[%s728 + $0x60] sm:$0xe]
      %v2261 = vld [vmem:[%s728 + $0x6c] sm:$0xe]
      %v2262 = vld [vmem:[%s728 + $0x78] sm:$0xe]
      %v2263 = vld [vmem:[%s728 + $0x84] sm:$0xe]
      %v2264 = vld [vmem:[%s728 + $0x90] sm:$0xe]
      %v2265 = vld [vmem:[%s728 + $0x9c] sm:$0xe]
      %v2266 = vld [vmem:[%s728 + $0xa8] sm:$0xe]
      %v2267 = vld [vmem:[%s728 + $0xb4] sm:$0xe]
      %v2316 = vrot.slane %v2252, 5
      %v2317 = vrot.slane %v2316, 4
      %v2318 = vrot.slane %v1821, 5
      %v2319 = vsel %vm1451, %v2317, %v2318
      %v2320 = vrot.slane %v2318, 4
      %v2321 = vrot.slane %v1852, 5
      %v2322 = vsel %vm1451, %v2320, %v2321
      %v2323 = vrot.slane %v2253, 5
      %v2324 = vrot.slane %v2323, 4
      %v2325 = vrot.slane %v1823, 5
      %v2326 = vsel %vm1451, %v2324, %v2325
      %v2327 = vrot.slane %v2325, 4
      %v2328 = vrot.slane %v1853, 5
      %v2329 = vsel %vm1451, %v2327, %v2328
      %v2330 = vrot.slane %v2254, 5
      %v2331 = vrot.slane %v2330, 4
      %v2332 = vrot.slane %v1825, 5
      %v2333 = vsel %vm1451, %v2331, %v2332
      %v2334 = vrot.slane %v2332, 4
      %v2335 = vrot.slane %v1854, 5
      %v2336 = vsel %vm1451, %v2334, %v2335
      %v2337 = vrot.slane %v2255, 5
      %v2338 = vrot.slane %v2337, 4
      %v2339 = vrot.slane %v1827, 5
      %v2340 = vsel %vm1451, %v2338, %v2339
      %v2341 = vrot.slane %v2339, 4
      %v2342 = vrot.slane %v1855, 5
      %v2343 = vsel %vm1451, %v2341, %v2342
      %v2344 = vrot.slane %v2256, 5
      %v2345 = vrot.slane %v2344, 4
      %v2346 = vrot.slane %v1829, 5
      %v2347 = vsel %vm1451, %v2345, %v2346
      %v2348 = vrot.slane %v2346, 4
      %v2349 = vrot.slane %v1856, 5
      %v2350 = vsel %vm1451, %v2348, %v2349
      %v2351 = vrot.slane %v2257, 5
      %v2352 = vrot.slane %v2351, 4
      %v2353 = vrot.slane %v1831, 5
      %v2354 = vsel %vm1451, %v2352, %v2353
      %v2355 = vrot.slane %v2353, 4
      %v2356 = vrot.slane %v1857, 5
      %v2357 = vsel %vm1451, %v2355, %v2356
      %v2358 = vrot.slane %v2258, 5
      %v2359 = vrot.slane %v2358, 4
      %v2360 = vrot.slane %v1833, 5
      %v2361 = vsel %vm1451, %v2359, %v2360
      %v2362 = vrot.slane %v2360, 4
      %v2363 = vrot.slane %v1858, 5
      %v2364 = vsel %vm1451, %v2362, %v2363
      %v2365 = vrot.slane %v2259, 5
      %v2366 = vrot.slane %v2365, 4
      %v2367 = vrot.slane %v1835, 5
      %v2368 = vsel %vm1451, %v2366, %v2367
      %v2369 = vrot.slane %v2367, 4
      %v2370 = vrot.slane %v1859, 5
      %v2371 = vsel %vm1451, %v2369, %v2370
      %v2372 = vrot.slane %v2260, 5
      %v2373 = vrot.slane %v2372, 4
      %v2374 = vrot.slane %v1837, 5
      %v2375 = vsel %vm1451, %v2373, %v2374
      %v2376 = vrot.slane %v2374, 4
      %v2377 = vrot.slane %v1860, 5
      %v2378 = vsel %vm1451, %v2376, %v2377
      %v2379 = vrot.slane %v2261, 5
      %v2380 = vrot.slane %v2379, 4
      %v2381 = vrot.slane %v1839, 5
      %v2382 = vsel %vm1451, %v2380, %v2381
      %v2383 = vrot.slane %v2381, 4
      %v2384 = vrot.slane %v1861, 5
      %v2385 = vsel %vm1451, %v2383, %v2384
      %v2386 = vrot.slane %v2262, 5
      %v2387 = vrot.slane %v2386, 4
      %v2388 = vrot.slane %v1841, 5
      %v2389 = vsel %vm1451, %v2387, %v2388
      %v2390 = vrot.slane %v2388, 4
      %v2391 = vrot.slane %v1862, 5
      %v2392 = vsel %vm1451, %v2390, %v2391
      %v2393 = vrot.slane %v2263, 5
      %v2394 = vrot.slane %v2393, 4
      %v2395 = vrot.slane %v1843, 5
      %v2396 = vsel %vm1451, %v2394, %v2395
      %v2397 = vrot.slane %v2395, 4
      %v2398 = vrot.slane %v1863, 5
      %v2399 = vsel %vm1451, %v2397, %v2398
      %v2400 = vrot.slane %v2264, 5
      %v2401 = vrot.slane %v2400, 4
      %v2402 = vrot.slane %v1845, 5
      %v2403 = vsel %vm1451, %v2401, %v2402
      %v2404 = vrot.slane %v2402, 4
      %v2405 = vrot.slane %v1864, 5
      %v2406 = vsel %vm1451, %v2404, %v2405
      %v2407 = vrot.slane %v2265, 5
      %v2408 = vrot.slane %v2407, 4
      %v2409 = vrot.slane %v1847, 5
      %v2410 = vsel %vm1451, %v2408, %v2409
      %v2411 = vrot.slane %v2409, 4
      %v2412 = vrot.slane %v1865, 5
      %v2413 = vsel %vm1451, %v2411, %v2412
      %v2414 = vrot.slane %v2266, 5
      %v2415 = vrot.slane %v2414, 4
      %v2416 = vrot.slane %v1849, 5
      %v2417 = vsel %vm1451, %v2415, %v2416
      %v2418 = vrot.slane %v2416, 4
      %v2419 = vrot.slane %v1866, 5
      %v2420 = vsel %vm1451, %v2418, %v2419
      %v2421 = vrot.slane %v2267, 5
      %v2422 = vrot.slane %v2421, 4
      %v2423 = vrot.slane %v1851, 5
      %v2424 = vsel %vm1451, %v2422, %v2423
      %v2425 = vrot.slane %v2423, 4
      %v2426 = vrot.slane %v1867, 5
      %v2427 = vsel %vm1451, %v2425, %v2426
      %v2444 = vunpack.c.l.b16 %v1820
      %v2445 = vunpack.c.l.b16 %v1821
      %v2446 = vunpack.c.l.b16 %v1822
      %v2447 = vunpack.c.l.b16 %v1823
      %v2448 = vunpack.c.l.b16 %v1824
      %v2449 = vunpack.c.l.b16 %v1825
      %v2450 = vunpack.c.l.b16 %v1826
      %v2451 = vunpack.c.l.b16 %v1827
      %v2452 = vunpack.c.l.b16 %v1828
      %v2453 = vunpack.c.l.b16 %v1829
      %v2454 = vunpack.c.l.b16 %v1830
      %v2455 = vunpack.c.l.b16 %v1831
      %v2456 = vunpack.c.l.b16 %v1832
      %v2457 = vunpack.c.l.b16 %v1833
      %v2458 = vunpack.c.l.b16 %v1834
      %v2459 = vunpack.c.l.b16 %v1835
      %v2460 = vunpack.c.l.b16 %v1836
      %v2461 = vunpack.c.l.b16 %v1837
      %v2462 = vunpack.c.l.b16 %v1838
      %v2463 = vunpack.c.l.b16 %v1839
      %v2464 = vunpack.c.l.b16 %v1840
      %v2465 = vunpack.c.l.b16 %v1841
      %v2466 = vunpack.c.l.b16 %v1842
      %v2467 = vunpack.c.l.b16 %v1843
      %v2468 = vunpack.c.l.b16 %v1844
      %v2469 = vunpack.c.l.b16 %v1845
      %v2470 = vunpack.c.l.b16 %v1846
      %v2471 = vunpack.c.l.b16 %v1847
      %v2472 = vunpack.c.l.b16 %v1848
      %v2473 = vunpack.c.l.b16 %v1849
      %v2474 = vunpack.c.l.b16 %v1850
      %v2475 = vunpack.c.l.b16 %v1851
      %v2476 = vpack.c.b16 %v2445, %v2444
      %v2477 = vpack.c.b16 %v2447, %v2446
      %v2478 = vpack.c.b16 %v2449, %v2448
      %v2479 = vpack.c.b16 %v2451, %v2450
      %v2480 = vpack.c.b16 %v2453, %v2452
      %v2481 = vpack.c.b16 %v2455, %v2454
      %v2482 = vpack.c.b16 %v2457, %v2456
      %v2483 = vpack.c.b16 %v2459, %v2458
      %v2484 = vpack.c.b16 %v2461, %v2460
      %v2485 = vpack.c.b16 %v2463, %v2462
      %v2486 = vpack.c.b16 %v2465, %v2464
      %v2487 = vpack.c.b16 %v2467, %v2466
      %v2488 = vpack.c.b16 %v2469, %v2468
      %v2489 = vpack.c.b16 %v2471, %v2470
      %v2490 = vpack.c.b16 %v2473, %v2472
      %v2491 = vpack.c.b16 %v2475, %v2474
      %v2508 = vunpack.c.l.b16 %v1881
      %v2509 = vunpack.c.l.b16 %v1891
      %v2510 = vunpack.c.l.b16 %v1905
      %v2511 = vunpack.c.l.b16 %v1915
      %v2512 = vunpack.c.l.b16 %v1929
      %v2513 = vunpack.c.l.b16 %v1939
      %v2514 = vunpack.c.l.b16 %v1953
      %v2515 = vunpack.c.l.b16 %v1963
      %v2516 = vunpack.c.l.b16 %v1977
      %v2517 = vunpack.c.l.b16 %v1987
      %v2518 = vunpack.c.l.b16 %v2001
      %v2519 = vunpack.c.l.b16 %v2011
      %v2520 = vunpack.c.l.b16 %v2025
      %v2521 = vunpack.c.l.b16 %v2035
      %v2522 = vunpack.c.l.b16 %v2049
      %v2523 = vunpack.c.l.b16 %v2059
      %v2524 = vunpack.c.l.b16 %v2073
      %v2525 = vunpack.c.l.b16 %v2083
      %v2526 = vunpack.c.l.b16 %v2097
      %v2527 = vunpack.c.l.b16 %v2107
      %v2528 = vunpack.c.l.b16 %v2121
      %v2529 = vunpack.c.l.b16 %v2131
      %v2530 = vunpack.c.l.b16 %v2145
      %v2531 = vunpack.c.l.b16 %v2155
      %v2532 = vunpack.c.l.b16 %v2169
      %v2533 = vunpack.c.l.b16 %v2179
      %v2534 = vunpack.c.l.b16 %v2193
      %v2535 = vunpack.c.l.b16 %v2203
      %v2536 = vunpack.c.l.b16 %v2217
      %v2537 = vunpack.c.l.b16 %v2227
      %v2538 = vunpack.c.l.b16 %v2241
      %v2539 = vunpack.c.l.b16 %v2251
      %v2540 = vpack.c.b16 %v2509, %v2508
      %v2541 = vpack.c.b16 %v2511, %v2510
      %v2542 = vpack.c.b16 %v2513, %v2512
      %v2543 = vpack.c.b16 %v2515, %v2514
      %v2544 = vpack.c.b16 %v2517, %v2516
      %v2545 = vpack.c.b16 %v2519, %v2518
      %v2546 = vpack.c.b16 %v2521, %v2520
      %v2547 = vpack.c.b16 %v2523, %v2522
      %v2548 = vpack.c.b16 %v2525, %v2524
      %v2549 = vpack.c.b16 %v2527, %v2526
      %v2550 = vpack.c.b16 %v2529, %v2528
      %v2551 = vpack.c.b16 %v2531, %v2530
      %v2552 = vpack.c.b16 %v2533, %v2532
      %v2553 = vpack.c.b16 %v2535, %v2534
      %v2554 = vpack.c.b16 %v2537, %v2536
      %v2555 = vpack.c.b16 %v2539, %v2538
      %v2572 = vunpack.c.l.b16 %v2319
      %v2573 = vunpack.c.l.b16 %v2322
      %v2574 = vunpack.c.l.b16 %v2326
      %v2575 = vunpack.c.l.b16 %v2329
      %v2576 = vunpack.c.l.b16 %v2333
      %v2577 = vunpack.c.l.b16 %v2336
      %v2578 = vunpack.c.l.b16 %v2340
      %v2579 = vunpack.c.l.b16 %v2343
      %v2580 = vunpack.c.l.b16 %v2347
      %v2581 = vunpack.c.l.b16 %v2350
      %v2582 = vunpack.c.l.b16 %v2354
      %v2583 = vunpack.c.l.b16 %v2357
      %v2584 = vunpack.c.l.b16 %v2361
      %v2585 = vunpack.c.l.b16 %v2364
      %v2586 = vunpack.c.l.b16 %v2368
      %v2587 = vunpack.c.l.b16 %v2371
      %v2588 = vunpack.c.l.b16 %v2375
      %v2589 = vunpack.c.l.b16 %v2378
      %v2590 = vunpack.c.l.b16 %v2382
      %v2591 = vunpack.c.l.b16 %v2385
      %v2592 = vunpack.c.l.b16 %v2389
      %v2593 = vunpack.c.l.b16 %v2392
      %v2594 = vunpack.c.l.b16 %v2396
      %v2595 = vunpack.c.l.b16 %v2399
      %v2596 = vunpack.c.l.b16 %v2403
      %v2597 = vunpack.c.l.b16 %v2406
      %v2598 = vunpack.c.l.b16 %v2410
      %v2599 = vunpack.c.l.b16 %v2413
      %v2600 = vunpack.c.l.b16 %v2417
      %v2601 = vunpack.c.l.b16 %v2420
      %v2602 = vunpack.c.l.b16 %v2424
      %v2603 = vunpack.c.l.b16 %v2427
      %v2604 = vpack.c.b16 %v2573, %v2572
      %v2605 = vpack.c.b16 %v2575, %v2574
      %v2606 = vpack.c.b16 %v2577, %v2576
      %v2607 = vpack.c.b16 %v2579, %v2578
      %v2608 = vpack.c.b16 %v2581, %v2580
      %v2609 = vpack.c.b16 %v2583, %v2582
      %v2610 = vpack.c.b16 %v2585, %v2584
      %v2611 = vpack.c.b16 %v2587, %v2586
      %v2612 = vpack.c.b16 %v2589, %v2588
      %v2613 = vpack.c.b16 %v2591, %v2590
      %v2614 = vpack.c.b16 %v2593, %v2592
      %v2615 = vpack.c.b16 %v2595, %v2594
      %v2616 = vpack.c.b16 %v2597, %v2596
      %v2617 = vpack.c.b16 %v2599, %v2598
      %v2618 = vpack.c.b16 %v2601, %v2600
      %v2619 = vpack.c.b16 %v2603, %v2602
      %v2636 = vld [vmem:[%s3 + $0xc0] sm:$0xf]
      %v2637 = vld [vmem:[%s3 + $0xc4] sm:$0xf]
      %v2638 = vld [vmem:[%s3 + $0xc8] sm:$0xf]
      %v2639 = vld [vmem:[%s3 + $0xcc] sm:$0xf]
      %v2640 = vld [vmem:[%s3 + $0xd0] sm:$0xf]
      %v2641 = vld [vmem:[%s3 + $0xd4] sm:$0xf]
      %v2642 = vld [vmem:[%s3 + $0xd8] sm:$0xf]
      %v2643 = vld [vmem:[%s3 + $0xdc] sm:$0xf]
      %v2644 = vld [vmem:[%s3 + $0xe0] sm:$0xf]
      %v2645 = vld [vmem:[%s3 + $0xe4] sm:$0xf]
      %v2646 = vld [vmem:[%s3 + $0xe8] sm:$0xf]
      %v2647 = vld [vmem:[%s3 + $0xec] sm:$0xf]
      %v2648 = vld [vmem:[%s3 + $0xf0] sm:$0xf]
      %v2649 = vld [vmem:[%s3 + $0xf4] sm:$0xf]
      %v2650 = vld [vmem:[%s3 + $0xf8] sm:$0xf]
      %v2651 = vld [vmem:[%s3 + $0xfc] sm:$0xf]
      %v2652 = vld [vmem:[%s3 + $0x100] sm:$0xf]
      %v2653 = vld [vmem:[%s3 + $0x104] sm:$0xf]
      %v2654 = vld [vmem:[%s3 + $0x108] sm:$0xf]
      %v2655 = vld [vmem:[%s3 + $0x10c] sm:$0xf]
      %v2656 = vld [vmem:[%s3 + $0x110] sm:$0xf]
      %v2657 = vld [vmem:[%s3 + $0x114] sm:$0xf]
      %v2658 = vld [vmem:[%s3 + $0x118] sm:$0xf]
      %v2659 = vld [vmem:[%s3 + $0x11c] sm:$0xf]
      %v2660 = vld [vmem:[%s3 + $0x120] sm:$0xf]
      %v2661 = vld [vmem:[%s3 + $0x124] sm:$0xf]
      %v2662 = vld [vmem:[%s3 + $0x128] sm:$0xf]
      %v2663 = vld [vmem:[%s3 + $0x12c] sm:$0xf]
      %v2664 = vld [vmem:[%s3 + $0x130] sm:$0xf]
      %v2665 = vld [vmem:[%s3 + $0x134] sm:$0xf]
      %v2666 = vld [vmem:[%s3 + $0x138] sm:$0xf]
      %v2667 = vld [vmem:[%s3 + $0x13c] sm:$0xf]
      %v2668 = vld [vmem:[%s3 + $0x140] sm:$0xf]
      %v2669 = vld [vmem:[%s3 + $0x144] sm:$0xf]
      %v2670 = vld [vmem:[%s3 + $0x148] sm:$0xf]
      %v2671 = vld [vmem:[%s3 + $0x14c] sm:$0xf]
      %v2672 = vld [vmem:[%s3 + $0x150] sm:$0xf]
      %v2673 = vld [vmem:[%s3 + $0x154] sm:$0xf]
      %v2674 = vld [vmem:[%s3 + $0x158] sm:$0xf]
      %v2675 = vld [vmem:[%s3 + $0x15c] sm:$0xf]
      %v2676 = vld [vmem:[%s3 + $0x160] sm:$0xf]
      %v2677 = vld [vmem:[%s3 + $0x164] sm:$0xf]
      %v2678 = vld [vmem:[%s3 + $0x168] sm:$0xf]
      %v2679 = vld [vmem:[%s3 + $0x16c] sm:$0xf]
      %v2680 = vld [vmem:[%s3 + $0x170] sm:$0xf]
      %v2681 = vld [vmem:[%s3 + $0x174] sm:$0xf]
      %v2682 = vld [vmem:[%s3 + $0x178] sm:$0xf]
      %v2683 = vld [vmem:[%s3 + $0x17c] sm:$0xf]
      %v2732 = vunpack.c.l.b16 %v2636
      %v2733 = vunpack.c.l.b16 %v2637
      %v2734 = vunpack.c.l.b16 %v2638
      %v2735 = vunpack.c.l.b16 %v2639
      %v2736 = vunpack.c.l.b16 %v2640
      %v2737 = vunpack.c.l.b16 %v2641
      %v2738 = vunpack.c.l.b16 %v2642
      %v2739 = vunpack.c.l.b16 %v2643
      %v2740 = vunpack.c.l.b16 %v2644
      %v2741 = vunpack.c.l.b16 %v2645
      %v2742 = vunpack.c.l.b16 %v2646
      %v2743 = vunpack.c.l.b16 %v2647
      %v2744 = vunpack.c.l.b16 %v2648
      %v2745 = vunpack.c.l.b16 %v2649
      %v2746 = vunpack.c.l.b16 %v2650
      %v2747 = vunpack.c.l.b16 %v2651
      %v2748 = vunpack.c.l.b16 %v2652
      %v2749 = vunpack.c.l.b16 %v2653
      %v2750 = vunpack.c.l.b16 %v2654
      %v2751 = vunpack.c.l.b16 %v2655
      %v2752 = vunpack.c.l.b16 %v2656
      %v2753 = vunpack.c.l.b16 %v2657
      %v2754 = vunpack.c.l.b16 %v2658
      %v2755 = vunpack.c.l.b16 %v2659
      %v2756 = vunpack.c.l.b16 %v2660
      %v2757 = vunpack.c.l.b16 %v2661
      %v2758 = vunpack.c.l.b16 %v2662
      %v2759 = vunpack.c.l.b16 %v2663
      %v2760 = vunpack.c.l.b16 %v2664
      %v2761 = vunpack.c.l.b16 %v2665
      %v2762 = vunpack.c.l.b16 %v2666
      %v2763 = vunpack.c.l.b16 %v2667
      %v2764 = vunpack.c.l.b16 %v2668
      %v2765 = vunpack.c.l.b16 %v2669
      %v2766 = vunpack.c.l.b16 %v2670
      %v2767 = vunpack.c.l.b16 %v2671
      %v2768 = vunpack.c.l.b16 %v2672
      %v2769 = vunpack.c.l.b16 %v2673
      %v2770 = vunpack.c.l.b16 %v2674
      %v2771 = vunpack.c.l.b16 %v2675
      %v2772 = vunpack.c.l.b16 %v2676
      %v2773 = vunpack.c.l.b16 %v2677
      %v2774 = vunpack.c.l.b16 %v2678
      %v2775 = vunpack.c.l.b16 %v2679
      %v2776 = vunpack.c.l.b16 %v2680
      %v2777 = vunpack.c.l.b16 %v2681
      %v2778 = vunpack.c.l.b16 %v2682
      %v2779 = vunpack.c.l.b16 %v2683
      %v2780 = vpack.c.b16 %v2733, %v2732
      %v2781 = vpack.c.b16 %v2735, %v2734
      %v2782 = vpack.c.b16 %v2737, %v2736
      %v2783 = vpack.c.b16 %v2739, %v2738
      %v2784 = vpack.c.b16 %v2741, %v2740
      %v2785 = vpack.c.b16 %v2743, %v2742
      %v2786 = vpack.c.b16 %v2745, %v2744
      %v2787 = vpack.c.b16 %v2747, %v2746
      %v2788 = vpack.c.b16 %v2749, %v2748
      %v2789 = vpack.c.b16 %v2751, %v2750
      %v2790 = vpack.c.b16 %v2753, %v2752
      %v2791 = vpack.c.b16 %v2755, %v2754
      %v2792 = vpack.c.b16 %v2757, %v2756
      %v2793 = vpack.c.b16 %v2759, %v2758
      %v2794 = vpack.c.b16 %v2761, %v2760
      %v2795 = vpack.c.b16 %v2763, %v2762
      %v2796 = vpack.c.b16 %v2765, %v2764
      %v2797 = vpack.c.b16 %v2767, %v2766
      %v2798 = vpack.c.b16 %v2769, %v2768
      %v2799 = vpack.c.b16 %v2771, %v2770
      %v2800 = vpack.c.b16 %v2773, %v2772
      %v2801 = vpack.c.b16 %v2775, %v2774
      %v2802 = vpack.c.b16 %v2777, %v2776
      %v2803 = vpack.c.b16 %v2779, %v2778
      %2828 = vmatpush.bf16.msra.mxu0 %v2787
      %2829 = vmatpush.bf16.msra.mxu0 %v2786
      %2830 = vmatpush.bf16.msra.mxu0 %v2785
      %2831 = vmatpush.bf16.msra.mxu0 %v2784
      %2832 = vmatpush.bf16.msra.mxu0 %v2783
      %2833 = vmatpush.bf16.msra.mxu0 %v2782
      %2834 = vmatpush.bf16.msra.mxu0 %v2781
      %2835 = vmatpush.bf16.msra.mxu0 %v2780
      %2836 = vmatmul.bf16.gmra.mxu0 %v2476
      %v2837 = vpop.f32.mrf.mxu0
      %v2838 = vadd.f32 0.0, %v2837
      %v2839 = vpop.f32.mrf.mxu0
      %v2840 = vadd.f32 0.0, %v2839
      %2841 = vmatmul.bf16.gmra.mxu0 %v2477
      %v2842 = vpop.f32.mrf.mxu0
      %v2843 = vadd.f32 0.0, %v2842
      %v2844 = vpop.f32.mrf.mxu0
      %v2845 = vadd.f32 0.0, %v2844
      %2846 = vmatmul.bf16.gmra.mxu0 %v2478
      %v2847 = vpop.f32.mrf.mxu0
      %v2848 = vadd.f32 0.0, %v2847
      %v2849 = vpop.f32.mrf.mxu0
      %v2850 = vadd.f32 0.0, %v2849
      %2851 = vmatmul.bf16.gmra.mxu0 %v2479
      %v2852 = vpop.f32.mrf.mxu0
      %v2853 = vadd.f32 0.0, %v2852
      %v2854 = vpop.f32.mrf.mxu0
      %v2855 = vadd.f32 0.0, %v2854
      %2856 = vmatmul.bf16.gmra.mxu0 %v2480
      %v2857 = vpop.f32.mrf.mxu0
      %v2858 = vadd.f32 0.0, %v2857
      %v2859 = vpop.f32.mrf.mxu0
      %v2860 = vadd.f32 0.0, %v2859
      %2861 = vmatmul.bf16.gmra.mxu0 %v2481
      %v2862 = vpop.f32.mrf.mxu0
      %v2863 = vadd.f32 0.0, %v2862
      %v2864 = vpop.f32.mrf.mxu0
      %v2865 = vadd.f32 0.0, %v2864
      %2866 = vmatmul.bf16.gmra.mxu0 %v2482
      %v2867 = vpop.f32.mrf.mxu0
      %v2868 = vadd.f32 0.0, %v2867
      %v2869 = vpop.f32.mrf.mxu0
      %v2870 = vadd.f32 0.0, %v2869
      %2871 = vmatmul.bf16.gmra.mxu0 %v2483
      %v2872 = vpop.f32.mrf.mxu0
      %v2873 = vadd.f32 0.0, %v2872
      %v2874 = vpop.f32.mrf.mxu0
      %v2875 = vadd.f32 0.0, %v2874
      %2876 = vmatmul.bf16.gmra.mxu0 %v2484
      %v2877 = vpop.f32.mrf.mxu0
      %v2878 = vadd.f32 0.0, %v2877
      %v2879 = vpop.f32.mrf.mxu0
      %v2880 = vadd.f32 0.0, %v2879
      %2881 = vmatmul.bf16.gmra.mxu0 %v2485
      %v2882 = vpop.f32.mrf.mxu0
      %v2883 = vadd.f32 0.0, %v2882
      %v2884 = vpop.f32.mrf.mxu0
      %v2885 = vadd.f32 0.0, %v2884
      %2886 = vmatmul.bf16.gmra.mxu0 %v2486
      %v2887 = vpop.f32.mrf.mxu0
      %v2888 = vadd.f32 0.0, %v2887
      %v2889 = vpop.f32.mrf.mxu0
      %v2890 = vadd.f32 0.0, %v2889
      %2891 = vmatmul.bf16.gmra.mxu0 %v2487
      %v2892 = vpop.f32.mrf.mxu0
      %v2893 = vadd.f32 0.0, %v2892
      %v2894 = vpop.f32.mrf.mxu0
      %v2895 = vadd.f32 0.0, %v2894
      %2896 = vmatmul.bf16.gmra.mxu0 %v2488
      %v2897 = vpop.f32.mrf.mxu0
      %v2898 = vadd.f32 0.0, %v2897
      %v2899 = vpop.f32.mrf.mxu0
      %v2900 = vadd.f32 0.0, %v2899
      %2901 = vmatmul.bf16.gmra.mxu0 %v2489
      %v2902 = vpop.f32.mrf.mxu0
      %v2903 = vadd.f32 0.0, %v2902
      %v2904 = vpop.f32.mrf.mxu0
      %v2905 = vadd.f32 0.0, %v2904
      %2906 = vmatmul.bf16.gmra.mxu0 %v2490
      %v2907 = vpop.f32.mrf.mxu0
      %v2908 = vadd.f32 0.0, %v2907
      %v2909 = vpop.f32.mrf.mxu0
      %v2910 = vadd.f32 0.0, %v2909
      %2911 = vmatmul.bf16.gmra.mxu0 %v2491
      %v2912 = vpop.f32.mrf.mxu0
      %v2913 = vadd.f32 0.0, %v2912
      %v2914 = vpop.f32.mrf.mxu0
      %v2915 = vadd.f32 0.0, %v2914
      %2916 = vdwg.mxu0
      %2917 = vmatpush.bf16.msra.mxu0 %v2795
      %2918 = vmatpush.bf16.msra.mxu0 %v2794
      %2919 = vmatpush.bf16.msra.mxu0 %v2793
      %2920 = vmatpush.bf16.msra.mxu0 %v2792
      %2921 = vmatpush.bf16.msra.mxu0 %v2791
      %2922 = vmatpush.bf16.msra.mxu0 %v2790
      %2923 = vmatpush.bf16.msra.mxu0 %v2789
      %2924 = vmatpush.bf16.msra.mxu0 %v2788
      %2925 = vmatmul.bf16.gmra.mxu0 %v2540
      %v2926 = vpop.f32.mrf.mxu0
      %v2927 = vadd.f32 %v2838, %v2926
      %v2928 = vpop.f32.mrf.mxu0
      %v2929 = vadd.f32 %v2840, %v2928
      %2930 = vmatmul.bf16.gmra.mxu0 %v2541
      %v2931 = vpop.f32.mrf.mxu0
      %v2932 = vadd.f32 %v2843, %v2931
      %v2933 = vpop.f32.mrf.mxu0
      %v2934 = vadd.f32 %v2845, %v2933
      %2935 = vmatmul.bf16.gmra.mxu0 %v2542
      %v2936 = vpop.f32.mrf.mxu0
      %v2937 = vadd.f32 %v2848, %v2936
      %v2938 = vpop.f32.mrf.mxu0
      %v2939 = vadd.f32 %v2850, %v2938
      %2940 = vmatmul.bf16.gmra.mxu0 %v2543
      %v2941 = vpop.f32.mrf.mxu0
      %v2942 = vadd.f32 %v2853, %v2941
      %v2943 = vpop.f32.mrf.mxu0
      %v2944 = vadd.f32 %v2855, %v2943
      %2945 = vmatmul.bf16.gmra.mxu0 %v2544
      %v2946 = vpop.f32.mrf.mxu0
      %v2947 = vadd.f32 %v2858, %v2946
      %v2948 = vpop.f32.mrf.mxu0
      %v2949 = vadd.f32 %v2860, %v2948
      %2950 = vmatmul.bf16.gmra.mxu0 %v2545
      %v2951 = vpop.f32.mrf.mxu0
      %v2952 = vadd.f32 %v2863, %v2951
      %v2953 = vpop.f32.mrf.mxu0
      %v2954 = vadd.f32 %v2865, %v2953
      %2955 = vmatmul.bf16.gmra.mxu0 %v2546
      %v2956 = vpop.f32.mrf.mxu0
      %v2957 = vadd.f32 %v2868, %v2956
      %v2958 = vpop.f32.mrf.mxu0
      %v2959 = vadd.f32 %v2870, %v2958
      %2960 = vmatmul.bf16.gmra.mxu0 %v2547
      %v2961 = vpop.f32.mrf.mxu0
      %v2962 = vadd.f32 %v2873, %v2961
      %v2963 = vpop.f32.mrf.mxu0
      %v2964 = vadd.f32 %v2875, %v2963
      %2965 = vmatmul.bf16.gmra.mxu0 %v2548
      %v2966 = vpop.f32.mrf.mxu0
      %v2967 = vadd.f32 %v2878, %v2966
      %v2968 = vpop.f32.mrf.mxu0
      %v2969 = vadd.f32 %v2880, %v2968
      %2970 = vmatmul.bf16.gmra.mxu0 %v2549
      %v2971 = vpop.f32.mrf.mxu0
      %v2972 = vadd.f32 %v2883, %v2971
      %v2973 = vpop.f32.mrf.mxu0
      %v2974 = vadd.f32 %v2885, %v2973
      %2975 = vmatmul.bf16.gmra.mxu0 %v2550
      %v2976 = vpop.f32.mrf.mxu0
      %v2977 = vadd.f32 %v2888, %v2976
      %v2978 = vpop.f32.mrf.mxu0
      %v2979 = vadd.f32 %v2890, %v2978
      %2980 = vmatmul.bf16.gmra.mxu0 %v2551
      %v2981 = vpop.f32.mrf.mxu0
      %v2982 = vadd.f32 %v2893, %v2981
      %v2983 = vpop.f32.mrf.mxu0
      %v2984 = vadd.f32 %v2895, %v2983
      %2985 = vmatmul.bf16.gmra.mxu0 %v2552
      %v2986 = vpop.f32.mrf.mxu0
      %v2987 = vadd.f32 %v2898, %v2986
      %v2988 = vpop.f32.mrf.mxu0
      %v2989 = vadd.f32 %v2900, %v2988
      %2990 = vmatmul.bf16.gmra.mxu0 %v2553
      %v2991 = vpop.f32.mrf.mxu0
      %v2992 = vadd.f32 %v2903, %v2991
      %v2993 = vpop.f32.mrf.mxu0
      %v2994 = vadd.f32 %v2905, %v2993
      %2995 = vmatmul.bf16.gmra.mxu0 %v2554
      %v2996 = vpop.f32.mrf.mxu0
      %v2997 = vadd.f32 %v2908, %v2996
      %v2998 = vpop.f32.mrf.mxu0
      %v2999 = vadd.f32 %v2910, %v2998
      %3000 = vmatmul.bf16.gmra.mxu0 %v2555
      %v3001 = vpop.f32.mrf.mxu0
      %v3002 = vadd.f32 %v2913, %v3001
      %v3003 = vpop.f32.mrf.mxu0
      %v3004 = vadd.f32 %v2915, %v3003
      %3005 = vdwg.mxu0
      %3006 = vmatpush.bf16.msra.mxu0 %v2803
      %3007 = vmatpush.bf16.msra.mxu0 %v2802
      %3008 = vmatpush.bf16.msra.mxu0 %v2801
      %3009 = vmatpush.bf16.msra.mxu0 %v2800
      %3010 = vmatpush.bf16.msra.mxu0 %v2799
      %3011 = vmatpush.bf16.msra.mxu0 %v2798
      %3012 = vmatpush.bf16.msra.mxu0 %v2797
      %3013 = vmatpush.bf16.msra.mxu0 %v2796
      %3014 = vmatmul.bf16.gmra.mxu0 %v2604
      %v3015 = vpop.f32.mrf.mxu0
      %v3016 = vadd.f32 %v2927, %v3015
      %v3017 = vpop.f32.mrf.mxu0
      %v3018 = vadd.f32 %v2929, %v3017
      %3019 = vmatmul.bf16.gmra.mxu0 %v2605
      %v3020 = vpop.f32.mrf.mxu0
      %v3021 = vadd.f32 %v2932, %v3020
      %v3022 = vpop.f32.mrf.mxu0
      %v3023 = vadd.f32 %v2934, %v3022
      %3024 = vmatmul.bf16.gmra.mxu0 %v2606
      %v3025 = vpop.f32.mrf.mxu0
      %v3026 = vadd.f32 %v2937, %v3025
      %v3027 = vpop.f32.mrf.mxu0
      %v3028 = vadd.f32 %v2939, %v3027
      %3029 = vmatmul.bf16.gmra.mxu0 %v2607
      %v3030 = vpop.f32.mrf.mxu0
      %v3031 = vadd.f32 %v2942, %v3030
      %v3032 = vpop.f32.mrf.mxu0
      %v3033 = vadd.f32 %v2944, %v3032
      %3034 = vmatmul.bf16.gmra.mxu0 %v2608
      %v3035 = vpop.f32.mrf.mxu0
      %v3036 = vadd.f32 %v2947, %v3035
      %v3037 = vpop.f32.mrf.mxu0
      %v3038 = vadd.f32 %v2949, %v3037
      %3039 = vmatmul.bf16.gmra.mxu0 %v2609
      %v3040 = vpop.f32.mrf.mxu0
      %v3041 = vadd.f32 %v2952, %v3040
      %v3042 = vpop.f32.mrf.mxu0
      %v3043 = vadd.f32 %v2954, %v3042
      %3044 = vmatmul.bf16.gmra.mxu0 %v2610
      %v3045 = vpop.f32.mrf.mxu0
      %v3046 = vadd.f32 %v2957, %v3045
      %v3047 = vpop.f32.mrf.mxu0
      %v3048 = vadd.f32 %v2959, %v3047
      %3049 = vmatmul.bf16.gmra.mxu0 %v2611
      %v3050 = vpop.f32.mrf.mxu0
      %v3051 = vadd.f32 %v2962, %v3050
      %v3052 = vpop.f32.mrf.mxu0
      %v3053 = vadd.f32 %v2964, %v3052
      %3054 = vmatmul.bf16.gmra.mxu0 %v2612
      %v3055 = vpop.f32.mrf.mxu0
      %v3056 = vadd.f32 %v2967, %v3055
      %v3057 = vpop.f32.mrf.mxu0
      %v3058 = vadd.f32 %v2969, %v3057
      %3059 = vmatmul.bf16.gmra.mxu0 %v2613
      %v3060 = vpop.f32.mrf.mxu0
      %v3061 = vadd.f32 %v2972, %v3060
      %v3062 = vpop.f32.mrf.mxu0
      %v3063 = vadd.f32 %v2974, %v3062
      %3064 = vmatmul.bf16.gmra.mxu0 %v2614
      %v3065 = vpop.f32.mrf.mxu0
      %v3066 = vadd.f32 %v2977, %v3065
      %v3067 = vpop.f32.mrf.mxu0
      %v3068 = vadd.f32 %v2979, %v3067
      %3069 = vmatmul.bf16.gmra.mxu0 %v2615
      %v3070 = vpop.f32.mrf.mxu0
      %v3071 = vadd.f32 %v2982, %v3070
      %v3072 = vpop.f32.mrf.mxu0
      %v3073 = vadd.f32 %v2984, %v3072
      %3074 = vmatmul.bf16.gmra.mxu0 %v2616
      %v3075 = vpop.f32.mrf.mxu0
      %v3076 = vadd.f32 %v2987, %v3075
      %v3077 = vpop.f32.mrf.mxu0
      %v3078 = vadd.f32 %v2989, %v3077
      %3079 = vmatmul.bf16.gmra.mxu0 %v2617
      %v3080 = vpop.f32.mrf.mxu0
      %v3081 = vadd.f32 %v2992, %v3080
      %v3082 = vpop.f32.mrf.mxu0
      %v3083 = vadd.f32 %v2994, %v3082
      %3084 = vmatmul.bf16.gmra.mxu0 %v2618
      %v3085 = vpop.f32.mrf.mxu0
      %v3086 = vadd.f32 %v2997, %v3085
      %v3087 = vpop.f32.mrf.mxu0
      %v3088 = vadd.f32 %v2999, %v3087
      %3089 = vmatmul.bf16.gmra.mxu0 %v2619
      %v3090 = vpop.f32.mrf.mxu0
      %v3091 = vadd.f32 %v3002, %v3090
      %v3092 = vpop.f32.mrf.mxu0
      %v3093 = vadd.f32 %v3004, %v3092
      %3094 = vdwg.mxu0
      %v3143 = vunpack.c.l.b16 %v1772
      %v3144 = vunpack.c.l.b16 %v1773
      %v3145 = vunpack.c.l.b16 %v1774
      %v3146 = vunpack.c.l.b16 %v1775
      %v3147 = vunpack.c.l.b16 %v1776
      %v3148 = vunpack.c.l.b16 %v1777
      %v3149 = vunpack.c.l.b16 %v1778
      %v3150 = vunpack.c.l.b16 %v1779
      %v3151 = vunpack.c.l.b16 %v1780
      %v3152 = vunpack.c.l.b16 %v1781
      %v3153 = vunpack.c.l.b16 %v1782
      %v3154 = vunpack.c.l.b16 %v1783
      %v3155 = vunpack.c.l.b16 %v1784
      %v3156 = vunpack.c.l.b16 %v1785
      %v3157 = vunpack.c.l.b16 %v1786
      %v3158 = vunpack.c.l.b16 %v1787
      %v3159 = vunpack.c.l.b16 %v1788
      %v3160 = vunpack.c.l.b16 %v1789
      %v3161 = vunpack.c.l.b16 %v1790
      %v3162 = vunpack.c.l.b16 %v1791
      %v3163 = vunpack.c.l.b16 %v1792
      %v3164 = vunpack.c.l.b16 %v1793
      %v3165 = vunpack.c.l.b16 %v1794
      %v3166 = vunpack.c.l.b16 %v1795
      %v3167 = vunpack.c.l.b16 %v1796
      %v3168 = vunpack.c.l.b16 %v1797
      %v3169 = vunpack.c.l.b16 %v1798
      %v3170 = vunpack.c.l.b16 %v1799
      %v3171 = vunpack.c.l.b16 %v1800
      %v3172 = vunpack.c.l.b16 %v1801
      %v3173 = vunpack.c.l.b16 %v1802
      %v3174 = vunpack.c.l.b16 %v1803
      %v3175 = vunpack.c.l.b16 %v1804
      %v3176 = vunpack.c.l.b16 %v1805
      %v3177 = vunpack.c.l.b16 %v1806
      %v3178 = vunpack.c.l.b16 %v1807
      %v3179 = vunpack.c.l.b16 %v1808
      %v3180 = vunpack.c.l.b16 %v1809
      %v3181 = vunpack.c.l.b16 %v1810
      %v3182 = vunpack.c.l.b16 %v1811
      %v3183 = vunpack.c.l.b16 %v1812
      %v3184 = vunpack.c.l.b16 %v1813
      %v3185 = vunpack.c.l.b16 %v1814
      %v3186 = vunpack.c.l.b16 %v1815
      %v3187 = vunpack.c.l.b16 %v1816
      %v3188 = vunpack.c.l.b16 %v1817
      %v3189 = vunpack.c.l.b16 %v1818
      %v3190 = vunpack.c.l.b16 %v1819
      %v3191 = vpack.c.b16 %v3144, %v3143
      %v3192 = vpack.c.b16 %v3146, %v3145
      %v3193 = vpack.c.b16 %v3148, %v3147
      %v3194 = vpack.c.b16 %v3150, %v3149
      %v3195 = vpack.c.b16 %v3152, %v3151
      %v3196 = vpack.c.b16 %v3154, %v3153
      %v3197 = vpack.c.b16 %v3156, %v3155
      %v3198 = vpack.c.b16 %v3158, %v3157
      %v3199 = vpack.c.b16 %v3160, %v3159
      %v3200 = vpack.c.b16 %v3162, %v3161
      %v3201 = vpack.c.b16 %v3164, %v3163
      %v3202 = vpack.c.b16 %v3166, %v3165
      %v3203 = vpack.c.b16 %v3168, %v3167
      %v3204 = vpack.c.b16 %v3170, %v3169
      %v3205 = vpack.c.b16 %v3172, %v3171
      %v3206 = vpack.c.b16 %v3174, %v3173
      %v3207 = vpack.c.b16 %v3176, %v3175
      %v3208 = vpack.c.b16 %v3178, %v3177
      %v3209 = vpack.c.b16 %v3180, %v3179
      %v3210 = vpack.c.b16 %v3182, %v3181
      %v3211 = vpack.c.b16 %v3184, %v3183
      %v3212 = vpack.c.b16 %v3186, %v3185
      %v3213 = vpack.c.b16 %v3188, %v3187
      %v3214 = vpack.c.b16 %v3190, %v3189
      %3239 = vmatpush.bf16.msra.mxu0 %v3198
      %3240 = vmatpush.bf16.msra.mxu0 %v3197
      %3241 = vmatpush.bf16.msra.mxu0 %v3196
      %3242 = vmatpush.bf16.msra.mxu0 %v3195
      %3243 = vmatpush.bf16.msra.mxu0 %v3194
      %3244 = vmatpush.bf16.msra.mxu0 %v3193
      %3245 = vmatpush.bf16.msra.mxu0 %v3192
      %3246 = vmatpush.bf16.msra.mxu0 %v3191
      %3247 = vmatmul.bf16.gmra.mxu0 %v1612
      %v3248 = vpop.f32.mrf.mxu0
      %v3249 = vadd.f32 %v3016, %v3248
      %v3250 = vpop.f32.mrf.mxu0
      %v3251 = vadd.f32 %v3018, %v3250
      %3252 = vmatmul.bf16.gmra.mxu0 %v1613
      %v3253 = vpop.f32.mrf.mxu0
      %v3254 = vadd.f32 %v3021, %v3253
      %v3255 = vpop.f32.mrf.mxu0
      %v3256 = vadd.f32 %v3023, %v3255
      %3257 = vmatmul.bf16.gmra.mxu0 %v1614
      %v3258 = vpop.f32.mrf.mxu0
      %v3259 = vadd.f32 %v3026, %v3258
      %v3260 = vpop.f32.mrf.mxu0
      %v3261 = vadd.f32 %v3028, %v3260
      %3262 = vmatmul.bf16.gmra.mxu0 %v1615
      %v3263 = vpop.f32.mrf.mxu0
      %v3264 = vadd.f32 %v3031, %v3263
      %v3265 = vpop.f32.mrf.mxu0
      %v3266 = vadd.f32 %v3033, %v3265
      %3267 = vmatmul.bf16.gmra.mxu0 %v1616
      %v3268 = vpop.f32.mrf.mxu0
      %v3269 = vadd.f32 %v3036, %v3268
      %v3270 = vpop.f32.mrf.mxu0
      %v3271 = vadd.f32 %v3038, %v3270
      %3272 = vmatmul.bf16.gmra.mxu0 %v1617
      %v3273 = vpop.f32.mrf.mxu0
      %v3274 = vadd.f32 %v3041, %v3273
      %v3275 = vpop.f32.mrf.mxu0
      %v3276 = vadd.f32 %v3043, %v3275
      %3277 = vmatmul.bf16.gmra.mxu0 %v1618
      %v3278 = vpop.f32.mrf.mxu0
      %v3279 = vadd.f32 %v3046, %v3278
      %v3280 = vpop.f32.mrf.mxu0
      %v3281 = vadd.f32 %v3048, %v3280
      %3282 = vmatmul.bf16.gmra.mxu0 %v1619
      %v3283 = vpop.f32.mrf.mxu0
      %v3284 = vadd.f32 %v3051, %v3283
      %v3285 = vpop.f32.mrf.mxu0
      %v3286 = vadd.f32 %v3053, %v3285
      %3287 = vmatmul.bf16.gmra.mxu0 %v1620
      %v3288 = vpop.f32.mrf.mxu0
      %v3289 = vadd.f32 %v3056, %v3288
      %v3290 = vpop.f32.mrf.mxu0
      %v3291 = vadd.f32 %v3058, %v3290
      %3292 = vmatmul.bf16.gmra.mxu0 %v1621
      %v3293 = vpop.f32.mrf.mxu0
      %v3294 = vadd.f32 %v3061, %v3293
      %v3295 = vpop.f32.mrf.mxu0
      %v3296 = vadd.f32 %v3063, %v3295
      %3297 = vmatmul.bf16.gmra.mxu0 %v1622
      %v3298 = vpop.f32.mrf.mxu0
      %v3299 = vadd.f32 %v3066, %v3298
      %v3300 = vpop.f32.mrf.mxu0
      %v3301 = vadd.f32 %v3068, %v3300
      %3302 = vmatmul.bf16.gmra.mxu0 %v1623
      %v3303 = vpop.f32.mrf.mxu0
      %v3304 = vadd.f32 %v3071, %v3303
      %v3305 = vpop.f32.mrf.mxu0
      %v3306 = vadd.f32 %v3073, %v3305
      %3307 = vmatmul.bf16.gmra.mxu0 %v1624
      %v3308 = vpop.f32.mrf.mxu0
      %v3309 = vadd.f32 %v3076, %v3308
      %v3310 = vpop.f32.mrf.mxu0
      %v3311 = vadd.f32 %v3078, %v3310
      %3312 = vmatmul.bf16.gmra.mxu0 %v1625
      %v3313 = vpop.f32.mrf.mxu0
      %v3314 = vadd.f32 %v3081, %v3313
      %v3315 = vpop.f32.mrf.mxu0
      %v3316 = vadd.f32 %v3083, %v3315
      %3317 = vmatmul.bf16.gmra.mxu0 %v1626
      %v3318 = vpop.f32.mrf.mxu0
      %v3319 = vadd.f32 %v3086, %v3318
      %v3320 = vpop.f32.mrf.mxu0
      %v3321 = vadd.f32 %v3088, %v3320
      %3322 = vmatmul.bf16.gmra.mxu0 %v1627
      %v3323 = vpop.f32.mrf.mxu0
      %v3324 = vadd.f32 %v3091, %v3323
      %v3325 = vpop.f32.mrf.mxu0
      %v3326 = vadd.f32 %v3093, %v3325
      %3327 = vdwg.mxu0
      %3328 = vmatpush.bf16.msra.mxu0 %v3206
      %3329 = vmatpush.bf16.msra.mxu0 %v3205
      %3330 = vmatpush.bf16.msra.mxu0 %v3204
      %3331 = vmatpush.bf16.msra.mxu0 %v3203
      %3332 = vmatpush.bf16.msra.mxu0 %v3202
      %3333 = vmatpush.bf16.msra.mxu0 %v3201
      %3334 = vmatpush.bf16.msra.mxu0 %v3200
      %3335 = vmatpush.bf16.msra.mxu0 %v3199
      %3336 = vmatmul.bf16.gmra.mxu0 %v1676
      %v3337 = vpop.f32.mrf.mxu0
      %v3338 = vadd.f32 %v3249, %v3337
      %v3339 = vpop.f32.mrf.mxu0
      %v3340 = vadd.f32 %v3251, %v3339
      %3341 = vmatmul.bf16.gmra.mxu0 %v1677
      %v3342 = vpop.f32.mrf.mxu0
      %v3343 = vadd.f32 %v3254, %v3342
      %v3344 = vpop.f32.mrf.mxu0
      %v3345 = vadd.f32 %v3256, %v3344
      %3346 = vmatmul.bf16.gmra.mxu0 %v1678
      %v3347 = vpop.f32.mrf.mxu0
      %v3348 = vadd.f32 %v3259, %v3347
      %v3349 = vpop.f32.mrf.mxu0
      %v3350 = vadd.f32 %v3261, %v3349
      %3351 = vmatmul.bf16.gmra.mxu0 %v1679
      %v3352 = vpop.f32.mrf.mxu0
      %v3353 = vadd.f32 %v3264, %v3352
      %v3354 = vpop.f32.mrf.mxu0
      %v3355 = vadd.f32 %v3266, %v3354
      %3356 = vmatmul.bf16.gmra.mxu0 %v1680
      %v3357 = vpop.f32.mrf.mxu0
      %v3358 = vadd.f32 %v3269, %v3357
      %v3359 = vpop.f32.mrf.mxu0
      %v3360 = vadd.f32 %v3271, %v3359
      %3361 = vmatmul.bf16.gmra.mxu0 %v1681
      %v3362 = vpop.f32.mrf.mxu0
      %v3363 = vadd.f32 %v3274, %v3362
      %v3364 = vpop.f32.mrf.mxu0
      %v3365 = vadd.f32 %v3276, %v3364
      %3366 = vmatmul.bf16.gmra.mxu0 %v1682
      %v3367 = vpop.f32.mrf.mxu0
      %v3368 = vadd.f32 %v3279, %v3367
      %v3369 = vpop.f32.mrf.mxu0
      %v3370 = vadd.f32 %v3281, %v3369
      %3371 = vmatmul.bf16.gmra.mxu0 %v1683
      %v3372 = vpop.f32.mrf.mxu0
      %v3373 = vadd.f32 %v3284, %v3372
      %v3374 = vpop.f32.mrf.mxu0
      %v3375 = vadd.f32 %v3286, %v3374
      %3376 = vmatmul.bf16.gmra.mxu0 %v1684
      %v3377 = vpop.f32.mrf.mxu0
      %v3378 = vadd.f32 %v3289, %v3377
      %v3379 = vpop.f32.mrf.mxu0
      %v3380 = vadd.f32 %v3291, %v3379
      %3381 = vmatmul.bf16.gmra.mxu0 %v1685
      %v3382 = vpop.f32.mrf.mxu0
      %v3383 = vadd.f32 %v3294, %v3382
      %v3384 = vpop.f32.mrf.mxu0
      %v3385 = vadd.f32 %v3296, %v3384
      %3386 = vmatmul.bf16.gmra.mxu0 %v1686
      %v3387 = vpop.f32.mrf.mxu0
      %v3388 = vadd.f32 %v3299, %v3387
      %v3389 = vpop.f32.mrf.mxu0
      %v3390 = vadd.f32 %v3301, %v3389
      %3391 = vmatmul.bf16.gmra.mxu0 %v1687
      %v3392 = vpop.f32.mrf.mxu0
      %v3393 = vadd.f32 %v3304, %v3392
      %v3394 = vpop.f32.mrf.mxu0
      %v3395 = vadd.f32 %v3306, %v3394
      %3396 = vmatmul.bf16.gmra.mxu0 %v1688
      %v3397 = vpop.f32.mrf.mxu0
      %v3398 = vadd.f32 %v3309, %v3397
      %v3399 = vpop.f32.mrf.mxu0
      %v3400 = vadd.f32 %v3311, %v3399
      %3401 = vmatmul.bf16.gmra.mxu0 %v1689
      %v3402 = vpop.f32.mrf.mxu0
      %v3403 = vadd.f32 %v3314, %v3402
      %v3404 = vpop.f32.mrf.mxu0
      %v3405 = vadd.f32 %v3316, %v3404
      %3406 = vmatmul.bf16.gmra.mxu0 %v1690
      %v3407 = vpop.f32.mrf.mxu0
      %v3408 = vadd.f32 %v3319, %v3407
      %v3409 = vpop.f32.mrf.mxu0
      %v3410 = vadd.f32 %v3321, %v3409
      %3411 = vmatmul.bf16.gmra.mxu0 %v1691
      %v3412 = vpop.f32.mrf.mxu0
      %v3413 = vadd.f32 %v3324, %v3412
      %v3414 = vpop.f32.mrf.mxu0
      %v3415 = vadd.f32 %v3326, %v3414
      %3416 = vdwg.mxu0
      %3417 = vmatpush.bf16.msra.mxu0 %v3214
      %3418 = vmatpush.bf16.msra.mxu0 %v3213
      %3419 = vmatpush.bf16.msra.mxu0 %v3212
      %3420 = vmatpush.bf16.msra.mxu0 %v3211
      %3421 = vmatpush.bf16.msra.mxu0 %v3210
      %3422 = vmatpush.bf16.msra.mxu0 %v3209
      %3423 = vmatpush.bf16.msra.mxu0 %v3208
      %3424 = vmatpush.bf16.msra.mxu0 %v3207
      %3425 = vmatmul.bf16.gmra.mxu0 %v1740
      %v3426 = vpop.f32.mrf.mxu0
      %v3427 = vadd.f32 %v3338, %v3426
      %v3428 = vpop.f32.mrf.mxu0
      %v3429 = vadd.f32 %v3340, %v3428
      %3430 = vmatmul.bf16.gmra.mxu0 %v1741
      %v3431 = vpop.f32.mrf.mxu0
      %v3432 = vadd.f32 %v3343, %v3431
      %v3433 = vpop.f32.mrf.mxu0
      %v3434 = vadd.f32 %v3345, %v3433
      %3435 = vmatmul.bf16.gmra.mxu0 %v1742
      %v3436 = vpop.f32.mrf.mxu0
      %v3437 = vadd.f32 %v3348, %v3436
      %v3438 = vpop.f32.mrf.mxu0
      %v3439 = vadd.f32 %v3350, %v3438
      %3440 = vmatmul.bf16.gmra.mxu0 %v1743
      %v3441 = vpop.f32.mrf.mxu0
      %v3442 = vadd.f32 %v3353, %v3441
      %v3443 = vpop.f32.mrf.mxu0
      %v3444 = vadd.f32 %v3355, %v3443
      %3445 = vmatmul.bf16.gmra.mxu0 %v1744
      %v3446 = vpop.f32.mrf.mxu0
      %v3447 = vadd.f32 %v3358, %v3446
      %v3448 = vpop.f32.mrf.mxu0
      %v3449 = vadd.f32 %v3360, %v3448
      %3450 = vmatmul.bf16.gmra.mxu0 %v1745
      %v3451 = vpop.f32.mrf.mxu0
      %v3452 = vadd.f32 %v3363, %v3451
      %v3453 = vpop.f32.mrf.mxu0
      %v3454 = vadd.f32 %v3365, %v3453
      %3455 = vmatmul.bf16.gmra.mxu0 %v1746
      %v3456 = vpop.f32.mrf.mxu0
      %v3457 = vadd.f32 %v3368, %v3456
      %v3458 = vpop.f32.mrf.mxu0
      %v3459 = vadd.f32 %v3370, %v3458
      %3460 = vmatmul.bf16.gmra.mxu0 %v1747
      %v3461 = vpop.f32.mrf.mxu0
      %v3462 = vadd.f32 %v3373, %v3461
      %v3463 = vpop.f32.mrf.mxu0
      %v3464 = vadd.f32 %v3375, %v3463
      %3465 = vmatmul.bf16.gmra.mxu0 %v1748
      %v3466 = vpop.f32.mrf.mxu0
      %v3467 = vadd.f32 %v3378, %v3466
      %v3468 = vpop.f32.mrf.mxu0
      %v3469 = vadd.f32 %v3380, %v3468
      %3470 = vmatmul.bf16.gmra.mxu0 %v1749
      %v3471 = vpop.f32.mrf.mxu0
      %v3472 = vadd.f32 %v3383, %v3471
      %v3473 = vpop.f32.mrf.mxu0
      %v3474 = vadd.f32 %v3385, %v3473
      %3475 = vmatmul.bf16.gmra.mxu0 %v1750
      %v3476 = vpop.f32.mrf.mxu0
      %v3477 = vadd.f32 %v3388, %v3476
      %v3478 = vpop.f32.mrf.mxu0
      %v3479 = vadd.f32 %v3390, %v3478
      %3480 = vmatmul.bf16.gmra.mxu0 %v1751
      %v3481 = vpop.f32.mrf.mxu0
      %v3482 = vadd.f32 %v3393, %v3481
      %v3483 = vpop.f32.mrf.mxu0
      %v3484 = vadd.f32 %v3395, %v3483
      %3485 = vmatmul.bf16.gmra.mxu0 %v1752
      %v3486 = vpop.f32.mrf.mxu0
      %v3487 = vadd.f32 %v3398, %v3486
      %v3488 = vpop.f32.mrf.mxu0
      %v3489 = vadd.f32 %v3400, %v3488
      %3490 = vmatmul.bf16.gmra.mxu0 %v1753
      %v3491 = vpop.f32.mrf.mxu0
      %v3492 = vadd.f32 %v3403, %v3491
      %v3493 = vpop.f32.mrf.mxu0
      %v3494 = vadd.f32 %v3405, %v3493
      %3495 = vmatmul.bf16.gmra.mxu0 %v1754
      %v3496 = vpop.f32.mrf.mxu0
      %v3497 = vadd.f32 %v3408, %v3496
      %v3498 = vpop.f32.mrf.mxu0
      %v3499 = vadd.f32 %v3410, %v3498
      %3500 = vmatmul.bf16.gmra.mxu0 %v1755
      %v3501 = vpop.f32.mrf.mxu0
      %v3502 = vadd.f32 %v3413, %v3501
      %v3503 = vpop.f32.mrf.mxu0
      %v3504 = vadd.f32 %v3415, %v3503
      %3505 = vdwg.mxu0
      %s3506 = scalar_lea.vmem [#allocation2], 24
      %v3507 = vld [vmem:[%s3506] sm:$0xf]
      %v3508 = vld [vmem:[%s3506 + $0x4] sm:$0xf]
      %v3509 = vld [vmem:[%s3506 + $0xc] sm:$0xf]
      %v3510 = vld [vmem:[%s3506 + $0x10] sm:$0xf]
      %v3511 = vld [vmem:[%s3506 + $0x18] sm:$0xf]
      %v3512 = vld [vmem:[%s3506 + $0x1c] sm:$0xf]
      %v3513 = vld [vmem:[%s3506 + $0x24] sm:$0xf]
      %v3514 = vld [vmem:[%s3506 + $0x28] sm:$0xf]
      %v3515 = vld [vmem:[%s3506 + $0x30] sm:$0xf]
      %v3516 = vld [vmem:[%s3506 + $0x34] sm:$0xf]
      %v3517 = vld [vmem:[%s3506 + $0x3c] sm:$0xf]
      %v3518 = vld [vmem:[%s3506 + $0x40] sm:$0xf]
      %v3519 = vld [vmem:[%s3506 + $0x48] sm:$0xf]
      %v3520 = vld [vmem:[%s3506 + $0x4c] sm:$0xf]
      %v3521 = vld [vmem:[%s3506 + $0x54] sm:$0xf]
      %v3522 = vld [vmem:[%s3506 + $0x58] sm:$0xf]
      %v3523 = vld [vmem:[%s3506 + $0x60] sm:$0xf]
      %v3524 = vld [vmem:[%s3506 + $0x64] sm:$0xf]
      %v3525 = vld [vmem:[%s3506 + $0x6c] sm:$0xf]
      %v3526 = vld [vmem:[%s3506 + $0x70] sm:$0xf]
      %v3527 = vld [vmem:[%s3506 + $0x78] sm:$0xf]
      %v3528 = vld [vmem:[%s3506 + $0x7c] sm:$0xf]
      %v3529 = vld [vmem:[%s3506 + $0x84] sm:$0xf]
      %v3530 = vld [vmem:[%s3506 + $0x88] sm:$0xf]
      %v3531 = vld [vmem:[%s3506 + $0x90] sm:$0xf]
      %v3532 = vld [vmem:[%s3506 + $0x94] sm:$0xf]
      %v3533 = vld [vmem:[%s3506 + $0x9c] sm:$0xf]
      %v3534 = vld [vmem:[%s3506 + $0xa0] sm:$0xf]
      %v3535 = vld [vmem:[%s3506 + $0xa8] sm:$0xf]
      %v3536 = vld [vmem:[%s3506 + $0xac] sm:$0xf]
      %v3537 = vld [vmem:[%s3506 + $0xb4] sm:$0xf]
      %v3538 = vld [vmem:[%s3506 + $0xb8] sm:$0xf]
      %v3539 = vld [vmem:[%s3506 + $0x8] sm:$0x1]
      %v3540 = vld [vmem:[%s3506 + $0x14] sm:$0x1]
      %v3541 = vld [vmem:[%s3506 + $0x20] sm:$0x1]
      %v3542 = vld [vmem:[%s3506 + $0x2c] sm:$0x1]
      %v3543 = vld [vmem:[%s3506 + $0x38] sm:$0x1]
      %v3544 = vld [vmem:[%s3506 + $0x44] sm:$0x1]
      %v3545 = vld [vmem:[%s3506 + $0x50] sm:$0x1]
      %v3546 = vld [vmem:[%s3506 + $0x5c] sm:$0x1]
      %v3547 = vld [vmem:[%s3506 + $0x68] sm:$0x1]
      %v3548 = vld [vmem:[%s3506 + $0x74] sm:$0x1]
      %v3549 = vld [vmem:[%s3506 + $0x80] sm:$0x1]
      %v3550 = vld [vmem:[%s3506 + $0x8c] sm:$0x1]
      %v3551 = vld [vmem:[%s3506 + $0x98] sm:$0x1]
      %v3552 = vld [vmem:[%s3506 + $0xa4] sm:$0x1]
      %v3553 = vld [vmem:[%s3506 + $0xb0] sm:$0x1]
      %v3554 = vld [vmem:[%s3506 + $0xbc] sm:$0x1]
      %v3556 = vshrl.u32 %v3507, 16
      %v3558 = vrot.slane %v3556, 4
      %v3559 = vshll.u32 %v3507, 16
      %v3561 = vrot.slane %v3559, 5
      %v3562 = vor.u32 %v3558, %v3561
      %v3563 = vrot.slane %v3562, 4
      %v3565 = vshll.u32 %v3508, 16
      %v3567 = vrot.slane %v3565, 5
      %v3568 = vsel %vm1000, %v3563, %v3567
      %v3569 = vshrl.u32 %v3508, 16
      %v3571 = vrot.slane %v3569, 4
      %v3572 = vor.u32 %v3571, %v3567
      %v3573 = vrot.slane %v3572, 4
      %v3575 = vshll.u32 %v3539, 16
      %v3577 = vrot.slane %v3575, 5
      %v3578 = vsel %vm1000, %v3573, %v3577
      %v3580 = vshrl.u32 %v3509, 16
      %v3582 = vrot.slane %v3580, 4
      %v3583 = vshll.u32 %v3509, 16
      %v3585 = vrot.slane %v3583, 5
      %v3586 = vor.u32 %v3582, %v3585
      %v3587 = vrot.slane %v3586, 4
      %v3589 = vshll.u32 %v3510, 16
      %v3591 = vrot.slane %v3589, 5
      %v3592 = vsel %vm1000, %v3587, %v3591
      %v3593 = vshrl.u32 %v3510, 16
      %v3595 = vrot.slane %v3593, 4
      %v3596 = vor.u32 %v3595, %v3591
      %v3597 = vrot.slane %v3596, 4
      %v3599 = vshll.u32 %v3540, 16
      %v3601 = vrot.slane %v3599, 5
      %v3602 = vsel %vm1000, %v3597, %v3601
      %v3604 = vshrl.u32 %v3511, 16
      %v3606 = vrot.slane %v3604, 4
      %v3607 = vshll.u32 %v3511, 16
      %v3609 = vrot.slane %v3607, 5
      %v3610 = vor.u32 %v3606, %v3609
      %v3611 = vrot.slane %v3610, 4
      %v3613 = vshll.u32 %v3512, 16
      %v3615 = vrot.slane %v3613, 5
      %v3616 = vsel %vm1000, %v3611, %v3615
      %v3617 = vshrl.u32 %v3512, 16
      %v3619 = vrot.slane %v3617, 4
      %v3620 = vor.u32 %v3619, %v3615
      %v3621 = vrot.slane %v3620, 4
      %v3623 = vshll.u32 %v3541, 16
      %v3625 = vrot.slane %v3623, 5
      %v3626 = vsel %vm1000, %v3621, %v3625
      %v3628 = vshrl.u32 %v3513, 16
      %v3630 = vrot.slane %v3628, 4
      %v3631 = vshll.u32 %v3513, 16
      %v3633 = vrot.slane %v3631, 5
      %v3634 = vor.u32 %v3630, %v3633
      %v3635 = vrot.slane %v3634, 4
      %v3637 = vshll.u32 %v3514, 16
      %v3639 = vrot.slane %v3637, 5
      %v3640 = vsel %vm1000, %v3635, %v3639
      %v3641 = vshrl.u32 %v3514, 16
      %v3643 = vrot.slane %v3641, 4
      %v3644 = vor.u32 %v3643, %v3639
      %v3645 = vrot.slane %v3644, 4
      %v3647 = vshll.u32 %v3542, 16
      %v3649 = vrot.slane %v3647, 5
      %v3650 = vsel %vm1000, %v3645, %v3649
      %v3652 = vshrl.u32 %v3515, 16
      %v3654 = vrot.slane %v3652, 4
      %v3655 = vshll.u32 %v3515, 16
      %v3657 = vrot.slane %v3655, 5
      %v3658 = vor.u32 %v3654, %v3657
      %v3659 = vrot.slane %v3658, 4
      %v3661 = vshll.u32 %v3516, 16
      %v3663 = vrot.slane %v3661, 5
      %v3664 = vsel %vm1000, %v3659, %v3663
      %v3665 = vshrl.u32 %v3516, 16
      %v3667 = vrot.slane %v3665, 4
      %v3668 = vor.u32 %v3667, %v3663
      %v3669 = vrot.slane %v3668, 4
      %v3671 = vshll.u32 %v3543, 16
      %v3673 = vrot.slane %v3671, 5
      %v3674 = vsel %vm1000, %v3669, %v3673
      %v3676 = vshrl.u32 %v3517, 16
      %v3678 = vrot.slane %v3676, 4
      %v3679 = vshll.u32 %v3517, 16
      %v3681 = vrot.slane %v3679, 5
      %v3682 = vor.u32 %v3678, %v3681
      %v3683 = vrot.slane %v3682, 4
      %v3685 = vshll.u32 %v3518, 16
      %v3687 = vrot.slane %v3685, 5
      %v3688 = vsel %vm1000, %v3683, %v3687
      %v3689 = vshrl.u32 %v3518, 16
      %v3691 = vrot.slane %v3689, 4
      %v3692 = vor.u32 %v3691, %v3687
      %v3693 = vrot.slane %v3692, 4
      %v3695 = vshll.u32 %v3544, 16
      %v3697 = vrot.slane %v3695, 5
      %v3698 = vsel %vm1000, %v3693, %v3697
      %v3700 = vshrl.u32 %v3519, 16
      %v3702 = vrot.slane %v3700, 4
      %v3703 = vshll.u32 %v3519, 16
      %v3705 = vrot.slane %v3703, 5
      %v3706 = vor.u32 %v3702, %v3705
      %v3707 = vrot.slane %v3706, 4
      %v3709 = vshll.u32 %v3520, 16
      %v3711 = vrot.slane %v3709, 5
      %v3712 = vsel %vm1000, %v3707, %v3711
      %v3713 = vshrl.u32 %v3520, 16
      %v3715 = vrot.slane %v3713, 4
      %v3716 = vor.u32 %v3715, %v3711
      %v3717 = vrot.slane %v3716, 4
      %v3719 = vshll.u32 %v3545, 16
      %v3721 = vrot.slane %v3719, 5
      %v3722 = vsel %vm1000, %v3717, %v3721
      %v3724 = vshrl.u32 %v3521, 16
      %v3726 = vrot.slane %v3724, 4
      %v3727 = vshll.u32 %v3521, 16
      %v3729 = vrot.slane %v3727, 5
      %v3730 = vor.u32 %v3726, %v3729
      %v3731 = vrot.slane %v3730, 4
      %v3733 = vshll.u32 %v3522, 16
      %v3735 = vrot.slane %v3733, 5
      %v3736 = vsel %vm1000, %v3731, %v3735
      %v3737 = vshrl.u32 %v3522, 16
      %v3739 = vrot.slane %v3737, 4
      %v3740 = vor.u32 %v3739, %v3735
      %v3741 = vrot.slane %v3740, 4
      %v3743 = vshll.u32 %v3546, 16
      %v3745 = vrot.slane %v3743, 5
      %v3746 = vsel %vm1000, %v3741, %v3745
      %v3748 = vshrl.u32 %v3523, 16
      %v3750 = vrot.slane %v3748, 4
      %v3751 = vshll.u32 %v3523, 16
      %v3753 = vrot.slane %v3751, 5
      %v3754 = vor.u32 %v3750, %v3753
      %v3755 = vrot.slane %v3754, 4
      %v3757 = vshll.u32 %v3524, 16
      %v3759 = vrot.slane %v3757, 5
      %v3760 = vsel %vm1000, %v3755, %v3759
      %v3761 = vshrl.u32 %v3524, 16
      %v3763 = vrot.slane %v3761, 4
      %v3764 = vor.u32 %v3763, %v3759
      %v3765 = vrot.slane %v3764, 4
      %v3767 = vshll.u32 %v3547, 16
      %v3769 = vrot.slane %v3767, 5
      %v3770 = vsel %vm1000, %v3765, %v3769
      %v3772 = vshrl.u32 %v3525, 16
      %v3774 = vrot.slane %v3772, 4
      %v3775 = vshll.u32 %v3525, 16
      %v3777 = vrot.slane %v3775, 5
      %v3778 = vor.u32 %v3774, %v3777
      %v3779 = vrot.slane %v3778, 4
      %v3781 = vshll.u32 %v3526, 16
      %v3783 = vrot.slane %v3781, 5
      %v3784 = vsel %vm1000, %v3779, %v3783
      %v3785 = vshrl.u32 %v3526, 16
      %v3787 = vrot.slane %v3785, 4
      %v3788 = vor.u32 %v3787, %v3783
      %v3789 = vrot.slane %v3788, 4
      %v3791 = vshll.u32 %v3548, 16
      %v3793 = vrot.slane %v3791, 5
      %v3794 = vsel %vm1000, %v3789, %v3793
      %v3796 = vshrl.u32 %v3527, 16
      %v3798 = vrot.slane %v3796, 4
      %v3799 = vshll.u32 %v3527, 16
      %v3801 = vrot.slane %v3799, 5
      %v3802 = vor.u32 %v3798, %v3801
      %v3803 = vrot.slane %v3802, 4
      %v3805 = vshll.u32 %v3528, 16
      %v3807 = vrot.slane %v3805, 5
      %v3808 = vsel %vm1000, %v3803, %v3807
      %v3809 = vshrl.u32 %v3528, 16
      %v3811 = vrot.slane %v3809, 4
      %v3812 = vor.u32 %v3811, %v3807
      %v3813 = vrot.slane %v3812, 4
      %v3815 = vshll.u32 %v3549, 16
      %v3817 = vrot.slane %v3815, 5
      %v3818 = vsel %vm1000, %v3813, %v3817
      %v3820 = vshrl.u32 %v3529, 16
      %v3822 = vrot.slane %v3820, 4
      %v3823 = vshll.u32 %v3529, 16
      %v3825 = vrot.slane %v3823, 5
      %v3826 = vor.u32 %v3822, %v3825
      %v3827 = vrot.slane %v3826, 4
      %v3829 = vshll.u32 %v3530, 16
      %v3831 = vrot.slane %v3829, 5
      %v3832 = vsel %vm1000, %v3827, %v3831
      %v3833 = vshrl.u32 %v3530, 16
      %v3835 = vrot.slane %v3833, 4
      %v3836 = vor.u32 %v3835, %v3831
      %v3837 = vrot.slane %v3836, 4
      %v3839 = vshll.u32 %v3550, 16
      %v3841 = vrot.slane %v3839, 5
      %v3842 = vsel %vm1000, %v3837, %v3841
      %v3844 = vshrl.u32 %v3531, 16
      %v3846 = vrot.slane %v3844, 4
      %v3847 = vshll.u32 %v3531, 16
      %v3849 = vrot.slane %v3847, 5
      %v3850 = vor.u32 %v3846, %v3849
      %v3851 = vrot.slane %v3850, 4
      %v3853 = vshll.u32 %v3532, 16
      %v3855 = vrot.slane %v3853, 5
      %v3856 = vsel %vm1000, %v3851, %v3855
      %v3857 = vshrl.u32 %v3532, 16
      %v3859 = vrot.slane %v3857, 4
      %v3860 = vor.u32 %v3859, %v3855
      %v3861 = vrot.slane %v3860, 4
      %v3863 = vshll.u32 %v3551, 16
      %v3865 = vrot.slane %v3863, 5
      %v3866 = vsel %vm1000, %v3861, %v3865
      %v3868 = vshrl.u32 %v3533, 16
      %v3870 = vrot.slane %v3868, 4
      %v3871 = vshll.u32 %v3533, 16
      %v3873 = vrot.slane %v3871, 5
      %v3874 = vor.u32 %v3870, %v3873
      %v3875 = vrot.slane %v3874, 4
      %v3877 = vshll.u32 %v3534, 16
      %v3879 = vrot.slane %v3877, 5
      %v3880 = vsel %vm1000, %v3875, %v3879
      %v3881 = vshrl.u32 %v3534, 16
      %v3883 = vrot.slane %v3881, 4
      %v3884 = vor.u32 %v3883, %v3879
      %v3885 = vrot.slane %v3884, 4
      %v3887 = vshll.u32 %v3552, 16
      %v3889 = vrot.slane %v3887, 5
      %v3890 = vsel %vm1000, %v3885, %v3889
      %v3892 = vshrl.u32 %v3535, 16
      %v3894 = vrot.slane %v3892, 4
      %v3895 = vshll.u32 %v3535, 16
      %v3897 = vrot.slane %v3895, 5
      %v3898 = vor.u32 %v3894, %v3897
      %v3899 = vrot.slane %v3898, 4
      %v3901 = vshll.u32 %v3536, 16
      %v3903 = vrot.slane %v3901, 5
      %v3904 = vsel %vm1000, %v3899, %v3903
      %v3905 = vshrl.u32 %v3536, 16
      %v3907 = vrot.slane %v3905, 4
      %v3908 = vor.u32 %v3907, %v3903
      %v3909 = vrot.slane %v3908, 4
      %v3911 = vshll.u32 %v3553, 16
      %v3913 = vrot.slane %v3911, 5
      %v3914 = vsel %vm1000, %v3909, %v3913
      %v3916 = vshrl.u32 %v3537, 16
      %v3918 = vrot.slane %v3916, 4
      %v3919 = vshll.u32 %v3537, 16
      %v3921 = vrot.slane %v3919, 5
      %v3922 = vor.u32 %v3918, %v3921
      %v3923 = vrot.slane %v3922, 4
      %v3925 = vshll.u32 %v3538, 16
      %v3927 = vrot.slane %v3925, 5
      %v3928 = vsel %vm1000, %v3923, %v3927
      %v3929 = vshrl.u32 %v3538, 16
      %v3931 = vrot.slane %v3929, 4
      %v3932 = vor.u32 %v3931, %v3927
      %v3933 = vrot.slane %v3932, 4
      %v3935 = vshll.u32 %v3554, 16
      %v3937 = vrot.slane %v3935, 5
      %v3938 = vsel %vm1000, %v3933, %v3937
      %v3939 = vld [vmem:[%s3506] sm:$0xe]
      %v3940 = vld [vmem:[%s3506 + $0xc] sm:$0xe]
      %v3941 = vld [vmem:[%s3506 + $0x18] sm:$0xe]
      %v3942 = vld [vmem:[%s3506 + $0x24] sm:$0xe]
      %v3943 = vld [vmem:[%s3506 + $0x30] sm:$0xe]
      %v3944 = vld [vmem:[%s3506 + $0x3c] sm:$0xe]
      %v3945 = vld [vmem:[%s3506 + $0x48] sm:$0xe]
      %v3946 = vld [vmem:[%s3506 + $0x54] sm:$0xe]
      %v3947 = vld [vmem:[%s3506 + $0x60] sm:$0xe]
      %v3948 = vld [vmem:[%s3506 + $0x6c] sm:$0xe]
      %v3949 = vld [vmem:[%s3506 + $0x78] sm:$0xe]
      %v3950 = vld [vmem:[%s3506 + $0x84] sm:$0xe]
      %v3951 = vld [vmem:[%s3506 + $0x90] sm:$0xe]
      %v3952 = vld [vmem:[%s3506 + $0x9c] sm:$0xe]
      %v3953 = vld [vmem:[%s3506 + $0xa8] sm:$0xe]
      %v3954 = vld [vmem:[%s3506 + $0xb4] sm:$0xe]
      %v4003 = vrot.slane %v3939, 5
      %v4004 = vrot.slane %v4003, 4
      %v4005 = vrot.slane %v3508, 5
      %v4006 = vsel %vm1451, %v4004, %v4005
      %v4007 = vrot.slane %v4005, 4
      %v4008 = vrot.slane %v3539, 5
      %v4009 = vsel %vm1451, %v4007, %v4008
      %v4010 = vrot.slane %v3940, 5
      %v4011 = vrot.slane %v4010, 4
      %v4012 = vrot.slane %v3510, 5
      %v4013 = vsel %vm1451, %v4011, %v4012
      %v4014 = vrot.slane %v4012, 4
      %v4015 = vrot.slane %v3540, 5
      %v4016 = vsel %vm1451, %v4014, %v4015
      %v4017 = vrot.slane %v3941, 5
      %v4018 = vrot.slane %v4017, 4
      %v4019 = vrot.slane %v3512, 5
      %v4020 = vsel %vm1451, %v4018, %v4019
      %v4021 = vrot.slane %v4019, 4
      %v4022 = vrot.slane %v3541, 5
      %v4023 = vsel %vm1451, %v4021, %v4022
      %v4024 = vrot.slane %v3942, 5
      %v4025 = vrot.slane %v4024, 4
      %v4026 = vrot.slane %v3514, 5
      %v4027 = vsel %vm1451, %v4025, %v4026
      %v4028 = vrot.slane %v4026, 4
      %v4029 = vrot.slane %v3542, 5
      %v4030 = vsel %vm1451, %v4028, %v4029
      %v4031 = vrot.slane %v3943, 5
      %v4032 = vrot.slane %v4031, 4
      %v4033 = vrot.slane %v3516, 5
      %v4034 = vsel %vm1451, %v4032, %v4033
      %v4035 = vrot.slane %v4033, 4
      %v4036 = vrot.slane %v3543, 5
      %v4037 = vsel %vm1451, %v4035, %v4036
      %v4038 = vrot.slane %v3944, 5
      %v4039 = vrot.slane %v4038, 4
      %v4040 = vrot.slane %v3518, 5
      %v4041 = vsel %vm1451, %v4039, %v4040
      %v4042 = vrot.slane %v4040, 4
      %v4043 = vrot.slane %v3544, 5
      %v4044 = vsel %vm1451, %v4042, %v4043
      %v4045 = vrot.slane %v3945, 5
      %v4046 = vrot.slane %v4045, 4
      %v4047 = vrot.slane %v3520, 5
      %v4048 = vsel %vm1451, %v4046, %v4047
      %v4049 = vrot.slane %v4047, 4
      %v4050 = vrot.slane %v3545, 5
      %v4051 = vsel %vm1451, %v4049, %v4050
      %v4052 = vrot.slane %v3946, 5
      %v4053 = vrot.slane %v4052, 4
      %v4054 = vrot.slane %v3522, 5
      %v4055 = vsel %vm1451, %v4053, %v4054
      %v4056 = vrot.slane %v4054, 4
      %v4057 = vrot.slane %v3546, 5
      %v4058 = vsel %vm1451, %v4056, %v4057
      %v4059 = vrot.slane %v3947, 5
      %v4060 = vrot.slane %v4059, 4
      %v4061 = vrot.slane %v3524, 5
      %v4062 = vsel %vm1451, %v4060, %v4061
      %v4063 = vrot.slane %v4061, 4
      %v4064 = vrot.slane %v3547, 5
      %v4065 = vsel %vm1451, %v4063, %v4064
      %v4066 = vrot.slane %v3948, 5
      %v4067 = vrot.slane %v4066, 4
      %v4068 = vrot.slane %v3526, 5
      %v4069 = vsel %vm1451, %v4067, %v4068
      %v4070 = vrot.slane %v4068, 4
      %v4071 = vrot.slane %v3548, 5
      %v4072 = vsel %vm1451, %v4070, %v4071
      %v4073 = vrot.slane %v3949, 5
      %v4074 = vrot.slane %v4073, 4
      %v4075 = vrot.slane %v3528, 5
      %v4076 = vsel %vm1451, %v4074, %v4075
      %v4077 = vrot.slane %v4075, 4
      %v4078 = vrot.slane %v3549, 5
      %v4079 = vsel %vm1451, %v4077, %v4078
      %v4080 = vrot.slane %v3950, 5
      %v4081 = vrot.slane %v4080, 4
      %v4082 = vrot.slane %v3530, 5
      %v4083 = vsel %vm1451, %v4081, %v4082
      %v4084 = vrot.slane %v4082, 4
      %v4085 = vrot.slane %v3550, 5
      %v4086 = vsel %vm1451, %v4084, %v4085
      %v4087 = vrot.slane %v3951, 5
      %v4088 = vrot.slane %v4087, 4
      %v4089 = vrot.slane %v3532, 5
      %v4090 = vsel %vm1451, %v4088, %v4089
      %v4091 = vrot.slane %v4089, 4
      %v4092 = vrot.slane %v3551, 5
      %v4093 = vsel %vm1451, %v4091, %v4092
      %v4094 = vrot.slane %v3952, 5
      %v4095 = vrot.slane %v4094, 4
      %v4096 = vrot.slane %v3534, 5
      %v4097 = vsel %vm1451, %v4095, %v4096
      %v4098 = vrot.slane %v4096, 4
      %v4099 = vrot.slane %v3552, 5
      %v4100 = vsel %vm1451, %v4098, %v4099
      %v4101 = vrot.slane %v3953, 5
      %v4102 = vrot.slane %v4101, 4
      %v4103 = vrot.slane %v3536, 5
      %v4104 = vsel %vm1451, %v4102, %v4103
      %v4105 = vrot.slane %v4103, 4
      %v4106 = vrot.slane %v3553, 5
      %v4107 = vsel %vm1451, %v4105, %v4106
      %v4108 = vrot.slane %v3954, 5
      %v4109 = vrot.slane %v4108, 4
      %v4110 = vrot.slane %v3538, 5
      %v4111 = vsel %vm1451, %v4109, %v4110
      %v4112 = vrot.slane %v4110, 4
      %v4113 = vrot.slane %v3554, 5
      %v4114 = vsel %vm1451, %v4112, %v4113
      %v4131 = vunpack.c.l.b16 %v3507
      %v4132 = vunpack.c.l.b16 %v3508
      %v4133 = vunpack.c.l.b16 %v3509
      %v4134 = vunpack.c.l.b16 %v3510
      %v4135 = vunpack.c.l.b16 %v3511
      %v4136 = vunpack.c.l.b16 %v3512
      %v4137 = vunpack.c.l.b16 %v3513
      %v4138 = vunpack.c.l.b16 %v3514
      %v4139 = vunpack.c.l.b16 %v3515
      %v4140 = vunpack.c.l.b16 %v3516
      %v4141 = vunpack.c.l.b16 %v3517
      %v4142 = vunpack.c.l.b16 %v3518
      %v4143 = vunpack.c.l.b16 %v3519
      %v4144 = vunpack.c.l.b16 %v3520
      %v4145 = vunpack.c.l.b16 %v3521
      %v4146 = vunpack.c.l.b16 %v3522
      %v4147 = vunpack.c.l.b16 %v3523
      %v4148 = vunpack.c.l.b16 %v3524
      %v4149 = vunpack.c.l.b16 %v3525
      %v4150 = vunpack.c.l.b16 %v3526
      %v4151 = vunpack.c.l.b16 %v3527
      %v4152 = vunpack.c.l.b16 %v3528
      %v4153 = vunpack.c.l.b16 %v3529
      %v4154 = vunpack.c.l.b16 %v3530
      %v4155 = vunpack.c.l.b16 %v3531
      %v4156 = vunpack.c.l.b16 %v3532
      %v4157 = vunpack.c.l.b16 %v3533
      %v4158 = vunpack.c.l.b16 %v3534
      %v4159 = vunpack.c.l.b16 %v3535
      %v4160 = vunpack.c.l.b16 %v3536
      %v4161 = vunpack.c.l.b16 %v3537
      %v4162 = vunpack.c.l.b16 %v3538
      %v4163 = vpack.c.b16 %v4132, %v4131
      %v4164 = vpack.c.b16 %v4134, %v4133
      %v4165 = vpack.c.b16 %v4136, %v4135
      %v4166 = vpack.c.b16 %v4138, %v4137
      %v4167 = vpack.c.b16 %v4140, %v4139
      %v4168 = vpack.c.b16 %v4142, %v4141
      %v4169 = vpack.c.b16 %v4144, %v4143
      %v4170 = vpack.c.b16 %v4146, %v4145
      %v4171 = vpack.c.b16 %v4148, %v4147
      %v4172 = vpack.c.b16 %v4150, %v4149
      %v4173 = vpack.c.b16 %v4152, %v4151
      %v4174 = vpack.c.b16 %v4154, %v4153
      %v4175 = vpack.c.b16 %v4156, %v4155
      %v4176 = vpack.c.b16 %v4158, %v4157
      %v4177 = vpack.c.b16 %v4160, %v4159
      %v4178 = vpack.c.b16 %v4162, %v4161
      %v4195 = vunpack.c.l.b16 %v3568
      %v4196 = vunpack.c.l.b16 %v3578
      %v4197 = vunpack.c.l.b16 %v3592
      %v4198 = vunpack.c.l.b16 %v3602
      %v4199 = vunpack.c.l.b16 %v3616
      %v4200 = vunpack.c.l.b16 %v3626
      %v4201 = vunpack.c.l.b16 %v3640
      %v4202 = vunpack.c.l.b16 %v3650
      %v4203 = vunpack.c.l.b16 %v3664
      %v4204 = vunpack.c.l.b16 %v3674
      %v4205 = vunpack.c.l.b16 %v3688
      %v4206 = vunpack.c.l.b16 %v3698
      %v4207 = vunpack.c.l.b16 %v3712
      %v4208 = vunpack.c.l.b16 %v3722
      %v4209 = vunpack.c.l.b16 %v3736
      %v4210 = vunpack.c.l.b16 %v3746
      %v4211 = vunpack.c.l.b16 %v3760
      %v4212 = vunpack.c.l.b16 %v3770
      %v4213 = vunpack.c.l.b16 %v3784
      %v4214 = vunpack.c.l.b16 %v3794
      %v4215 = vunpack.c.l.b16 %v3808
      %v4216 = vunpack.c.l.b16 %v3818
      %v4217 = vunpack.c.l.b16 %v3832
      %v4218 = vunpack.c.l.b16 %v3842
      %v4219 = vunpack.c.l.b16 %v3856
      %v4220 = vunpack.c.l.b16 %v3866
      %v4221 = vunpack.c.l.b16 %v3880
      %v4222 = vunpack.c.l.b16 %v3890
      %v4223 = vunpack.c.l.b16 %v3904
      %v4224 = vunpack.c.l.b16 %v3914
      %v4225 = vunpack.c.l.b16 %v3928
      %v4226 = vunpack.c.l.b16 %v3938
      %v4227 = vpack.c.b16 %v4196, %v4195
      %v4228 = vpack.c.b16 %v4198, %v4197
      %v4229 = vpack.c.b16 %v4200, %v4199
      %v4230 = vpack.c.b16 %v4202, %v4201
      %v4231 = vpack.c.b16 %v4204, %v4203
      %v4232 = vpack.c.b16 %v4206, %v4205
      %v4233 = vpack.c.b16 %v4208, %v4207
      %v4234 = vpack.c.b16 %v4210, %v4209
      %v4235 = vpack.c.b16 %v4212, %v4211
      %v4236 = vpack.c.b16 %v4214, %v4213
      %v4237 = vpack.c.b16 %v4216, %v4215
      %v4238 = vpack.c.b16 %v4218, %v4217
      %v4239 = vpack.c.b16 %v4220, %v4219
      %v4240 = vpack.c.b16 %v4222, %v4221
      %v4241 = vpack.c.b16 %v4224, %v4223
      %v4242 = vpack.c.b16 %v4226, %v4225
      %v4259 = vunpack.c.l.b16 %v4006
      %v4260 = vunpack.c.l.b16 %v4009
      %v4261 = vunpack.c.l.b16 %v4013
      %v4262 = vunpack.c.l.b16 %v4016
      %v4263 = vunpack.c.l.b16 %v4020
      %v4264 = vunpack.c.l.b16 %v4023
      %v4265 = vunpack.c.l.b16 %v4027
      %v4266 = vunpack.c.l.b16 %v4030
      %v4267 = vunpack.c.l.b16 %v4034
      %v4268 = vunpack.c.l.b16 %v4037
      %v4269 = vunpack.c.l.b16 %v4041
      %v4270 = vunpack.c.l.b16 %v4044
      %v4271 = vunpack.c.l.b16 %v4048
      %v4272 = vunpack.c.l.b16 %v4051
      %v4273 = vunpack.c.l.b16 %v4055
      %v4274 = vunpack.c.l.b16 %v4058
      %v4275 = vunpack.c.l.b16 %v4062
      %v4276 = vunpack.c.l.b16 %v4065
      %v4277 = vunpack.c.l.b16 %v4069
      %v4278 = vunpack.c.l.b16 %v4072
      %v4279 = vunpack.c.l.b16 %v4076
      %v4280 = vunpack.c.l.b16 %v4079
      %v4281 = vunpack.c.l.b16 %v4083
      %v4282 = vunpack.c.l.b16 %v4086
      %v4283 = vunpack.c.l.b16 %v4090
      %v4284 = vunpack.c.l.b16 %v4093
      %v4285 = vunpack.c.l.b16 %v4097
      %v4286 = vunpack.c.l.b16 %v4100
      %v4287 = vunpack.c.l.b16 %v4104
      %v4288 = vunpack.c.l.b16 %v4107
      %v4289 = vunpack.c.l.b16 %v4111
      %v4290 = vunpack.c.l.b16 %v4114
      %v4291 = vpack.c.b16 %v4260, %v4259
      %v4292 = vpack.c.b16 %v4262, %v4261
      %v4293 = vpack.c.b16 %v4264, %v4263
      %v4294 = vpack.c.b16 %v4266, %v4265
      %v4295 = vpack.c.b16 %v4268, %v4267
      %v4296 = vpack.c.b16 %v4270, %v4269
      %v4297 = vpack.c.b16 %v4272, %v4271
      %v4298 = vpack.c.b16 %v4274, %v4273
      %v4299 = vpack.c.b16 %v4276, %v4275
      %v4300 = vpack.c.b16 %v4278, %v4277
      %v4301 = vpack.c.b16 %v4280, %v4279
      %v4302 = vpack.c.b16 %v4282, %v4281
      %v4303 = vpack.c.b16 %v4284, %v4283
      %v4304 = vpack.c.b16 %v4286, %v4285
      %v4305 = vpack.c.b16 %v4288, %v4287
      %v4306 = vpack.c.b16 %v4290, %v4289
      %v4323 = vld [vmem:[%s3 + $0x180] sm:$0xf]
      %v4324 = vld [vmem:[%s3 + $0x184] sm:$0xf]
      %v4325 = vld [vmem:[%s3 + $0x188] sm:$0xf]
      %v4326 = vld [vmem:[%s3 + $0x18c] sm:$0xf]
      %v4327 = vld [vmem:[%s3 + $0x190] sm:$0xf]
      %v4328 = vld [vmem:[%s3 + $0x194] sm:$0xf]
      %v4329 = vld [vmem:[%s3 + $0x198] sm:$0xf]
      %v4330 = vld [vmem:[%s3 + $0x19c] sm:$0xf]
      %v4331 = vld [vmem:[%s3 + $0x1a0] sm:$0xf]
      %v4332 = vld [vmem:[%s3 + $0x1a4] sm:$0xf]
      %v4333 = vld [vmem:[%s3 + $0x1a8] sm:$0xf]
      %v4334 = vld [vmem:[%s3 + $0x1ac] sm:$0xf]
      %v4335 = vld [vmem:[%s3 + $0x1b0] sm:$0xf]
      %v4336 = vld [vmem:[%s3 + $0x1b4] sm:$0xf]
      %v4337 = vld [vmem:[%s3 + $0x1b8] sm:$0xf]
      %v4338 = vld [vmem:[%s3 + $0x1bc] sm:$0xf]
      %v4339 = vld [vmem:[%s3 + $0x1c0] sm:$0xf]
      %v4340 = vld [vmem:[%s3 + $0x1c4] sm:$0xf]
      %v4341 = vld [vmem:[%s3 + $0x1c8] sm:$0xf]
      %v4342 = vld [vmem:[%s3 + $0x1cc] sm:$0xf]
      %v4343 = vld [vmem:[%s3 + $0x1d0] sm:$0xf]
      %v4344 = vld [vmem:[%s3 + $0x1d4] sm:$0xf]
      %v4345 = vld [vmem:[%s3 + $0x1d8] sm:$0xf]
      %v4346 = vld [vmem:[%s3 + $0x1dc] sm:$0xf]
      %v4347 = vld [vmem:[%s3 + $0x1e0] sm:$0xf]
      %v4348 = vld [vmem:[%s3 + $0x1e4] sm:$0xf]
      %v4349 = vld [vmem:[%s3 + $0x1e8] sm:$0xf]
      %v4350 = vld [vmem:[%s3 + $0x1ec] sm:$0xf]
      %v4351 = vld [vmem:[%s3 + $0x1f0] sm:$0xf]
      %v4352 = vld [vmem:[%s3 + $0x1f4] sm:$0xf]
      %v4353 = vld [vmem:[%s3 + $0x1f8] sm:$0xf]
      %v4354 = vld [vmem:[%s3 + $0x1fc] sm:$0xf]
      %v4355 = vld [vmem:[%s3 + $0x200] sm:$0xf]
      %v4356 = vld [vmem:[%s3 + $0x204] sm:$0xf]
      %v4357 = vld [vmem:[%s3 + $0x208] sm:$0xf]
      %v4358 = vld [vmem:[%s3 + $0x20c] sm:$0xf]
      %v4359 = vld [vmem:[%s3 + $0x210] sm:$0xf]
      %v4360 = vld [vmem:[%s3 + $0x214] sm:$0xf]
      %v4361 = vld [vmem:[%s3 + $0x218] sm:$0xf]
      %v4362 = vld [vmem:[%s3 + $0x21c] sm:$0xf]
      %v4363 = vld [vmem:[%s3 + $0x220] sm:$0xf]
      %v4364 = vld [vmem:[%s3 + $0x224] sm:$0xf]
      %v4365 = vld [vmem:[%s3 + $0x228] sm:$0xf]
      %v4366 = vld [vmem:[%s3 + $0x22c] sm:$0xf]
      %v4367 = vld [vmem:[%s3 + $0x230] sm:$0xf]
      %v4368 = vld [vmem:[%s3 + $0x234] sm:$0xf]
      %v4369 = vld [vmem:[%s3 + $0x238] sm:$0xf]
      %v4370 = vld [vmem:[%s3 + $0x23c] sm:$0xf]
      %v4419 = vunpack.c.l.b16 %v4323
      %v4420 = vunpack.c.l.b16 %v4324
      %v4421 = vunpack.c.l.b16 %v4325
      %v4422 = vunpack.c.l.b16 %v4326
      %v4423 = vunpack.c.l.b16 %v4327
      %v4424 = vunpack.c.l.b16 %v4328
      %v4425 = vunpack.c.l.b16 %v4329
      %v4426 = vunpack.c.l.b16 %v4330
      %v4427 = vunpack.c.l.b16 %v4331
      %v4428 = vunpack.c.l.b16 %v4332
      %v4429 = vunpack.c.l.b16 %v4333
      %v4430 = vunpack.c.l.b16 %v4334
      %v4431 = vunpack.c.l.b16 %v4335
      %v4432 = vunpack.c.l.b16 %v4336
      %v4433 = vunpack.c.l.b16 %v4337
      %v4434 = vunpack.c.l.b16 %v4338
      %v4435 = vunpack.c.l.b16 %v4339
      %v4436 = vunpack.c.l.b16 %v4340
      %v4437 = vunpack.c.l.b16 %v4341
      %v4438 = vunpack.c.l.b16 %v4342
      %v4439 = vunpack.c.l.b16 %v4343
      %v4440 = vunpack.c.l.b16 %v4344
      %v4441 = vunpack.c.l.b16 %v4345
      %v4442 = vunpack.c.l.b16 %v4346
      %v4443 = vunpack.c.l.b16 %v4347
      %v4444 = vunpack.c.l.b16 %v4348
      %v4445 = vunpack.c.l.b16 %v4349
      %v4446 = vunpack.c.l.b16 %v4350
      %v4447 = vunpack.c.l.b16 %v4351
      %v4448 = vunpack.c.l.b16 %v4352
      %v4449 = vunpack.c.l.b16 %v4353
      %v4450 = vunpack.c.l.b16 %v4354
      %v4451 = vunpack.c.l.b16 %v4355
      %v4452 = vunpack.c.l.b16 %v4356
      %v4453 = vunpack.c.l.b16 %v4357
      %v4454 = vunpack.c.l.b16 %v4358
      %v4455 = vunpack.c.l.b16 %v4359
      %v4456 = vunpack.c.l.b16 %v4360
      %v4457 = vunpack.c.l.b16 %v4361
      %v4458 = vunpack.c.l.b16 %v4362
      %v4459 = vunpack.c.l.b16 %v4363
      %v4460 = vunpack.c.l.b16 %v4364
      %v4461 = vunpack.c.l.b16 %v4365
      %v4462 = vunpack.c.l.b16 %v4366
      %v4463 = vunpack.c.l.b16 %v4367
      %v4464 = vunpack.c.l.b16 %v4368
      %v4465 = vunpack.c.l.b16 %v4369
      %v4466 = vunpack.c.l.b16 %v4370
      %v4467 = vpack.c.b16 %v4420, %v4419
      %v4468 = vpack.c.b16 %v4422, %v4421
      %v4469 = vpack.c.b16 %v4424, %v4423
      %v4470 = vpack.c.b16 %v4426, %v4425
      %v4471 = vpack.c.b16 %v4428, %v4427
      %v4472 = vpack.c.b16 %v4430, %v4429
      %v4473 = vpack.c.b16 %v4432, %v4431
      %v4474 = vpack.c.b16 %v4434, %v4433
      %v4475 = vpack.c.b16 %v4436, %v4435
      %v4476 = vpack.c.b16 %v4438, %v4437
      %v4477 = vpack.c.b16 %v4440, %v4439
      %v4478 = vpack.c.b16 %v4442, %v4441
      %v4479 = vpack.c.b16 %v4444, %v4443
      %v4480 = vpack.c.b16 %v4446, %v4445
      %v4481 = vpack.c.b16 %v4448, %v4447
      %v4482 = vpack.c.b16 %v4450, %v4449
      %v4483 = vpack.c.b16 %v4452, %v4451
      %v4484 = vpack.c.b16 %v4454, %v4453
      %v4485 = vpack.c.b16 %v4456, %v4455
      %v4486 = vpack.c.b16 %v4458, %v4457
      %v4487 = vpack.c.b16 %v4460, %v4459
      %v4488 = vpack.c.b16 %v4462, %v4461
      %v4489 = vpack.c.b16 %v4464, %v4463
      %v4490 = vpack.c.b16 %v4466, %v4465
      %4515 = vmatpush.bf16.msra.mxu0 %v4474
      %4516 = vmatpush.bf16.msra.mxu0 %v4473
      %4517 = vmatpush.bf16.msra.mxu0 %v4472
      %4518 = vmatpush.bf16.msra.mxu0 %v4471
      %4519 = vmatpush.bf16.msra.mxu0 %v4470
      %4520 = vmatpush.bf16.msra.mxu0 %v4469
      %4521 = vmatpush.bf16.msra.mxu0 %v4468
      %4522 = vmatpush.bf16.msra.mxu0 %v4467
      %4523 = vmatmul.bf16.gmra.mxu0 %v4163
      %v4524 = vpop.f32.mrf.mxu0
      %v4525 = vadd.f32 0.0, %v4524
      %v4526 = vpop.f32.mrf.mxu0
      %v4527 = vadd.f32 0.0, %v4526
      %4528 = vmatmul.bf16.gmra.mxu0 %v4164
      %v4529 = vpop.f32.mrf.mxu0
      %v4530 = vadd.f32 0.0, %v4529
      %v4531 = vpop.f32.mrf.mxu0
      %v4532 = vadd.f32 0.0, %v4531
      %4533 = vmatmul.bf16.gmra.mxu0 %v4165
      %v4534 = vpop.f32.mrf.mxu0
      %v4535 = vadd.f32 0.0, %v4534
      %v4536 = vpop.f32.mrf.mxu0
      %v4537 = vadd.f32 0.0, %v4536
      %4538 = vmatmul.bf16.gmra.mxu0 %v4166
      %v4539 = vpop.f32.mrf.mxu0
      %v4540 = vadd.f32 0.0, %v4539
      %v4541 = vpop.f32.mrf.mxu0
      %v4542 = vadd.f32 0.0, %v4541
      %4543 = vmatmul.bf16.gmra.mxu0 %v4167
      %v4544 = vpop.f32.mrf.mxu0
      %v4545 = vadd.f32 0.0, %v4544
      %v4546 = vpop.f32.mrf.mxu0
      %v4547 = vadd.f32 0.0, %v4546
      %4548 = vmatmul.bf16.gmra.mxu0 %v4168
      %v4549 = vpop.f32.mrf.mxu0
      %v4550 = vadd.f32 0.0, %v4549
      %v4551 = vpop.f32.mrf.mxu0
      %v4552 = vadd.f32 0.0, %v4551
      %4553 = vmatmul.bf16.gmra.mxu0 %v4169
      %v4554 = vpop.f32.mrf.mxu0
      %v4555 = vadd.f32 0.0, %v4554
      %v4556 = vpop.f32.mrf.mxu0
      %v4557 = vadd.f32 0.0, %v4556
      %4558 = vmatmul.bf16.gmra.mxu0 %v4170
      %v4559 = vpop.f32.mrf.mxu0
      %v4560 = vadd.f32 0.0, %v4559
      %v4561 = vpop.f32.mrf.mxu0
      %v4562 = vadd.f32 0.0, %v4561
      %4563 = vmatmul.bf16.gmra.mxu0 %v4171
      %v4564 = vpop.f32.mrf.mxu0
      %v4565 = vadd.f32 0.0, %v4564
      %v4566 = vpop.f32.mrf.mxu0
      %v4567 = vadd.f32 0.0, %v4566
      %4568 = vmatmul.bf16.gmra.mxu0 %v4172
      %v4569 = vpop.f32.mrf.mxu0
      %v4570 = vadd.f32 0.0, %v4569
      %v4571 = vpop.f32.mrf.mxu0
      %v4572 = vadd.f32 0.0, %v4571
      %4573 = vmatmul.bf16.gmra.mxu0 %v4173
      %v4574 = vpop.f32.mrf.mxu0
      %v4575 = vadd.f32 0.0, %v4574
      %v4576 = vpop.f32.mrf.mxu0
      %v4577 = vadd.f32 0.0, %v4576
      %4578 = vmatmul.bf16.gmra.mxu0 %v4174
      %v4579 = vpop.f32.mrf.mxu0
      %v4580 = vadd.f32 0.0, %v4579
      %v4581 = vpop.f32.mrf.mxu0
      %v4582 = vadd.f32 0.0, %v4581
      %4583 = vmatmul.bf16.gmra.mxu0 %v4175
      %v4584 = vpop.f32.mrf.mxu0
      %v4585 = vadd.f32 0.0, %v4584
      %v4586 = vpop.f32.mrf.mxu0
      %v4587 = vadd.f32 0.0, %v4586
      %4588 = vmatmul.bf16.gmra.mxu0 %v4176
      %v4589 = vpop.f32.mrf.mxu0
      %v4590 = vadd.f32 0.0, %v4589
      %v4591 = vpop.f32.mrf.mxu0
      %v4592 = vadd.f32 0.0, %v4591
      %4593 = vmatmul.bf16.gmra.mxu0 %v4177
      %v4594 = vpop.f32.mrf.mxu0
      %v4595 = vadd.f32 0.0, %v4594
      %v4596 = vpop.f32.mrf.mxu0
      %v4597 = vadd.f32 0.0, %v4596
      %4598 = vmatmul.bf16.gmra.mxu0 %v4178
      %v4599 = vpop.f32.mrf.mxu0
      %v4600 = vadd.f32 0.0, %v4599
      %v4601 = vpop.f32.mrf.mxu0
      %v4602 = vadd.f32 0.0, %v4601
      %4603 = vdwg.mxu0
      %4604 = vmatpush.bf16.msra.mxu0 %v4482
      %4605 = vmatpush.bf16.msra.mxu0 %v4481
      %4606 = vmatpush.bf16.msra.mxu0 %v4480
      %4607 = vmatpush.bf16.msra.mxu0 %v4479
      %4608 = vmatpush.bf16.msra.mxu0 %v4478
      %4609 = vmatpush.bf16.msra.mxu0 %v4477
      %4610 = vmatpush.bf16.msra.mxu0 %v4476
      %4611 = vmatpush.bf16.msra.mxu0 %v4475
      %4612 = vmatmul.bf16.gmra.mxu0 %v4227
      %v4613 = vpop.f32.mrf.mxu0
      %v4614 = vadd.f32 %v4525, %v4613
      %v4615 = vpop.f32.mrf.mxu0
      %v4616 = vadd.f32 %v4527, %v4615
      %4617 = vmatmul.bf16.gmra.mxu0 %v4228
      %v4618 = vpop.f32.mrf.mxu0
      %v4619 = vadd.f32 %v4530, %v4618
      %v4620 = vpop.f32.mrf.mxu0
      %v4621 = vadd.f32 %v4532, %v4620
      %4622 = vmatmul.bf16.gmra.mxu0 %v4229
      %v4623 = vpop.f32.mrf.mxu0
      %v4624 = vadd.f32 %v4535, %v4623
      %v4625 = vpop.f32.mrf.mxu0
      %v4626 = vadd.f32 %v4537, %v4625
      %4627 = vmatmul.bf16.gmra.mxu0 %v4230
      %v4628 = vpop.f32.mrf.mxu0
      %v4629 = vadd.f32 %v4540, %v4628
      %v4630 = vpop.f32.mrf.mxu0
      %v4631 = vadd.f32 %v4542, %v4630
      %4632 = vmatmul.bf16.gmra.mxu0 %v4231
      %v4633 = vpop.f32.mrf.mxu0
      %v4634 = vadd.f32 %v4545, %v4633
      %v4635 = vpop.f32.mrf.mxu0
      %v4636 = vadd.f32 %v4547, %v4635
      %4637 = vmatmul.bf16.gmra.mxu0 %v4232
      %v4638 = vpop.f32.mrf.mxu0
      %v4639 = vadd.f32 %v4550, %v4638
      %v4640 = vpop.f32.mrf.mxu0
      %v4641 = vadd.f32 %v4552, %v4640
      %4642 = vmatmul.bf16.gmra.mxu0 %v4233
      %v4643 = vpop.f32.mrf.mxu0
      %v4644 = vadd.f32 %v4555, %v4643
      %v4645 = vpop.f32.mrf.mxu0
      %v4646 = vadd.f32 %v4557, %v4645
      %4647 = vmatmul.bf16.gmra.mxu0 %v4234
      %v4648 = vpop.f32.mrf.mxu0
      %v4649 = vadd.f32 %v4560, %v4648
      %v4650 = vpop.f32.mrf.mxu0
      %v4651 = vadd.f32 %v4562, %v4650
      %4652 = vmatmul.bf16.gmra.mxu0 %v4235
      %v4653 = vpop.f32.mrf.mxu0
      %v4654 = vadd.f32 %v4565, %v4653
      %v4655 = vpop.f32.mrf.mxu0
      %v4656 = vadd.f32 %v4567, %v4655
      %4657 = vmatmul.bf16.gmra.mxu0 %v4236
      %v4658 = vpop.f32.mrf.mxu0
      %v4659 = vadd.f32 %v4570, %v4658
      %v4660 = vpop.f32.mrf.mxu0
      %v4661 = vadd.f32 %v4572, %v4660
      %4662 = vmatmul.bf16.gmra.mxu0 %v4237
      %v4663 = vpop.f32.mrf.mxu0
      %v4664 = vadd.f32 %v4575, %v4663
      %v4665 = vpop.f32.mrf.mxu0
      %v4666 = vadd.f32 %v4577, %v4665
      %4667 = vmatmul.bf16.gmra.mxu0 %v4238
      %v4668 = vpop.f32.mrf.mxu0
      %v4669 = vadd.f32 %v4580, %v4668
      %v4670 = vpop.f32.mrf.mxu0
      %v4671 = vadd.f32 %v4582, %v4670
      %4672 = vmatmul.bf16.gmra.mxu0 %v4239
      %v4673 = vpop.f32.mrf.mxu0
      %v4674 = vadd.f32 %v4585, %v4673
      %v4675 = vpop.f32.mrf.mxu0
      %v4676 = vadd.f32 %v4587, %v4675
      %4677 = vmatmul.bf16.gmra.mxu0 %v4240
      %v4678 = vpop.f32.mrf.mxu0
      %v4679 = vadd.f32 %v4590, %v4678
      %v4680 = vpop.f32.mrf.mxu0
      %v4681 = vadd.f32 %v4592, %v4680
      %4682 = vmatmul.bf16.gmra.mxu0 %v4241
      %v4683 = vpop.f32.mrf.mxu0
      %v4684 = vadd.f32 %v4595, %v4683
      %v4685 = vpop.f32.mrf.mxu0
      %v4686 = vadd.f32 %v4597, %v4685
      %4687 = vmatmul.bf16.gmra.mxu0 %v4242
      %v4688 = vpop.f32.mrf.mxu0
      %v4689 = vadd.f32 %v4600, %v4688
      %v4690 = vpop.f32.mrf.mxu0
      %v4691 = vadd.f32 %v4602, %v4690
      %4692 = vdwg.mxu0
      %4693 = vmatpush.bf16.msra.mxu0 %v4490
      %4694 = vmatpush.bf16.msra.mxu0 %v4489
      %4695 = vmatpush.bf16.msra.mxu0 %v4488
      %4696 = vmatpush.bf16.msra.mxu0 %v4487
      %4697 = vmatpush.bf16.msra.mxu0 %v4486
      %4698 = vmatpush.bf16.msra.mxu0 %v4485
      %4699 = vmatpush.bf16.msra.mxu0 %v4484
      %4700 = vmatpush.bf16.msra.mxu0 %v4483
      %4701 = vmatmul.bf16.gmra.mxu0 %v4291
      %v4702 = vpop.f32.mrf.mxu0
      %v4703 = vadd.f32 %v4614, %v4702
      %v4704 = vpop.f32.mrf.mxu0
      %v4705 = vadd.f32 %v4616, %v4704
      %4706 = vmatmul.bf16.gmra.mxu0 %v4292
      %v4707 = vpop.f32.mrf.mxu0
      %v4708 = vadd.f32 %v4619, %v4707
      %v4709 = vpop.f32.mrf.mxu0
      %v4710 = vadd.f32 %v4621, %v4709
      %4711 = vmatmul.bf16.gmra.mxu0 %v4293
      %v4712 = vpop.f32.mrf.mxu0
      %v4713 = vadd.f32 %v4624, %v4712
      %v4714 = vpop.f32.mrf.mxu0
      %v4715 = vadd.f32 %v4626, %v4714
      %4716 = vmatmul.bf16.gmra.mxu0 %v4294
      %v4717 = vpop.f32.mrf.mxu0
      %v4718 = vadd.f32 %v4629, %v4717
      %v4719 = vpop.f32.mrf.mxu0
      %v4720 = vadd.f32 %v4631, %v4719
      %4721 = vmatmul.bf16.gmra.mxu0 %v4295
      %v4722 = vpop.f32.mrf.mxu0
      %v4723 = vadd.f32 %v4634, %v4722
      %v4724 = vpop.f32.mrf.mxu0
      %v4725 = vadd.f32 %v4636, %v4724
      %4726 = vmatmul.bf16.gmra.mxu0 %v4296
      %v4727 = vpop.f32.mrf.mxu0
      %v4728 = vadd.f32 %v4639, %v4727
      %v4729 = vpop.f32.mrf.mxu0
      %v4730 = vadd.f32 %v4641, %v4729
      %4731 = vmatmul.bf16.gmra.mxu0 %v4297
      %v4732 = vpop.f32.mrf.mxu0
      %v4733 = vadd.f32 %v4644, %v4732
      %v4734 = vpop.f32.mrf.mxu0
      %v4735 = vadd.f32 %v4646, %v4734
      %4736 = vmatmul.bf16.gmra.mxu0 %v4298
      %v4737 = vpop.f32.mrf.mxu0
      %v4738 = vadd.f32 %v4649, %v4737
      %v4739 = vpop.f32.mrf.mxu0
      %v4740 = vadd.f32 %v4651, %v4739
      %4741 = vmatmul.bf16.gmra.mxu0 %v4299
      %v4742 = vpop.f32.mrf.mxu0
      %v4743 = vadd.f32 %v4654, %v4742
      %v4744 = vpop.f32.mrf.mxu0
      %v4745 = vadd.f32 %v4656, %v4744
      %4746 = vmatmul.bf16.gmra.mxu0 %v4300
      %v4747 = vpop.f32.mrf.mxu0
      %v4748 = vadd.f32 %v4659, %v4747
      %v4749 = vpop.f32.mrf.mxu0
      %v4750 = vadd.f32 %v4661, %v4749
      %4751 = vmatmul.bf16.gmra.mxu0 %v4301
      %v4752 = vpop.f32.mrf.mxu0
      %v4753 = vadd.f32 %v4664, %v4752
      %v4754 = vpop.f32.mrf.mxu0
      %v4755 = vadd.f32 %v4666, %v4754
      %4756 = vmatmul.bf16.gmra.mxu0 %v4302
      %v4757 = vpop.f32.mrf.mxu0
      %v4758 = vadd.f32 %v4669, %v4757
      %v4759 = vpop.f32.mrf.mxu0
      %v4760 = vadd.f32 %v4671, %v4759
      %4761 = vmatmul.bf16.gmra.mxu0 %v4303
      %v4762 = vpop.f32.mrf.mxu0
      %v4763 = vadd.f32 %v4674, %v4762
      %v4764 = vpop.f32.mrf.mxu0
      %v4765 = vadd.f32 %v4676, %v4764
      %4766 = vmatmul.bf16.gmra.mxu0 %v4304
      %v4767 = vpop.f32.mrf.mxu0
      %v4768 = vadd.f32 %v4679, %v4767
      %v4769 = vpop.f32.mrf.mxu0
      %v4770 = vadd.f32 %v4681, %v4769
      %4771 = vmatmul.bf16.gmra.mxu0 %v4305
      %v4772 = vpop.f32.mrf.mxu0
      %v4773 = vadd.f32 %v4684, %v4772
      %v4774 = vpop.f32.mrf.mxu0
      %v4775 = vadd.f32 %v4686, %v4774
      %4776 = vmatmul.bf16.gmra.mxu0 %v4306
      %v4777 = vpop.f32.mrf.mxu0
      %v4778 = vadd.f32 %v4689, %v4777
      %v4779 = vpop.f32.mrf.mxu0
      %v4780 = vadd.f32 %v4691, %v4779
      %4781 = vdwg.mxu0
      %v4782 = vadd.f32 %v3427, %v4703
      %v4783 = vadd.f32 %v3429, %v4705
      %v4784 = vadd.f32 %v3432, %v4708
      %v4785 = vadd.f32 %v3434, %v4710
      %v4786 = vadd.f32 %v3437, %v4713
      %v4787 = vadd.f32 %v3439, %v4715
      %v4788 = vadd.f32 %v3442, %v4718
      %v4789 = vadd.f32 %v3444, %v4720
      %v4790 = vadd.f32 %v3447, %v4723
      %v4791 = vadd.f32 %v3449, %v4725
      %v4792 = vadd.f32 %v3452, %v4728
      %v4793 = vadd.f32 %v3454, %v4730
      %v4794 = vadd.f32 %v3457, %v4733
      %v4795 = vadd.f32 %v3459, %v4735
      %v4796 = vadd.f32 %v3462, %v4738
      %v4797 = vadd.f32 %v3464, %v4740
      %v4798 = vadd.f32 %v3467, %v4743
      %v4799 = vadd.f32 %v3469, %v4745
      %v4800 = vadd.f32 %v3472, %v4748
      %v4801 = vadd.f32 %v3474, %v4750
      %v4802 = vadd.f32 %v3477, %v4753
      %v4803 = vadd.f32 %v3479, %v4755
      %v4804 = vadd.f32 %v3482, %v4758
      %v4805 = vadd.f32 %v3484, %v4760
      %v4806 = vadd.f32 %v3487, %v4763
      %v4807 = vadd.f32 %v3489, %v4765
      %v4808 = vadd.f32 %v3492, %v4768
      %v4809 = vadd.f32 %v3494, %v4770
      %v4810 = vadd.f32 %v3497, %v4773
      %v4811 = vadd.f32 %v3499, %v4775
      %v4812 = vadd.f32 %v3502, %v4778
      %v4813 = vadd.f32 %v3504, %v4780
      %4814 = vst [vmem:[%s231] sm:$0xff] %v4782
      %4815 = vst [vmem:[%s231 + $0x8] sm:$0xff] %v4783
      %4816 = vst [vmem:[%s231 + $0x10] sm:$0xff] %v4784
      %4817 = vst [vmem:[%s231 + $0x18] sm:$0xff] %v4785
      %4818 = vst [vmem:[%s231 + $0x20] sm:$0xff] %v4786
      %4819 = vst [vmem:[%s231 + $0x28] sm:$0xff] %v4787
      %4820 = vst [vmem:[%s231 + $0x30] sm:$0xff] %v4788
      %4821 = vst [vmem:[%s231 + $0x38] sm:$0xff] %v4789
      %4822 = vst [vmem:[%s231 + $0x40] sm:$0xff] %v4790
      %4823 = vst [vmem:[%s231 + $0x48] sm:$0xff] %v4791
      %4824 = vst [vmem:[%s231 + $0x50] sm:$0xff] %v4792
      %4825 = vst [vmem:[%s231 + $0x58] sm:$0xff] %v4793
      %4826 = vst [vmem:[%s231 + $0x60] sm:$0xff] %v4794
      %4827 = vst [vmem:[%s231 + $0x68] sm:$0xff] %v4795
      %4828 = vst [vmem:[%s231 + $0x70] sm:$0xff] %v4796
      %4829 = vst [vmem:[%s231 + $0x78] sm:$0xff] %v4797
      %4830 = vst [vmem:[%s231 + $0x80] sm:$0xff] %v4798
      %4831 = vst [vmem:[%s231 + $0x88] sm:$0xff] %v4799
      %4832 = vst [vmem:[%s231 + $0x90] sm:$0xff] %v4800
      %4833 = vst [vmem:[%s231 + $0x98] sm:$0xff] %v4801
      %4834 = vst [vmem:[%s231 + $0xa0] sm:$0xff] %v4802
      %4835 = vst [vmem:[%s231 + $0xa8] sm:$0xff] %v4803
      %4836 = vst [vmem:[%s231 + $0xb0] sm:$0xff] %v4804
      %4837 = vst [vmem:[%s231 + $0xb8] sm:$0xff] %v4805
      %4838 = vst [vmem:[%s231 + $0xc0] sm:$0xff] %v4806
      %4839 = vst [vmem:[%s231 + $0xc8] sm:$0xff] %v4807
      %4840 = vst [vmem:[%s231 + $0xd0] sm:$0xff] %v4808
      %4841 = vst [vmem:[%s231 + $0xd8] sm:$0xff] %v4809
      %4842 = vst [vmem:[%s231 + $0xe0] sm:$0xff] %v4810
      %4843 = vst [vmem:[%s231 + $0xe8] sm:$0xff] %v4811
      %4844 = vst [vmem:[%s231 + $0xf0] sm:$0xff] %v4812
      %4845 = vst [vmem:[%s231 + $0xf8] sm:$0xff] %v4813
      %v4846 = vadd.f32 %v4782, %v4783
      %v4847 = vadd.f32 %v4846, %v4784
      %v4848 = vadd.f32 %v4847, %v4785
      %v4849 = vadd.f32 %v4848, %v4786
      %v4850 = vadd.f32 %v4849, %v4787
      %v4851 = vadd.f32 %v4850, %v4788
      %v4852 = vadd.f32 %v4851, %v4789
      %v4853 = vadd.f32 %v4852, %v4790
      %v4854 = vadd.f32 %v4853, %v4791
      %v4855 = vadd.f32 %v4854, %v4792
      %v4856 = vadd.f32 %v4855, %v4793
      %v4857 = vadd.f32 %v4856, %v4794
      %v4858 = vadd.f32 %v4857, %v4795
      %v4859 = vadd.f32 %v4858, %v4796
      %v4860 = vadd.f32 %v4859, %v4797
      %v4861 = vadd.f32 %v4860, %v4798
      %v4862 = vadd.f32 %v4861, %v4799
      %v4863 = vadd.f32 %v4862, %v4800
      %v4864 = vadd.f32 %v4863, %v4801
      %v4865 = vadd.f32 %v4864, %v4802
      %v4866 = vadd.f32 %v4865, %v4803
      %v4867 = vadd.f32 %v4866, %v4804
      %v4868 = vadd.f32 %v4867, %v4805
      %v4869 = vadd.f32 %v4868, %v4806
      %v4870 = vadd.f32 %v4869, %v4807
      %v4871 = vadd.f32 %v4870, %v4808
      %v4872 = vadd.f32 %v4871, %v4809
      %v4873 = vadd.f32 %v4872, %v4810
      %v4874 = vadd.f32 %v4873, %v4811
      %v4875 = vadd.f32 %v4874, %v4812
      %v4876 = vadd.f32 %v4875, %v4813
      %v4877 = vrot.slane %v4876, 4
      %v4878 = vadd.f32 %v4876, %v4877
      %v4879 = vrot.slane %v4878, 2
      %v4880 = vadd.f32 %v4878, %v4879
      %v4881 = vrot.slane %v4880, 1
      %v4882 = vadd.f32 %v4880, %v4881
      %v4883 = vmul.f32 %v4882, 0.00390625
      %v4884 = vsub.f32 %v4782, %v4883
      %v4885 = vsub.f32 %v4783, %v4883
      %v4886 = vsub.f32 %v4784, %v4883
      %v4887 = vsub.f32 %v4785, %v4883
      %v4888 = vsub.f32 %v4786, %v4883
      %v4889 = vsub.f32 %v4787, %v4883
      %v4890 = vsub.f32 %v4788, %v4883
      %v4891 = vsub.f32 %v4789, %v4883
      %v4892 = vsub.f32 %v4790, %v4883
      %v4893 = vsub.f32 %v4791, %v4883
      %v4894 = vsub.f32 %v4792, %v4883
      %v4895 = vsub.f32 %v4793, %v4883
      %v4896 = vsub.f32 %v4794, %v4883
      %v4897 = vsub.f32 %v4795, %v4883
      %v4898 = vsub.f32 %v4796, %v4883
      %v4899 = vsub.f32 %v4797, %v4883
      %v4900 = vsub.f32 %v4798, %v4883
      %v4901 = vsub.f32 %v4799, %v4883
      %v4902 = vsub.f32 %v4800, %v4883
      %v4903 = vsub.f32 %v4801, %v4883
      %v4904 = vsub.f32 %v4802, %v4883
      %v4905 = vsub.f32 %v4803, %v4883
      %v4906 = vsub.f32 %v4804, %v4883
      %v4907 = vsub.f32 %v4805, %v4883
      %v4908 = vsub.f32 %v4806, %v4883
      %v4909 = vsub.f32 %v4807, %v4883
      %v4910 = vsub.f32 %v4808, %v4883
      %v4911 = vsub.f32 %v4809, %v4883
      %v4912 = vsub.f32 %v4810, %v4883
      %v4913 = vsub.f32 %v4811, %v4883
      %v4914 = vsub.f32 %v4812, %v4883
      %v4915 = vsub.f32 %v4813, %v4883
      %v4916 = vmul.f32 %v4884, %v4884
      %v4917 = vmul.f32 %v4885, %v4885
      %v4918 = vmul.f32 %v4886, %v4886
      %v4919 = vmul.f32 %v4887, %v4887
      %v4920 = vmul.f32 %v4888, %v4888
      %v4921 = vmul.f32 %v4889, %v4889
      %v4922 = vmul.f32 %v4890, %v4890
      %v4923 = vmul.f32 %v4891, %v4891
      %v4924 = vmul.f32 %v4892, %v4892
      %v4925 = vmul.f32 %v4893, %v4893
      %v4926 = vmul.f32 %v4894, %v4894
      %v4927 = vmul.f32 %v4895, %v4895
      %v4928 = vmul.f32 %v4896, %v4896
      %v4929 = vmul.f32 %v4897, %v4897
      %v4930 = vmul.f32 %v4898, %v4898
      %v4931 = vmul.f32 %v4899, %v4899
      %v4932 = vmul.f32 %v4900, %v4900
      %v4933 = vmul.f32 %v4901, %v4901
      %v4934 = vmul.f32 %v4902, %v4902
      %v4935 = vmul.f32 %v4903, %v4903
      %v4936 = vmul.f32 %v4904, %v4904
      %v4937 = vmul.f32 %v4905, %v4905
      %v4938 = vmul.f32 %v4906, %v4906
      %v4939 = vmul.f32 %v4907, %v4907
      %v4940 = vmul.f32 %v4908, %v4908
      %v4941 = vmul.f32 %v4909, %v4909
      %v4942 = vmul.f32 %v4910, %v4910
      %v4943 = vmul.f32 %v4911, %v4911
      %v4944 = vmul.f32 %v4912, %v4912
      %v4945 = vmul.f32 %v4913, %v4913
      %v4946 = vmul.f32 %v4914, %v4914
      %v4947 = vmul.f32 %v4915, %v4915
      %v4948 = vadd.f32 %v4916, %v4917
      %v4949 = vadd.f32 %v4948, %v4918
      %v4950 = vadd.f32 %v4949, %v4919
      %v4951 = vadd.f32 %v4950, %v4920
      %v4952 = vadd.f32 %v4951, %v4921
      %v4953 = vadd.f32 %v4952, %v4922
      %v4954 = vadd.f32 %v4953, %v4923
      %v4955 = vadd.f32 %v4954, %v4924
      %v4956 = vadd.f32 %v4955, %v4925
      %v4957 = vadd.f32 %v4956, %v4926
      %v4958 = vadd.f32 %v4957, %v4927
      %v4959 = vadd.f32 %v4958, %v4928
      %v4960 = vadd.f32 %v4959, %v4929
      %v4961 = vadd.f32 %v4960, %v4930
      %v4962 = vadd.f32 %v4961, %v4931
      %v4963 = vadd.f32 %v4962, %v4932
      %v4964 = vadd.f32 %v4963, %v4933
      %v4965 = vadd.f32 %v4964, %v4934
      %v4966 = vadd.f32 %v4965, %v4935
      %v4967 = vadd.f32 %v4966, %v4936
      %v4968 = vadd.f32 %v4967, %v4937
      %v4969 = vadd.f32 %v4968, %v4938
      %v4970 = vadd.f32 %v4969, %v4939
      %v4971 = vadd.f32 %v4970, %v4940
      %v4972 = vadd.f32 %v4971, %v4941
      %v4973 = vadd.f32 %v4972, %v4942
      %v4974 = vadd.f32 %v4973, %v4943
      %v4975 = vadd.f32 %v4974, %v4944
      %v4976 = vadd.f32 %v4975, %v4945
      %v4977 = vadd.f32 %v4976, %v4946
      %v4978 = vadd.f32 %v4977, %v4947
      %v4979 = vrot.slane %v4978, 4
      %v4980 = vadd.f32 %v4978, %v4979
      %v4981 = vrot.slane %v4980, 2
      %v4982 = vadd.f32 %v4980, %v4981
      %v4983 = vrot.slane %v4982, 1
      %v4984 = vadd.f32 %v4982, %v4983
      %4985 = vst [vmem:[%s235] sm:$0x1] %v4883
      %4986 = vst [vmem:[%s235 + $0x1] sm:$0x1] %v4984
      %p4987 = scmp.lt.s32.totalorder %s17, 1
      %s4988 = scalar_select %p4987, %s17, 1
      %s4989 = smul.addr %s4988, 32
      %s4990 = smul.addr %s4989, 8
      %s4991 = scalar_lea.vmem %s4, %s4990
      %p4992 = scmp.lt.s32.totalorder %s17, 1
      %s4993 = scalar_select %p4992, %s17, 1
      %s4994 = smul.addr %s4993, 2
      %s4995 = scalar_lea.vmem %s5, %s4994
      // Predicated region
      $region37: #{double_conv.4} parent=35 // pred_check
        %p4996 = pneg %p124
      $region38: #{double_conv.4} parent=35 // pred_check_branch
        %4998 = sbr.rel (%p4996) target = $region40
      $region39: #{double_conv.4} parent=35 // pred_region
        _
      $region40: #{double_conv.4} parent=35 // pred_fallthru
        _
      // Predicated region
      $region41: #{double_conv.4} parent=35 // pred_check
        %p4999 = pneg %p150
      $region42: #{double_conv.4} parent=35 // pred_check_branch
        %5001 = sbr.rel (%p4999) target = $region44
      $region43: #{double_conv.4} parent=35 // pred_region
        _
      $region44: #{double_conv.4} parent=35 // pred_fallthru
        _
    $region36: #{double_conv.4} parent=5 // pred_fallthru
      _
    %p5002 = scmp.le.s32.totalorder 2, %s12
    // Predicated region
    $region45: #{double_conv.4} parent=5 // pred_check
      %p5003 = pneg %p5002
    $region46: #{double_conv.4} parent=5 // pred_check_branch
      %5005 = sbr.rel (%p5003) target = $region48
    $region47: #{double_conv.4} parent=5 // pred_region
      %s5006 = ssub.s32 %s12, 2
      // Predicated region
      $region49: #{double_conv.4} parent=47 // pred_check
        %p5007 = pneg %p130
      $region50: #{double_conv.4} parent=47 // pred_check_branch
        %5009 = sbr.rel (%p5007) target = $region52
      $region51: #{double_conv.4} parent=47 // pred_region
        %p5010 = scmp.lt.s32.totalorder %s18, 1
        %s5011 = scalar_select %p5010, %s18, 1
        %s5012 = smul.addr %s5011, 32
        %s5013 = smul.addr %s5012, 8
        %s5014 = scalar_lea.vmem %s4, %s5013
      $region52: #{double_conv.4} parent=47 // pred_fallthru
        _
      // Predicated region
      $region53: #{double_conv.4} parent=47 // pred_check
        %p5015 = pneg %p156
      $region54: #{double_conv.4} parent=47 // pred_check_branch
        %5017 = sbr.rel (%p5015) target = $region56
      $region55: #{double_conv.4} parent=47 // pred_region
        %p5018 = scmp.lt.s32.totalorder %s18, 1
        %s5019 = scalar_select %p5018, %s18, 1
        %s5020 = smul.addr %s5019, 2
        %s5021 = scalar_lea.vmem %s5, %s5020
      $region56: #{double_conv.4} parent=47 // pred_fallthru
        _
    $region48: #{double_conv.4} parent=5 // pred_fallthru
      _
  $region6: #{double_conv.4} parent=0 // loop_footer
    %s16 = sadd.s32 1, %s12
  $region7: #{double_conv.4} parent=0 // loop_footer_branch
    %11 = sbr.rel target = $region3
  $region8: #{double_conv.4} parent=0 // loop_exit
    _

</llo_original>
